<compile_context>
chip_gen: v7x
topology: tpu7x:2x2x1
jax: 0.10.0
libtpu: 0.0.40
codegen_flags: <defaults>
</compile_context>

<pallas_src>
import functools

import jax
import jax.numpy as jnp
from jax.experimental import pallas as pl
from jax.experimental.pallas import tpu as pltpu


# ----------------------------------------------------------------------------
# Pallas kernels
# ----------------------------------------------------------------------------
def _gemm_bias_act_kernel(x_ref, w_ref, b_ref, o_ref, *, act):
    # bf16 operands on the MXU, f32 accumulation, f32 epilogue (v5e-safe).
    y = jnp.dot(x_ref[...], w_ref[...], preferred_element_type=jnp.float32)
    y = y + b_ref[...]
    if act == "leaky":
        y = jnp.where(y > 0, y, 0.2 * y)
    elif act == "relu":
        y = jnp.maximum(y, 0.0)
    elif act == "sigmoid":
        y = jax.nn.sigmoid(y)
    o_ref[...] = y.astype(o_ref.dtype)


def gemm_bias_act(x, w, bias, act="none", out_dtype=jnp.bfloat16):
    """out = act(x @ w + bias).  x:(M,K), w:(K,C), bias:(C,)."""
    M, K = x.shape
    C = w.shape[1]
    # At most two row blocks: enough for v7x's two TensorCores, minimal
    # grid-step overhead on v5e/v6e.  Pad M so blocks stay sublane-aligned.
    if M >= 1024:
        tm = ((pl.cdiv(M, 2) + 7) // 8) * 8
        Mp = 2 * tm
    else:
        tm, Mp = M, M
    if Mp != M:
        x = jnp.pad(x, ((0, Mp - M), (0, 0)))
    out = pl.pallas_call(
        functools.partial(_gemm_bias_act_kernel, act=act),
        out_shape=jax.ShapeDtypeStruct((Mp, C), out_dtype),
        grid=(Mp // tm,),
        in_specs=[
            pl.BlockSpec((tm, K), lambda i: (i, 0)),
            pl.BlockSpec((K, C), lambda i: (0, 0)),
            pl.BlockSpec((1, C), lambda i: (0, 0)),
        ],
        out_specs=pl.BlockSpec((tm, C), lambda i: (i, 0)),
        compiler_params=pltpu.CompilerParams(dimension_semantics=("parallel",)),
    )(x.astype(jnp.bfloat16), w.astype(jnp.bfloat16),
      bias.reshape(1, C).astype(jnp.float32))
    return out[:M] if Mp != M else out


def _encoder_tail_kernel(h_ref, w5_ref, lw_ref, lb_ref, o_ref):
    # conv5 (1x1 spatial output) as a GEMM + LeakyReLU, chained with the
    # mu/logvar Linear: one kernel instead of two M=2 pallas_calls.
    t = jnp.dot(h_ref[...], w5_ref[...], preferred_element_type=jnp.float32)
    t = jnp.where(t > 0, t, 0.2 * t)
    y = jnp.dot(t.astype(jnp.bfloat16), lw_ref[...],
                preferred_element_type=jnp.float32) + lb_ref[...]
    o_ref[...] = y


def encoder_tail(h, w5, lw, lb):
    # h: (N, 4, 4, C) NHWC.  w5: torch (Cout, Cin, 4, 4).  lw: torch (out, in).
    N = h.shape[0]
    c5 = w5.shape[0]
    out_c = lw.shape[0]
    hflat = h.reshape(N, -1)                                   # (h, w, c) order
    w5m = w5.transpose(2, 3, 1, 0).reshape(-1, c5)             # rows: (h, w, ci)
    return pl.pallas_call(
        _encoder_tail_kernel,
        out_shape=jax.ShapeDtypeStruct((N, out_c), jnp.float32),
    )(hflat.astype(jnp.bfloat16), w5m.astype(jnp.bfloat16),
      lw.T.astype(jnp.bfloat16), lb.reshape(1, out_c).astype(jnp.float32))


def _decoder_head_kernel(z_ref, lw_ref, lb_ref, w1_ref, b1_ref, o_ref):
    # Linear(nz->nfd) chained with ConvTranspose2d(nfd->8nfd, 4, 1, 0) on a
    # 1x1 input (a pure matmul) + folded BatchNorm + ReLU, in one kernel.
    t = jnp.dot(z_ref[...], lw_ref[...], preferred_element_type=jnp.float32)
    t = t + lb_ref[...]
    y = jnp.dot(t.astype(jnp.bfloat16), w1_ref[...],
                preferred_element_type=jnp.float32) + b1_ref[...]
    o_ref[...] = jnp.maximum(y, 0.0).astype(o_ref.dtype)


def decoder_head(z, lw, lb, w1, scale1, shift1):
    # z: (N, nz).  lw: torch (nfd, nz).  w1: torch (nfd, 8nfd, 4, 4).
    N = z.shape[0]
    nfd, c1 = w1.shape[0], w1.shape[1]
    w1m = (w1 * scale1[None, :, None, None]).transpose(0, 2, 3, 1)  # (ci,kh,kw,co)
    w1m = w1m.reshape(nfd, 16 * c1)
    b1 = jnp.tile(shift1, 16)                                       # (kh*kw, co)
    out = pl.pallas_call(
        _decoder_head_kernel,
        out_shape=jax.ShapeDtypeStruct((N, 16 * c1), jnp.bfloat16),
    )(z.astype(jnp.float32), lw.T.astype(jnp.float32),
      lb.reshape(1, -1).astype(jnp.float32),
      w1m.astype(jnp.bfloat16), b1.reshape(1, -1).astype(jnp.float32))
    return out.reshape(N, 4, 4, c1)                                 # NHWC


# ----------------------------------------------------------------------------
# Plain-JAX glue (NHWC im2col / sub-pixel deconv / BN folding)
# ----------------------------------------------------------------------------
def conv_block(x, w, scale, shift, act, stride, pad, out_dtype=jnp.bfloat16):
    # x: NHWC.  w: torch (Cout, Cin, kh, kw).  BN scale folded into the weight.
    N, H, W, Cin = x.shape
    Cout, _, kh, kw = w.shape
    xp = jnp.pad(x, ((0, 0), (pad, pad), (pad, pad), (0, 0)))
    Hp, Wp = H + 2 * pad, W + 2 * pad
    Ho = (Hp - kh) // stride + 1
    Wo = (Wp - kw) // stride + 1
    cols = [xp[:, i:i + (Ho - 1) * stride + 1:stride,
               j:j + (Wo - 1) * stride + 1:stride, :]
            for i in range(kh) for j in range(kw)]
    patches = jnp.stack(cols, axis=3).reshape(N * Ho * Wo, kh * kw * Cin)
    wmat = w.transpose(2, 3, 1, 0).reshape(kh * kw * Cin, Cout) * scale[None, :]
    y = gemm_bias_act(patches, wmat, shift, act, out_dtype)
    return y.reshape(N, Ho, Wo, Cout)


def _deconv_s2_weight(wt, scale):
    # ConvTranspose2d(k=4, s=2, p=1) == stride-1 3x3 conv (structured-sparse
    # taps) whose 4 output-phase results are pixel-shuffled.
    # wt: torch (Cin, Cout, 4, 4).  Returns (9*Cin, 4*Cout), rows (r, c, ci),
    # cols (ph_h, ph_w, co), BN scale folded in.
    Cin, Cout = wt.shape[0], wt.shape[1]
    w9 = jnp.zeros((Cin, 3, 3, 2, 2, Cout), jnp.float32)
    taps = {(0, 0): 3, (0, 1): 1, (1, 1): 2, (1, 2): 0}   # (phase, window) -> k
    for (ph_h, r), ki in taps.items():
        for (ph_w, c), kj in taps.items():
            w9 = w9.at[:, r, c, ph_h, ph_w, :].set(wt[:, :, ki, kj])
    w9 = w9 * scale[None, None, None, None, None, :]
    return w9.transpose(1, 2, 0, 3, 4, 5).reshape(9 * Cin, 4 * Cout)


def deconv_s2_block(x, wt, scale, shift, act, out_dtype=jnp.bfloat16):
    # x: NHWC (N, H, W, Cin) -> (N, 2H, 2W, Cout).  One GEMM, no zero-FLOPs.
    N, H, W, Cin = x.shape
    Cout = wt.shape[1]
    wmat = _deconv_s2_weight(wt, scale)
    xp = jnp.pad(x, ((0, 0), (1, 1), (1, 1), (0, 0)))
    cols = [xp[:, r:r + H, c:c + W, :] for r in range(3) for c in range(3)]
    patches = jnp.stack(cols, axis=3).reshape(N * H * W, 9 * Cin)
    y = gemm_bias_act(patches, wmat, jnp.tile(shift, 4), act, out_dtype)
    y = y.reshape(N, H, W, 2, 2, Cout).transpose(0, 1, 3, 2, 4, 5)
    return y.reshape(N, 2 * H, 2 * W, Cout)


def bn_affine(gamma, beta, eps=1e-5):
    # eval-mode BatchNorm with fresh running stats (mean=0, var=1)
    scale = gamma / jnp.sqrt(jnp.ones_like(gamma) + eps)
    shift = beta - jnp.zeros_like(gamma) * scale
    return scale, shift


# ----------------------------------------------------------------------------
# Parameters (deterministic init) and full forward
# ----------------------------------------------------------------------------
def init_params(key, nc, nfe, nfd, nz):
    keys = iter(jax.random.split(key, 40))

    def nrm(shape, s=0.05):
        return (s * jax.random.normal(next(keys), shape)).astype(jnp.float32)

    p = {}
    # encoder
    p["e_w1"] = nrm((nfe, nc, 4, 4))
    p["e_w2"] = nrm((nfe * 2, nfe, 4, 4))
    p["e_g2"] = 1.0 + nrm((nfe * 2,), 0.01); p["e_b2"] = nrm((nfe * 2,), 0.01)
    p["e_w3"] = nrm((nfe * 4, nfe * 2, 4, 4))
    p["e_g3"] = 1.0 + nrm((nfe * 4,), 0.01); p["e_b3"] = nrm((nfe * 4,), 0.01)
    p["e_w4"] = nrm((nfe * 8, nfe * 4, 4, 4))
    p["e_g4"] = 1.0 + nrm((nfe * 8,), 0.01); p["e_b4"] = nrm((nfe * 8,), 0.01)
    p["e_w5"] = nrm((nz * 4, nfe * 8, 4, 4))
    p["e_lw"] = nrm((nz * 2, nz * 4)); p["e_lb"] = nrm((nz * 2,), 0.01)
    # decoder
    p["d_lw"] = nrm((nfd, nz)); p["d_lb"] = nrm((nfd,), 0.01)
    p["d_w1"] = nrm((nfd, nfd * 8, 4, 4))
    p["d_g1"] = 1.0 + nrm((nfd * 8,), 0.01); p["d_b1"] = nrm((nfd * 8,), 0.01)
    p["d_w2"] = nrm((nfd * 8, nfd * 4, 4, 4))
    p["d_g2"] = 1.0 + nrm((nfd * 4,), 0.01); p["d_b2"] = nrm((nfd * 4,), 0.01)
    p["d_w3"] = nrm((nfd * 4, nfd * 2, 4, 4))
    p["d_g3"] = 1.0 + nrm((nfd * 2,), 0.01); p["d_b3"] = nrm((nfd * 2,), 0.01)
    p["d_w4"] = nrm((nfd * 2, nfd, 4, 4))
    p["d_g4"] = 1.0 + nrm((nfd,), 0.01); p["d_b4"] = nrm((nfd,), 0.01)
    p["d_w5"] = nrm((nfd, nc, 4, 4))
    return p


def vae_forward(x, p, nz):
    ones = lambda c: jnp.ones((c,), jnp.float32)
    zeros = lambda c: jnp.zeros((c,), jnp.float32)

    h = jnp.transpose(x, (0, 2, 3, 1))          # NCHW -> NHWC once at entry
    # ---------------- encoder ----------------
    c1 = p["e_w1"].shape[0]
    h = conv_block(h, p["e_w1"], ones(c1), zeros(c1), "leaky", 2, 1)
    s, b = bn_affine(p["e_g2"], p["e_b2"])
    h = conv_block(h, p["e_w2"], s, b, "leaky", 2, 1)
    s, b = bn_affine(p["e_g3"], p["e_b3"])
    h = conv_block(h, p["e_w3"], s, b, "leaky", 2, 1)
    s, b = bn_affine(p["e_g4"], p["e_b4"])
    h = conv_block(h, p["e_w4"], s, b, "leaky", 2, 1)
    mu_logvar = encoder_tail(h, p["e_w5"], p["e_lw"], p["e_lb"])   # (N, 2nz)
    mu, logvar = mu_logvar[:, :nz], mu_logvar[:, nz:]

    z = mu  # reparameterize() in eval mode returns mu

    # ---------------- decoder ----------------
    s, b = bn_affine(p["d_g1"], p["d_b1"])
    d = decoder_head(z, p["d_lw"], p["d_lb"], p["d_w1"], s, b)     # (N,4,4,8nfd)
    s, b = bn_affine(p["d_g2"], p["d_b2"])
    d = deconv_s2_block(d, p["d_w2"], s, b, "relu")
    s, b = bn_affine(p["d_g3"], p["d_b3"])
    d = deconv_s2_block(d, p["d_w3"], s, b, "relu")
    s, b = bn_affine(p["d_g4"], p["d_b4"])
    d = deconv_s2_block(d, p["d_w4"], s, b, "relu")
    nc = p["d_w5"].shape[1]
    d = deconv_s2_block(d, p["d_w5"], ones(nc), zeros(nc), "sigmoid",
                        out_dtype=jnp.float32)
    return jnp.transpose(d, (0, 3, 1, 2)), mu, logvar              # NCHW out


# ----------------------------------------------------------------------------
# Pure-JAX reference (f32, lax convs) for correctness checking
# ----------------------------------------------------------------------------
def _ref_forward(x, p, nz):
    leaky = lambda v: jnp.where(v > 0, v, 0.2 * v)

    def conv(h, w, stride, pad):
        return jax.lax.conv_general_dilated(
            h, w, (stride, stride), [(pad, pad), (pad, pad)],
            dimension_numbers=("NCHW", "OIHW", "NCHW"))

    def convT(h, w, stride, pad):
        k = w.shape[2]
        return jax.lax.conv_general_dilated(
            h, jnp.flip(w, (2, 3)).transpose(1, 0, 2, 3), (1, 1),
            [(k - 1 - pad, k - 1 - pad)] * 2, lhs_dilation=(stride, stride),
            dimension_numbers=("NCHW", "OIHW", "NCHW"))

    def bn(h, g, b):
        s, sh = bn_affine(g, b)
        return h * s[None, :, None, None] + sh[None, :, None, None]

    h = leaky(conv(x, p["e_w1"], 2, 1))
    h = leaky(bn(conv(h, p["e_w2"], 2, 1), p["e_g2"], p["e_b2"]))
    h = leaky(bn(conv(h, p["e_w3"], 2, 1), p["e_g3"], p["e_b3"]))
    h = leaky(bn(conv(h, p["e_w4"], 2, 1), p["e_g4"], p["e_b4"]))
    h = leaky(conv(h, p["e_w5"], 1, 0)).reshape(x.shape[0], -1)
    mu_logvar = h @ p["e_lw"].T + p["e_lb"]
    mu, logvar = mu_logvar[:, :nz], mu_logvar[:, nz:]
    d = (mu @ p["d_lw"].T + p["d_lb"]).reshape(x.shape[0], -1, 1, 1)
    d = jax.nn.relu(bn(convT(d, p["d_w1"], 1, 0), p["d_g1"], p["d_b1"]))
    d = jax.nn.relu(bn(convT(d, p["d_w2"], 2, 1), p["d_g2"], p["d_b2"]))
    d = jax.nn.relu(bn(convT(d, p["d_w3"], 2, 1), p["d_g3"], p["d_b3"]))
    d = jax.nn.relu(bn(convT(d, p["d_w4"], 2, 1), p["d_g4"], p["d_b4"]))
    d = jax.nn.sigmoid(convT(d, p["d_w5"], 2, 1))
    return d, mu, logvar


if __name__ == "__main__":
    # config: n_channel=3, n_filter_E=8, n_filter_D=8, n_zlatent=8
    nc, nfe, nfd, nz = 3, 8, 8, 8
    N, H, W = 2, 64, 64   # 64x64 spatial is required by the encoder architecture

    key = jax.random.PRNGKey(0)
    kx, kp = jax.random.split(key)
    x = jax.random.uniform(kx, (N, nc, H, W), jnp.float32)
    params = init_params(kp, nc, nfe, nfd, nz)

    fwd = jax.jit(functools.partial(vae_forward, nz=nz))
    recon, mu, logvar = fwd(x, params)
    jax.block_until_ready((recon, mu, logvar))

    assert recon.shape == (N, nc, H, W), recon.shape
    assert mu.shape == (N, nz) and logvar.shape == (N, nz)
    assert bool(jnp.all(jnp.isfinite(recon)))

    # numerical check vs pure-JAX reference (loose tol: bf16 MXU operands)
    r_ref, mu_ref, lv_ref = jax.jit(functools.partial(_ref_forward, nz=nz))(x, params)
    def _close(a, b, tol=0.02):
        return bool(jnp.max(jnp.abs(a - b)) <= tol + tol * jnp.max(jnp.abs(b)))
    assert _close(recon, r_ref), "recon mismatch vs reference"
    assert _close(mu, mu_ref), "mu mismatch vs reference"
    assert _close(logvar, lv_ref), "logvar mismatch vs reference"

    print("KERNEL_OK")
</pallas_src>

<mosaic_0001>
module attributes {stable_mosaic.version = 11 : i64} {
  func.func @_gemm_bias_act_kernel(%arg0: i32, %arg1: memref<1024x48xbf16, #tpu.memory_space<vmem>>, %arg2: memref<48x8xbf16, #tpu.memory_space<vmem>>, %arg3: memref<1x8xf32, #tpu.memory_space<vmem>>, %arg4: memref<1024x8xbf16, #tpu.memory_space<vmem>>) attributes {dimension_semantics = [#tpu.dimension_semantics<parallel>], iteration_bounds = array<i64: 2>, scalar_prefetch = 0 : i64, scratch_operands = 0 : i64, tpu.core_type = #tpu.core_type<tc>, window_params = [{transform_indices = @transform_0, window_bounds = array<i64: 1024, 48>}, {pipeline_mode = #tpu.pipeline_mode<synchronous>, transform_indices = @transform_1, window_bounds = array<i64: 48, 8>}, {pipeline_mode = #tpu.pipeline_mode<synchronous>, transform_indices = @transform_2, window_bounds = array<i64: 1, 8>}, {transform_indices = @transform_3, window_bounds = array<i64: 1024, 8>}]} {
    %c0 = arith.constant 0 : index
    %c0_0 = arith.constant 0 : index
    %0 = vector.load %arg1[%c0, %c0_0] : memref<1024x48xbf16, #tpu.memory_space<vmem>>, vector<1024x48xbf16>
    %c0_1 = arith.constant 0 : index
    %c0_2 = arith.constant 0 : index
    %1 = vector.load %arg2[%c0_1, %c0_2] : memref<48x8xbf16, #tpu.memory_space<vmem>>, vector<48x8xbf16>
    %cst = arith.constant dense<0.000000e+00> : vector<1024x8xf32>
    %2 = tpu.matmul %0, %1, %cst {dimension_numbers = #tpu.dot_dimension_numbers<[1], [0], [0], [1], [0, 0, 1, 1], [], []>} : vector<1024x48xbf16>, vector<48x8xbf16>, vector<1024x8xf32> -> vector<1024x8xf32>
    %c0_3 = arith.constant 0 : index
    %c0_4 = arith.constant 0 : index
    %3 = vector.load %arg3[%c0_3, %c0_4] : memref<1x8xf32, #tpu.memory_space<vmem>>, vector<1x8xf32>
    %4 = vector.broadcast %3 : vector<1x8xf32> to vector<1024x8xf32>
    %5 = arith.addf %2, %4 : vector<1024x8xf32>
    %cst_5 = arith.constant 0.000000e+00 : f32
    %6 = vector.broadcast %cst_5 : f32 to vector<1024x8xf32>
    %7 = arith.cmpf ogt, %5, %6 : vector<1024x8xf32>
    %cst_6 = arith.constant 2.000000e-01 : f32
    %8 = vector.broadcast %cst_6 : f32 to vector<1024x8xf32>
    %9 = arith.mulf %8, %5 : vector<1024x8xf32>
    %10 = arith.select %7, %5, %9 : vector<1024x8xi1>, vector<1024x8xf32>
    %11 = arith.truncf %10 : vector<1024x8xf32> to vector<1024x8xbf16>
    %c0_7 = arith.constant 0 : index
    %c0_8 = arith.constant 0 : index
    %12 = vector.load %arg4[%c0_7, %c0_8] : memref<1024x8xbf16, #tpu.memory_space<vmem>>, vector<1024x8xbf16>
    tpu.vector_store %arg4[%c0_7, %c0_8], %11 {strides = array<i32>} : memref<1024x8xbf16, #tpu.memory_space<vmem>>, vector<1024x8xbf16>,
    return
  }
  func.func @transform_0(%arg0: i32) -> (i32, i32) {
    %c0_i32 = arith.constant 0 : i32
    %c0_i32_0 = arith.constant 0 : i32
    return %arg0, %c0_i32 : i32, i32
  }
  func.func @transform_1(%arg0: i32) -> (i32, i32) {
    %c0_i32 = arith.constant 0 : i32
    %c0_i32_0 = arith.constant 0 : i32
    %c0_i32_1 = arith.constant 0 : i32
    return %c0_i32, %c0_i32_0 : i32, i32
  }
  func.func @transform_2(%arg0: i32) -> (i32, i32) {
    %c0_i32 = arith.constant 0 : i32
    %c0_i32_0 = arith.constant 0 : i32
    %c0_i32_1 = arith.constant 0 : i32
    return %c0_i32, %c0_i32_0 : i32, i32
  }
  func.func @transform_3(%arg0: i32) -> (i32, i32) {
    %c0_i32 = arith.constant 0 : i32
    %c0_i32_0 = arith.constant 0 : i32
    return %arg0, %c0_i32 : i32, i32
  }
}

module attributes {stable_mosaic.version = 11 : i64} {
  func.func @_gemm_bias_act_kernel(%arg0: i32, %arg1: memref<512x128xbf16, #tpu.memory_space<vmem>>, %arg2: memref<128x16xbf16, #tpu.memory_space<vmem>>, %arg3: memref<1x16xf32, #tpu.memory_space<vmem>>, %arg4: memref<512x16xbf16, #tpu.memory_space<vmem>>) attributes {dimension_semantics = [#tpu.dimension_semantics<parallel>], iteration_bounds = array<i64: 1>, scalar_prefetch = 0 : i64, scratch_operands = 0 : i64, tpu.core_type = #tpu.core_type<tc>, window_params = [{transform_indices = @transform_0, window_bounds = array<i64: 512, 128>}, {pipeline_mode = #tpu.pipeline_mode<synchronous>, transform_indices = @transform_1, window_bounds = array<i64: 128, 16>}, {pipeline_mode = #tpu.pipeline_mode<synchronous>, transform_indices = @transform_2, window_bounds = array<i64: 1, 16>}, {transform_indices = @transform_3, window_bounds = array<i64: 512, 16>}]} {
    %c0 = arith.constant 0 : index
    %c0_0 = arith.constant 0 : index
    %0 = vector.load %arg1[%c0, %c0_0] : memref<512x128xbf16, #tpu.memory_space<vmem>>, vector<512x128xbf16>
    %c0_1 = arith.constant 0 : index
    %c0_2 = arith.constant 0 : index
    %1 = vector.load %arg2[%c0_1, %c0_2] : memref<128x16xbf16, #tpu.memory_space<vmem>>, vector<128x16xbf16>
    %cst = arith.constant dense<0.000000e+00> : vector<512x16xf32>
    %2 = tpu.matmul %0, %1, %cst {dimension_numbers = #tpu.dot_dimension_numbers<[1], [0], [0], [1], [0, 0, 1, 1], [], []>} : vector<512x128xbf16>, vector<128x16xbf16>, vector<512x16xf32> -> vector<512x16xf32>
    %c0_3 = arith.constant 0 : index
    %c0_4 = arith.constant 0 : index
    %3 = vector.load %arg3[%c0_3, %c0_4] : memref<1x16xf32, #tpu.memory_space<vmem>>, vector<1x16xf32>
    %4 = vector.broadcast %3 : vector<1x16xf32> to vector<512x16xf32>
    %5 = arith.addf %2, %4 : vector<512x16xf32>
    %cst_5 = arith.constant 0.000000e+00 : f32
    %6 = vector.broadcast %cst_5 : f32 to vector<512x16xf32>
    %7 = arith.cmpf ogt, %5, %6 : vector<512x16xf32>
    %cst_6 = arith.constant 2.000000e-01 : f32
    %8 = vector.broadcast %cst_6 : f32 to vector<512x16xf32>
    %9 = arith.mulf %8, %5 : vector<512x16xf32>
    %10 = arith.select %7, %5, %9 : vector<512x16xi1>, vector<512x16xf32>
    %11 = arith.truncf %10 : vector<512x16xf32> to vector<512x16xbf16>
    %c0_7 = arith.constant 0 : index
    %c0_8 = arith.constant 0 : index
    %12 = vector.load %arg4[%c0_7, %c0_8] : memref<512x16xbf16, #tpu.memory_space<vmem>>, vector<512x16xbf16>
    tpu.vector_store %arg4[%c0_7, %c0_8], %11 {strides = array<i32>} : memref<512x16xbf16, #tpu.memory_space<vmem>>, vector<512x16xbf16>,
    return
  }
  func.func @transform_0(%arg0: i32) -> (i32, i32) {
    %c0_i32 = arith.constant 0 : i32
    %c0_i32_0 = arith.constant 0 : i32
    return %arg0, %c0_i32 : i32, i32
  }
  func.func @transform_1(%arg0: i32) -> (i32, i32) {
    %c0_i32 = arith.constant 0 : i32
    %c0_i32_0 = arith.constant 0 : i32
    %c0_i32_1 = arith.constant 0 : i32
    return %c0_i32, %c0_i32_0 : i32, i32
  }
  func.func @transform_2(%arg0: i32) -> (i32, i32) {
    %c0_i32 = arith.constant 0 : i32
    %c0_i32_0 = arith.constant 0 : i32
    %c0_i32_1 = arith.constant 0 : i32
    return %c0_i32, %c0_i32_0 : i32, i32
  }
  func.func @transform_3(%arg0: i32) -> (i32, i32) {
    %c0_i32 = arith.constant 0 : i32
    %c0_i32_0 = arith.constant 0 : i32
    return %arg0, %c0_i32 : i32, i32
  }
}

module attributes {stable_mosaic.version = 11 : i64} {
  func.func @_gemm_bias_act_kernel(%arg0: i32, %arg1: memref<128x256xbf16, #tpu.memory_space<vmem>>, %arg2: memref<256x32xbf16, #tpu.memory_space<vmem>>, %arg3: memref<1x32xf32, #tpu.memory_space<vmem>>, %arg4: memref<128x32xbf16, #tpu.memory_space<vmem>>) attributes {dimension_semantics = [#tpu.dimension_semantics<parallel>], iteration_bounds = array<i64: 1>, scalar_prefetch = 0 : i64, scratch_operands = 0 : i64, tpu.core_type = #tpu.core_type<tc>, window_params = [{transform_indices = @transform_0, window_bounds = array<i64: 128, 256>}, {pipeline_mode = #tpu.pipeline_mode<synchronous>, transform_indices = @transform_1, window_bounds = array<i64: 256, 32>}, {pipeline_mode = #tpu.pipeline_mode<synchronous>, transform_indices = @transform_2, window_bounds = array<i64: 1, 32>}, {transform_indices = @transform_3, window_bounds = array<i64: 128, 32>}]} {
    %c0 = arith.constant 0 : index
    %c0_0 = arith.constant 0 : index
    %0 = vector.load %arg1[%c0, %c0_0] : memref<128x256xbf16, #tpu.memory_space<vmem>>, vector<128x256xbf16>
    %c0_1 = arith.constant 0 : index
    %c0_2 = arith.constant 0 : index
    %1 = vector.load %arg2[%c0_1, %c0_2] : memref<256x32xbf16, #tpu.memory_space<vmem>>, vector<256x32xbf16>
    %cst = arith.constant dense<0.000000e+00> : vector<128x32xf32>
    %2 = tpu.matmul %0, %1, %cst {dimension_numbers = #tpu.dot_dimension_numbers<[1], [0], [0], [1], [0, 0, 1, 1], [], []>} : vector<128x256xbf16>, vector<256x32xbf16>, vector<128x32xf32> -> vector<128x32xf32>
    %c0_3 = arith.constant 0 : index
    %c0_4 = arith.constant 0 : index
    %3 = vector.load %arg3[%c0_3, %c0_4] : memref<1x32xf32, #tpu.memory_space<vmem>>, vector<1x32xf32>
    %4 = vector.broadcast %3 : vector<1x32xf32> to vector<128x32xf32>
    %5 = arith.addf %2, %4 : vector<128x32xf32>
    %cst_5 = arith.constant 0.000000e+00 : f32
    %6 = vector.broadcast %cst_5 : f32 to vector<128x32xf32>
    %7 = arith.cmpf ogt, %5, %6 : vector<128x32xf32>
    %cst_6 = arith.constant 2.000000e-01 : f32
    %8 = vector.broadcast %cst_6 : f32 to vector<128x32xf32>
    %9 = arith.mulf %8, %5 : vector<128x32xf32>
    %10 = arith.select %7, %5, %9 : vector<128x32xi1>, vector<128x32xf32>
    %11 = arith.truncf %10 : vector<128x32xf32> to vector<128x32xbf16>
    %c0_7 = arith.constant 0 : index
    %c0_8 = arith.constant 0 : index
    %12 = vector.load %arg4[%c0_7, %c0_8] : memref<128x32xbf16, #tpu.memory_space<vmem>>, vector<128x32xbf16>
    tpu.vector_store %arg4[%c0_7, %c0_8], %11 {strides = array<i32>} : memref<128x32xbf16, #tpu.memory_space<vmem>>, vector<128x32xbf16>,
    return
  }
  func.func @transform_0(%arg0: i32) -> (i32, i32) {
    %c0_i32 = arith.constant 0 : i32
    %c0_i32_0 = arith.constant 0 : i32
    return %arg0, %c0_i32 : i32, i32
  }
  func.func @transform_1(%arg0: i32) -> (i32, i32) {
    %c0_i32 = arith.constant 0 : i32
    %c0_i32_0 = arith.constant 0 : i32
    %c0_i32_1 = arith.constant 0 : i32
    return %c0_i32, %c0_i32_0 : i32, i32
  }
  func.func @transform_2(%arg0: i32) -> (i32, i32) {
    %c0_i32 = arith.constant 0 : i32
    %c0_i32_0 = arith.constant 0 : i32
    %c0_i32_1 = arith.constant 0 : i32
    return %c0_i32, %c0_i32_0 : i32, i32
  }
  func.func @transform_3(%arg0: i32) -> (i32, i32) {
    %c0_i32 = arith.constant 0 : i32
    %c0_i32_0 = arith.constant 0 : i32
    return %arg0, %c0_i32 : i32, i32
  }
}

module attributes {stable_mosaic.version = 11 : i64} {
  func.func @_gemm_bias_act_kernel(%arg0: i32, %arg1: memref<32x512xbf16, #tpu.memory_space<vmem>>, %arg2: memref<512x64xbf16, #tpu.memory_space<vmem>>, %arg3: memref<1x64xf32, #tpu.memory_space<vmem>>, %arg4: memref<32x64xbf16, #tpu.memory_space<vmem>>) attributes {dimension_semantics = [#tpu.dimension_semantics<parallel>], iteration_bounds = array<i64: 1>, scalar_prefetch = 0 : i64, scratch_operands = 0 : i64, tpu.core_type = #tpu.core_type<tc>, window_params = [{transform_indices = @transform_0, window_bounds = array<i64: 32, 512>}, {pipeline_mode = #tpu.pipeline_mode<synchronous>, transform_indices = @transform_1, window_bounds = array<i64: 512, 64>}, {pipeline_mode = #tpu.pipeline_mode<synchronous>, transform_indices = @transform_2, window_bounds = array<i64: 1, 64>}, {transform_indices = @transform_3, window_bounds = array<i64: 32, 64>}]} {
    %c0 = arith.constant 0 : index
    %c0_0 = arith.constant 0 : index
    %0 = vector.load %arg1[%c0, %c0_0] : memref<32x512xbf16, #tpu.memory_space<vmem>>, vector<32x512xbf16>
    %c0_1 = arith.constant 0 : index
    %c0_2 = arith.constant 0 : index
    %1 = vector.load %arg2[%c0_1, %c0_2] : memref<512x64xbf16, #tpu.memory_space<vmem>>, vector<512x64xbf16>
    %cst = arith.constant dense<0.000000e+00> : vector<32x64xf32>
    %2 = tpu.matmul %0, %1, %cst {dimension_numbers = #tpu.dot_dimension_numbers<[1], [0], [0], [1], [0, 0, 1, 1], [], []>} : vector<32x512xbf16>, vector<512x64xbf16>, vector<32x64xf32> -> vector<32x64xf32>
    %c0_3 = arith.constant 0 : index
    %c0_4 = arith.constant 0 : index
    %3 = vector.load %arg3[%c0_3, %c0_4] : memref<1x64xf32, #tpu.memory_space<vmem>>, vector<1x64xf32>
    %4 = vector.broadcast %3 : vector<1x64xf32> to vector<32x64xf32>
    %5 = arith.addf %2, %4 : vector<32x64xf32>
    %cst_5 = arith.constant 0.000000e+00 : f32
    %6 = vector.broadcast %cst_5 : f32 to vector<32x64xf32>
    %7 = arith.cmpf ogt, %5, %6 : vector<32x64xf32>
    %cst_6 = arith.constant 2.000000e-01 : f32
    %8 = vector.broadcast %cst_6 : f32 to vector<32x64xf32>
    %9 = arith.mulf %8, %5 : vector<32x64xf32>
    %10 = arith.select %7, %5, %9 : vector<32x64xi1>, vector<32x64xf32>
    %11 = arith.truncf %10 : vector<32x64xf32> to vector<32x64xbf16>
    %c0_7 = arith.constant 0 : index
    %c0_8 = arith.constant 0 : index
    %12 = vector.load %arg4[%c0_7, %c0_8] : memref<32x64xbf16, #tpu.memory_space<vmem>>, vector<32x64xbf16>
    tpu.vector_store %arg4[%c0_7, %c0_8], %11 {strides = array<i32>} : memref<32x64xbf16, #tpu.memory_space<vmem>>, vector<32x64xbf16>,
    return
  }
  func.func @transform_0(%arg0: i32) -> (i32, i32) {
    %c0_i32 = arith.constant 0 : i32
    %c0_i32_0 = arith.constant 0 : i32
    return %arg0, %c0_i32 : i32, i32
  }
  func.func @transform_1(%arg0: i32) -> (i32, i32) {
    %c0_i32 = arith.constant 0 : i32
    %c0_i32_0 = arith.constant 0 : i32
    %c0_i32_1 = arith.constant 0 : i32
    return %c0_i32, %c0_i32_0 : i32, i32
  }
  func.func @transform_2(%arg0: i32) -> (i32, i32) {
    %c0_i32 = arith.constant 0 : i32
    %c0_i32_0 = arith.constant 0 : i32
    %c0_i32_1 = arith.constant 0 : i32
    return %c0_i32, %c0_i32_0 : i32, i32
  }
  func.func @transform_3(%arg0: i32) -> (i32, i32) {
    %c0_i32 = arith.constant 0 : i32
    %c0_i32_0 = arith.constant 0 : i32
    return %arg0, %c0_i32 : i32, i32
  }
}

module attributes {stable_mosaic.version = 11 : i64} {
  func.func @_encoder_tail_kernel(%arg0: memref<2x1024xbf16, #tpu.memory_space<vmem>>, %arg1: memref<1024x32xbf16, #tpu.memory_space<vmem>>, %arg2: memref<32x16xbf16, #tpu.memory_space<vmem>>, %arg3: memref<1x16xf32, #tpu.memory_space<vmem>>, %arg4: memref<2x16xf32, #tpu.memory_space<vmem>>) attributes {dimension_semantics = [], scalar_prefetch = 0 : i64, scratch_operands = 0 : i64, tpu.core_type = #tpu.core_type<tc>} {
    %c0 = arith.constant 0 : index
    %c0_0 = arith.constant 0 : index
    %0 = vector.load %arg0[%c0, %c0_0] : memref<2x1024xbf16, #tpu.memory_space<vmem>>, vector<2x1024xbf16>
    %c0_1 = arith.constant 0 : index
    %c0_2 = arith.constant 0 : index
    %1 = vector.load %arg1[%c0_1, %c0_2] : memref<1024x32xbf16, #tpu.memory_space<vmem>>, vector<1024x32xbf16>
    %cst = arith.constant dense<0.000000e+00> : vector<2x32xf32>
    %2 = tpu.matmul %0, %1, %cst {dimension_numbers = #tpu.dot_dimension_numbers<[1], [0], [0], [1], [0, 0, 1, 1], [], []>} : vector<2x1024xbf16>, vector<1024x32xbf16>, vector<2x32xf32> -> vector<2x32xf32>
    %cst_3 = arith.constant 0.000000e+00 : f32
    %3 = vector.broadcast %cst_3 : f32 to vector<2x32xf32>
    %4 = arith.cmpf ogt, %2, %3 : vector<2x32xf32>
    %cst_4 = arith.constant 2.000000e-01 : f32
    %5 = vector.broadcast %cst_4 : f32 to vector<2x32xf32>
    %6 = arith.mulf %5, %2 : vector<2x32xf32>
    %7 = arith.select %4, %2, %6 : vector<2x32xi1>, vector<2x32xf32>
    %8 = arith.truncf %7 : vector<2x32xf32> to vector<2x32xbf16>
    %c0_5 = arith.constant 0 : index
    %c0_6 = arith.constant 0 : index
    %9 = vector.load %arg2[%c0_5, %c0_6] : memref<32x16xbf16, #tpu.memory_space<vmem>>, vector<32x16xbf16>
    %cst_7 = arith.constant dense<0.000000e+00> : vector<2x16xf32>
    %10 = tpu.matmul %8, %9, %cst_7 {dimension_numbers = #tpu.dot_dimension_numbers<[1], [0], [0], [1], [0, 0, 1, 1], [], []>} : vector<2x32xbf16>, vector<32x16xbf16>, vector<2x16xf32> -> vector<2x16xf32>
    %c0_8 = arith.constant 0 : index
    %c0_9 = arith.constant 0 : index
    %11 = vector.load %arg3[%c0_8, %c0_9] : memref<1x16xf32, #tpu.memory_space<vmem>>, vector<1x16xf32>
    %12 = vector.broadcast %11 : vector<1x16xf32> to vector<2x16xf32>
    %13 = arith.addf %10, %12 : vector<2x16xf32>
    %c0_10 = arith.constant 0 : index
    %c0_11 = arith.constant 0 : index
    %14 = vector.load %arg4[%c0_10, %c0_11] : memref<2x16xf32, #tpu.memory_space<vmem>>, vector<2x16xf32>
    tpu.vector_store %arg4[%c0_10, %c0_11], %13 {strides = array<i32>} : memref<2x16xf32, #tpu.memory_space<vmem>>, vector<2x16xf32>,
    return
  }
}

module attributes {stable_mosaic.version = 11 : i64} {
  func.func @_decoder_head_kernel(%arg0: memref<2x8xf32, #tpu.memory_space<vmem>>, %arg1: memref<8x8xf32, #tpu.memory_space<vmem>>, %arg2: memref<1x8xf32, #tpu.memory_space<vmem>>, %arg3: memref<8x1024xbf16, #tpu.memory_space<vmem>>, %arg4: memref<1x1024xf32, #tpu.memory_space<vmem>>, %arg5: memref<2x1024xbf16, #tpu.memory_space<vmem>>) attributes {dimension_semantics = [], scalar_prefetch = 0 : i64, scratch_operands = 0 : i64, tpu.core_type = #tpu.core_type<tc>} {
    %c0 = arith.constant 0 : index
    %c0_0 = arith.constant 0 : index
    %0 = vector.load %arg0[%c0, %c0_0] : memref<2x8xf32, #tpu.memory_space<vmem>>, vector<2x8xf32>
    %c0_1 = arith.constant 0 : index
    %c0_2 = arith.constant 0 : index
    %1 = vector.load %arg1[%c0_1, %c0_2] : memref<8x8xf32, #tpu.memory_space<vmem>>, vector<8x8xf32>
    %cst = arith.constant dense<0.000000e+00> : vector<2x8xf32>
    %2 = tpu.matmul %0, %1, %cst {dimension_numbers = #tpu.dot_dimension_numbers<[1], [0], [0], [1], [0, 0, 1, 1], [], []>} : vector<2x8xf32>, vector<8x8xf32>, vector<2x8xf32> -> vector<2x8xf32>
    %c0_3 = arith.constant 0 : index
    %c0_4 = arith.constant 0 : index
    %3 = vector.load %arg2[%c0_3, %c0_4] : memref<1x8xf32, #tpu.memory_space<vmem>>, vector<1x8xf32>
    %4 = vector.broadcast %3 : vector<1x8xf32> to vector<2x8xf32>
    %5 = arith.addf %2, %4 : vector<2x8xf32>
    %6 = arith.truncf %5 : vector<2x8xf32> to vector<2x8xbf16>
    %c0_5 = arith.constant 0 : index
    %c0_6 = arith.constant 0 : index
    %7 = vector.load %arg3[%c0_5, %c0_6] : memref<8x1024xbf16, #tpu.memory_space<vmem>>, vector<8x1024xbf16>
    %cst_7 = arith.constant dense<0.000000e+00> : vector<2x1024xf32>
    %8 = tpu.matmul %6, %7, %cst_7 {dimension_numbers = #tpu.dot_dimension_numbers<[1], [0], [0], [1], [0, 0, 1, 1], [], []>} : vector<2x8xbf16>, vector<8x1024xbf16>, vector<2x1024xf32> -> vector<2x1024xf32>
    %c0_8 = arith.constant 0 : index
    %c0_9 = arith.constant 0 : index
    %9 = vector.load %arg4[%c0_8, %c0_9] : memref<1x1024xf32, #tpu.memory_space<vmem>>, vector<1x1024xf32>
    %10 = vector.broadcast %9 : vector<1x1024xf32> to vector<2x1024xf32>
    %11 = arith.addf %8, %10 : vector<2x1024xf32>
    %cst_10 = arith.constant 0.000000e+00 : f32
    %12 = vector.broadcast %cst_10 : f32 to vector<2x1024xf32>
    %13 = arith.maximumf %11, %12 : vector<2x1024xf32>
    %14 = arith.truncf %13 : vector<2x1024xf32> to vector<2x1024xbf16>
    %c0_11 = arith.constant 0 : index
    %c0_12 = arith.constant 0 : index
    %15 = vector.load %arg5[%c0_11, %c0_12] : memref<2x1024xbf16, #tpu.memory_space<vmem>>, vector<2x1024xbf16>
    tpu.vector_store %arg5[%c0_11, %c0_12], %14 {strides = array<i32>} : memref<2x1024xbf16, #tpu.memory_space<vmem>>, vector<2x1024xbf16>,
    return
  }
}

module attributes {stable_mosaic.version = 11 : i64} {
  func.func @_gemm_bias_act_kernel(%arg0: i32, %arg1: memref<32x576xbf16, #tpu.memory_space<vmem>>, %arg2: memref<576x128xbf16, #tpu.memory_space<vmem>>, %arg3: memref<1x128xf32, #tpu.memory_space<vmem>>, %arg4: memref<32x128xbf16, #tpu.memory_space<vmem>>) attributes {dimension_semantics = [#tpu.dimension_semantics<parallel>], iteration_bounds = array<i64: 1>, scalar_prefetch = 0 : i64, scratch_operands = 0 : i64, tpu.core_type = #tpu.core_type<tc>, window_params = [{transform_indices = @transform_0, window_bounds = array<i64: 32, 576>}, {pipeline_mode = #tpu.pipeline_mode<synchronous>, transform_indices = @transform_1, window_bounds = array<i64: 576, 128>}, {pipeline_mode = #tpu.pipeline_mode<synchronous>, transform_indices = @transform_2, window_bounds = array<i64: 1, 128>}, {transform_indices = @transform_3, window_bounds = array<i64: 32, 128>}]} {
    %c0 = arith.constant 0 : index
    %c0_0 = arith.constant 0 : index
    %0 = vector.load %arg1[%c0, %c0_0] : memref<32x576xbf16, #tpu.memory_space<vmem>>, vector<32x576xbf16>
    %c0_1 = arith.constant 0 : index
    %c0_2 = arith.constant 0 : index
    %1 = vector.load %arg2[%c0_1, %c0_2] : memref<576x128xbf16, #tpu.memory_space<vmem>>, vector<576x128xbf16>
    %cst = arith.constant dense<0.000000e+00> : vector<32x128xf32>
    %2 = tpu.matmul %0, %1, %cst {dimension_numbers = #tpu.dot_dimension_numbers<[1], [0], [0], [1], [0, 0, 1, 1], [], []>} : vector<32x576xbf16>, vector<576x128xbf16>, vector<32x128xf32> -> vector<32x128xf32>
    %c0_3 = arith.constant 0 : index
    %c0_4 = arith.constant 0 : index
    %3 = vector.load %arg3[%c0_3, %c0_4] : memref<1x128xf32, #tpu.memory_space<vmem>>, vector<1x128xf32>
    %4 = vector.broadcast %3 : vector<1x128xf32> to vector<32x128xf32>
    %5 = arith.addf %2, %4 : vector<32x128xf32>
    %cst_5 = arith.constant 0.000000e+00 : f32
    %6 = vector.broadcast %cst_5 : f32 to vector<32x128xf32>
    %7 = arith.maximumf %5, %6 : vector<32x128xf32>
    %8 = arith.truncf %7 : vector<32x128xf32> to vector<32x128xbf16>
    %c0_6 = arith.constant 0 : index
    %c0_7 = arith.constant 0 : index
    %9 = vector.load %arg4[%c0_6, %c0_7] : memref<32x128xbf16, #tpu.memory_space<vmem>>, vector<32x128xbf16>
    tpu.vector_store %arg4[%c0_6, %c0_7], %8 {strides = array<i32>} : memref<32x128xbf16, #tpu.memory_space<vmem>>, vector<32x128xbf16>,
    return
  }
  func.func @transform_0(%arg0: i32) -> (i32, i32) {
    %c0_i32 = arith.constant 0 : i32
    %c0_i32_0 = arith.constant 0 : i32
    return %arg0, %c0_i32 : i32, i32
  }
  func.func @transform_1(%arg0: i32) -> (i32, i32) {
    %c0_i32 = arith.constant 0 : i32
    %c0_i32_0 = arith.constant 0 : i32
    %c0_i32_1 = arith.constant 0 : i32
    return %c0_i32, %c0_i32_0 : i32, i32
  }
  func.func @transform_2(%arg0: i32) -> (i32, i32) {
    %c0_i32 = arith.constant 0 : i32
    %c0_i32_0 = arith.constant 0 : i32
    %c0_i32_1 = arith.constant 0 : i32
    return %c0_i32, %c0_i32_0 : i32, i32
  }
  func.func @transform_3(%arg0: i32) -> (i32, i32) {
    %c0_i32 = arith.constant 0 : i32
    %c0_i32_0 = arith.constant 0 : i32
    return %arg0, %c0_i32 : i32, i32
  }
}

module attributes {stable_mosaic.version = 11 : i64} {
  func.func @_gemm_bias_act_kernel(%arg0: i32, %arg1: memref<128x288xbf16, #tpu.memory_space<vmem>>, %arg2: memref<288x64xbf16, #tpu.memory_space<vmem>>, %arg3: memref<1x64xf32, #tpu.memory_space<vmem>>, %arg4: memref<128x64xbf16, #tpu.memory_space<vmem>>) attributes {dimension_semantics = [#tpu.dimension_semantics<parallel>], iteration_bounds = array<i64: 1>, scalar_prefetch = 0 : i64, scratch_operands = 0 : i64, tpu.core_type = #tpu.core_type<tc>, window_params = [{transform_indices = @transform_0, window_bounds = array<i64: 128, 288>}, {pipeline_mode = #tpu.pipeline_mode<synchronous>, transform_indices = @transform_1, window_bounds = array<i64: 288, 64>}, {pipeline_mode = #tpu.pipeline_mode<synchronous>, transform_indices = @transform_2, window_bounds = array<i64: 1, 64>}, {transform_indices = @transform_3, window_bounds = array<i64: 128, 64>}]} {
    %c0 = arith.constant 0 : index
    %c0_0 = arith.constant 0 : index
    %0 = vector.load %arg1[%c0, %c0_0] : memref<128x288xbf16, #tpu.memory_space<vmem>>, vector<128x288xbf16>
    %c0_1 = arith.constant 0 : index
    %c0_2 = arith.constant 0 : index
    %1 = vector.load %arg2[%c0_1, %c0_2] : memref<288x64xbf16, #tpu.memory_space<vmem>>, vector<288x64xbf16>
    %cst = arith.constant dense<0.000000e+00> : vector<128x64xf32>
    %2 = tpu.matmul %0, %1, %cst {dimension_numbers = #tpu.dot_dimension_numbers<[1], [0], [0], [1], [0, 0, 1, 1], [], []>} : vector<128x288xbf16>, vector<288x64xbf16>, vector<128x64xf32> -> vector<128x64xf32>
    %c0_3 = arith.constant 0 : index
    %c0_4 = arith.constant 0 : index
    %3 = vector.load %arg3[%c0_3, %c0_4] : memref<1x64xf32, #tpu.memory_space<vmem>>, vector<1x64xf32>
    %4 = vector.broadcast %3 : vector<1x64xf32> to vector<128x64xf32>
    %5 = arith.addf %2, %4 : vector<128x64xf32>
    %cst_5 = arith.constant 0.000000e+00 : f32
    %6 = vector.broadcast %cst_5 : f32 to vector<128x64xf32>
    %7 = arith.maximumf %5, %6 : vector<128x64xf32>
    %8 = arith.truncf %7 : vector<128x64xf32> to vector<128x64xbf16>
    %c0_6 = arith.constant 0 : index
    %c0_7 = arith.constant 0 : index
    %9 = vector.load %arg4[%c0_6, %c0_7] : memref<128x64xbf16, #tpu.memory_space<vmem>>, vector<128x64xbf16>
    tpu.vector_store %arg4[%c0_6, %c0_7], %8 {strides = array<i32>} : memref<128x64xbf16, #tpu.memory_space<vmem>>, vector<128x64xbf16>,
    return
  }
  func.func @transform_0(%arg0: i32) -> (i32, i32) {
    %c0_i32 = arith.constant 0 : i32
    %c0_i32_0 = arith.constant 0 : i32
    return %arg0, %c0_i32 : i32, i32
  }
  func.func @transform_1(%arg0: i32) -> (i32, i32) {
    %c0_i32 = arith.constant 0 : i32
    %c0_i32_0 = arith.constant 0 : i32
    %c0_i32_1 = arith.constant 0 : i32
    return %c0_i32, %c0_i32_0 : i32, i32
  }
  func.func @transform_2(%arg0: i32) -> (i32, i32) {
    %c0_i32 = arith.constant 0 : i32
    %c0_i32_0 = arith.constant 0 : i32
    %c0_i32_1 = arith.constant 0 : i32
    return %c0_i32, %c0_i32_0 : i32, i32
  }
  func.func @transform_3(%arg0: i32) -> (i32, i32) {
    %c0_i32 = arith.constant 0 : i32
    %c0_i32_0 = arith.constant 0 : i32
    return %arg0, %c0_i32 : i32, i32
  }
}

module attributes {stable_mosaic.version = 11 : i64} {
  func.func @_gemm_bias_act_kernel(%arg0: i32, %arg1: memref<512x144xbf16, #tpu.memory_space<vmem>>, %arg2: memref<144x32xbf16, #tpu.memory_space<vmem>>, %arg3: memref<1x32xf32, #tpu.memory_space<vmem>>, %arg4: memref<512x32xbf16, #tpu.memory_space<vmem>>) attributes {dimension_semantics = [#tpu.dimension_semantics<parallel>], iteration_bounds = array<i64: 1>, scalar_prefetch = 0 : i64, scratch_operands = 0 : i64, tpu.core_type = #tpu.core_type<tc>, window_params = [{transform_indices = @transform_0, window_bounds = array<i64: 512, 144>}, {pipeline_mode = #tpu.pipeline_mode<synchronous>, transform_indices = @transform_1, window_bounds = array<i64: 144, 32>}, {pipeline_mode = #tpu.pipeline_mode<synchronous>, transform_indices = @transform_2, window_bounds = array<i64: 1, 32>}, {transform_indices = @transform_3, window_bounds = array<i64: 512, 32>}]} {
    %c0 = arith.constant 0 : index
    %c0_0 = arith.constant 0 : index
    %0 = vector.load %arg1[%c0, %c0_0] : memref<512x144xbf16, #tpu.memory_space<vmem>>, vector<512x144xbf16>
    %c0_1 = arith.constant 0 : index
    %c0_2 = arith.constant 0 : index
    %1 = vector.load %arg2[%c0_1, %c0_2] : memref<144x32xbf16, #tpu.memory_space<vmem>>, vector<144x32xbf16>
    %cst = arith.constant dense<0.000000e+00> : vector<512x32xf32>
    %2 = tpu.matmul %0, %1, %cst {dimension_numbers = #tpu.dot_dimension_numbers<[1], [0], [0], [1], [0, 0, 1, 1], [], []>} : vector<512x144xbf16>, vector<144x32xbf16>, vector<512x32xf32> -> vector<512x32xf32>
    %c0_3 = arith.constant 0 : index
    %c0_4 = arith.constant 0 : index
    %3 = vector.load %arg3[%c0_3, %c0_4] : memref<1x32xf32, #tpu.memory_space<vmem>>, vector<1x32xf32>
    %4 = vector.broadcast %3 : vector<1x32xf32> to vector<512x32xf32>
    %5 = arith.addf %2, %4 : vector<512x32xf32>
    %cst_5 = arith.constant 0.000000e+00 : f32
    %6 = vector.broadcast %cst_5 : f32 to vector<512x32xf32>
    %7 = arith.maximumf %5, %6 : vector<512x32xf32>
    %8 = arith.truncf %7 : vector<512x32xf32> to vector<512x32xbf16>
    %c0_6 = arith.constant 0 : index
    %c0_7 = arith.constant 0 : index
    %9 = vector.load %arg4[%c0_6, %c0_7] : memref<512x32xbf16, #tpu.memory_space<vmem>>, vector<512x32xbf16>
    tpu.vector_store %arg4[%c0_6, %c0_7], %8 {strides = array<i32>} : memref<512x32xbf16, #tpu.memory_space<vmem>>, vector<512x32xbf16>,
    return
  }
  func.func @transform_0(%arg0: i32) -> (i32, i32) {
    %c0_i32 = arith.constant 0 : i32
    %c0_i32_0 = arith.constant 0 : i32
    return %arg0, %c0_i32 : i32, i32
  }
  func.func @transform_1(%arg0: i32) -> (i32, i32) {
    %c0_i32 = arith.constant 0 : i32
    %c0_i32_0 = arith.constant 0 : i32
    %c0_i32_1 = arith.constant 0 : i32
    return %c0_i32, %c0_i32_0 : i32, i32
  }
  func.func @transform_2(%arg0: i32) -> (i32, i32) {
    %c0_i32 = arith.constant 0 : i32
    %c0_i32_0 = arith.constant 0 : i32
    %c0_i32_1 = arith.constant 0 : i32
    return %c0_i32, %c0_i32_0 : i32, i32
  }
  func.func @transform_3(%arg0: i32) -> (i32, i32) {
    %c0_i32 = arith.constant 0 : i32
    %c0_i32_0 = arith.constant 0 : i32
    return %arg0, %c0_i32 : i32, i32
  }
}

module attributes {stable_mosaic.version = 11 : i64} {
  func.func @_gemm_bias_act_kernel(%arg0: i32, %arg1: memref<1024x72xbf16, #tpu.memory_space<vmem>>, %arg2: memref<72x12xbf16, #tpu.memory_space<vmem>>, %arg3: memref<1x12xf32, #tpu.memory_space<vmem>>, %arg4: memref<1024x12xf32, #tpu.memory_space<vmem>>) attributes {dimension_semantics = [#tpu.dimension_semantics<parallel>], iteration_bounds = array<i64: 2>, scalar_prefetch = 0 : i64, scratch_operands = 0 : i64, tpu.core_type = #tpu.core_type<tc>, window_params = [{transform_indices = @transform_0, window_bounds = array<i64: 1024, 72>}, {pipeline_mode = #tpu.pipeline_mode<synchronous>, transform_indices = @transform_1, window_bounds = array<i64: 72, 12>}, {pipeline_mode = #tpu.pipeline_mode<synchronous>, transform_indices = @transform_2, window_bounds = array<i64: 1, 12>}, {transform_indices = @transform_3, window_bounds = array<i64: 1024, 12>}]} {
    %c0 = arith.constant 0 : index
    %c0_0 = arith.constant 0 : index
    %0 = vector.load %arg1[%c0, %c0_0] : memref<1024x72xbf16, #tpu.memory_space<vmem>>, vector<1024x72xbf16>
    %c0_1 = arith.constant 0 : index
    %c0_2 = arith.constant 0 : index
    %1 = vector.load %arg2[%c0_1, %c0_2] : memref<72x12xbf16, #tpu.memory_space<vmem>>, vector<72x12xbf16>
    %cst = arith.constant dense<0.000000e+00> : vector<1024x12xf32>
    %2 = tpu.matmul %0, %1, %cst {dimension_numbers = #tpu.dot_dimension_numbers<[1], [0], [0], [1], [0, 0, 1, 1], [], []>} : vector<1024x72xbf16>, vector<72x12xbf16>, vector<1024x12xf32> -> vector<1024x12xf32>
    %c0_3 = arith.constant 0 : index
    %c0_4 = arith.constant 0 : index
    %3 = vector.load %arg3[%c0_3, %c0_4] : memref<1x12xf32, #tpu.memory_space<vmem>>, vector<1x12xf32>
    %4 = vector.broadcast %3 : vector<1x12xf32> to vector<1024x12xf32>
    %5 = arith.addf %2, %4 : vector<1024x12xf32>
    %6 = arith.negf %5 : vector<1024x12xf32>
    %7 = math.exp %6 : vector<1024x12xf32>
    %cst_5 = arith.constant 1.000000e+00 : f32
    %8 = vector.broadcast %cst_5 : f32 to vector<1024x12xf32>
    %9 = arith.addf %8, %7 : vector<1024x12xf32>
    %10 = arith.divf %8, %9 : vector<1024x12xf32>
    %c0_6 = arith.constant 0 : index
    %c0_7 = arith.constant 0 : index
    %11 = vector.load %arg4[%c0_6, %c0_7] : memref<1024x12xf32, #tpu.memory_space<vmem>>, vector<1024x12xf32>
    tpu.vector_store %arg4[%c0_6, %c0_7], %10 {strides = array<i32>} : memref<1024x12xf32, #tpu.memory_space<vmem>>, vector<1024x12xf32>,
    return
  }
  func.func @transform_0(%arg0: i32) -> (i32, i32) {
    %c0_i32 = arith.constant 0 : i32
    %c0_i32_0 = arith.constant 0 : i32
    return %arg0, %c0_i32 : i32, i32
  }
  func.func @transform_1(%arg0: i32) -> (i32, i32) {
    %c0_i32 = arith.constant 0 : i32
    %c0_i32_0 = arith.constant 0 : i32
    %c0_i32_1 = arith.constant 0 : i32
    return %c0_i32, %c0_i32_0 : i32, i32
  }
  func.func @transform_2(%arg0: i32) -> (i32, i32) {
    %c0_i32 = arith.constant 0 : i32
    %c0_i32_0 = arith.constant 0 : i32
    %c0_i32_1 = arith.constant 0 : i32
    return %c0_i32, %c0_i32_0 : i32, i32
  }
  func.func @transform_3(%arg0: i32) -> (i32, i32) {
    %c0_i32 = arith.constant 0 : i32
    %c0_i32_0 = arith.constant 0 : i32
    return %arg0, %c0_i32 : i32, i32
  }
}

</mosaic_0001>

<llo_original>
// kernel: vae_forward.10
$region0: #{vae_forward.10}
  #allocation0 [shape = 'u32[]', space=smem, size = 0x4, offset = 0x4, fixed_abs, tag = 'smem constant byte address 0x4 - core index']
  #allocation1 [shape = 'u32[144,128]{1,0:T(1,128)}', space=vmem, size = 0x12000, scoped, tag = 'internal scratch']
  %s0 = inlined_call_operand.vmem [shape: bf16[2048,48], index: 0, kind: input, shape index: {}]
  %s1 = inlined_call_operand.vmem [shape: bf16[48,8], index: 1, kind: input, shape index: {}]
  %s2 = inlined_call_operand.vmem [shape: f32[1,8], index: 2, kind: input, shape index: {}]
  %s3 = inlined_call_operand.vmem [shape: bf16[2048,8], index: 3, kind: output, shape index: {}]
  %s4 = sld [smem:[#allocation0]]
  $region45: #{vae_forward.10} parent=0
    _
  %s6 = ssub.s32 1, %s4
  %s7 = scalar_select 0, %s6, %s4
  loop: start=0, step=1, limit=4
  $region2: #{vae_forward.10} parent=0 // loop_pre_header
    _
  $region3: #{vae_forward.10} parent=0 // loop_header
    %s9 = sphi 0, %s13
    %p10 = scmp.ge.s32.totalorder %s9, 4
    %s19 = sphi 0, %s21
    %s22 = sphi 0, %s19
    %s23 = sphi 0, %s22
    %s39 = sphi 0, %s23
    %s43 = sphi 0, %s43
    %s45 = sphi 0, %s43
    %s46 = sphi 0, %s45
    %s60 = sphi 0, %s46
    %s64 = sphi 0, %s64
    %s66 = sphi 0, %s64
    %s67 = sphi 0, %s66
    %s81 = sphi 0, %s67
    %s87 = sphi 0, %s89
    %s90 = sphi 0, %s87
    %s91 = sphi 0, %s90
    %s107 = sphi 0, %s91
  $region4: #{vae_forward.10} parent=0 // loop_header_branch
    %12 = sbr.rel (%p10) target = $region8
  $region5: #{vae_forward.10} parent=0 // loop_body
    %s14 = ssub.s32 %s9, 1
    %s15 = ssub.s32 %s9, 2
    %s16 = sadd.s32 %s9, 1
    %s17 = ssub.s32 %s9, %s16
    %p18 = scmp.eq.s32.totalorder %s17, 0
    %s20 = sadd.s32 %s19, 1
    %s21 = scalar_select %p18, %s19, %s20
    %p24 = pneg %p18
    %p25 = scmp.eq.s32.totalorder %s9, 1
    %p26 = por %p24, %p25
    %p27 = scmp.ne.s32.totalorder %s19, %s22
    %p28 = scmp.eq.s32.totalorder %s9, 0
    %p29 = por %p27, %p28
    %p30 = scmp.ne.s32.totalorder %s19, %s22
    %p31 = scmp.eq.s32.totalorder %s14, 1
    %p32 = por %p30, %p31
    %p33 = scmp.ne.s32.totalorder %s22, %s23
    %p34 = scmp.eq.s32.totalorder %s14, 0
    %p35 = por %p33, %p34
    %p36 = scmp.ne.s32.totalorder %s22, %s23
    %p37 = scmp.eq.s32.totalorder %s15, 1
    %p38 = por %p36, %p37
    %p40 = scmp.ne.s32.totalorder %s23, %s39
    %p41 = scmp.eq.s32.totalorder %s15, 0
    %p42 = por %p40, %p41
    %s44 = sadd.s32 %s43, 1
    %p47 = scmp.eq.s32.totalorder %s9, 1
    %p48 = scmp.ne.s32.totalorder %s43, %s45
    %p49 = scmp.eq.s32.totalorder %s9, 0
    %p50 = por %p48, %p49
    %p51 = scmp.ne.s32.totalorder %s43, %s45
    %p52 = scmp.eq.s32.totalorder %s14, 1
    %p53 = por %p51, %p52
    %p54 = scmp.ne.s32.totalorder %s45, %s46
    %p55 = scmp.eq.s32.totalorder %s14, 0
    %p56 = por %p54, %p55
    %p57 = scmp.ne.s32.totalorder %s45, %s46
    %p58 = scmp.eq.s32.totalorder %s15, 1
    %p59 = por %p57, %p58
    %p61 = scmp.ne.s32.totalorder %s46, %s60
    %p62 = scmp.eq.s32.totalorder %s15, 0
    %p63 = por %p61, %p62
    %s65 = sadd.s32 %s64, 1
    %p68 = scmp.eq.s32.totalorder %s9, 1
    %p69 = scmp.ne.s32.totalorder %s64, %s66
    %p70 = scmp.eq.s32.totalorder %s9, 0
    %p71 = por %p69, %p70
    %p72 = scmp.ne.s32.totalorder %s64, %s66
    %p73 = scmp.eq.s32.totalorder %s14, 1
    %p74 = por %p72, %p73
    %p75 = scmp.ne.s32.totalorder %s66, %s67
    %p76 = scmp.eq.s32.totalorder %s14, 0
    %p77 = por %p75, %p76
    %p78 = scmp.ne.s32.totalorder %s66, %s67
    %p79 = scmp.eq.s32.totalorder %s15, 1
    %p80 = por %p78, %p79
    %p82 = scmp.ne.s32.totalorder %s67, %s81
    %p83 = scmp.eq.s32.totalorder %s15, 0
    %p84 = por %p82, %p83
    %s85 = ssub.s32 %s9, %s16
    %p86 = scmp.eq.s32.totalorder %s85, 0
    %s88 = sadd.s32 %s87, 1
    %s89 = scalar_select %p86, %s87, %s88
    %p92 = pneg %p86
    %p93 = scmp.eq.s32.totalorder %s9, 1
    %p94 = por %p92, %p93
    %p95 = scmp.ne.s32.totalorder %s87, %s90
    %p96 = scmp.eq.s32.totalorder %s9, 0
    %p97 = por %p95, %p96
    %p98 = scmp.ne.s32.totalorder %s87, %s90
    %p99 = scmp.eq.s32.totalorder %s14, 1
    %p100 = por %p98, %p99
    %p101 = scmp.ne.s32.totalorder %s90, %s91
    %p102 = scmp.eq.s32.totalorder %s14, 0
    %p103 = por %p101, %p102
    %p104 = scmp.ne.s32.totalorder %s90, %s91
    %p105 = scmp.eq.s32.totalorder %s15, 1
    %p106 = por %p104, %p105
    %p108 = scmp.ne.s32.totalorder %s91, %s107
    %p109 = scmp.eq.s32.totalorder %s15, 0
    %p110 = por %p108, %p109
    %p111 = scmp.le.s32.totalorder 1, %s9
    %p112 = scmp.lt.s32.totalorder %s9, 3
    %p113 = pnand %p111, %p112
    %p114 = pneg %p113
    // Predicated region
    $region9: #{vae_forward.10} parent=5 // pred_check
      _
    $region10: #{vae_forward.10} parent=5 // pred_check_branch
      %116 = sbr.rel (%p113) target = $region12
    $region11: #{vae_forward.10} parent=5 // pred_region
      %s117 = ssub.s32 %s9, 1
      // Predicated region
      $region13: #{vae_forward.10} parent=11 // pred_check
        %p118 = pneg %p56
      $region14: #{vae_forward.10} parent=11 // pred_check_branch
        %120 = sbr.rel (%p118) target = $region16
      $region15: #{vae_forward.10} parent=11 // pred_region
        _
      $region16: #{vae_forward.10} parent=11 // pred_fallthru
        _
      // Predicated region
      $region17: #{vae_forward.10} parent=11 // pred_check
        %p121 = pneg %p77
      $region18: #{vae_forward.10} parent=11 // pred_check_branch
        %123 = sbr.rel (%p121) target = $region20
      $region19: #{vae_forward.10} parent=11 // pred_region
        _
      $region20: #{vae_forward.10} parent=11 // pred_fallthru
        _
    $region12: #{vae_forward.10} parent=5 // pred_fallthru
      _
    %p124 = scmp.lt.s32.totalorder %s9, 2
    // Predicated region
    $region21: #{vae_forward.10} parent=5 // pred_check
      %p125 = pneg %p124
    $region22: #{vae_forward.10} parent=5 // pred_check_branch
      %127 = sbr.rel (%p125) target = $region24
    $region23: #{vae_forward.10} parent=5 // pred_region
      // Predicated region
      $region25: #{vae_forward.10} parent=23 // pred_check
        %p128 = pneg %p29
      $region26: #{vae_forward.10} parent=23 // pred_check_branch
        %130 = sbr.rel (%p128) target = $region28
      $region27: #{vae_forward.10} parent=23 // pred_region
        %s131 = smul.u32 128, %s9
        %p132 = scmp.lt.s32.totalorder %s131, 255
        %s133 = scalar_select %p132, %s131, 255
        %s134 = smul.addr %s133, 4
        %s135 = scalar_lea.vmem %s0, %s134
        %s136 = smul.u32 128, %s9
      $region28: #{vae_forward.10} parent=23 // pred_fallthru
        _
    $region24: #{vae_forward.10} parent=5 // pred_fallthru
      _
    %p137 = scmp.le.s32.totalorder 1, %s9
    %p138 = scmp.lt.s32.totalorder %s9, 3
    %p139 = pnand %p137, %p138
    %p140 = pneg %p139
    // Predicated region
    $region29: #{vae_forward.10} parent=5 // pred_check
      _
    $region30: #{vae_forward.10} parent=5 // pred_check_branch
      %142 = sbr.rel (%p139) target = $region32
    $region31: #{vae_forward.10} parent=5 // pred_region
      %s143 = ssub.s32 %s9, 1
      %s144 = smul.u32 128, %s14
      %p145 = scmp.lt.s32.totalorder %s144, 255
      %s146 = scalar_select %p145, %s144, 255
      %s147 = smul.addr %s146, 4
      %s148 = scalar_lea.vmem %s0, %s147
      %p149 = pneg %p35
      %p150 = pneg %p32
      %p151 = pneg %p56
      %p152 = pneg %p53
      %p153 = pneg %p77
      %p154 = pneg %p74
      %p155 = pneg %p103
      %p156 = pneg %p100
      %s157 = smul.u32 128, %s14
      %p158 = scmp.lt.s32.totalorder %s157, 255
      %s159 = scalar_select %p158, %s157, 255
      %s160 = smul.addr %s159, 4
      %s161 = scalar_lea.vmem %s3, %s160
      %s162 = smul.u32 128, %s14
      %p163 = scmp.lt.s32.totalorder %s162, 255
      %s164 = scalar_select %p163, %s162, 255
      %s165 = smul.addr %s164, 4
      %s166 = scalar_lea.vmem %s0, %s165
      %s167 = smul.u32 128, %s14
      %s168 = smul.u32 128, %s14
      %p169 = scmp.lt.s32.totalorder %s168, 255
      %s170 = scalar_select %p169, %s168, 255
      %s171 = smul.addr %s170, 4
      %s172 = scalar_lea.vmem %s3, %s171
      %s173 = smul.u32 128, %s14
      %v175 = vld [vmem:[%s166] sm:$0xf]
      %v176 = vld [vmem:[%s166 + $0x4] sm:$0xf]
      %v177 = vld [vmem:[%s166 + $0x8] sm:$0xf]
      %v178 = vld [vmem:[%s166 + $0xc] sm:$0xf]
      %v179 = vld [vmem:[%s166 + $0x10] sm:$0xf]
      %v180 = vld [vmem:[%s166 + $0x14] sm:$0xf]
      %v181 = vld [vmem:[%s166 + $0x18] sm:$0xf]
      %v182 = vld [vmem:[%s166 + $0x1c] sm:$0xf]
      %v183 = vld [vmem:[%s166 + $0x20] sm:$0xf]
      %v184 = vld [vmem:[%s166 + $0x24] sm:$0xf]
      %v185 = vld [vmem:[%s166 + $0x28] sm:$0xf]
      %v186 = vld [vmem:[%s166 + $0x2c] sm:$0xf]
      %v187 = vld [vmem:[%s166 + $0x30] sm:$0xf]
      %v188 = vld [vmem:[%s166 + $0x34] sm:$0xf]
      %v189 = vld [vmem:[%s166 + $0x38] sm:$0xf]
      %v190 = vld [vmem:[%s166 + $0x3c] sm:$0xf]
      %v191 = vld [vmem:[%s166 + $0x40] sm:$0xf]
      %v192 = vld [vmem:[%s166 + $0x44] sm:$0xf]
      %v193 = vld [vmem:[%s166 + $0x48] sm:$0xf]
      %v194 = vld [vmem:[%s166 + $0x4c] sm:$0xf]
      %v195 = vld [vmem:[%s166 + $0x50] sm:$0xf]
      %v196 = vld [vmem:[%s166 + $0x54] sm:$0xf]
      %v197 = vld [vmem:[%s166 + $0x58] sm:$0xf]
      %v198 = vld [vmem:[%s166 + $0x5c] sm:$0xf]
      %v199 = vld [vmem:[%s166 + $0x60] sm:$0xf]
      %v200 = vld [vmem:[%s166 + $0x64] sm:$0xf]
      %v201 = vld [vmem:[%s166 + $0x68] sm:$0xf]
      %v202 = vld [vmem:[%s166 + $0x6c] sm:$0xf]
      %v203 = vld [vmem:[%s166 + $0x70] sm:$0xf]
      %v204 = vld [vmem:[%s166 + $0x74] sm:$0xf]
      %v205 = vld [vmem:[%s166 + $0x78] sm:$0xf]
      %v206 = vld [vmem:[%s166 + $0x7c] sm:$0xf]
      %v207 = vld [vmem:[%s166 + $0x80] sm:$0xf]
      %v208 = vld [vmem:[%s166 + $0x84] sm:$0xf]
      %v209 = vld [vmem:[%s166 + $0x88] sm:$0xf]
      %v210 = vld [vmem:[%s166 + $0x8c] sm:$0xf]
      %v211 = vld [vmem:[%s166 + $0x90] sm:$0xf]
      %v212 = vld [vmem:[%s166 + $0x94] sm:$0xf]
      %v213 = vld [vmem:[%s166 + $0x98] sm:$0xf]
      %v214 = vld [vmem:[%s166 + $0x9c] sm:$0xf]
      %v215 = vld [vmem:[%s166 + $0xa0] sm:$0xf]
      %v216 = vld [vmem:[%s166 + $0xa4] sm:$0xf]
      %v217 = vld [vmem:[%s166 + $0xa8] sm:$0xf]
      %v218 = vld [vmem:[%s166 + $0xac] sm:$0xf]
      %v219 = vld [vmem:[%s166 + $0xb0] sm:$0xf]
      %v220 = vld [vmem:[%s166 + $0xb4] sm:$0xf]
      %v221 = vld [vmem:[%s166 + $0xb8] sm:$0xf]
      %v222 = vld [vmem:[%s166 + $0xbc] sm:$0xf]
      %v223 = vld [vmem:[%s166 + $0xc0] sm:$0xf]
      %v224 = vld [vmem:[%s166 + $0xc4] sm:$0xf]
      %v225 = vld [vmem:[%s166 + $0xc8] sm:$0xf]
      %v226 = vld [vmem:[%s166 + $0xcc] sm:$0xf]
      %v227 = vld [vmem:[%s166 + $0xd0] sm:$0xf]
      %v228 = vld [vmem:[%s166 + $0xd4] sm:$0xf]
      %v229 = vld [vmem:[%s166 + $0xd8] sm:$0xf]
      %v230 = vld [vmem:[%s166 + $0xdc] sm:$0xf]
      %v231 = vld [vmem:[%s166 + $0xe0] sm:$0xf]
      %v232 = vld [vmem:[%s166 + $0xe4] sm:$0xf]
      %v233 = vld [vmem:[%s166 + $0xe8] sm:$0xf]
      %v234 = vld [vmem:[%s166 + $0xec] sm:$0xf]
      %v235 = vld [vmem:[%s166 + $0xf0] sm:$0xf]
      %v236 = vld [vmem:[%s166 + $0xf4] sm:$0xf]
      %v237 = vld [vmem:[%s166 + $0xf8] sm:$0xf]
      %v238 = vld [vmem:[%s166 + $0xfc] sm:$0xf]
      %v239 = vld [vmem:[%s166 + $0x100] sm:$0xf]
      %v240 = vld [vmem:[%s166 + $0x104] sm:$0xf]
      %v241 = vld [vmem:[%s166 + $0x108] sm:$0xf]
      %v242 = vld [vmem:[%s166 + $0x10c] sm:$0xf]
      %v243 = vld [vmem:[%s166 + $0x110] sm:$0xf]
      %v244 = vld [vmem:[%s166 + $0x114] sm:$0xf]
      %v245 = vld [vmem:[%s166 + $0x118] sm:$0xf]
      %v246 = vld [vmem:[%s166 + $0x11c] sm:$0xf]
      %v247 = vld [vmem:[%s166 + $0x120] sm:$0xf]
      %v248 = vld [vmem:[%s166 + $0x124] sm:$0xf]
      %v249 = vld [vmem:[%s166 + $0x128] sm:$0xf]
      %v250 = vld [vmem:[%s166 + $0x12c] sm:$0xf]
      %v251 = vld [vmem:[%s166 + $0x130] sm:$0xf]
      %v252 = vld [vmem:[%s166 + $0x134] sm:$0xf]
      %v253 = vld [vmem:[%s166 + $0x138] sm:$0xf]
      %v254 = vld [vmem:[%s166 + $0x13c] sm:$0xf]
      %v255 = vld [vmem:[%s166 + $0x140] sm:$0xf]
      %v256 = vld [vmem:[%s166 + $0x144] sm:$0xf]
      %v257 = vld [vmem:[%s166 + $0x148] sm:$0xf]
      %v258 = vld [vmem:[%s166 + $0x14c] sm:$0xf]
      %v259 = vld [vmem:[%s166 + $0x150] sm:$0xf]
      %v260 = vld [vmem:[%s166 + $0x154] sm:$0xf]
      %v261 = vld [vmem:[%s166 + $0x158] sm:$0xf]
      %v262 = vld [vmem:[%s166 + $0x15c] sm:$0xf]
      %v263 = vld [vmem:[%s166 + $0x160] sm:$0xf]
      %v264 = vld [vmem:[%s166 + $0x164] sm:$0xf]
      %v265 = vld [vmem:[%s166 + $0x168] sm:$0xf]
      %v266 = vld [vmem:[%s166 + $0x16c] sm:$0xf]
      %v267 = vld [vmem:[%s166 + $0x170] sm:$0xf]
      %v268 = vld [vmem:[%s166 + $0x174] sm:$0xf]
      %v269 = vld [vmem:[%s166 + $0x178] sm:$0xf]
      %v270 = vld [vmem:[%s166 + $0x17c] sm:$0xf]
      %v271 = vld [vmem:[%s166 + $0x180] sm:$0xf]
      %v272 = vld [vmem:[%s166 + $0x184] sm:$0xf]
      %v273 = vld [vmem:[%s166 + $0x188] sm:$0xf]
      %v274 = vld [vmem:[%s166 + $0x18c] sm:$0xf]
      %v275 = vld [vmem:[%s166 + $0x190] sm:$0xf]
      %v276 = vld [vmem:[%s166 + $0x194] sm:$0xf]
      %v277 = vld [vmem:[%s166 + $0x198] sm:$0xf]
      %v278 = vld [vmem:[%s166 + $0x19c] sm:$0xf]
      %v279 = vld [vmem:[%s166 + $0x1a0] sm:$0xf]
      %v280 = vld [vmem:[%s166 + $0x1a4] sm:$0xf]
      %v281 = vld [vmem:[%s166 + $0x1a8] sm:$0xf]
      %v282 = vld [vmem:[%s166 + $0x1ac] sm:$0xf]
      %v283 = vld [vmem:[%s166 + $0x1b0] sm:$0xf]
      %v284 = vld [vmem:[%s166 + $0x1b4] sm:$0xf]
      %v285 = vld [vmem:[%s166 + $0x1b8] sm:$0xf]
      %v286 = vld [vmem:[%s166 + $0x1bc] sm:$0xf]
      %v287 = vld [vmem:[%s166 + $0x1c0] sm:$0xf]
      %v288 = vld [vmem:[%s166 + $0x1c4] sm:$0xf]
      %v289 = vld [vmem:[%s166 + $0x1c8] sm:$0xf]
      %v290 = vld [vmem:[%s166 + $0x1cc] sm:$0xf]
      %v291 = vld [vmem:[%s166 + $0x1d0] sm:$0xf]
      %v292 = vld [vmem:[%s166 + $0x1d4] sm:$0xf]
      %v293 = vld [vmem:[%s166 + $0x1d8] sm:$0xf]
      %v294 = vld [vmem:[%s166 + $0x1dc] sm:$0xf]
      %v295 = vld [vmem:[%s166 + $0x1e0] sm:$0xf]
      %v296 = vld [vmem:[%s166 + $0x1e4] sm:$0xf]
      %v297 = vld [vmem:[%s166 + $0x1e8] sm:$0xf]
      %v298 = vld [vmem:[%s166 + $0x1ec] sm:$0xf]
      %v299 = vld [vmem:[%s166 + $0x1f0] sm:$0xf]
      %v300 = vld [vmem:[%s166 + $0x1f4] sm:$0xf]
      %v301 = vld [vmem:[%s166 + $0x1f8] sm:$0xf]
      %v302 = vld [vmem:[%s166 + $0x1fc] sm:$0xf]
      %v303 = vld [vmem:[%s1] sm:$0xf]
      %v304 = vld [vmem:[%s1 + $0x4] sm:$0xf]
      %v305 = vld [vmem:[%s1 + $0x8] sm:$0xf]
      %v306 = vld [vmem:[%s1 + $0xc] sm:$0xf]
      %v307 = vld [vmem:[%s1 + $0x10] sm:$0xf]
      %v308 = vld [vmem:[%s1 + $0x14] sm:$0xf]
      %v309 = vld [vmem:[%s2] sm:$0x1]
      %v311 = vlaneseq
      %v312 = vshrl.u32 %v311, 7
      %v313 = vsub.s32 0, %v312
      %v314 = vrot.slane %v309, %v313
      %v444 = vunpack.c.l.b16 %v175
      %v445 = vunpack.c.l.b16 %v176
      %v446 = vunpack.c.l.b16 %v177
      %v447 = vunpack.c.l.b16 %v178
      %v448 = vunpack.c.l.b16 %v179
      %v449 = vunpack.c.l.b16 %v180
      %v450 = vunpack.c.l.b16 %v181
      %v451 = vunpack.c.l.b16 %v182
      %v452 = vunpack.c.l.b16 %v183
      %v453 = vunpack.c.l.b16 %v184
      %v454 = vunpack.c.l.b16 %v185
      %v455 = vunpack.c.l.b16 %v186
      %v456 = vunpack.c.l.b16 %v187
      %v457 = vunpack.c.l.b16 %v188
      %v458 = vunpack.c.l.b16 %v189
      %v459 = vunpack.c.l.b16 %v190
      %v460 = vunpack.c.l.b16 %v191
      %v461 = vunpack.c.l.b16 %v192
      %v462 = vunpack.c.l.b16 %v193
      %v463 = vunpack.c.l.b16 %v194
      %v464 = vunpack.c.l.b16 %v195
      %v465 = vunpack.c.l.b16 %v196
      %v466 = vunpack.c.l.b16 %v197
      %v467 = vunpack.c.l.b16 %v198
      %v468 = vunpack.c.l.b16 %v199
      %v469 = vunpack.c.l.b16 %v200
      %v470 = vunpack.c.l.b16 %v201
      %v471 = vunpack.c.l.b16 %v202
      %v472 = vunpack.c.l.b16 %v203
      %v473 = vunpack.c.l.b16 %v204
      %v474 = vunpack.c.l.b16 %v205
      %v475 = vunpack.c.l.b16 %v206
      %v476 = vunpack.c.l.b16 %v207
      %v477 = vunpack.c.l.b16 %v208
      %v478 = vunpack.c.l.b16 %v209
      %v479 = vunpack.c.l.b16 %v210
      %v480 = vunpack.c.l.b16 %v211
      %v481 = vunpack.c.l.b16 %v212
      %v482 = vunpack.c.l.b16 %v213
      %v483 = vunpack.c.l.b16 %v214
      %v484 = vunpack.c.l.b16 %v215
      %v485 = vunpack.c.l.b16 %v216
      %v486 = vunpack.c.l.b16 %v217
      %v487 = vunpack.c.l.b16 %v218
      %v488 = vunpack.c.l.b16 %v219
      %v489 = vunpack.c.l.b16 %v220
      %v490 = vunpack.c.l.b16 %v221
      %v491 = vunpack.c.l.b16 %v222
      %v492 = vunpack.c.l.b16 %v223
      %v493 = vunpack.c.l.b16 %v224
      %v494 = vunpack.c.l.b16 %v225
      %v495 = vunpack.c.l.b16 %v226
      %v496 = vunpack.c.l.b16 %v227
      %v497 = vunpack.c.l.b16 %v228
      %v498 = vunpack.c.l.b16 %v229
      %v499 = vunpack.c.l.b16 %v230
      %v500 = vunpack.c.l.b16 %v231
      %v501 = vunpack.c.l.b16 %v232
      %v502 = vunpack.c.l.b16 %v233
      %v503 = vunpack.c.l.b16 %v234
      %v504 = vunpack.c.l.b16 %v235
      %v505 = vunpack.c.l.b16 %v236
      %v506 = vunpack.c.l.b16 %v237
      %v507 = vunpack.c.l.b16 %v238
      %v508 = vunpack.c.l.b16 %v239
      %v509 = vunpack.c.l.b16 %v240
      %v510 = vunpack.c.l.b16 %v241
      %v511 = vunpack.c.l.b16 %v242
      %v512 = vunpack.c.l.b16 %v243
      %v513 = vunpack.c.l.b16 %v244
      %v514 = vunpack.c.l.b16 %v245
      %v515 = vunpack.c.l.b16 %v246
      %v516 = vunpack.c.l.b16 %v247
      %v517 = vunpack.c.l.b16 %v248
      %v518 = vunpack.c.l.b16 %v249
      %v519 = vunpack.c.l.b16 %v250
      %v520 = vunpack.c.l.b16 %v251
      %v521 = vunpack.c.l.b16 %v252
      %v522 = vunpack.c.l.b16 %v253
      %v523 = vunpack.c.l.b16 %v254
      %v524 = vunpack.c.l.b16 %v255
      %v525 = vunpack.c.l.b16 %v256
      %v526 = vunpack.c.l.b16 %v257
      %v527 = vunpack.c.l.b16 %v258
      %v528 = vunpack.c.l.b16 %v259
      %v529 = vunpack.c.l.b16 %v260
      %v530 = vunpack.c.l.b16 %v261
      %v531 = vunpack.c.l.b16 %v262
      %v532 = vunpack.c.l.b16 %v263
      %v533 = vunpack.c.l.b16 %v264
      %v534 = vunpack.c.l.b16 %v265
      %v535 = vunpack.c.l.b16 %v266
      %v536 = vunpack.c.l.b16 %v267
      %v537 = vunpack.c.l.b16 %v268
      %v538 = vunpack.c.l.b16 %v269
      %v539 = vunpack.c.l.b16 %v270
      %v540 = vunpack.c.l.b16 %v271
      %v541 = vunpack.c.l.b16 %v272
      %v542 = vunpack.c.l.b16 %v273
      %v543 = vunpack.c.l.b16 %v274
      %v544 = vunpack.c.l.b16 %v275
      %v545 = vunpack.c.l.b16 %v276
      %v546 = vunpack.c.l.b16 %v277
      %v547 = vunpack.c.l.b16 %v278
      %v548 = vunpack.c.l.b16 %v279
      %v549 = vunpack.c.l.b16 %v280
      %v550 = vunpack.c.l.b16 %v281
      %v551 = vunpack.c.l.b16 %v282
      %v552 = vunpack.c.l.b16 %v283
      %v553 = vunpack.c.l.b16 %v284
      %v554 = vunpack.c.l.b16 %v285
      %v555 = vunpack.c.l.b16 %v286
      %v556 = vunpack.c.l.b16 %v287
      %v557 = vunpack.c.l.b16 %v288
      %v558 = vunpack.c.l.b16 %v289
      %v559 = vunpack.c.l.b16 %v290
      %v560 = vunpack.c.l.b16 %v291
      %v561 = vunpack.c.l.b16 %v292
      %v562 = vunpack.c.l.b16 %v293
      %v563 = vunpack.c.l.b16 %v294
      %v564 = vunpack.c.l.b16 %v295
      %v565 = vunpack.c.l.b16 %v296
      %v566 = vunpack.c.l.b16 %v297
      %v567 = vunpack.c.l.b16 %v298
      %v568 = vunpack.c.l.b16 %v299
      %v569 = vunpack.c.l.b16 %v300
      %v570 = vunpack.c.l.b16 %v301
      %v571 = vunpack.c.l.b16 %v302
      %v572 = vpack.c.b16 %v445, %v444
      %v573 = vpack.c.b16 %v447, %v446
      %v574 = vpack.c.b16 %v449, %v448
      %v575 = vpack.c.b16 %v451, %v450
      %v576 = vpack.c.b16 %v453, %v452
      %v577 = vpack.c.b16 %v455, %v454
      %v578 = vpack.c.b16 %v457, %v456
      %v579 = vpack.c.b16 %v459, %v458
      %v580 = vpack.c.b16 %v461, %v460
      %v581 = vpack.c.b16 %v463, %v462
      %v582 = vpack.c.b16 %v465, %v464
      %v583 = vpack.c.b16 %v467, %v466
      %v584 = vpack.c.b16 %v469, %v468
      %v585 = vpack.c.b16 %v471, %v470
      %v586 = vpack.c.b16 %v473, %v472
      %v587 = vpack.c.b16 %v475, %v474
      %v588 = vpack.c.b16 %v477, %v476
      %v589 = vpack.c.b16 %v479, %v478
      %v590 = vpack.c.b16 %v481, %v480
      %v591 = vpack.c.b16 %v483, %v482
      %v592 = vpack.c.b16 %v485, %v484
      %v593 = vpack.c.b16 %v487, %v486
      %v594 = vpack.c.b16 %v489, %v488
      %v595 = vpack.c.b16 %v491, %v490
      %v596 = vpack.c.b16 %v493, %v492
      %v597 = vpack.c.b16 %v495, %v494
      %v598 = vpack.c.b16 %v497, %v496
      %v599 = vpack.c.b16 %v499, %v498
      %v600 = vpack.c.b16 %v501, %v500
      %v601 = vpack.c.b16 %v503, %v502
      %v602 = vpack.c.b16 %v505, %v504
      %v603 = vpack.c.b16 %v507, %v506
      %v604 = vpack.c.b16 %v509, %v508
      %v605 = vpack.c.b16 %v511, %v510
      %v606 = vpack.c.b16 %v513, %v512
      %v607 = vpack.c.b16 %v515, %v514
      %v608 = vpack.c.b16 %v517, %v516
      %v609 = vpack.c.b16 %v519, %v518
      %v610 = vpack.c.b16 %v521, %v520
      %v611 = vpack.c.b16 %v523, %v522
      %v612 = vpack.c.b16 %v525, %v524
      %v613 = vpack.c.b16 %v527, %v526
      %v614 = vpack.c.b16 %v529, %v528
      %v615 = vpack.c.b16 %v531, %v530
      %v616 = vpack.c.b16 %v533, %v532
      %v617 = vpack.c.b16 %v535, %v534
      %v618 = vpack.c.b16 %v537, %v536
      %v619 = vpack.c.b16 %v539, %v538
      %v620 = vpack.c.b16 %v541, %v540
      %v621 = vpack.c.b16 %v543, %v542
      %v622 = vpack.c.b16 %v545, %v544
      %v623 = vpack.c.b16 %v547, %v546
      %v624 = vpack.c.b16 %v549, %v548
      %v625 = vpack.c.b16 %v551, %v550
      %v626 = vpack.c.b16 %v553, %v552
      %v627 = vpack.c.b16 %v555, %v554
      %v628 = vpack.c.b16 %v557, %v556
      %v629 = vpack.c.b16 %v559, %v558
      %v630 = vpack.c.b16 %v561, %v560
      %v631 = vpack.c.b16 %v563, %v562
      %v632 = vpack.c.b16 %v565, %v564
      %v633 = vpack.c.b16 %v567, %v566
      %v634 = vpack.c.b16 %v569, %v568
      %v635 = vpack.c.b16 %v571, %v570
      %v642 = vunpack.c.l.b16 %v303
      %v643 = vunpack.c.l.b16 %v304
      %v644 = vunpack.c.l.b16 %v305
      %v645 = vunpack.c.l.b16 %v306
      %v646 = vunpack.c.l.b16 %v307
      %v647 = vunpack.c.l.b16 %v308
      %v648 = vpack.c.b16 %v643, %v642
      %v649 = vpack.c.b16 %v645, %v644
      %v650 = vpack.c.b16 %v647, %v646
      %vm654 = vcmask 392192
      %v656 = vsel %vm654, %v572, 0
      %v659 = vsel %vm654, %v573, 0
      %v662 = vsel %vm654, %v574, 0
      %v665 = vsel %vm654, %v575, 0
      %v668 = vsel %vm654, %v576, 0
      %v671 = vsel %vm654, %v577, 0
      %v674 = vsel %vm654, %v578, 0
      %v677 = vsel %vm654, %v579, 0
      %v680 = vsel %vm654, %v580, 0
      %v683 = vsel %vm654, %v581, 0
      %v686 = vsel %vm654, %v582, 0
      %v689 = vsel %vm654, %v583, 0
      %v692 = vsel %vm654, %v584, 0
      %v695 = vsel %vm654, %v585, 0
      %v698 = vsel %vm654, %v586, 0
      %v701 = vsel %vm654, %v587, 0
      %v704 = vsel %vm654, %v588, 0
      %v707 = vsel %vm654, %v589, 0
      %v710 = vsel %vm654, %v590, 0
      %v713 = vsel %vm654, %v591, 0
      %v716 = vsel %vm654, %v592, 0
      %v719 = vsel %vm654, %v593, 0
      %v722 = vsel %vm654, %v594, 0
      %v725 = vsel %vm654, %v595, 0
      %v728 = vsel %vm654, %v596, 0
      %v731 = vsel %vm654, %v597, 0
      %v734 = vsel %vm654, %v598, 0
      %v737 = vsel %vm654, %v599, 0
      %v740 = vsel %vm654, %v600, 0
      %v743 = vsel %vm654, %v601, 0
      %v746 = vsel %vm654, %v602, 0
      %v749 = vsel %vm654, %v603, 0
      %v752 = vsel %vm654, %v604, 0
      %v755 = vsel %vm654, %v605, 0
      %v758 = vsel %vm654, %v606, 0
      %v761 = vsel %vm654, %v607, 0
      %v764 = vsel %vm654, %v608, 0
      %v767 = vsel %vm654, %v609, 0
      %v770 = vsel %vm654, %v610, 0
      %v773 = vsel %vm654, %v611, 0
      %v776 = vsel %vm654, %v612, 0
      %v779 = vsel %vm654, %v613, 0
      %v782 = vsel %vm654, %v614, 0
      %v785 = vsel %vm654, %v615, 0
      %v788 = vsel %vm654, %v616, 0
      %v791 = vsel %vm654, %v617, 0
      %v794 = vsel %vm654, %v618, 0
      %v797 = vsel %vm654, %v619, 0
      %v800 = vsel %vm654, %v620, 0
      %v803 = vsel %vm654, %v621, 0
      %v806 = vsel %vm654, %v622, 0
      %v809 = vsel %vm654, %v623, 0
      %v812 = vsel %vm654, %v624, 0
      %v815 = vsel %vm654, %v625, 0
      %v818 = vsel %vm654, %v626, 0
      %v821 = vsel %vm654, %v627, 0
      %v824 = vsel %vm654, %v628, 0
      %v827 = vsel %vm654, %v629, 0
      %v830 = vsel %vm654, %v630, 0
      %v833 = vsel %vm654, %v631, 0
      %v836 = vsel %vm654, %v632, 0
      %v839 = vsel %vm654, %v633, 0
      %v842 = vsel %vm654, %v634, 0
      %v845 = vsel %vm654, %v635, 0
      %847 = vmatprep.subr.bf16.mxu0 0
      %848 = vmatpush1.bf16.msra.mxu0 %v648
      %849 = vmatprep.subr.bf16.mxu0 0
      %850 = vmatpush1.bf16.msra.mxu0 %v649
      %851 = vmatprep.subr.bf16.mxu0 0
      %852 = vmatpush1.bf16.msra.mxu0 %v650
      %853 = vmatprep.subr.bf16.mxu0 0
      %854 = vmatpush1.bf16.msra.mxu0 0
      %855 = vmatprep.subr.bf16.mxu0 0
      %856 = vmatpush1.bf16.msra.mxu0 0
      %857 = vmatprep.subr.bf16.mxu0 0
      %858 = vmatpush1.bf16.msra.mxu0 0
      %859 = vmatprep.subr.bf16.mxu0 0
      %860 = vmatpush1.bf16.msra.mxu0 0
      %861 = vmatprep.subr.bf16.mxu0 0
      %862 = vmatpush1.bf16.msra.mxu0 0
      %863 = vmatprep.subr.bf16.mxu0 0
      %864 = vmatpush1.bf16.msra.mxu0 0
      %865 = vmatprep.subr.bf16.mxu0 0
      %866 = vmatpush1.bf16.msra.mxu0 0
      %867 = vmatprep.subr.bf16.mxu0 0
      %868 = vmatpush1.bf16.msra.mxu0 0
      %869 = vmatprep.subr.bf16.mxu0 0
      %870 = vmatpush1.bf16.msra.mxu0 0
      %871 = vmatprep.subr.bf16.mxu0 0
      %872 = vmatpush1.bf16.msra.mxu0 0
      %873 = vmatprep.subr.bf16.mxu0 0
      %874 = vmatpush1.bf16.msra.mxu0 0
      %875 = vmatprep.subr.bf16.mxu0 0
      %876 = vmatpush1.bf16.msra.mxu0 0
      %877 = vmatprep.subr.bf16.mxu0 0
      %878 = vmatpush1.bf16.msra.mxu0 0
      %879 = vmatprep.mubr.bf16.mxu0 0
      %880 = vmatmul.mubr.bf16.gmra.mrb[0].mxu0 %v656
      %v881 = vpop.f32.mrb[0].mxu0
      %v882 = vadd.f32 %v314, %v881
      %v883 = vpop.f32.mrb[0].mxu0
      %v884 = vpop.f32.mrb[0].mxu0
      %v885 = vadd.f32 %v314, %v884
      %v886 = vpop.f32.mrb[0].mxu0
      %887 = vmatprep.mubr.bf16.mxu0 0
      %888 = vmatmul.mubr.bf16.gmra.mrb[0].mxu0 %v659
      %v889 = vpop.f32.mrb[0].mxu0
      %v890 = vadd.f32 %v314, %v889
      %v891 = vpop.f32.mrb[0].mxu0
      %v892 = vpop.f32.mrb[0].mxu0
      %v893 = vadd.f32 %v314, %v892
      %v894 = vpop.f32.mrb[0].mxu0
      %895 = vmatprep.mubr.bf16.mxu0 0
      %896 = vmatmul.mubr.bf16.gmra.mrb[0].mxu0 %v662
      %v897 = vpop.f32.mrb[0].mxu0
      %v898 = vadd.f32 %v314, %v897
      %v899 = vpop.f32.mrb[0].mxu0
      %v900 = vpop.f32.mrb[0].mxu0
      %v901 = vadd.f32 %v314, %v900
      %v902 = vpop.f32.mrb[0].mxu0
      %903 = vmatprep.mubr.bf16.mxu0 0
      %904 = vmatmul.mubr.bf16.gmra.mrb[0].mxu0 %v665
      %v905 = vpop.f32.mrb[0].mxu0
      %v906 = vadd.f32 %v314, %v905
      %v907 = vpop.f32.mrb[0].mxu0
      %v908 = vpop.f32.mrb[0].mxu0
      %v909 = vadd.f32 %v314, %v908
      %v910 = vpop.f32.mrb[0].mxu0
      %911 = vmatprep.mubr.bf16.mxu0 0
      %912 = vmatmul.mubr.bf16.gmra.mrb[0].mxu0 %v668
      %v913 = vpop.f32.mrb[0].mxu0
      %v914 = vadd.f32 %v314, %v913
      %v915 = vpop.f32.mrb[0].mxu0
      %v916 = vpop.f32.mrb[0].mxu0
      %v917 = vadd.f32 %v314, %v916
      %v918 = vpop.f32.mrb[0].mxu0
      %919 = vmatprep.mubr.bf16.mxu0 0
      %920 = vmatmul.mubr.bf16.gmra.mrb[0].mxu0 %v671
      %v921 = vpop.f32.mrb[0].mxu0
      %v922 = vadd.f32 %v314, %v921
      %v923 = vpop.f32.mrb[0].mxu0
      %v924 = vpop.f32.mrb[0].mxu0
      %v925 = vadd.f32 %v314, %v924
      %v926 = vpop.f32.mrb[0].mxu0
      %927 = vmatprep.mubr.bf16.mxu0 0
      %928 = vmatmul.mubr.bf16.gmra.mrb[0].mxu0 %v674
      %v929 = vpop.f32.mrb[0].mxu0
      %v930 = vadd.f32 %v314, %v929
      %v931 = vpop.f32.mrb[0].mxu0
      %v932 = vpop.f32.mrb[0].mxu0
      %v933 = vadd.f32 %v314, %v932
      %v934 = vpop.f32.mrb[0].mxu0
      %935 = vmatprep.mubr.bf16.mxu0 0
      %936 = vmatmul.mubr.bf16.gmra.mrb[0].mxu0 %v677
      %v937 = vpop.f32.mrb[0].mxu0
      %v938 = vadd.f32 %v314, %v937
      %v939 = vpop.f32.mrb[0].mxu0
      %v940 = vpop.f32.mrb[0].mxu0
      %v941 = vadd.f32 %v314, %v940
      %v942 = vpop.f32.mrb[0].mxu0
      %943 = vmatprep.mubr.bf16.mxu0 0
      %944 = vmatmul.mubr.bf16.gmra.mrb[0].mxu0 %v680
      %v945 = vpop.f32.mrb[0].mxu0
      %v946 = vadd.f32 %v314, %v945
      %v947 = vpop.f32.mrb[0].mxu0
      %v948 = vpop.f32.mrb[0].mxu0
      %v949 = vadd.f32 %v314, %v948
      %v950 = vpop.f32.mrb[0].mxu0
      %951 = vmatprep.mubr.bf16.mxu0 0
      %952 = vmatmul.mubr.bf16.gmra.mrb[0].mxu0 %v683
      %v953 = vpop.f32.mrb[0].mxu0
      %v954 = vadd.f32 %v314, %v953
      %v955 = vpop.f32.mrb[0].mxu0
      %v956 = vpop.f32.mrb[0].mxu0
      %v957 = vadd.f32 %v314, %v956
      %v958 = vpop.f32.mrb[0].mxu0
      %959 = vmatprep.mubr.bf16.mxu0 0
      %960 = vmatmul.mubr.bf16.gmra.mrb[0].mxu0 %v686
      %v961 = vpop.f32.mrb[0].mxu0
      %v962 = vadd.f32 %v314, %v961
      %v963 = vpop.f32.mrb[0].mxu0
      %v964 = vpop.f32.mrb[0].mxu0
      %v965 = vadd.f32 %v314, %v964
      %v966 = vpop.f32.mrb[0].mxu0
      %967 = vmatprep.mubr.bf16.mxu0 0
      %968 = vmatmul.mubr.bf16.gmra.mrb[0].mxu0 %v689
      %v969 = vpop.f32.mrb[0].mxu0
      %v970 = vadd.f32 %v314, %v969
      %v971 = vpop.f32.mrb[0].mxu0
      %v972 = vpop.f32.mrb[0].mxu0
      %v973 = vadd.f32 %v314, %v972
      %v974 = vpop.f32.mrb[0].mxu0
      %975 = vmatprep.mubr.bf16.mxu0 0
      %976 = vmatmul.mubr.bf16.gmra.mrb[0].mxu0 %v692
      %v977 = vpop.f32.mrb[0].mxu0
      %v978 = vadd.f32 %v314, %v977
      %v979 = vpop.f32.mrb[0].mxu0
      %v980 = vpop.f32.mrb[0].mxu0
      %v981 = vadd.f32 %v314, %v980
      %v982 = vpop.f32.mrb[0].mxu0
      %983 = vmatprep.mubr.bf16.mxu0 0
      %984 = vmatmul.mubr.bf16.gmra.mrb[0].mxu0 %v695
      %v985 = vpop.f32.mrb[0].mxu0
      %v986 = vadd.f32 %v314, %v985
      %v987 = vpop.f32.mrb[0].mxu0
      %v988 = vpop.f32.mrb[0].mxu0
      %v989 = vadd.f32 %v314, %v988
      %v990 = vpop.f32.mrb[0].mxu0
      %991 = vmatprep.mubr.bf16.mxu0 0
      %992 = vmatmul.mubr.bf16.gmra.mrb[0].mxu0 %v698
      %v993 = vpop.f32.mrb[0].mxu0
      %v994 = vadd.f32 %v314, %v993
      %v995 = vpop.f32.mrb[0].mxu0
      %v996 = vpop.f32.mrb[0].mxu0
      %v997 = vadd.f32 %v314, %v996
      %v998 = vpop.f32.mrb[0].mxu0
      %999 = vmatprep.mubr.bf16.mxu0 0
      %1000 = vmatmul.mubr.bf16.gmra.mrb[0].mxu0 %v701
      %v1001 = vpop.f32.mrb[0].mxu0
      %v1002 = vadd.f32 %v314, %v1001
      %v1003 = vpop.f32.mrb[0].mxu0
      %v1004 = vpop.f32.mrb[0].mxu0
      %v1005 = vadd.f32 %v314, %v1004
      %v1006 = vpop.f32.mrb[0].mxu0
      %1007 = vmatprep.mubr.bf16.mxu0 0
      %1008 = vmatmul.mubr.bf16.gmra.mrb[0].mxu0 %v704
      %v1009 = vpop.f32.mrb[0].mxu0
      %v1010 = vadd.f32 %v314, %v1009
      %v1011 = vpop.f32.mrb[0].mxu0
      %v1012 = vpop.f32.mrb[0].mxu0
      %v1013 = vadd.f32 %v314, %v1012
      %v1014 = vpop.f32.mrb[0].mxu0
      %1015 = vmatprep.mubr.bf16.mxu0 0
      %1016 = vmatmul.mubr.bf16.gmra.mrb[0].mxu0 %v707
      %v1017 = vpop.f32.mrb[0].mxu0
      %v1018 = vadd.f32 %v314, %v1017
      %v1019 = vpop.f32.mrb[0].mxu0
      %v1020 = vpop.f32.mrb[0].mxu0
      %v1021 = vadd.f32 %v314, %v1020
      %v1022 = vpop.f32.mrb[0].mxu0
      %1023 = vmatprep.mubr.bf16.mxu0 0
      %1024 = vmatmul.mubr.bf16.gmra.mrb[0].mxu0 %v710
      %v1025 = vpop.f32.mrb[0].mxu0
      %v1026 = vadd.f32 %v314, %v1025
      %v1027 = vpop.f32.mrb[0].mxu0
      %v1028 = vpop.f32.mrb[0].mxu0
      %v1029 = vadd.f32 %v314, %v1028
      %v1030 = vpop.f32.mrb[0].mxu0
      %1031 = vmatprep.mubr.bf16.mxu0 0
      %1032 = vmatmul.mubr.bf16.gmra.mrb[0].mxu0 %v713
      %v1033 = vpop.f32.mrb[0].mxu0
      %v1034 = vadd.f32 %v314, %v1033
      %v1035 = vpop.f32.mrb[0].mxu0
      %v1036 = vpop.f32.mrb[0].mxu0
      %v1037 = vadd.f32 %v314, %v1036
      %v1038 = vpop.f32.mrb[0].mxu0
      %1039 = vmatprep.mubr.bf16.mxu0 0
      %1040 = vmatmul.mubr.bf16.gmra.mrb[0].mxu0 %v716
      %v1041 = vpop.f32.mrb[0].mxu0
      %v1042 = vadd.f32 %v314, %v1041
      %v1043 = vpop.f32.mrb[0].mxu0
      %v1044 = vpop.f32.mrb[0].mxu0
      %v1045 = vadd.f32 %v314, %v1044
      %v1046 = vpop.f32.mrb[0].mxu0
      %1047 = vmatprep.mubr.bf16.mxu0 0
      %1048 = vmatmul.mubr.bf16.gmra.mrb[0].mxu0 %v719
      %v1049 = vpop.f32.mrb[0].mxu0
      %v1050 = vadd.f32 %v314, %v1049
      %v1051 = vpop.f32.mrb[0].mxu0
      %v1052 = vpop.f32.mrb[0].mxu0
      %v1053 = vadd.f32 %v314, %v1052
      %v1054 = vpop.f32.mrb[0].mxu0
      %1055 = vmatprep.mubr.bf16.mxu0 0
      %1056 = vmatmul.mubr.bf16.gmra.mrb[0].mxu0 %v722
      %v1057 = vpop.f32.mrb[0].mxu0
      %v1058 = vadd.f32 %v314, %v1057
      %v1059 = vpop.f32.mrb[0].mxu0
      %v1060 = vpop.f32.mrb[0].mxu0
      %v1061 = vadd.f32 %v314, %v1060
      %v1062 = vpop.f32.mrb[0].mxu0
      %1063 = vmatprep.mubr.bf16.mxu0 0
      %1064 = vmatmul.mubr.bf16.gmra.mrb[0].mxu0 %v725
      %v1065 = vpop.f32.mrb[0].mxu0
      %v1066 = vadd.f32 %v314, %v1065
      %v1067 = vpop.f32.mrb[0].mxu0
      %v1068 = vpop.f32.mrb[0].mxu0
      %v1069 = vadd.f32 %v314, %v1068
      %v1070 = vpop.f32.mrb[0].mxu0
      %1071 = vmatprep.mubr.bf16.mxu0 0
      %1072 = vmatmul.mubr.bf16.gmra.mrb[0].mxu0 %v728
      %v1073 = vpop.f32.mrb[0].mxu0
      %v1074 = vadd.f32 %v314, %v1073
      %v1075 = vpop.f32.mrb[0].mxu0
      %v1076 = vpop.f32.mrb[0].mxu0
      %v1077 = vadd.f32 %v314, %v1076
      %v1078 = vpop.f32.mrb[0].mxu0
      %1079 = vmatprep.mubr.bf16.mxu0 0
      %1080 = vmatmul.mubr.bf16.gmra.mrb[0].mxu0 %v731
      %v1081 = vpop.f32.mrb[0].mxu0
      %v1082 = vadd.f32 %v314, %v1081
      %v1083 = vpop.f32.mrb[0].mxu0
      %v1084 = vpop.f32.mrb[0].mxu0
      %v1085 = vadd.f32 %v314, %v1084
      %v1086 = vpop.f32.mrb[0].mxu0
      %1087 = vmatprep.mubr.bf16.mxu0 0
      %1088 = vmatmul.mubr.bf16.gmra.mrb[0].mxu0 %v734
      %v1089 = vpop.f32.mrb[0].mxu0
      %v1090 = vadd.f32 %v314, %v1089
      %v1091 = vpop.f32.mrb[0].mxu0
      %v1092 = vpop.f32.mrb[0].mxu0
      %v1093 = vadd.f32 %v314, %v1092
      %v1094 = vpop.f32.mrb[0].mxu0
      %1095 = vmatprep.mubr.bf16.mxu0 0
      %1096 = vmatmul.mubr.bf16.gmra.mrb[0].mxu0 %v737
      %v1097 = vpop.f32.mrb[0].mxu0
      %v1098 = vadd.f32 %v314, %v1097
      %v1099 = vpop.f32.mrb[0].mxu0
      %v1100 = vpop.f32.mrb[0].mxu0
      %v1101 = vadd.f32 %v314, %v1100
      %v1102 = vpop.f32.mrb[0].mxu0
      %1103 = vmatprep.mubr.bf16.mxu0 0
      %1104 = vmatmul.mubr.bf16.gmra.mrb[0].mxu0 %v740
      %v1105 = vpop.f32.mrb[0].mxu0
      %v1106 = vadd.f32 %v314, %v1105
      %v1107 = vpop.f32.mrb[0].mxu0
      %v1108 = vpop.f32.mrb[0].mxu0
      %v1109 = vadd.f32 %v314, %v1108
      %v1110 = vpop.f32.mrb[0].mxu0
      %1111 = vmatprep.mubr.bf16.mxu0 0
      %1112 = vmatmul.mubr.bf16.gmra.mrb[0].mxu0 %v743
      %v1113 = vpop.f32.mrb[0].mxu0
      %v1114 = vadd.f32 %v314, %v1113
      %v1115 = vpop.f32.mrb[0].mxu0
      %v1116 = vpop.f32.mrb[0].mxu0
      %v1117 = vadd.f32 %v314, %v1116
      %v1118 = vpop.f32.mrb[0].mxu0
      %1119 = vmatprep.mubr.bf16.mxu0 0
      %1120 = vmatmul.mubr.bf16.gmra.mrb[0].mxu0 %v746
      %v1121 = vpop.f32.mrb[0].mxu0
      %v1122 = vadd.f32 %v314, %v1121
      %v1123 = vpop.f32.mrb[0].mxu0
      %v1124 = vpop.f32.mrb[0].mxu0
      %v1125 = vadd.f32 %v314, %v1124
      %v1126 = vpop.f32.mrb[0].mxu0
      %1127 = vmatprep.mubr.bf16.mxu0 0
      %1128 = vmatmul.mubr.bf16.gmra.mrb[0].mxu0 %v749
      %v1129 = vpop.f32.mrb[0].mxu0
      %v1130 = vadd.f32 %v314, %v1129
      %v1131 = vpop.f32.mrb[0].mxu0
      %v1132 = vpop.f32.mrb[0].mxu0
      %v1133 = vadd.f32 %v314, %v1132
      %v1134 = vpop.f32.mrb[0].mxu0
      %1135 = vmatprep.mubr.bf16.mxu0 0
      %1136 = vmatmul.mubr.bf16.gmra.mrb[0].mxu0 %v752
      %v1137 = vpop.f32.mrb[0].mxu0
      %v1138 = vadd.f32 %v314, %v1137
      %v1139 = vpop.f32.mrb[0].mxu0
      %v1140 = vpop.f32.mrb[0].mxu0
      %v1141 = vadd.f32 %v314, %v1140
      %v1142 = vpop.f32.mrb[0].mxu0
      %1143 = vmatprep.mubr.bf16.mxu0 0
      %1144 = vmatmul.mubr.bf16.gmra.mrb[0].mxu0 %v755
      %v1145 = vpop.f32.mrb[0].mxu0
      %v1146 = vadd.f32 %v314, %v1145
      %v1147 = vpop.f32.mrb[0].mxu0
      %v1148 = vpop.f32.mrb[0].mxu0
      %v1149 = vadd.f32 %v314, %v1148
      %v1150 = vpop.f32.mrb[0].mxu0
      %1151 = vmatprep.mubr.bf16.mxu0 0
      %1152 = vmatmul.mubr.bf16.gmra.mrb[0].mxu0 %v758
      %v1153 = vpop.f32.mrb[0].mxu0
      %v1154 = vadd.f32 %v314, %v1153
      %v1155 = vpop.f32.mrb[0].mxu0
      %v1156 = vpop.f32.mrb[0].mxu0
      %v1157 = vadd.f32 %v314, %v1156
      %v1158 = vpop.f32.mrb[0].mxu0
      %1159 = vmatprep.mubr.bf16.mxu0 0
      %1160 = vmatmul.mubr.bf16.gmra.mrb[0].mxu0 %v761
      %v1161 = vpop.f32.mrb[0].mxu0
      %v1162 = vadd.f32 %v314, %v1161
      %v1163 = vpop.f32.mrb[0].mxu0
      %v1164 = vpop.f32.mrb[0].mxu0
      %v1165 = vadd.f32 %v314, %v1164
      %v1166 = vpop.f32.mrb[0].mxu0
      %1167 = vmatprep.mubr.bf16.mxu0 0
      %1168 = vmatmul.mubr.bf16.gmra.mrb[0].mxu0 %v764
      %v1169 = vpop.f32.mrb[0].mxu0
      %v1170 = vadd.f32 %v314, %v1169
      %v1171 = vpop.f32.mrb[0].mxu0
      %v1172 = vpop.f32.mrb[0].mxu0
      %v1173 = vadd.f32 %v314, %v1172
      %v1174 = vpop.f32.mrb[0].mxu0
      %1175 = vmatprep.mubr.bf16.mxu0 0
      %1176 = vmatmul.mubr.bf16.gmra.mrb[0].mxu0 %v767
      %v1177 = vpop.f32.mrb[0].mxu0
      %v1178 = vadd.f32 %v314, %v1177
      %v1179 = vpop.f32.mrb[0].mxu0
      %v1180 = vpop.f32.mrb[0].mxu0
      %v1181 = vadd.f32 %v314, %v1180
      %v1182 = vpop.f32.mrb[0].mxu0
      %1183 = vmatprep.mubr.bf16.mxu0 0
      %1184 = vmatmul.mubr.bf16.gmra.mrb[0].mxu0 %v770
      %v1185 = vpop.f32.mrb[0].mxu0
      %v1186 = vadd.f32 %v314, %v1185
      %v1187 = vpop.f32.mrb[0].mxu0
      %v1188 = vpop.f32.mrb[0].mxu0
      %v1189 = vadd.f32 %v314, %v1188
      %v1190 = vpop.f32.mrb[0].mxu0
      %1191 = vmatprep.mubr.bf16.mxu0 0
      %1192 = vmatmul.mubr.bf16.gmra.mrb[0].mxu0 %v773
      %v1193 = vpop.f32.mrb[0].mxu0
      %v1194 = vadd.f32 %v314, %v1193
      %v1195 = vpop.f32.mrb[0].mxu0
      %v1196 = vpop.f32.mrb[0].mxu0
      %v1197 = vadd.f32 %v314, %v1196
      %v1198 = vpop.f32.mrb[0].mxu0
      %1199 = vmatprep.mubr.bf16.mxu0 0
      %1200 = vmatmul.mubr.bf16.gmra.mrb[0].mxu0 %v776
      %v1201 = vpop.f32.mrb[0].mxu0
      %v1202 = vadd.f32 %v314, %v1201
      %v1203 = vpop.f32.mrb[0].mxu0
      %v1204 = vpop.f32.mrb[0].mxu0
      %v1205 = vadd.f32 %v314, %v1204
      %v1206 = vpop.f32.mrb[0].mxu0
      %1207 = vmatprep.mubr.bf16.mxu0 0
      %1208 = vmatmul.mubr.bf16.gmra.mrb[0].mxu0 %v779
      %v1209 = vpop.f32.mrb[0].mxu0
      %v1210 = vadd.f32 %v314, %v1209
      %v1211 = vpop.f32.mrb[0].mxu0
      %v1212 = vpop.f32.mrb[0].mxu0
      %v1213 = vadd.f32 %v314, %v1212
      %v1214 = vpop.f32.mrb[0].mxu0
      %1215 = vmatprep.mubr.bf16.mxu0 0
      %1216 = vmatmul.mubr.bf16.gmra.mrb[0].mxu0 %v782
      %v1217 = vpop.f32.mrb[0].mxu0
      %v1218 = vadd.f32 %v314, %v1217
      %v1219 = vpop.f32.mrb[0].mxu0
      %v1220 = vpop.f32.mrb[0].mxu0
      %v1221 = vadd.f32 %v314, %v1220
      %v1222 = vpop.f32.mrb[0].mxu0
      %1223 = vmatprep.mubr.bf16.mxu0 0
      %1224 = vmatmul.mubr.bf16.gmra.mrb[0].mxu0 %v785
      %v1225 = vpop.f32.mrb[0].mxu0
      %v1226 = vadd.f32 %v314, %v1225
      %v1227 = vpop.f32.mrb[0].mxu0
      %v1228 = vpop.f32.mrb[0].mxu0
      %v1229 = vadd.f32 %v314, %v1228
      %v1230 = vpop.f32.mrb[0].mxu0
      %1231 = vmatprep.mubr.bf16.mxu0 0
      %1232 = vmatmul.mubr.bf16.gmra.mrb[0].mxu0 %v788
      %v1233 = vpop.f32.mrb[0].mxu0
      %v1234 = vadd.f32 %v314, %v1233
      %v1235 = vpop.f32.mrb[0].mxu0
      %v1236 = vpop.f32.mrb[0].mxu0
      %v1237 = vadd.f32 %v314, %v1236
      %v1238 = vpop.f32.mrb[0].mxu0
      %1239 = vmatprep.mubr.bf16.mxu0 0
      %1240 = vmatmul.mubr.bf16.gmra.mrb[0].mxu0 %v791
      %v1241 = vpop.f32.mrb[0].mxu0
      %v1242 = vadd.f32 %v314, %v1241
      %v1243 = vpop.f32.mrb[0].mxu0
      %v1244 = vpop.f32.mrb[0].mxu0
      %v1245 = vadd.f32 %v314, %v1244
      %v1246 = vpop.f32.mrb[0].mxu0
      %1247 = vmatprep.mubr.bf16.mxu0 0
      %1248 = vmatmul.mubr.bf16.gmra.mrb[0].mxu0 %v794
      %v1249 = vpop.f32.mrb[0].mxu0
      %v1250 = vadd.f32 %v314, %v1249
      %v1251 = vpop.f32.mrb[0].mxu0
      %v1252 = vpop.f32.mrb[0].mxu0
      %v1253 = vadd.f32 %v314, %v1252
      %v1254 = vpop.f32.mrb[0].mxu0
      %1255 = vmatprep.mubr.bf16.mxu0 0
      %1256 = vmatmul.mubr.bf16.gmra.mrb[0].mxu0 %v797
      %v1257 = vpop.f32.mrb[0].mxu0
      %v1258 = vadd.f32 %v314, %v1257
      %v1259 = vpop.f32.mrb[0].mxu0
      %v1260 = vpop.f32.mrb[0].mxu0
      %v1261 = vadd.f32 %v314, %v1260
      %v1262 = vpop.f32.mrb[0].mxu0
      %1263 = vmatprep.mubr.bf16.mxu0 0
      %1264 = vmatmul.mubr.bf16.gmra.mrb[0].mxu0 %v800
      %v1265 = vpop.f32.mrb[0].mxu0
      %v1266 = vadd.f32 %v314, %v1265
      %v1267 = vpop.f32.mrb[0].mxu0
      %v1268 = vpop.f32.mrb[0].mxu0
      %v1269 = vadd.f32 %v314, %v1268
      %v1270 = vpop.f32.mrb[0].mxu0
      %1271 = vmatprep.mubr.bf16.mxu0 0
      %1272 = vmatmul.mubr.bf16.gmra.mrb[0].mxu0 %v803
      %v1273 = vpop.f32.mrb[0].mxu0
      %v1274 = vadd.f32 %v314, %v1273
      %v1275 = vpop.f32.mrb[0].mxu0
      %v1276 = vpop.f32.mrb[0].mxu0
      %v1277 = vadd.f32 %v314, %v1276
      %v1278 = vpop.f32.mrb[0].mxu0
      %1279 = vmatprep.mubr.bf16.mxu0 0
      %1280 = vmatmul.mubr.bf16.gmra.mrb[0].mxu0 %v806
      %v1281 = vpop.f32.mrb[0].mxu0
      %v1282 = vadd.f32 %v314, %v1281
      %v1283 = vpop.f32.mrb[0].mxu0
      %v1284 = vpop.f32.mrb[0].mxu0
      %v1285 = vadd.f32 %v314, %v1284
      %v1286 = vpop.f32.mrb[0].mxu0
      %1287 = vmatprep.mubr.bf16.mxu0 0
      %1288 = vmatmul.mubr.bf16.gmra.mrb[0].mxu0 %v809
      %v1289 = vpop.f32.mrb[0].mxu0
      %v1290 = vadd.f32 %v314, %v1289
      %v1291 = vpop.f32.mrb[0].mxu0
      %v1292 = vpop.f32.mrb[0].mxu0
      %v1293 = vadd.f32 %v314, %v1292
      %v1294 = vpop.f32.mrb[0].mxu0
      %1295 = vmatprep.mubr.bf16.mxu0 0
      %1296 = vmatmul.mubr.bf16.gmra.mrb[0].mxu0 %v812
      %v1297 = vpop.f32.mrb[0].mxu0
      %v1298 = vadd.f32 %v314, %v1297
      %v1299 = vpop.f32.mrb[0].mxu0
      %v1300 = vpop.f32.mrb[0].mxu0
      %v1301 = vadd.f32 %v314, %v1300
      %v1302 = vpop.f32.mrb[0].mxu0
      %1303 = vmatprep.mubr.bf16.mxu0 0
      %1304 = vmatmul.mubr.bf16.gmra.mrb[0].mxu0 %v815
      %v1305 = vpop.f32.mrb[0].mxu0
      %v1306 = vadd.f32 %v314, %v1305
      %v1307 = vpop.f32.mrb[0].mxu0
      %v1308 = vpop.f32.mrb[0].mxu0
      %v1309 = vadd.f32 %v314, %v1308
      %v1310 = vpop.f32.mrb[0].mxu0
      %1311 = vmatprep.mubr.bf16.mxu0 0
      %1312 = vmatmul.mubr.bf16.gmra.mrb[0].mxu0 %v818
      %v1313 = vpop.f32.mrb[0].mxu0
      %v1314 = vadd.f32 %v314, %v1313
      %v1315 = vpop.f32.mrb[0].mxu0
      %v1316 = vpop.f32.mrb[0].mxu0
      %v1317 = vadd.f32 %v314, %v1316
      %v1318 = vpop.f32.mrb[0].mxu0
      %1319 = vmatprep.mubr.bf16.mxu0 0
      %1320 = vmatmul.mubr.bf16.gmra.mrb[0].mxu0 %v821
      %v1321 = vpop.f32.mrb[0].mxu0
      %v1322 = vadd.f32 %v314, %v1321
      %v1323 = vpop.f32.mrb[0].mxu0
      %v1324 = vpop.f32.mrb[0].mxu0
      %v1325 = vadd.f32 %v314, %v1324
      %v1326 = vpop.f32.mrb[0].mxu0
      %1327 = vmatprep.mubr.bf16.mxu0 0
      %1328 = vmatmul.mubr.bf16.gmra.mrb[0].mxu0 %v824
      %v1329 = vpop.f32.mrb[0].mxu0
      %v1330 = vadd.f32 %v314, %v1329
      %v1331 = vpop.f32.mrb[0].mxu0
      %v1332 = vpop.f32.mrb[0].mxu0
      %v1333 = vadd.f32 %v314, %v1332
      %v1334 = vpop.f32.mrb[0].mxu0
      %1335 = vmatprep.mubr.bf16.mxu0 0
      %1336 = vmatmul.mubr.bf16.gmra.mrb[0].mxu0 %v827
      %v1337 = vpop.f32.mrb[0].mxu0
      %v1338 = vadd.f32 %v314, %v1337
      %v1339 = vpop.f32.mrb[0].mxu0
      %v1340 = vpop.f32.mrb[0].mxu0
      %v1341 = vadd.f32 %v314, %v1340
      %v1342 = vpop.f32.mrb[0].mxu0
      %1343 = vmatprep.mubr.bf16.mxu0 0
      %1344 = vmatmul.mubr.bf16.gmra.mrb[0].mxu0 %v830
      %v1345 = vpop.f32.mrb[0].mxu0
      %v1346 = vadd.f32 %v314, %v1345
      %v1347 = vpop.f32.mrb[0].mxu0
      %v1348 = vpop.f32.mrb[0].mxu0
      %v1349 = vadd.f32 %v314, %v1348
      %v1350 = vpop.f32.mrb[0].mxu0
      %1351 = vmatprep.mubr.bf16.mxu0 0
      %1352 = vmatmul.mubr.bf16.gmra.mrb[0].mxu0 %v833
      %v1353 = vpop.f32.mrb[0].mxu0
      %v1354 = vadd.f32 %v314, %v1353
      %v1355 = vpop.f32.mrb[0].mxu0
      %v1356 = vpop.f32.mrb[0].mxu0
      %v1357 = vadd.f32 %v314, %v1356
      %v1358 = vpop.f32.mrb[0].mxu0
      %1359 = vmatprep.mubr.bf16.mxu0 0
      %1360 = vmatmul.mubr.bf16.gmra.mrb[0].mxu0 %v836
      %v1361 = vpop.f32.mrb[0].mxu0
      %v1362 = vadd.f32 %v314, %v1361
      %v1363 = vpop.f32.mrb[0].mxu0
      %v1364 = vpop.f32.mrb[0].mxu0
      %v1365 = vadd.f32 %v314, %v1364
      %v1366 = vpop.f32.mrb[0].mxu0
      %1367 = vmatprep.mubr.bf16.mxu0 0
      %1368 = vmatmul.mubr.bf16.gmra.mrb[0].mxu0 %v839
      %v1369 = vpop.f32.mrb[0].mxu0
      %v1370 = vadd.f32 %v314, %v1369
      %v1371 = vpop.f32.mrb[0].mxu0
      %v1372 = vpop.f32.mrb[0].mxu0
      %v1373 = vadd.f32 %v314, %v1372
      %v1374 = vpop.f32.mrb[0].mxu0
      %1375 = vmatprep.mubr.bf16.mxu0 0
      %1376 = vmatmul.mubr.bf16.gmra.mrb[0].mxu0 %v842
      %v1377 = vpop.f32.mrb[0].mxu0
      %v1378 = vadd.f32 %v314, %v1377
      %v1379 = vpop.f32.mrb[0].mxu0
      %v1380 = vpop.f32.mrb[0].mxu0
      %v1381 = vadd.f32 %v314, %v1380
      %v1382 = vpop.f32.mrb[0].mxu0
      %1383 = vmatprep.mubr.bf16.mxu0 0
      %1384 = vmatmul.mubr.bf16.gmra.mrb[0].mxu0 %v845
      %v1385 = vpop.f32.mrb[0].mxu0
      %v1386 = vadd.f32 %v314, %v1385
      %v1387 = vpop.f32.mrb[0].mxu0
      %v1388 = vpop.f32.mrb[0].mxu0
      %v1389 = vadd.f32 %v314, %v1388
      %v1390 = vpop.f32.mrb[0].mxu0
      %1391 = vdwg.mxu0
      %vm1392 = vcmp.gt.f32.partialorder %v882, 0.0
      %vm1393 = vcmp.gt.f32.partialorder %v885, 0.0
      %vm1394 = vcmp.gt.f32.partialorder %v890, 0.0
      %vm1395 = vcmp.gt.f32.partialorder %v893, 0.0
      %vm1396 = vcmp.gt.f32.partialorder %v898, 0.0
      %vm1397 = vcmp.gt.f32.partialorder %v901, 0.0
      %vm1398 = vcmp.gt.f32.partialorder %v906, 0.0
      %vm1399 = vcmp.gt.f32.partialorder %v909, 0.0
      %vm1400 = vcmp.gt.f32.partialorder %v914, 0.0
      %vm1401 = vcmp.gt.f32.partialorder %v917, 0.0
      %vm1402 = vcmp.gt.f32.partialorder %v922, 0.0
      %vm1403 = vcmp.gt.f32.partialorder %v925, 0.0
      %vm1404 = vcmp.gt.f32.partialorder %v930, 0.0
      %vm1405 = vcmp.gt.f32.partialorder %v933, 0.0
      %vm1406 = vcmp.gt.f32.partialorder %v938, 0.0
      %vm1407 = vcmp.gt.f32.partialorder %v941, 0.0
      %vm1408 = vcmp.gt.f32.partialorder %v946, 0.0
      %vm1409 = vcmp.gt.f32.partialorder %v949, 0.0
      %vm1410 = vcmp.gt.f32.partialorder %v954, 0.0
      %vm1411 = vcmp.gt.f32.partialorder %v957, 0.0
      %vm1412 = vcmp.gt.f32.partialorder %v962, 0.0
      %vm1413 = vcmp.gt.f32.partialorder %v965, 0.0
      %vm1414 = vcmp.gt.f32.partialorder %v970, 0.0
      %vm1415 = vcmp.gt.f32.partialorder %v973, 0.0
      %vm1416 = vcmp.gt.f32.partialorder %v978, 0.0
      %vm1417 = vcmp.gt.f32.partialorder %v981, 0.0
      %vm1418 = vcmp.gt.f32.partialorder %v986, 0.0
      %vm1419 = vcmp.gt.f32.partialorder %v989, 0.0
      %vm1420 = vcmp.gt.f32.partialorder %v994, 0.0
      %vm1421 = vcmp.gt.f32.partialorder %v997, 0.0
      %vm1422 = vcmp.gt.f32.partialorder %v1002, 0.0
      %vm1423 = vcmp.gt.f32.partialorder %v1005, 0.0
      %vm1424 = vcmp.gt.f32.partialorder %v1010, 0.0
      %vm1425 = vcmp.gt.f32.partialorder %v1013, 0.0
      %vm1426 = vcmp.gt.f32.partialorder %v1018, 0.0
      %vm1427 = vcmp.gt.f32.partialorder %v1021, 0.0
      %vm1428 = vcmp.gt.f32.partialorder %v1026, 0.0
      %vm1429 = vcmp.gt.f32.partialorder %v1029, 0.0
      %vm1430 = vcmp.gt.f32.partialorder %v1034, 0.0
      %vm1431 = vcmp.gt.f32.partialorder %v1037, 0.0
      %vm1432 = vcmp.gt.f32.partialorder %v1042, 0.0
      %vm1433 = vcmp.gt.f32.partialorder %v1045, 0.0
      %vm1434 = vcmp.gt.f32.partialorder %v1050, 0.0
      %vm1435 = vcmp.gt.f32.partialorder %v1053, 0.0
      %vm1436 = vcmp.gt.f32.partialorder %v1058, 0.0
      %vm1437 = vcmp.gt.f32.partialorder %v1061, 0.0
      %vm1438 = vcmp.gt.f32.partialorder %v1066, 0.0
      %vm1439 = vcmp.gt.f32.partialorder %v1069, 0.0
      %vm1440 = vcmp.gt.f32.partialorder %v1074, 0.0
      %vm1441 = vcmp.gt.f32.partialorder %v1077, 0.0
      %vm1442 = vcmp.gt.f32.partialorder %v1082, 0.0
      %vm1443 = vcmp.gt.f32.partialorder %v1085, 0.0
      %vm1444 = vcmp.gt.f32.partialorder %v1090, 0.0
      %vm1445 = vcmp.gt.f32.partialorder %v1093, 0.0
      %vm1446 = vcmp.gt.f32.partialorder %v1098, 0.0
      %vm1447 = vcmp.gt.f32.partialorder %v1101, 0.0
      %vm1448 = vcmp.gt.f32.partialorder %v1106, 0.0
      %vm1449 = vcmp.gt.f32.partialorder %v1109, 0.0
      %vm1450 = vcmp.gt.f32.partialorder %v1114, 0.0
      %vm1451 = vcmp.gt.f32.partialorder %v1117, 0.0
      %vm1452 = vcmp.gt.f32.partialorder %v1122, 0.0
      %vm1453 = vcmp.gt.f32.partialorder %v1125, 0.0
      %vm1454 = vcmp.gt.f32.partialorder %v1130, 0.0
      %vm1455 = vcmp.gt.f32.partialorder %v1133, 0.0
      %vm1456 = vcmp.gt.f32.partialorder %v1138, 0.0
      %vm1457 = vcmp.gt.f32.partialorder %v1141, 0.0
      %vm1458 = vcmp.gt.f32.partialorder %v1146, 0.0
      %vm1459 = vcmp.gt.f32.partialorder %v1149, 0.0
      %vm1460 = vcmp.gt.f32.partialorder %v1154, 0.0
      %vm1461 = vcmp.gt.f32.partialorder %v1157, 0.0
      %vm1462 = vcmp.gt.f32.partialorder %v1162, 0.0
      %vm1463 = vcmp.gt.f32.partialorder %v1165, 0.0
      %vm1464 = vcmp.gt.f32.partialorder %v1170, 0.0
      %vm1465 = vcmp.gt.f32.partialorder %v1173, 0.0
      %vm1466 = vcmp.gt.f32.partialorder %v1178, 0.0
      %vm1467 = vcmp.gt.f32.partialorder %v1181, 0.0
      %vm1468 = vcmp.gt.f32.partialorder %v1186, 0.0
      %vm1469 = vcmp.gt.f32.partialorder %v1189, 0.0
      %vm1470 = vcmp.gt.f32.partialorder %v1194, 0.0
      %vm1471 = vcmp.gt.f32.partialorder %v1197, 0.0
      %vm1472 = vcmp.gt.f32.partialorder %v1202, 0.0
      %vm1473 = vcmp.gt.f32.partialorder %v1205, 0.0
      %vm1474 = vcmp.gt.f32.partialorder %v1210, 0.0
      %vm1475 = vcmp.gt.f32.partialorder %v1213, 0.0
      %vm1476 = vcmp.gt.f32.partialorder %v1218, 0.0
      %vm1477 = vcmp.gt.f32.partialorder %v1221, 0.0
      %vm1478 = vcmp.gt.f32.partialorder %v1226, 0.0
      %vm1479 = vcmp.gt.f32.partialorder %v1229, 0.0
      %vm1480 = vcmp.gt.f32.partialorder %v1234, 0.0
      %vm1481 = vcmp.gt.f32.partialorder %v1237, 0.0
      %vm1482 = vcmp.gt.f32.partialorder %v1242, 0.0
      %vm1483 = vcmp.gt.f32.partialorder %v1245, 0.0
      %vm1484 = vcmp.gt.f32.partialorder %v1250, 0.0
      %vm1485 = vcmp.gt.f32.partialorder %v1253, 0.0
      %vm1486 = vcmp.gt.f32.partialorder %v1258, 0.0
      %vm1487 = vcmp.gt.f32.partialorder %v1261, 0.0
      %vm1488 = vcmp.gt.f32.partialorder %v1266, 0.0
      %vm1489 = vcmp.gt.f32.partialorder %v1269, 0.0
      %vm1490 = vcmp.gt.f32.partialorder %v1274, 0.0
      %vm1491 = vcmp.gt.f32.partialorder %v1277, 0.0
      %vm1492 = vcmp.gt.f32.partialorder %v1282, 0.0
      %vm1493 = vcmp.gt.f32.partialorder %v1285, 0.0
      %vm1494 = vcmp.gt.f32.partialorder %v1290, 0.0
      %vm1495 = vcmp.gt.f32.partialorder %v1293, 0.0
      %vm1496 = vcmp.gt.f32.partialorder %v1298, 0.0
      %vm1497 = vcmp.gt.f32.partialorder %v1301, 0.0
      %vm1498 = vcmp.gt.f32.partialorder %v1306, 0.0
      %vm1499 = vcmp.gt.f32.partialorder %v1309, 0.0
      %vm1500 = vcmp.gt.f32.partialorder %v1314, 0.0
      %vm1501 = vcmp.gt.f32.partialorder %v1317, 0.0
      %vm1502 = vcmp.gt.f32.partialorder %v1322, 0.0
      %vm1503 = vcmp.gt.f32.partialorder %v1325, 0.0
      %vm1504 = vcmp.gt.f32.partialorder %v1330, 0.0
      %vm1505 = vcmp.gt.f32.partialorder %v1333, 0.0
      %vm1506 = vcmp.gt.f32.partialorder %v1338, 0.0
      %vm1507 = vcmp.gt.f32.partialorder %v1341, 0.0
      %vm1508 = vcmp.gt.f32.partialorder %v1346, 0.0
      %vm1509 = vcmp.gt.f32.partialorder %v1349, 0.0
      %vm1510 = vcmp.gt.f32.partialorder %v1354, 0.0
      %vm1511 = vcmp.gt.f32.partialorder %v1357, 0.0
      %vm1512 = vcmp.gt.f32.partialorder %v1362, 0.0
      %vm1513 = vcmp.gt.f32.partialorder %v1365, 0.0
      %vm1514 = vcmp.gt.f32.partialorder %v1370, 0.0
      %vm1515 = vcmp.gt.f32.partialorder %v1373, 0.0
      %vm1516 = vcmp.gt.f32.partialorder %v1378, 0.0
      %vm1517 = vcmp.gt.f32.partialorder %v1381, 0.0
      %vm1518 = vcmp.gt.f32.partialorder %v1386, 0.0
      %vm1519 = vcmp.gt.f32.partialorder %v1389, 0.0
      %v1520 = vmul.f32 %v882, 0.2
      %v1521 = vmul.f32 %v885, 0.2
      %v1522 = vmul.f32 %v890, 0.2
      %v1523 = vmul.f32 %v893, 0.2
      %v1524 = vmul.f32 %v898, 0.2
      %v1525 = vmul.f32 %v901, 0.2
      %v1526 = vmul.f32 %v906, 0.2
      %v1527 = vmul.f32 %v909, 0.2
      %v1528 = vmul.f32 %v914, 0.2
      %v1529 = vmul.f32 %v917, 0.2
      %v1530 = vmul.f32 %v922, 0.2
      %v1531 = vmul.f32 %v925, 0.2
      %v1532 = vmul.f32 %v930, 0.2
      %v1533 = vmul.f32 %v933, 0.2
      %v1534 = vmul.f32 %v938, 0.2
      %v1535 = vmul.f32 %v941, 0.2
      %v1536 = vmul.f32 %v946, 0.2
      %v1537 = vmul.f32 %v949, 0.2
      %v1538 = vmul.f32 %v954, 0.2
      %v1539 = vmul.f32 %v957, 0.2
      %v1540 = vmul.f32 %v962, 0.2
      %v1541 = vmul.f32 %v965, 0.2
      %v1542 = vmul.f32 %v970, 0.2
      %v1543 = vmul.f32 %v973, 0.2
      %v1544 = vmul.f32 %v978, 0.2
      %v1545 = vmul.f32 %v981, 0.2
      %v1546 = vmul.f32 %v986, 0.2
      %v1547 = vmul.f32 %v989, 0.2
      %v1548 = vmul.f32 %v994, 0.2
      %v1549 = vmul.f32 %v997, 0.2
      %v1550 = vmul.f32 %v1002, 0.2
      %v1551 = vmul.f32 %v1005, 0.2
      %v1552 = vmul.f32 %v1010, 0.2
      %v1553 = vmul.f32 %v1013, 0.2
      %v1554 = vmul.f32 %v1018, 0.2
      %v1555 = vmul.f32 %v1021, 0.2
      %v1556 = vmul.f32 %v1026, 0.2
      %v1557 = vmul.f32 %v1029, 0.2
      %v1558 = vmul.f32 %v1034, 0.2
      %v1559 = vmul.f32 %v1037, 0.2
      %v1560 = vmul.f32 %v1042, 0.2
      %v1561 = vmul.f32 %v1045, 0.2
      %v1562 = vmul.f32 %v1050, 0.2
      %v1563 = vmul.f32 %v1053, 0.2
      %v1564 = vmul.f32 %v1058, 0.2
      %v1565 = vmul.f32 %v1061, 0.2
      %v1566 = vmul.f32 %v1066, 0.2
      %v1567 = vmul.f32 %v1069, 0.2
      %v1568 = vmul.f32 %v1074, 0.2
      %v1569 = vmul.f32 %v1077, 0.2
      %v1570 = vmul.f32 %v1082, 0.2
      %v1571 = vmul.f32 %v1085, 0.2
      %v1572 = vmul.f32 %v1090, 0.2
      %v1573 = vmul.f32 %v1093, 0.2
      %v1574 = vmul.f32 %v1098, 0.2
      %v1575 = vmul.f32 %v1101, 0.2
      %v1576 = vmul.f32 %v1106, 0.2
      %v1577 = vmul.f32 %v1109, 0.2
      %v1578 = vmul.f32 %v1114, 0.2
      %v1579 = vmul.f32 %v1117, 0.2
      %v1580 = vmul.f32 %v1122, 0.2
      %v1581 = vmul.f32 %v1125, 0.2
      %v1582 = vmul.f32 %v1130, 0.2
      %v1583 = vmul.f32 %v1133, 0.2
      %v1584 = vmul.f32 %v1138, 0.2
      %v1585 = vmul.f32 %v1141, 0.2
      %v1586 = vmul.f32 %v1146, 0.2
      %v1587 = vmul.f32 %v1149, 0.2
      %v1588 = vmul.f32 %v1154, 0.2
      %v1589 = vmul.f32 %v1157, 0.2
      %v1590 = vmul.f32 %v1162, 0.2
      %v1591 = vmul.f32 %v1165, 0.2
      %v1592 = vmul.f32 %v1170, 0.2
      %v1593 = vmul.f32 %v1173, 0.2
      %v1594 = vmul.f32 %v1178, 0.2
      %v1595 = vmul.f32 %v1181, 0.2
      %v1596 = vmul.f32 %v1186, 0.2
      %v1597 = vmul.f32 %v1189, 0.2
      %v1598 = vmul.f32 %v1194, 0.2
      %v1599 = vmul.f32 %v1197, 0.2
      %v1600 = vmul.f32 %v1202, 0.2
      %v1601 = vmul.f32 %v1205, 0.2
      %v1602 = vmul.f32 %v1210, 0.2
      %v1603 = vmul.f32 %v1213, 0.2
      %v1604 = vmul.f32 %v1218, 0.2
      %v1605 = vmul.f32 %v1221, 0.2
      %v1606 = vmul.f32 %v1226, 0.2
      %v1607 = vmul.f32 %v1229, 0.2
      %v1608 = vmul.f32 %v1234, 0.2
      %v1609 = vmul.f32 %v1237, 0.2
      %v1610 = vmul.f32 %v1242, 0.2
      %v1611 = vmul.f32 %v1245, 0.2
      %v1612 = vmul.f32 %v1250, 0.2
      %v1613 = vmul.f32 %v1253, 0.2
      %v1614 = vmul.f32 %v1258, 0.2
      %v1615 = vmul.f32 %v1261, 0.2
      %v1616 = vmul.f32 %v1266, 0.2
      %v1617 = vmul.f32 %v1269, 0.2
      %v1618 = vmul.f32 %v1274, 0.2
      %v1619 = vmul.f32 %v1277, 0.2
      %v1620 = vmul.f32 %v1282, 0.2
      %v1621 = vmul.f32 %v1285, 0.2
      %v1622 = vmul.f32 %v1290, 0.2
      %v1623 = vmul.f32 %v1293, 0.2
      %v1624 = vmul.f32 %v1298, 0.2
      %v1625 = vmul.f32 %v1301, 0.2
      %v1626 = vmul.f32 %v1306, 0.2
      %v1627 = vmul.f32 %v1309, 0.2
      %v1628 = vmul.f32 %v1314, 0.2
      %v1629 = vmul.f32 %v1317, 0.2
      %v1630 = vmul.f32 %v1322, 0.2
      %v1631 = vmul.f32 %v1325, 0.2
      %v1632 = vmul.f32 %v1330, 0.2
      %v1633 = vmul.f32 %v1333, 0.2
      %v1634 = vmul.f32 %v1338, 0.2
      %v1635 = vmul.f32 %v1341, 0.2
      %v1636 = vmul.f32 %v1346, 0.2
      %v1637 = vmul.f32 %v1349, 0.2
      %v1638 = vmul.f32 %v1354, 0.2
      %v1639 = vmul.f32 %v1357, 0.2
      %v1640 = vmul.f32 %v1362, 0.2
      %v1641 = vmul.f32 %v1365, 0.2
      %v1642 = vmul.f32 %v1370, 0.2
      %v1643 = vmul.f32 %v1373, 0.2
      %v1644 = vmul.f32 %v1378, 0.2
      %v1645 = vmul.f32 %v1381, 0.2
      %v1646 = vmul.f32 %v1386, 0.2
      %v1647 = vmul.f32 %v1389, 0.2
      %v1648 = vsel %vm1392, %v882, %v1520
      %v1649 = vsel %vm1393, %v885, %v1521
      %v1650 = vsel %vm1394, %v890, %v1522
      %v1651 = vsel %vm1395, %v893, %v1523
      %v1652 = vsel %vm1396, %v898, %v1524
      %v1653 = vsel %vm1397, %v901, %v1525
      %v1654 = vsel %vm1398, %v906, %v1526
      %v1655 = vsel %vm1399, %v909, %v1527
      %v1656 = vsel %vm1400, %v914, %v1528
      %v1657 = vsel %vm1401, %v917, %v1529
      %v1658 = vsel %vm1402, %v922, %v1530
      %v1659 = vsel %vm1403, %v925, %v1531
      %v1660 = vsel %vm1404, %v930, %v1532
      %v1661 = vsel %vm1405, %v933, %v1533
      %v1662 = vsel %vm1406, %v938, %v1534
      %v1663 = vsel %vm1407, %v941, %v1535
      %v1664 = vsel %vm1408, %v946, %v1536
      %v1665 = vsel %vm1409, %v949, %v1537
      %v1666 = vsel %vm1410, %v954, %v1538
      %v1667 = vsel %vm1411, %v957, %v1539
      %v1668 = vsel %vm1412, %v962, %v1540
      %v1669 = vsel %vm1413, %v965, %v1541
      %v1670 = vsel %vm1414, %v970, %v1542
      %v1671 = vsel %vm1415, %v973, %v1543
      %v1672 = vsel %vm1416, %v978, %v1544
      %v1673 = vsel %vm1417, %v981, %v1545
      %v1674 = vsel %vm1418, %v986, %v1546
      %v1675 = vsel %vm1419, %v989, %v1547
      %v1676 = vsel %vm1420, %v994, %v1548
      %v1677 = vsel %vm1421, %v997, %v1549
      %v1678 = vsel %vm1422, %v1002, %v1550
      %v1679 = vsel %vm1423, %v1005, %v1551
      %v1680 = vsel %vm1424, %v1010, %v1552
      %v1681 = vsel %vm1425, %v1013, %v1553
      %v1682 = vsel %vm1426, %v1018, %v1554
      %v1683 = vsel %vm1427, %v1021, %v1555
      %v1684 = vsel %vm1428, %v1026, %v1556
      %v1685 = vsel %vm1429, %v1029, %v1557
      %v1686 = vsel %vm1430, %v1034, %v1558
      %v1687 = vsel %vm1431, %v1037, %v1559
      %v1688 = vsel %vm1432, %v1042, %v1560
      %v1689 = vsel %vm1433, %v1045, %v1561
      %v1690 = vsel %vm1434, %v1050, %v1562
      %v1691 = vsel %vm1435, %v1053, %v1563
      %v1692 = vsel %vm1436, %v1058, %v1564
      %v1693 = vsel %vm1437, %v1061, %v1565
      %v1694 = vsel %vm1438, %v1066, %v1566
      %v1695 = vsel %vm1439, %v1069, %v1567
      %v1696 = vsel %vm1440, %v1074, %v1568
      %v1697 = vsel %vm1441, %v1077, %v1569
      %v1698 = vsel %vm1442, %v1082, %v1570
      %v1699 = vsel %vm1443, %v1085, %v1571
      %v1700 = vsel %vm1444, %v1090, %v1572
      %v1701 = vsel %vm1445, %v1093, %v1573
      %v1702 = vsel %vm1446, %v1098, %v1574
      %v1703 = vsel %vm1447, %v1101, %v1575
      %v1704 = vsel %vm1448, %v1106, %v1576
      %v1705 = vsel %vm1449, %v1109, %v1577
      %v1706 = vsel %vm1450, %v1114, %v1578
      %v1707 = vsel %vm1451, %v1117, %v1579
      %v1708 = vsel %vm1452, %v1122, %v1580
      %v1709 = vsel %vm1453, %v1125, %v1581
      %v1710 = vsel %vm1454, %v1130, %v1582
      %v1711 = vsel %vm1455, %v1133, %v1583
      %v1712 = vsel %vm1456, %v1138, %v1584
      %v1713 = vsel %vm1457, %v1141, %v1585
      %v1714 = vsel %vm1458, %v1146, %v1586
      %v1715 = vsel %vm1459, %v1149, %v1587
      %v1716 = vsel %vm1460, %v1154, %v1588
      %v1717 = vsel %vm1461, %v1157, %v1589
      %v1718 = vsel %vm1462, %v1162, %v1590
      %v1719 = vsel %vm1463, %v1165, %v1591
      %v1720 = vsel %vm1464, %v1170, %v1592
      %v1721 = vsel %vm1465, %v1173, %v1593
      %v1722 = vsel %vm1466, %v1178, %v1594
      %v1723 = vsel %vm1467, %v1181, %v1595
      %v1724 = vsel %vm1468, %v1186, %v1596
      %v1725 = vsel %vm1469, %v1189, %v1597
      %v1726 = vsel %vm1470, %v1194, %v1598
      %v1727 = vsel %vm1471, %v1197, %v1599
      %v1728 = vsel %vm1472, %v1202, %v1600
      %v1729 = vsel %vm1473, %v1205, %v1601
      %v1730 = vsel %vm1474, %v1210, %v1602
      %v1731 = vsel %vm1475, %v1213, %v1603
      %v1732 = vsel %vm1476, %v1218, %v1604
      %v1733 = vsel %vm1477, %v1221, %v1605
      %v1734 = vsel %vm1478, %v1226, %v1606
      %v1735 = vsel %vm1479, %v1229, %v1607
      %v1736 = vsel %vm1480, %v1234, %v1608
      %v1737 = vsel %vm1481, %v1237, %v1609
      %v1738 = vsel %vm1482, %v1242, %v1610
      %v1739 = vsel %vm1483, %v1245, %v1611
      %v1740 = vsel %vm1484, %v1250, %v1612
      %v1741 = vsel %vm1485, %v1253, %v1613
      %v1742 = vsel %vm1486, %v1258, %v1614
      %v1743 = vsel %vm1487, %v1261, %v1615
      %v1744 = vsel %vm1488, %v1266, %v1616
      %v1745 = vsel %vm1489, %v1269, %v1617
      %v1746 = vsel %vm1490, %v1274, %v1618
      %v1747 = vsel %vm1491, %v1277, %v1619
      %v1748 = vsel %vm1492, %v1282, %v1620
      %v1749 = vsel %vm1493, %v1285, %v1621
      %v1750 = vsel %vm1494, %v1290, %v1622
      %v1751 = vsel %vm1495, %v1293, %v1623
      %v1752 = vsel %vm1496, %v1298, %v1624
      %v1753 = vsel %vm1497, %v1301, %v1625
      %v1754 = vsel %vm1498, %v1306, %v1626
      %v1755 = vsel %vm1499, %v1309, %v1627
      %v1756 = vsel %vm1500, %v1314, %v1628
      %v1757 = vsel %vm1501, %v1317, %v1629
      %v1758 = vsel %vm1502, %v1322, %v1630
      %v1759 = vsel %vm1503, %v1325, %v1631
      %v1760 = vsel %vm1504, %v1330, %v1632
      %v1761 = vsel %vm1505, %v1333, %v1633
      %v1762 = vsel %vm1506, %v1338, %v1634
      %v1763 = vsel %vm1507, %v1341, %v1635
      %v1764 = vsel %vm1508, %v1346, %v1636
      %v1765 = vsel %vm1509, %v1349, %v1637
      %v1766 = vsel %vm1510, %v1354, %v1638
      %v1767 = vsel %vm1511, %v1357, %v1639
      %v1768 = vsel %vm1512, %v1362, %v1640
      %v1769 = vsel %vm1513, %v1365, %v1641
      %v1770 = vsel %vm1514, %v1370, %v1642
      %v1771 = vsel %vm1515, %v1373, %v1643
      %v1772 = vsel %vm1516, %v1378, %v1644
      %v1773 = vsel %vm1517, %v1381, %v1645
      %v1774 = vsel %vm1518, %v1386, %v1646
      %v1775 = vsel %vm1519, %v1389, %v1647
      %v1776 = vpack.c.bf16 %v1649, %v1648
      %v1777 = vpack.c.bf16 %v1651, %v1650
      %v1778 = vpack.c.bf16 %v1653, %v1652
      %v1779 = vpack.c.bf16 %v1655, %v1654
      %v1780 = vpack.c.bf16 %v1657, %v1656
      %v1781 = vpack.c.bf16 %v1659, %v1658
      %v1782 = vpack.c.bf16 %v1661, %v1660
      %v1783 = vpack.c.bf16 %v1663, %v1662
      %v1784 = vpack.c.bf16 %v1665, %v1664
      %v1785 = vpack.c.bf16 %v1667, %v1666
      %v1786 = vpack.c.bf16 %v1669, %v1668
      %v1787 = vpack.c.bf16 %v1671, %v1670
      %v1788 = vpack.c.bf16 %v1673, %v1672
      %v1789 = vpack.c.bf16 %v1675, %v1674
      %v1790 = vpack.c.bf16 %v1677, %v1676
      %v1791 = vpack.c.bf16 %v1679, %v1678
      %v1792 = vpack.c.bf16 %v1681, %v1680
      %v1793 = vpack.c.bf16 %v1683, %v1682
      %v1794 = vpack.c.bf16 %v1685, %v1684
      %v1795 = vpack.c.bf16 %v1687, %v1686
      %v1796 = vpack.c.bf16 %v1689, %v1688
      %v1797 = vpack.c.bf16 %v1691, %v1690
      %v1798 = vpack.c.bf16 %v1693, %v1692
      %v1799 = vpack.c.bf16 %v1695, %v1694
      %v1800 = vpack.c.bf16 %v1697, %v1696
      %v1801 = vpack.c.bf16 %v1699, %v1698
      %v1802 = vpack.c.bf16 %v1701, %v1700
      %v1803 = vpack.c.bf16 %v1703, %v1702
      %v1804 = vpack.c.bf16 %v1705, %v1704
      %v1805 = vpack.c.bf16 %v1707, %v1706
      %v1806 = vpack.c.bf16 %v1709, %v1708
      %v1807 = vpack.c.bf16 %v1711, %v1710
      %v1808 = vpack.c.bf16 %v1713, %v1712
      %v1809 = vpack.c.bf16 %v1715, %v1714
      %v1810 = vpack.c.bf16 %v1717, %v1716
      %v1811 = vpack.c.bf16 %v1719, %v1718
      %v1812 = vpack.c.bf16 %v1721, %v1720
      %v1813 = vpack.c.bf16 %v1723, %v1722
      %v1814 = vpack.c.bf16 %v1725, %v1724
      %v1815 = vpack.c.bf16 %v1727, %v1726
      %v1816 = vpack.c.bf16 %v1729, %v1728
      %v1817 = vpack.c.bf16 %v1731, %v1730
      %v1818 = vpack.c.bf16 %v1733, %v1732
      %v1819 = vpack.c.bf16 %v1735, %v1734
      %v1820 = vpack.c.bf16 %v1737, %v1736
      %v1821 = vpack.c.bf16 %v1739, %v1738
      %v1822 = vpack.c.bf16 %v1741, %v1740
      %v1823 = vpack.c.bf16 %v1743, %v1742
      %v1824 = vpack.c.bf16 %v1745, %v1744
      %v1825 = vpack.c.bf16 %v1747, %v1746
      %v1826 = vpack.c.bf16 %v1749, %v1748
      %v1827 = vpack.c.bf16 %v1751, %v1750
      %v1828 = vpack.c.bf16 %v1753, %v1752
      %v1829 = vpack.c.bf16 %v1755, %v1754
      %v1830 = vpack.c.bf16 %v1757, %v1756
      %v1831 = vpack.c.bf16 %v1759, %v1758
      %v1832 = vpack.c.bf16 %v1761, %v1760
      %v1833 = vpack.c.bf16 %v1763, %v1762
      %v1834 = vpack.c.bf16 %v1765, %v1764
      %v1835 = vpack.c.bf16 %v1767, %v1766
      %v1836 = vpack.c.bf16 %v1769, %v1768
      %v1837 = vpack.c.bf16 %v1771, %v1770
      %v1838 = vpack.c.bf16 %v1773, %v1772
      %v1839 = vpack.c.bf16 %v1775, %v1774
      %v1904 = vunpack.c.l.b16 %v1776
      %v1905 = vunpack.c.h.b16 %v1776
      %v1906 = vunpack.c.l.b16 %v1777
      %v1907 = vunpack.c.h.b16 %v1777
      %v1908 = vunpack.c.l.b16 %v1778
      %v1909 = vunpack.c.h.b16 %v1778
      %v1910 = vunpack.c.l.b16 %v1779
      %v1911 = vunpack.c.h.b16 %v1779
      %v1912 = vunpack.c.l.b16 %v1780
      %v1913 = vunpack.c.h.b16 %v1780
      %v1914 = vunpack.c.l.b16 %v1781
      %v1915 = vunpack.c.h.b16 %v1781
      %v1916 = vunpack.c.l.b16 %v1782
      %v1917 = vunpack.c.h.b16 %v1782
      %v1918 = vunpack.c.l.b16 %v1783
      %v1919 = vunpack.c.h.b16 %v1783
      %v1920 = vunpack.c.l.b16 %v1784
      %v1921 = vunpack.c.h.b16 %v1784
      %v1922 = vunpack.c.l.b16 %v1785
      %v1923 = vunpack.c.h.b16 %v1785
      %v1924 = vunpack.c.l.b16 %v1786
      %v1925 = vunpack.c.h.b16 %v1786
      %v1926 = vunpack.c.l.b16 %v1787
      %v1927 = vunpack.c.h.b16 %v1787
      %v1928 = vunpack.c.l.b16 %v1788
      %v1929 = vunpack.c.h.b16 %v1788
      %v1930 = vunpack.c.l.b16 %v1789
      %v1931 = vunpack.c.h.b16 %v1789
      %v1932 = vunpack.c.l.b16 %v1790
      %v1933 = vunpack.c.h.b16 %v1790
      %v1934 = vunpack.c.l.b16 %v1791
      %v1935 = vunpack.c.h.b16 %v1791
      %v1936 = vunpack.c.l.b16 %v1792
      %v1937 = vunpack.c.h.b16 %v1792
      %v1938 = vunpack.c.l.b16 %v1793
      %v1939 = vunpack.c.h.b16 %v1793
      %v1940 = vunpack.c.l.b16 %v1794
      %v1941 = vunpack.c.h.b16 %v1794
      %v1942 = vunpack.c.l.b16 %v1795
      %v1943 = vunpack.c.h.b16 %v1795
      %v1944 = vunpack.c.l.b16 %v1796
      %v1945 = vunpack.c.h.b16 %v1796
      %v1946 = vunpack.c.l.b16 %v1797
      %v1947 = vunpack.c.h.b16 %v1797
      %v1948 = vunpack.c.l.b16 %v1798
      %v1949 = vunpack.c.h.b16 %v1798
      %v1950 = vunpack.c.l.b16 %v1799
      %v1951 = vunpack.c.h.b16 %v1799
      %v1952 = vunpack.c.l.b16 %v1800
      %v1953 = vunpack.c.h.b16 %v1800
      %v1954 = vunpack.c.l.b16 %v1801
      %v1955 = vunpack.c.h.b16 %v1801
      %v1956 = vunpack.c.l.b16 %v1802
      %v1957 = vunpack.c.h.b16 %v1802
      %v1958 = vunpack.c.l.b16 %v1803
      %v1959 = vunpack.c.h.b16 %v1803
      %v1960 = vunpack.c.l.b16 %v1804
      %v1961 = vunpack.c.h.b16 %v1804
      %v1962 = vunpack.c.l.b16 %v1805
      %v1963 = vunpack.c.h.b16 %v1805
      %v1964 = vunpack.c.l.b16 %v1806
      %v1965 = vunpack.c.h.b16 %v1806
      %v1966 = vunpack.c.l.b16 %v1807
      %v1967 = vunpack.c.h.b16 %v1807
      %v1968 = vunpack.c.l.b16 %v1808
      %v1969 = vunpack.c.h.b16 %v1808
      %v1970 = vunpack.c.l.b16 %v1809
      %v1971 = vunpack.c.h.b16 %v1809
      %v1972 = vunpack.c.l.b16 %v1810
      %v1973 = vunpack.c.h.b16 %v1810
      %v1974 = vunpack.c.l.b16 %v1811
      %v1975 = vunpack.c.h.b16 %v1811
      %v1976 = vunpack.c.l.b16 %v1812
      %v1977 = vunpack.c.h.b16 %v1812
      %v1978 = vunpack.c.l.b16 %v1813
      %v1979 = vunpack.c.h.b16 %v1813
      %v1980 = vunpack.c.l.b16 %v1814
      %v1981 = vunpack.c.h.b16 %v1814
      %v1982 = vunpack.c.l.b16 %v1815
      %v1983 = vunpack.c.h.b16 %v1815
      %v1984 = vunpack.c.l.b16 %v1816
      %v1985 = vunpack.c.h.b16 %v1816
      %v1986 = vunpack.c.l.b16 %v1817
      %v1987 = vunpack.c.h.b16 %v1817
      %v1988 = vunpack.c.l.b16 %v1818
      %v1989 = vunpack.c.h.b16 %v1818
      %v1990 = vunpack.c.l.b16 %v1819
      %v1991 = vunpack.c.h.b16 %v1819
      %v1992 = vunpack.c.l.b16 %v1820
      %v1993 = vunpack.c.h.b16 %v1820
      %v1994 = vunpack.c.l.b16 %v1821
      %v1995 = vunpack.c.h.b16 %v1821
      %v1996 = vunpack.c.l.b16 %v1822
      %v1997 = vunpack.c.h.b16 %v1822
      %v1998 = vunpack.c.l.b16 %v1823
      %v1999 = vunpack.c.h.b16 %v1823
      %v2000 = vunpack.c.l.b16 %v1824
      %v2001 = vunpack.c.h.b16 %v1824
      %v2002 = vunpack.c.l.b16 %v1825
      %v2003 = vunpack.c.h.b16 %v1825
      %v2004 = vunpack.c.l.b16 %v1826
      %v2005 = vunpack.c.h.b16 %v1826
      %v2006 = vunpack.c.l.b16 %v1827
      %v2007 = vunpack.c.h.b16 %v1827
      %v2008 = vunpack.c.l.b16 %v1828
      %v2009 = vunpack.c.h.b16 %v1828
      %v2010 = vunpack.c.l.b16 %v1829
      %v2011 = vunpack.c.h.b16 %v1829
      %v2012 = vunpack.c.l.b16 %v1830
      %v2013 = vunpack.c.h.b16 %v1830
      %v2014 = vunpack.c.l.b16 %v1831
      %v2015 = vunpack.c.h.b16 %v1831
      %v2016 = vunpack.c.l.b16 %v1832
      %v2017 = vunpack.c.h.b16 %v1832
      %v2018 = vunpack.c.l.b16 %v1833
      %v2019 = vunpack.c.h.b16 %v1833
      %v2020 = vunpack.c.l.b16 %v1834
      %v2021 = vunpack.c.h.b16 %v1834
      %v2022 = vunpack.c.l.b16 %v1835
      %v2023 = vunpack.c.h.b16 %v1835
      %v2024 = vunpack.c.l.b16 %v1836
      %v2025 = vunpack.c.h.b16 %v1836
      %v2026 = vunpack.c.l.b16 %v1837
      %v2027 = vunpack.c.h.b16 %v1837
      %v2028 = vunpack.c.l.b16 %v1838
      %v2029 = vunpack.c.h.b16 %v1838
      %v2030 = vunpack.c.l.b16 %v1839
      %v2031 = vunpack.c.h.b16 %v1839
      %v2032 = vpack.c.b16 %v1904, %v1904
      %v2033 = vpack.c.b16 %v1905, %v1905
      %v2034 = vpack.c.b16 %v1906, %v1906
      %v2035 = vpack.c.b16 %v1907, %v1907
      %v2036 = vpack.c.b16 %v1908, %v1908
      %v2037 = vpack.c.b16 %v1909, %v1909
      %v2038 = vpack.c.b16 %v1910, %v1910
      %v2039 = vpack.c.b16 %v1911, %v1911
      %v2040 = vpack.c.b16 %v1912, %v1912
      %v2041 = vpack.c.b16 %v1913, %v1913
      %v2042 = vpack.c.b16 %v1914, %v1914
      %v2043 = vpack.c.b16 %v1915, %v1915
      %v2044 = vpack.c.b16 %v1916, %v1916
      %v2045 = vpack.c.b16 %v1917, %v1917
      %v2046 = vpack.c.b16 %v1918, %v1918
      %v2047 = vpack.c.b16 %v1919, %v1919
      %v2048 = vpack.c.b16 %v1920, %v1920
      %v2049 = vpack.c.b16 %v1921, %v1921
      %v2050 = vpack.c.b16 %v1922, %v1922
      %v2051 = vpack.c.b16 %v1923, %v1923
      %v2052 = vpack.c.b16 %v1924, %v1924
      %v2053 = vpack.c.b16 %v1925, %v1925
      %v2054 = vpack.c.b16 %v1926, %v1926
      %v2055 = vpack.c.b16 %v1927, %v1927
      %v2056 = vpack.c.b16 %v1928, %v1928
      %v2057 = vpack.c.b16 %v1929, %v1929
      %v2058 = vpack.c.b16 %v1930, %v1930
      %v2059 = vpack.c.b16 %v1931, %v1931
      %v2060 = vpack.c.b16 %v1932, %v1932
      %v2061 = vpack.c.b16 %v1933, %v1933
      %v2062 = vpack.c.b16 %v1934, %v1934
      %v2063 = vpack.c.b16 %v1935, %v1935
      %v2064 = vpack.c.b16 %v1936, %v1936
      %v2065 = vpack.c.b16 %v1937, %v1937
      %v2066 = vpack.c.b16 %v1938, %v1938
      %v2067 = vpack.c.b16 %v1939, %v1939
      %v2068 = vpack.c.b16 %v1940, %v1940
      %v2069 = vpack.c.b16 %v1941, %v1941
      %v2070 = vpack.c.b16 %v1942, %v1942
      %v2071 = vpack.c.b16 %v1943, %v1943
      %v2072 = vpack.c.b16 %v1944, %v1944
      %v2073 = vpack.c.b16 %v1945, %v1945
      %v2074 = vpack.c.b16 %v1946, %v1946
      %v2075 = vpack.c.b16 %v1947, %v1947
      %v2076 = vpack.c.b16 %v1948, %v1948
      %v2077 = vpack.c.b16 %v1949, %v1949
      %v2078 = vpack.c.b16 %v1950, %v1950
      %v2079 = vpack.c.b16 %v1951, %v1951
      %v2080 = vpack.c.b16 %v1952, %v1952
      %v2081 = vpack.c.b16 %v1953, %v1953
      %v2082 = vpack.c.b16 %v1954, %v1954
      %v2083 = vpack.c.b16 %v1955, %v1955
      %v2084 = vpack.c.b16 %v1956, %v1956
      %v2085 = vpack.c.b16 %v1957, %v1957
      %v2086 = vpack.c.b16 %v1958, %v1958
      %v2087 = vpack.c.b16 %v1959, %v1959
      %v2088 = vpack.c.b16 %v1960, %v1960
      %v2089 = vpack.c.b16 %v1961, %v1961
      %v2090 = vpack.c.b16 %v1962, %v1962
      %v2091 = vpack.c.b16 %v1963, %v1963
      %v2092 = vpack.c.b16 %v1964, %v1964
      %v2093 = vpack.c.b16 %v1965, %v1965
      %v2094 = vpack.c.b16 %v1966, %v1966
      %v2095 = vpack.c.b16 %v1967, %v1967
      %v2096 = vpack.c.b16 %v1968, %v1968
      %v2097 = vpack.c.b16 %v1969, %v1969
      %v2098 = vpack.c.b16 %v1970, %v1970
      %v2099 = vpack.c.b16 %v1971, %v1971
      %v2100 = vpack.c.b16 %v1972, %v1972
      %v2101 = vpack.c.b16 %v1973, %v1973
      %v2102 = vpack.c.b16 %v1974, %v1974
      %v2103 = vpack.c.b16 %v1975, %v1975
      %v2104 = vpack.c.b16 %v1976, %v1976
      %v2105 = vpack.c.b16 %v1977, %v1977
      %v2106 = vpack.c.b16 %v1978, %v1978
      %v2107 = vpack.c.b16 %v1979, %v1979
      %v2108 = vpack.c.b16 %v1980, %v1980
      %v2109 = vpack.c.b16 %v1981, %v1981
      %v2110 = vpack.c.b16 %v1982, %v1982
      %v2111 = vpack.c.b16 %v1983, %v1983
      %v2112 = vpack.c.b16 %v1984, %v1984
      %v2113 = vpack.c.b16 %v1985, %v1985
      %v2114 = vpack.c.b16 %v1986, %v1986
      %v2115 = vpack.c.b16 %v1987, %v1987
      %v2116 = vpack.c.b16 %v1988, %v1988
      %v2117 = vpack.c.b16 %v1989, %v1989
      %v2118 = vpack.c.b16 %v1990, %v1990
      %v2119 = vpack.c.b16 %v1991, %v1991
      %v2120 = vpack.c.b16 %v1992, %v1992
      %v2121 = vpack.c.b16 %v1993, %v1993
      %v2122 = vpack.c.b16 %v1994, %v1994
      %v2123 = vpack.c.b16 %v1995, %v1995
      %v2124 = vpack.c.b16 %v1996, %v1996
      %v2125 = vpack.c.b16 %v1997, %v1997
      %v2126 = vpack.c.b16 %v1998, %v1998
      %v2127 = vpack.c.b16 %v1999, %v1999
      %v2128 = vpack.c.b16 %v2000, %v2000
      %v2129 = vpack.c.b16 %v2001, %v2001
      %v2130 = vpack.c.b16 %v2002, %v2002
      %v2131 = vpack.c.b16 %v2003, %v2003
      %v2132 = vpack.c.b16 %v2004, %v2004
      %v2133 = vpack.c.b16 %v2005, %v2005
      %v2134 = vpack.c.b16 %v2006, %v2006
      %v2135 = vpack.c.b16 %v2007, %v2007
      %v2136 = vpack.c.b16 %v2008, %v2008
      %v2137 = vpack.c.b16 %v2009, %v2009
      %v2138 = vpack.c.b16 %v2010, %v2010
      %v2139 = vpack.c.b16 %v2011, %v2011
      %v2140 = vpack.c.b16 %v2012, %v2012
      %v2141 = vpack.c.b16 %v2013, %v2013
      %v2142 = vpack.c.b16 %v2014, %v2014
      %v2143 = vpack.c.b16 %v2015, %v2015
      %v2144 = vpack.c.b16 %v2016, %v2016
      %v2145 = vpack.c.b16 %v2017, %v2017
      %v2146 = vpack.c.b16 %v2018, %v2018
      %v2147 = vpack.c.b16 %v2019, %v2019
      %v2148 = vpack.c.b16 %v2020, %v2020
      %v2149 = vpack.c.b16 %v2021, %v2021
      %v2150 = vpack.c.b16 %v2022, %v2022
      %v2151 = vpack.c.b16 %v2023, %v2023
      %v2152 = vpack.c.b16 %v2024, %v2024
      %v2153 = vpack.c.b16 %v2025, %v2025
      %v2154 = vpack.c.b16 %v2026, %v2026
      %v2155 = vpack.c.b16 %v2027, %v2027
      %v2156 = vpack.c.b16 %v2028, %v2028
      %v2157 = vpack.c.b16 %v2029, %v2029
      %v2158 = vpack.c.b16 %v2030, %v2030
      %v2159 = vpack.c.b16 %v2031, %v2031
      %vm2288 = vcmask 60416
      %2289 = vst.msk [vmem:[%s172] sm:$0xf] %vm2288, %v2032
      %2290 = vst.msk [vmem:[%s172 + $0x4] sm:$0xf] %vm2288, %v2033
      %2291 = vst.msk [vmem:[%s172 + $0x8] sm:$0xf] %vm2288, %v2034
      %2292 = vst.msk [vmem:[%s172 + $0xc] sm:$0xf] %vm2288, %v2035
      %2293 = vst.msk [vmem:[%s172 + $0x10] sm:$0xf] %vm2288, %v2036
      %2294 = vst.msk [vmem:[%s172 + $0x14] sm:$0xf] %vm2288, %v2037
      %2295 = vst.msk [vmem:[%s172 + $0x18] sm:$0xf] %vm2288, %v2038
      %2296 = vst.msk [vmem:[%s172 + $0x1c] sm:$0xf] %vm2288, %v2039
      %2297 = vst.msk [vmem:[%s172 + $0x20] sm:$0xf] %vm2288, %v2040
      %2298 = vst.msk [vmem:[%s172 + $0x24] sm:$0xf] %vm2288, %v2041
      %2299 = vst.msk [vmem:[%s172 + $0x28] sm:$0xf] %vm2288, %v2042
      %2300 = vst.msk [vmem:[%s172 + $0x2c] sm:$0xf] %vm2288, %v2043
      %2301 = vst.msk [vmem:[%s172 + $0x30] sm:$0xf] %vm2288, %v2044
      %2302 = vst.msk [vmem:[%s172 + $0x34] sm:$0xf] %vm2288, %v2045
      %2303 = vst.msk [vmem:[%s172 + $0x38] sm:$0xf] %vm2288, %v2046
      %2304 = vst.msk [vmem:[%s172 + $0x3c] sm:$0xf] %vm2288, %v2047
      %2305 = vst.msk [vmem:[%s172 + $0x40] sm:$0xf] %vm2288, %v2048
      %2306 = vst.msk [vmem:[%s172 + $0x44] sm:$0xf] %vm2288, %v2049
      %2307 = vst.msk [vmem:[%s172 + $0x48] sm:$0xf] %vm2288, %v2050
      %2308 = vst.msk [vmem:[%s172 + $0x4c] sm:$0xf] %vm2288, %v2051
      %2309 = vst.msk [vmem:[%s172 + $0x50] sm:$0xf] %vm2288, %v2052
      %2310 = vst.msk [vmem:[%s172 + $0x54] sm:$0xf] %vm2288, %v2053
      %2311 = vst.msk [vmem:[%s172 + $0x58] sm:$0xf] %vm2288, %v2054
      %2312 = vst.msk [vmem:[%s172 + $0x5c] sm:$0xf] %vm2288, %v2055
      %2313 = vst.msk [vmem:[%s172 + $0x60] sm:$0xf] %vm2288, %v2056
      %2314 = vst.msk [vmem:[%s172 + $0x64] sm:$0xf] %vm2288, %v2057
      %2315 = vst.msk [vmem:[%s172 + $0x68] sm:$0xf] %vm2288, %v2058
      %2316 = vst.msk [vmem:[%s172 + $0x6c] sm:$0xf] %vm2288, %v2059
      %2317 = vst.msk [vmem:[%s172 + $0x70] sm:$0xf] %vm2288, %v2060
      %2318 = vst.msk [vmem:[%s172 + $0x74] sm:$0xf] %vm2288, %v2061
      %2319 = vst.msk [vmem:[%s172 + $0x78] sm:$0xf] %vm2288, %v2062
      %2320 = vst.msk [vmem:[%s172 + $0x7c] sm:$0xf] %vm2288, %v2063
      %2321 = vst.msk [vmem:[%s172 + $0x80] sm:$0xf] %vm2288, %v2064
      %2322 = vst.msk [vmem:[%s172 + $0x84] sm:$0xf] %vm2288, %v2065
      %2323 = vst.msk [vmem:[%s172 + $0x88] sm:$0xf] %vm2288, %v2066
      %2324 = vst.msk [vmem:[%s172 + $0x8c] sm:$0xf] %vm2288, %v2067
      %2325 = vst.msk [vmem:[%s172 + $0x90] sm:$0xf] %vm2288, %v2068
      %2326 = vst.msk [vmem:[%s172 + $0x94] sm:$0xf] %vm2288, %v2069
      %2327 = vst.msk [vmem:[%s172 + $0x98] sm:$0xf] %vm2288, %v2070
      %2328 = vst.msk [vmem:[%s172 + $0x9c] sm:$0xf] %vm2288, %v2071
      %2329 = vst.msk [vmem:[%s172 + $0xa0] sm:$0xf] %vm2288, %v2072
      %2330 = vst.msk [vmem:[%s172 + $0xa4] sm:$0xf] %vm2288, %v2073
      %2331 = vst.msk [vmem:[%s172 + $0xa8] sm:$0xf] %vm2288, %v2074
      %2332 = vst.msk [vmem:[%s172 + $0xac] sm:$0xf] %vm2288, %v2075
      %2333 = vst.msk [vmem:[%s172 + $0xb0] sm:$0xf] %vm2288, %v2076
      %2334 = vst.msk [vmem:[%s172 + $0xb4] sm:$0xf] %vm2288, %v2077
      %2335 = vst.msk [vmem:[%s172 + $0xb8] sm:$0xf] %vm2288, %v2078
      %2336 = vst.msk [vmem:[%s172 + $0xbc] sm:$0xf] %vm2288, %v2079
      %2337 = vst.msk [vmem:[%s172 + $0xc0] sm:$0xf] %vm2288, %v2080
      %2338 = vst.msk [vmem:[%s172 + $0xc4] sm:$0xf] %vm2288, %v2081
      %2339 = vst.msk [vmem:[%s172 + $0xc8] sm:$0xf] %vm2288, %v2082
      %2340 = vst.msk [vmem:[%s172 + $0xcc] sm:$0xf] %vm2288, %v2083
      %2341 = vst.msk [vmem:[%s172 + $0xd0] sm:$0xf] %vm2288, %v2084
      %2342 = vst.msk [vmem:[%s172 + $0xd4] sm:$0xf] %vm2288, %v2085
      %2343 = vst.msk [vmem:[%s172 + $0xd8] sm:$0xf] %vm2288, %v2086
      %2344 = vst.msk [vmem:[%s172 + $0xdc] sm:$0xf] %vm2288, %v2087
      %2345 = vst.msk [vmem:[%s172 + $0xe0] sm:$0xf] %vm2288, %v2088
      %2346 = vst.msk [vmem:[%s172 + $0xe4] sm:$0xf] %vm2288, %v2089
      %2347 = vst.msk [vmem:[%s172 + $0xe8] sm:$0xf] %vm2288, %v2090
      %2348 = vst.msk [vmem:[%s172 + $0xec] sm:$0xf] %vm2288, %v2091
      %2349 = vst.msk [vmem:[%s172 + $0xf0] sm:$0xf] %vm2288, %v2092
      %2350 = vst.msk [vmem:[%s172 + $0xf4] sm:$0xf] %vm2288, %v2093
      %2351 = vst.msk [vmem:[%s172 + $0xf8] sm:$0xf] %vm2288, %v2094
      %2352 = vst.msk [vmem:[%s172 + $0xfc] sm:$0xf] %vm2288, %v2095
      %2353 = vst.msk [vmem:[%s172 + $0x100] sm:$0xf] %vm2288, %v2096
      %2354 = vst.msk [vmem:[%s172 + $0x104] sm:$0xf] %vm2288, %v2097
      %2355 = vst.msk [vmem:[%s172 + $0x108] sm:$0xf] %vm2288, %v2098
      %2356 = vst.msk [vmem:[%s172 + $0x10c] sm:$0xf] %vm2288, %v2099
      %2357 = vst.msk [vmem:[%s172 + $0x110] sm:$0xf] %vm2288, %v2100
      %2358 = vst.msk [vmem:[%s172 + $0x114] sm:$0xf] %vm2288, %v2101
      %2359 = vst.msk [vmem:[%s172 + $0x118] sm:$0xf] %vm2288, %v2102
      %2360 = vst.msk [vmem:[%s172 + $0x11c] sm:$0xf] %vm2288, %v2103
      %2361 = vst.msk [vmem:[%s172 + $0x120] sm:$0xf] %vm2288, %v2104
      %2362 = vst.msk [vmem:[%s172 + $0x124] sm:$0xf] %vm2288, %v2105
      %2363 = vst.msk [vmem:[%s172 + $0x128] sm:$0xf] %vm2288, %v2106
      %2364 = vst.msk [vmem:[%s172 + $0x12c] sm:$0xf] %vm2288, %v2107
      %2365 = vst.msk [vmem:[%s172 + $0x130] sm:$0xf] %vm2288, %v2108
      %2366 = vst.msk [vmem:[%s172 + $0x134] sm:$0xf] %vm2288, %v2109
      %2367 = vst.msk [vmem:[%s172 + $0x138] sm:$0xf] %vm2288, %v2110
      %2368 = vst.msk [vmem:[%s172 + $0x13c] sm:$0xf] %vm2288, %v2111
      %2369 = vst.msk [vmem:[%s172 + $0x140] sm:$0xf] %vm2288, %v2112
      %2370 = vst.msk [vmem:[%s172 + $0x144] sm:$0xf] %vm2288, %v2113
      %2371 = vst.msk [vmem:[%s172 + $0x148] sm:$0xf] %vm2288, %v2114
      %2372 = vst.msk [vmem:[%s172 + $0x14c] sm:$0xf] %vm2288, %v2115
      %2373 = vst.msk [vmem:[%s172 + $0x150] sm:$0xf] %vm2288, %v2116
      %2374 = vst.msk [vmem:[%s172 + $0x154] sm:$0xf] %vm2288, %v2117
      %2375 = vst.msk [vmem:[%s172 + $0x158] sm:$0xf] %vm2288, %v2118
      %2376 = vst.msk [vmem:[%s172 + $0x15c] sm:$0xf] %vm2288, %v2119
      %2377 = vst.msk [vmem:[%s172 + $0x160] sm:$0xf] %vm2288, %v2120
      %2378 = vst.msk [vmem:[%s172 + $0x164] sm:$0xf] %vm2288, %v2121
      %2379 = vst.msk [vmem:[%s172 + $0x168] sm:$0xf] %vm2288, %v2122
      %2380 = vst.msk [vmem:[%s172 + $0x16c] sm:$0xf] %vm2288, %v2123
      %2381 = vst.msk [vmem:[%s172 + $0x170] sm:$0xf] %vm2288, %v2124
      %2382 = vst.msk [vmem:[%s172 + $0x174] sm:$0xf] %vm2288, %v2125
      %2383 = vst.msk [vmem:[%s172 + $0x178] sm:$0xf] %vm2288, %v2126
      %2384 = vst.msk [vmem:[%s172 + $0x17c] sm:$0xf] %vm2288, %v2127
      %2385 = vst.msk [vmem:[%s172 + $0x180] sm:$0xf] %vm2288, %v2128
      %2386 = vst.msk [vmem:[%s172 + $0x184] sm:$0xf] %vm2288, %v2129
      %2387 = vst.msk [vmem:[%s172 + $0x188] sm:$0xf] %vm2288, %v2130
      %2388 = vst.msk [vmem:[%s172 + $0x18c] sm:$0xf] %vm2288, %v2131
      %2389 = vst.msk [vmem:[%s172 + $0x190] sm:$0xf] %vm2288, %v2132
      %2390 = vst.msk [vmem:[%s172 + $0x194] sm:$0xf] %vm2288, %v2133
      %2391 = vst.msk [vmem:[%s172 + $0x198] sm:$0xf] %vm2288, %v2134
      %2392 = vst.msk [vmem:[%s172 + $0x19c] sm:$0xf] %vm2288, %v2135
      %2393 = vst.msk [vmem:[%s172 + $0x1a0] sm:$0xf] %vm2288, %v2136
      %2394 = vst.msk [vmem:[%s172 + $0x1a4] sm:$0xf] %vm2288, %v2137
      %2395 = vst.msk [vmem:[%s172 + $0x1a8] sm:$0xf] %vm2288, %v2138
      %2396 = vst.msk [vmem:[%s172 + $0x1ac] sm:$0xf] %vm2288, %v2139
      %2397 = vst.msk [vmem:[%s172 + $0x1b0] sm:$0xf] %vm2288, %v2140
      %2398 = vst.msk [vmem:[%s172 + $0x1b4] sm:$0xf] %vm2288, %v2141
      %2399 = vst.msk [vmem:[%s172 + $0x1b8] sm:$0xf] %vm2288, %v2142
      %2400 = vst.msk [vmem:[%s172 + $0x1bc] sm:$0xf] %vm2288, %v2143
      %2401 = vst.msk [vmem:[%s172 + $0x1c0] sm:$0xf] %vm2288, %v2144
      %2402 = vst.msk [vmem:[%s172 + $0x1c4] sm:$0xf] %vm2288, %v2145
      %2403 = vst.msk [vmem:[%s172 + $0x1c8] sm:$0xf] %vm2288, %v2146
      %2404 = vst.msk [vmem:[%s172 + $0x1cc] sm:$0xf] %vm2288, %v2147
      %2405 = vst.msk [vmem:[%s172 + $0x1d0] sm:$0xf] %vm2288, %v2148
      %2406 = vst.msk [vmem:[%s172 + $0x1d4] sm:$0xf] %vm2288, %v2149
      %2407 = vst.msk [vmem:[%s172 + $0x1d8] sm:$0xf] %vm2288, %v2150
      %2408 = vst.msk [vmem:[%s172 + $0x1dc] sm:$0xf] %vm2288, %v2151
      %2409 = vst.msk [vmem:[%s172 + $0x1e0] sm:$0xf] %vm2288, %v2152
      %2410 = vst.msk [vmem:[%s172 + $0x1e4] sm:$0xf] %vm2288, %v2153
      %2411 = vst.msk [vmem:[%s172 + $0x1e8] sm:$0xf] %vm2288, %v2154
      %2412 = vst.msk [vmem:[%s172 + $0x1ec] sm:$0xf] %vm2288, %v2155
      %2413 = vst.msk [vmem:[%s172 + $0x1f0] sm:$0xf] %vm2288, %v2156
      %2414 = vst.msk [vmem:[%s172 + $0x1f4] sm:$0xf] %vm2288, %v2157
      %2415 = vst.msk [vmem:[%s172 + $0x1f8] sm:$0xf] %vm2288, %v2158
      %2416 = vst.msk [vmem:[%s172 + $0x1fc] sm:$0xf] %vm2288, %v2159
      %s2417 = smul.u32 128, %s14
      %p2418 = scmp.lt.s32.totalorder %s2417, 255
      %s2419 = scalar_select %p2418, %s2417, 255
      %s2420 = smul.addr %s2419, 4
      %s2421 = scalar_lea.vmem %s3, %s2420
      // Predicated region
      $region33: #{vae_forward.10} parent=31 // pred_check
        %p2422 = pneg %p100
      $region34: #{vae_forward.10} parent=31 // pred_check_branch
        %2424 = sbr.rel (%p2422) target = $region36
      $region35: #{vae_forward.10} parent=31 // pred_region
        %s2425 = smul.u32 128, %s14
      $region36: #{vae_forward.10} parent=31 // pred_fallthru
        _
    $region32: #{vae_forward.10} parent=5 // pred_fallthru
      _
    %p2426 = scmp.le.s32.totalorder 2, %s9
    // Predicated region
    $region37: #{vae_forward.10} parent=5 // pred_check
      %p2427 = pneg %p2426
    $region38: #{vae_forward.10} parent=5 // pred_check_branch
      %2429 = sbr.rel (%p2427) target = $region40
    $region39: #{vae_forward.10} parent=5 // pred_region
      %s2430 = ssub.s32 %s9, 2
      // Predicated region
      $region41: #{vae_forward.10} parent=39 // pred_check
        %p2431 = pneg %p106
      $region42: #{vae_forward.10} parent=39 // pred_check_branch
        %2433 = sbr.rel (%p2431) target = $region44
      $region43: #{vae_forward.10} parent=39 // pred_region
        %s2434 = smul.u32 128, %s15
        %p2435 = scmp.lt.s32.totalorder %s2434, 255
        %s2436 = scalar_select %p2435, %s2434, 255
        %s2437 = smul.addr %s2436, 4
        %s2438 = scalar_lea.vmem %s3, %s2437
      $region44: #{vae_forward.10} parent=39 // pred_fallthru
        _
    $region40: #{vae_forward.10} parent=5 // pred_fallthru
      _
  $region6: #{vae_forward.10} parent=0 // loop_footer
    %s13 = sadd.s32 1, %s9
  $region7: #{vae_forward.10} parent=0 // loop_footer_branch
    %8 = sbr.rel target = $region3
  $region8: #{vae_forward.10} parent=0 // loop_exit
    _

// kernel: vae_forward.11
$region0: #{vae_forward.11}
  #allocation0 [shape = 'u32[]', space=smem, size = 0x4, offset = 0x4, fixed_abs, tag = 'smem constant byte address 0x4 - core index']
  #allocation1 [shape = 'u32[144,128]{1,0:T(1,128)}', space=vmem, size = 0x12000, scoped, tag = 'internal scratch']
  %s0 = inlined_call_operand.vmem [shape: bf16[512,128], index: 0, kind: input, shape index: {}]
  %s1 = inlined_call_operand.vmem [shape: bf16[128,16], index: 1, kind: input, shape index: {}]
  %s2 = inlined_call_operand.vmem [shape: f32[1,16], index: 2, kind: input, shape index: {}]
  %s3 = inlined_call_operand.vmem [shape: bf16[512,16], index: 3, kind: output, shape index: {}]
  %s4 = sld [smem:[#allocation0]]
  $region22: #{vae_forward.11} parent=0
    _
  %s6 = ssub.s32 1, %s4
  %s7 = scalar_select 0, %s6, %s4
  // Predicated region
  $region2: #{vae_forward.11} parent=0 // pred_check
    _
  $region3: #{vae_forward.11} parent=0 // pred_check_branch
    %9 = sbr.rel (0) target = $region5
  $region4: #{vae_forward.11} parent=0 // pred_region
    _
  $region5: #{vae_forward.11} parent=0 // pred_fallthru
    _
  // Predicated region
  $region6: #{vae_forward.11} parent=0 // pred_check
    _
  $region7: #{vae_forward.11} parent=0 // pred_check_branch
    %11 = sbr.rel (0) target = $region9
  $region8: #{vae_forward.11} parent=0 // pred_region
    _
  $region9: #{vae_forward.11} parent=0 // pred_fallthru
    _
  // Predicated region
  $region10: #{vae_forward.11} parent=0 // pred_check
    _
  $region11: #{vae_forward.11} parent=0 // pred_check_branch
    %13 = sbr.rel (0) target = $region13
  $region12: #{vae_forward.11} parent=0 // pred_region
    _
  $region13: #{vae_forward.11} parent=0 // pred_fallthru
    _
  %v15 = vld [vmem:[%s0] sm:$0xf]
  %v16 = vld [vmem:[%s0 + $0x4] sm:$0xf]
  %v17 = vld [vmem:[%s0 + $0x8] sm:$0xf]
  %v18 = vld [vmem:[%s0 + $0xc] sm:$0xf]
  %v19 = vld [vmem:[%s0 + $0x10] sm:$0xf]
  %v20 = vld [vmem:[%s0 + $0x14] sm:$0xf]
  %v21 = vld [vmem:[%s0 + $0x18] sm:$0xf]
  %v22 = vld [vmem:[%s0 + $0x1c] sm:$0xf]
  %v23 = vld [vmem:[%s0 + $0x20] sm:$0xf]
  %v24 = vld [vmem:[%s0 + $0x24] sm:$0xf]
  %v25 = vld [vmem:[%s0 + $0x28] sm:$0xf]
  %v26 = vld [vmem:[%s0 + $0x2c] sm:$0xf]
  %v27 = vld [vmem:[%s0 + $0x30] sm:$0xf]
  %v28 = vld [vmem:[%s0 + $0x34] sm:$0xf]
  %v29 = vld [vmem:[%s0 + $0x38] sm:$0xf]
  %v30 = vld [vmem:[%s0 + $0x3c] sm:$0xf]
  %v31 = vld [vmem:[%s0 + $0x40] sm:$0xf]
  %v32 = vld [vmem:[%s0 + $0x44] sm:$0xf]
  %v33 = vld [vmem:[%s0 + $0x48] sm:$0xf]
  %v34 = vld [vmem:[%s0 + $0x4c] sm:$0xf]
  %v35 = vld [vmem:[%s0 + $0x50] sm:$0xf]
  %v36 = vld [vmem:[%s0 + $0x54] sm:$0xf]
  %v37 = vld [vmem:[%s0 + $0x58] sm:$0xf]
  %v38 = vld [vmem:[%s0 + $0x5c] sm:$0xf]
  %v39 = vld [vmem:[%s0 + $0x60] sm:$0xf]
  %v40 = vld [vmem:[%s0 + $0x64] sm:$0xf]
  %v41 = vld [vmem:[%s0 + $0x68] sm:$0xf]
  %v42 = vld [vmem:[%s0 + $0x6c] sm:$0xf]
  %v43 = vld [vmem:[%s0 + $0x70] sm:$0xf]
  %v44 = vld [vmem:[%s0 + $0x74] sm:$0xf]
  %v45 = vld [vmem:[%s0 + $0x78] sm:$0xf]
  %v46 = vld [vmem:[%s0 + $0x7c] sm:$0xf]
  %v47 = vld [vmem:[%s0 + $0x80] sm:$0xf]
  %v48 = vld [vmem:[%s0 + $0x84] sm:$0xf]
  %v49 = vld [vmem:[%s0 + $0x88] sm:$0xf]
  %v50 = vld [vmem:[%s0 + $0x8c] sm:$0xf]
  %v51 = vld [vmem:[%s0 + $0x90] sm:$0xf]
  %v52 = vld [vmem:[%s0 + $0x94] sm:$0xf]
  %v53 = vld [vmem:[%s0 + $0x98] sm:$0xf]
  %v54 = vld [vmem:[%s0 + $0x9c] sm:$0xf]
  %v55 = vld [vmem:[%s0 + $0xa0] sm:$0xf]
  %v56 = vld [vmem:[%s0 + $0xa4] sm:$0xf]
  %v57 = vld [vmem:[%s0 + $0xa8] sm:$0xf]
  %v58 = vld [vmem:[%s0 + $0xac] sm:$0xf]
  %v59 = vld [vmem:[%s0 + $0xb0] sm:$0xf]
  %v60 = vld [vmem:[%s0 + $0xb4] sm:$0xf]
  %v61 = vld [vmem:[%s0 + $0xb8] sm:$0xf]
  %v62 = vld [vmem:[%s0 + $0xbc] sm:$0xf]
  %v63 = vld [vmem:[%s0 + $0xc0] sm:$0xf]
  %v64 = vld [vmem:[%s0 + $0xc4] sm:$0xf]
  %v65 = vld [vmem:[%s0 + $0xc8] sm:$0xf]
  %v66 = vld [vmem:[%s0 + $0xcc] sm:$0xf]
  %v67 = vld [vmem:[%s0 + $0xd0] sm:$0xf]
  %v68 = vld [vmem:[%s0 + $0xd4] sm:$0xf]
  %v69 = vld [vmem:[%s0 + $0xd8] sm:$0xf]
  %v70 = vld [vmem:[%s0 + $0xdc] sm:$0xf]
  %v71 = vld [vmem:[%s0 + $0xe0] sm:$0xf]
  %v72 = vld [vmem:[%s0 + $0xe4] sm:$0xf]
  %v73 = vld [vmem:[%s0 + $0xe8] sm:$0xf]
  %v74 = vld [vmem:[%s0 + $0xec] sm:$0xf]
  %v75 = vld [vmem:[%s0 + $0xf0] sm:$0xf]
  %v76 = vld [vmem:[%s0 + $0xf4] sm:$0xf]
  %v77 = vld [vmem:[%s0 + $0xf8] sm:$0xf]
  %v78 = vld [vmem:[%s0 + $0xfc] sm:$0xf]
  %v79 = vld [vmem:[%s1] sm:$0xf]
  %v80 = vld [vmem:[%s1 + $0x4] sm:$0xf]
  %v81 = vld [vmem:[%s1 + $0x8] sm:$0xf]
  %v82 = vld [vmem:[%s1 + $0xc] sm:$0xf]
  %v83 = vld [vmem:[%s1 + $0x10] sm:$0xf]
  %v84 = vld [vmem:[%s1 + $0x14] sm:$0xf]
  %v85 = vld [vmem:[%s1 + $0x18] sm:$0xf]
  %v86 = vld [vmem:[%s1 + $0x1c] sm:$0xf]
  %v87 = vld [vmem:[%s1 + $0x20] sm:$0xf]
  %v88 = vld [vmem:[%s1 + $0x24] sm:$0xf]
  %v89 = vld [vmem:[%s1 + $0x28] sm:$0xf]
  %v90 = vld [vmem:[%s1 + $0x2c] sm:$0xf]
  %v91 = vld [vmem:[%s1 + $0x30] sm:$0xf]
  %v92 = vld [vmem:[%s1 + $0x34] sm:$0xf]
  %v93 = vld [vmem:[%s1 + $0x38] sm:$0xf]
  %v94 = vld [vmem:[%s1 + $0x3c] sm:$0xf]
  %v95 = vld [vmem:[%s2] sm:$0x1]
  %v97 = vlaneseq
  %v98 = vshrl.u32 %v97, 7
  %v99 = vsub.s32 0, %v98
  %v100 = vrot.slane %v95, %v99
  %v166 = vunpack.c.l.b16 %v15
  %v167 = vunpack.c.l.b16 %v16
  %v168 = vunpack.c.l.b16 %v17
  %v169 = vunpack.c.l.b16 %v18
  %v170 = vunpack.c.l.b16 %v19
  %v171 = vunpack.c.l.b16 %v20
  %v172 = vunpack.c.l.b16 %v21
  %v173 = vunpack.c.l.b16 %v22
  %v174 = vunpack.c.l.b16 %v23
  %v175 = vunpack.c.l.b16 %v24
  %v176 = vunpack.c.l.b16 %v25
  %v177 = vunpack.c.l.b16 %v26
  %v178 = vunpack.c.l.b16 %v27
  %v179 = vunpack.c.l.b16 %v28
  %v180 = vunpack.c.l.b16 %v29
  %v181 = vunpack.c.l.b16 %v30
  %v182 = vunpack.c.l.b16 %v31
  %v183 = vunpack.c.l.b16 %v32
  %v184 = vunpack.c.l.b16 %v33
  %v185 = vunpack.c.l.b16 %v34
  %v186 = vunpack.c.l.b16 %v35
  %v187 = vunpack.c.l.b16 %v36
  %v188 = vunpack.c.l.b16 %v37
  %v189 = vunpack.c.l.b16 %v38
  %v190 = vunpack.c.l.b16 %v39
  %v191 = vunpack.c.l.b16 %v40
  %v192 = vunpack.c.l.b16 %v41
  %v193 = vunpack.c.l.b16 %v42
  %v194 = vunpack.c.l.b16 %v43
  %v195 = vunpack.c.l.b16 %v44
  %v196 = vunpack.c.l.b16 %v45
  %v197 = vunpack.c.l.b16 %v46
  %v198 = vunpack.c.l.b16 %v47
  %v199 = vunpack.c.l.b16 %v48
  %v200 = vunpack.c.l.b16 %v49
  %v201 = vunpack.c.l.b16 %v50
  %v202 = vunpack.c.l.b16 %v51
  %v203 = vunpack.c.l.b16 %v52
  %v204 = vunpack.c.l.b16 %v53
  %v205 = vunpack.c.l.b16 %v54
  %v206 = vunpack.c.l.b16 %v55
  %v207 = vunpack.c.l.b16 %v56
  %v208 = vunpack.c.l.b16 %v57
  %v209 = vunpack.c.l.b16 %v58
  %v210 = vunpack.c.l.b16 %v59
  %v211 = vunpack.c.l.b16 %v60
  %v212 = vunpack.c.l.b16 %v61
  %v213 = vunpack.c.l.b16 %v62
  %v214 = vunpack.c.l.b16 %v63
  %v215 = vunpack.c.l.b16 %v64
  %v216 = vunpack.c.l.b16 %v65
  %v217 = vunpack.c.l.b16 %v66
  %v218 = vunpack.c.l.b16 %v67
  %v219 = vunpack.c.l.b16 %v68
  %v220 = vunpack.c.l.b16 %v69
  %v221 = vunpack.c.l.b16 %v70
  %v222 = vunpack.c.l.b16 %v71
  %v223 = vunpack.c.l.b16 %v72
  %v224 = vunpack.c.l.b16 %v73
  %v225 = vunpack.c.l.b16 %v74
  %v226 = vunpack.c.l.b16 %v75
  %v227 = vunpack.c.l.b16 %v76
  %v228 = vunpack.c.l.b16 %v77
  %v229 = vunpack.c.l.b16 %v78
  %v230 = vpack.c.b16 %v167, %v166
  %v231 = vpack.c.b16 %v169, %v168
  %v232 = vpack.c.b16 %v171, %v170
  %v233 = vpack.c.b16 %v173, %v172
  %v234 = vpack.c.b16 %v175, %v174
  %v235 = vpack.c.b16 %v177, %v176
  %v236 = vpack.c.b16 %v179, %v178
  %v237 = vpack.c.b16 %v181, %v180
  %v238 = vpack.c.b16 %v183, %v182
  %v239 = vpack.c.b16 %v185, %v184
  %v240 = vpack.c.b16 %v187, %v186
  %v241 = vpack.c.b16 %v189, %v188
  %v242 = vpack.c.b16 %v191, %v190
  %v243 = vpack.c.b16 %v193, %v192
  %v244 = vpack.c.b16 %v195, %v194
  %v245 = vpack.c.b16 %v197, %v196
  %v246 = vpack.c.b16 %v199, %v198
  %v247 = vpack.c.b16 %v201, %v200
  %v248 = vpack.c.b16 %v203, %v202
  %v249 = vpack.c.b16 %v205, %v204
  %v250 = vpack.c.b16 %v207, %v206
  %v251 = vpack.c.b16 %v209, %v208
  %v252 = vpack.c.b16 %v211, %v210
  %v253 = vpack.c.b16 %v213, %v212
  %v254 = vpack.c.b16 %v215, %v214
  %v255 = vpack.c.b16 %v217, %v216
  %v256 = vpack.c.b16 %v219, %v218
  %v257 = vpack.c.b16 %v221, %v220
  %v258 = vpack.c.b16 %v223, %v222
  %v259 = vpack.c.b16 %v225, %v224
  %v260 = vpack.c.b16 %v227, %v226
  %v261 = vpack.c.b16 %v229, %v228
  %v310 = vunpack.c.l.b16 %v79
  %v311 = vunpack.c.l.b16 %v80
  %v312 = vunpack.c.l.b16 %v81
  %v313 = vunpack.c.l.b16 %v82
  %v314 = vunpack.c.l.b16 %v83
  %v315 = vunpack.c.l.b16 %v84
  %v316 = vunpack.c.l.b16 %v85
  %v317 = vunpack.c.l.b16 %v86
  %v318 = vunpack.c.l.b16 %v87
  %v319 = vunpack.c.l.b16 %v88
  %v320 = vunpack.c.l.b16 %v89
  %v321 = vunpack.c.l.b16 %v90
  %v322 = vunpack.c.l.b16 %v91
  %v323 = vunpack.c.l.b16 %v92
  %v324 = vunpack.c.l.b16 %v93
  %v325 = vunpack.c.l.b16 %v94
  %v326 = vpack.c.b16 %v311, %v310
  %v327 = vpack.c.b16 %v313, %v312
  %v328 = vpack.c.b16 %v315, %v314
  %v329 = vpack.c.b16 %v317, %v316
  %v330 = vpack.c.b16 %v319, %v318
  %v331 = vpack.c.b16 %v321, %v320
  %v332 = vpack.c.b16 %v323, %v322
  %v333 = vpack.c.b16 %v325, %v324
  %342 = vmatprep.subr.bf16.mxu0 0
  %343 = vmatpush1.bf16.msra.mxu0 %v326
  %344 = vmatprep.subr.bf16.mxu0 0
  %345 = vmatpush1.bf16.msra.mxu0 %v327
  %346 = vmatprep.subr.bf16.mxu0 0
  %347 = vmatpush1.bf16.msra.mxu0 %v328
  %348 = vmatprep.subr.bf16.mxu0 0
  %349 = vmatpush1.bf16.msra.mxu0 %v329
  %350 = vmatprep.subr.bf16.mxu0 0
  %351 = vmatpush1.bf16.msra.mxu0 %v330
  %352 = vmatprep.subr.bf16.mxu0 0
  %353 = vmatpush1.bf16.msra.mxu0 %v331
  %354 = vmatprep.subr.bf16.mxu0 0
  %355 = vmatpush1.bf16.msra.mxu0 %v332
  %356 = vmatprep.subr.bf16.mxu0 0
  %357 = vmatpush1.bf16.msra.mxu0 %v333
  %358 = vmatprep.subr.bf16.mxu0 0
  %359 = vmatpush1.bf16.msra.mxu0 0
  %360 = vmatprep.subr.bf16.mxu0 0
  %361 = vmatpush1.bf16.msra.mxu0 0
  %362 = vmatprep.subr.bf16.mxu0 0
  %363 = vmatpush1.bf16.msra.mxu0 0
  %364 = vmatprep.subr.bf16.mxu0 0
  %365 = vmatpush1.bf16.msra.mxu0 0
  %366 = vmatprep.subr.bf16.mxu0 0
  %367 = vmatpush1.bf16.msra.mxu0 0
  %368 = vmatprep.subr.bf16.mxu0 0
  %369 = vmatpush1.bf16.msra.mxu0 0
  %370 = vmatprep.subr.bf16.mxu0 0
  %371 = vmatpush1.bf16.msra.mxu0 0
  %372 = vmatprep.subr.bf16.mxu0 0
  %373 = vmatpush1.bf16.msra.mxu0 0
  %374 = vmatprep.mubr.bf16.mxu0 0
  %375 = vmatmul.mubr.bf16.gmra.mrb[0].mxu0 %v230
  %v376 = vpop.f32.mrb[0].mxu0
  %v377 = vadd.f32 %v100, %v376
  %v378 = vpop.f32.mrb[0].mxu0
  %v379 = vpop.f32.mrb[0].mxu0
  %v380 = vadd.f32 %v100, %v379
  %v381 = vpop.f32.mrb[0].mxu0
  %382 = vmatprep.mubr.bf16.mxu0 0
  %383 = vmatmul.mubr.bf16.gmra.mrb[0].mxu0 %v231
  %v384 = vpop.f32.mrb[0].mxu0
  %v385 = vadd.f32 %v100, %v384
  %v386 = vpop.f32.mrb[0].mxu0
  %v387 = vpop.f32.mrb[0].mxu0
  %v388 = vadd.f32 %v100, %v387
  %v389 = vpop.f32.mrb[0].mxu0
  %390 = vmatprep.mubr.bf16.mxu0 0
  %391 = vmatmul.mubr.bf16.gmra.mrb[0].mxu0 %v232
  %v392 = vpop.f32.mrb[0].mxu0
  %v393 = vadd.f32 %v100, %v392
  %v394 = vpop.f32.mrb[0].mxu0
  %v395 = vpop.f32.mrb[0].mxu0
  %v396 = vadd.f32 %v100, %v395
  %v397 = vpop.f32.mrb[0].mxu0
  %398 = vmatprep.mubr.bf16.mxu0 0
  %399 = vmatmul.mubr.bf16.gmra.mrb[0].mxu0 %v233
  %v400 = vpop.f32.mrb[0].mxu0
  %v401 = vadd.f32 %v100, %v400
  %v402 = vpop.f32.mrb[0].mxu0
  %v403 = vpop.f32.mrb[0].mxu0
  %v404 = vadd.f32 %v100, %v403
  %v405 = vpop.f32.mrb[0].mxu0
  %406 = vmatprep.mubr.bf16.mxu0 0
  %407 = vmatmul.mubr.bf16.gmra.mrb[0].mxu0 %v234
  %v408 = vpop.f32.mrb[0].mxu0
  %v409 = vadd.f32 %v100, %v408
  %v410 = vpop.f32.mrb[0].mxu0
  %v411 = vpop.f32.mrb[0].mxu0
  %v412 = vadd.f32 %v100, %v411
  %v413 = vpop.f32.mrb[0].mxu0
  %414 = vmatprep.mubr.bf16.mxu0 0
  %415 = vmatmul.mubr.bf16.gmra.mrb[0].mxu0 %v235
  %v416 = vpop.f32.mrb[0].mxu0
  %v417 = vadd.f32 %v100, %v416
  %v418 = vpop.f32.mrb[0].mxu0
  %v419 = vpop.f32.mrb[0].mxu0
  %v420 = vadd.f32 %v100, %v419
  %v421 = vpop.f32.mrb[0].mxu0
  %422 = vmatprep.mubr.bf16.mxu0 0
  %423 = vmatmul.mubr.bf16.gmra.mrb[0].mxu0 %v236
  %v424 = vpop.f32.mrb[0].mxu0
  %v425 = vadd.f32 %v100, %v424
  %v426 = vpop.f32.mrb[0].mxu0
  %v427 = vpop.f32.mrb[0].mxu0
  %v428 = vadd.f32 %v100, %v427
  %v429 = vpop.f32.mrb[0].mxu0
  %430 = vmatprep.mubr.bf16.mxu0 0
  %431 = vmatmul.mubr.bf16.gmra.mrb[0].mxu0 %v237
  %v432 = vpop.f32.mrb[0].mxu0
  %v433 = vadd.f32 %v100, %v432
  %v434 = vpop.f32.mrb[0].mxu0
  %v435 = vpop.f32.mrb[0].mxu0
  %v436 = vadd.f32 %v100, %v435
  %v437 = vpop.f32.mrb[0].mxu0
  %438 = vmatprep.mubr.bf16.mxu0 0
  %439 = vmatmul.mubr.bf16.gmra.mrb[0].mxu0 %v238
  %v440 = vpop.f32.mrb[0].mxu0
  %v441 = vadd.f32 %v100, %v440
  %v442 = vpop.f32.mrb[0].mxu0
  %v443 = vpop.f32.mrb[0].mxu0
  %v444 = vadd.f32 %v100, %v443
  %v445 = vpop.f32.mrb[0].mxu0
  %446 = vmatprep.mubr.bf16.mxu0 0
  %447 = vmatmul.mubr.bf16.gmra.mrb[0].mxu0 %v239
  %v448 = vpop.f32.mrb[0].mxu0
  %v449 = vadd.f32 %v100, %v448
  %v450 = vpop.f32.mrb[0].mxu0
  %v451 = vpop.f32.mrb[0].mxu0
  %v452 = vadd.f32 %v100, %v451
  %v453 = vpop.f32.mrb[0].mxu0
  %454 = vmatprep.mubr.bf16.mxu0 0
  %455 = vmatmul.mubr.bf16.gmra.mrb[0].mxu0 %v240
  %v456 = vpop.f32.mrb[0].mxu0
  %v457 = vadd.f32 %v100, %v456
  %v458 = vpop.f32.mrb[0].mxu0
  %v459 = vpop.f32.mrb[0].mxu0
  %v460 = vadd.f32 %v100, %v459
  %v461 = vpop.f32.mrb[0].mxu0
  %462 = vmatprep.mubr.bf16.mxu0 0
  %463 = vmatmul.mubr.bf16.gmra.mrb[0].mxu0 %v241
  %v464 = vpop.f32.mrb[0].mxu0
  %v465 = vadd.f32 %v100, %v464
  %v466 = vpop.f32.mrb[0].mxu0
  %v467 = vpop.f32.mrb[0].mxu0
  %v468 = vadd.f32 %v100, %v467
  %v469 = vpop.f32.mrb[0].mxu0
  %470 = vmatprep.mubr.bf16.mxu0 0
  %471 = vmatmul.mubr.bf16.gmra.mrb[0].mxu0 %v242
  %v472 = vpop.f32.mrb[0].mxu0
  %v473 = vadd.f32 %v100, %v472
  %v474 = vpop.f32.mrb[0].mxu0
  %v475 = vpop.f32.mrb[0].mxu0
  %v476 = vadd.f32 %v100, %v475
  %v477 = vpop.f32.mrb[0].mxu0
  %478 = vmatprep.mubr.bf16.mxu0 0
  %479 = vmatmul.mubr.bf16.gmra.mrb[0].mxu0 %v243
  %v480 = vpop.f32.mrb[0].mxu0
  %v481 = vadd.f32 %v100, %v480
  %v482 = vpop.f32.mrb[0].mxu0
  %v483 = vpop.f32.mrb[0].mxu0
  %v484 = vadd.f32 %v100, %v483
  %v485 = vpop.f32.mrb[0].mxu0
  %486 = vmatprep.mubr.bf16.mxu0 0
  %487 = vmatmul.mubr.bf16.gmra.mrb[0].mxu0 %v244
  %v488 = vpop.f32.mrb[0].mxu0
  %v489 = vadd.f32 %v100, %v488
  %v490 = vpop.f32.mrb[0].mxu0
  %v491 = vpop.f32.mrb[0].mxu0
  %v492 = vadd.f32 %v100, %v491
  %v493 = vpop.f32.mrb[0].mxu0
  %494 = vmatprep.mubr.bf16.mxu0 0
  %495 = vmatmul.mubr.bf16.gmra.mrb[0].mxu0 %v245
  %v496 = vpop.f32.mrb[0].mxu0
  %v497 = vadd.f32 %v100, %v496
  %v498 = vpop.f32.mrb[0].mxu0
  %v499 = vpop.f32.mrb[0].mxu0
  %v500 = vadd.f32 %v100, %v499
  %v501 = vpop.f32.mrb[0].mxu0
  %502 = vmatprep.mubr.bf16.mxu0 0
  %503 = vmatmul.mubr.bf16.gmra.mrb[0].mxu0 %v246
  %v504 = vpop.f32.mrb[0].mxu0
  %v505 = vadd.f32 %v100, %v504
  %v506 = vpop.f32.mrb[0].mxu0
  %v507 = vpop.f32.mrb[0].mxu0
  %v508 = vadd.f32 %v100, %v507
  %v509 = vpop.f32.mrb[0].mxu0
  %510 = vmatprep.mubr.bf16.mxu0 0
  %511 = vmatmul.mubr.bf16.gmra.mrb[0].mxu0 %v247
  %v512 = vpop.f32.mrb[0].mxu0
  %v513 = vadd.f32 %v100, %v512
  %v514 = vpop.f32.mrb[0].mxu0
  %v515 = vpop.f32.mrb[0].mxu0
  %v516 = vadd.f32 %v100, %v515
  %v517 = vpop.f32.mrb[0].mxu0
  %518 = vmatprep.mubr.bf16.mxu0 0
  %519 = vmatmul.mubr.bf16.gmra.mrb[0].mxu0 %v248
  %v520 = vpop.f32.mrb[0].mxu0
  %v521 = vadd.f32 %v100, %v520
  %v522 = vpop.f32.mrb[0].mxu0
  %v523 = vpop.f32.mrb[0].mxu0
  %v524 = vadd.f32 %v100, %v523
  %v525 = vpop.f32.mrb[0].mxu0
  %526 = vmatprep.mubr.bf16.mxu0 0
  %527 = vmatmul.mubr.bf16.gmra.mrb[0].mxu0 %v249
  %v528 = vpop.f32.mrb[0].mxu0
  %v529 = vadd.f32 %v100, %v528
  %v530 = vpop.f32.mrb[0].mxu0
  %v531 = vpop.f32.mrb[0].mxu0
  %v532 = vadd.f32 %v100, %v531
  %v533 = vpop.f32.mrb[0].mxu0
  %534 = vmatprep.mubr.bf16.mxu0 0
  %535 = vmatmul.mubr.bf16.gmra.mrb[0].mxu0 %v250
  %v536 = vpop.f32.mrb[0].mxu0
  %v537 = vadd.f32 %v100, %v536
  %v538 = vpop.f32.mrb[0].mxu0
  %v539 = vpop.f32.mrb[0].mxu0
  %v540 = vadd.f32 %v100, %v539
  %v541 = vpop.f32.mrb[0].mxu0
  %542 = vmatprep.mubr.bf16.mxu0 0
  %543 = vmatmul.mubr.bf16.gmra.mrb[0].mxu0 %v251
  %v544 = vpop.f32.mrb[0].mxu0
  %v545 = vadd.f32 %v100, %v544
  %v546 = vpop.f32.mrb[0].mxu0
  %v547 = vpop.f32.mrb[0].mxu0
  %v548 = vadd.f32 %v100, %v547
  %v549 = vpop.f32.mrb[0].mxu0
  %550 = vmatprep.mubr.bf16.mxu0 0
  %551 = vmatmul.mubr.bf16.gmra.mrb[0].mxu0 %v252
  %v552 = vpop.f32.mrb[0].mxu0
  %v553 = vadd.f32 %v100, %v552
  %v554 = vpop.f32.mrb[0].mxu0
  %v555 = vpop.f32.mrb[0].mxu0
  %v556 = vadd.f32 %v100, %v555
  %v557 = vpop.f32.mrb[0].mxu0
  %558 = vmatprep.mubr.bf16.mxu0 0
  %559 = vmatmul.mubr.bf16.gmra.mrb[0].mxu0 %v253
  %v560 = vpop.f32.mrb[0].mxu0
  %v561 = vadd.f32 %v100, %v560
  %v562 = vpop.f32.mrb[0].mxu0
  %v563 = vpop.f32.mrb[0].mxu0
  %v564 = vadd.f32 %v100, %v563
  %v565 = vpop.f32.mrb[0].mxu0
  %566 = vmatprep.mubr.bf16.mxu0 0
  %567 = vmatmul.mubr.bf16.gmra.mrb[0].mxu0 %v254
  %v568 = vpop.f32.mrb[0].mxu0
  %v569 = vadd.f32 %v100, %v568
  %v570 = vpop.f32.mrb[0].mxu0
  %v571 = vpop.f32.mrb[0].mxu0
  %v572 = vadd.f32 %v100, %v571
  %v573 = vpop.f32.mrb[0].mxu0
  %574 = vmatprep.mubr.bf16.mxu0 0
  %575 = vmatmul.mubr.bf16.gmra.mrb[0].mxu0 %v255
  %v576 = vpop.f32.mrb[0].mxu0
  %v577 = vadd.f32 %v100, %v576
  %v578 = vpop.f32.mrb[0].mxu0
  %v579 = vpop.f32.mrb[0].mxu0
  %v580 = vadd.f32 %v100, %v579
  %v581 = vpop.f32.mrb[0].mxu0
  %582 = vmatprep.mubr.bf16.mxu0 0
  %583 = vmatmul.mubr.bf16.gmra.mrb[0].mxu0 %v256
  %v584 = vpop.f32.mrb[0].mxu0
  %v585 = vadd.f32 %v100, %v584
  %v586 = vpop.f32.mrb[0].mxu0
  %v587 = vpop.f32.mrb[0].mxu0
  %v588 = vadd.f32 %v100, %v587
  %v589 = vpop.f32.mrb[0].mxu0
  %590 = vmatprep.mubr.bf16.mxu0 0
  %591 = vmatmul.mubr.bf16.gmra.mrb[0].mxu0 %v257
  %v592 = vpop.f32.mrb[0].mxu0
  %v593 = vadd.f32 %v100, %v592
  %v594 = vpop.f32.mrb[0].mxu0
  %v595 = vpop.f32.mrb[0].mxu0
  %v596 = vadd.f32 %v100, %v595
  %v597 = vpop.f32.mrb[0].mxu0
  %598 = vmatprep.mubr.bf16.mxu0 0
  %599 = vmatmul.mubr.bf16.gmra.mrb[0].mxu0 %v258
  %v600 = vpop.f32.mrb[0].mxu0
  %v601 = vadd.f32 %v100, %v600
  %v602 = vpop.f32.mrb[0].mxu0
  %v603 = vpop.f32.mrb[0].mxu0
  %v604 = vadd.f32 %v100, %v603
  %v605 = vpop.f32.mrb[0].mxu0
  %606 = vmatprep.mubr.bf16.mxu0 0
  %607 = vmatmul.mubr.bf16.gmra.mrb[0].mxu0 %v259
  %v608 = vpop.f32.mrb[0].mxu0
  %v609 = vadd.f32 %v100, %v608
  %v610 = vpop.f32.mrb[0].mxu0
  %v611 = vpop.f32.mrb[0].mxu0
  %v612 = vadd.f32 %v100, %v611
  %v613 = vpop.f32.mrb[0].mxu0
  %614 = vmatprep.mubr.bf16.mxu0 0
  %615 = vmatmul.mubr.bf16.gmra.mrb[0].mxu0 %v260
  %v616 = vpop.f32.mrb[0].mxu0
  %v617 = vadd.f32 %v100, %v616
  %v618 = vpop.f32.mrb[0].mxu0
  %v619 = vpop.f32.mrb[0].mxu0
  %v620 = vadd.f32 %v100, %v619
  %v621 = vpop.f32.mrb[0].mxu0
  %622 = vmatprep.mubr.bf16.mxu0 0
  %623 = vmatmul.mubr.bf16.gmra.mrb[0].mxu0 %v261
  %v624 = vpop.f32.mrb[0].mxu0
  %v625 = vadd.f32 %v100, %v624
  %v626 = vpop.f32.mrb[0].mxu0
  %v627 = vpop.f32.mrb[0].mxu0
  %v628 = vadd.f32 %v100, %v627
  %v629 = vpop.f32.mrb[0].mxu0
  %630 = vdwg.mxu0
  %vm631 = vcmp.gt.f32.partialorder %v377, 0.0
  %vm632 = vcmp.gt.f32.partialorder %v380, 0.0
  %vm633 = vcmp.gt.f32.partialorder %v385, 0.0
  %vm634 = vcmp.gt.f32.partialorder %v388, 0.0
  %vm635 = vcmp.gt.f32.partialorder %v393, 0.0
  %vm636 = vcmp.gt.f32.partialorder %v396, 0.0
  %vm637 = vcmp.gt.f32.partialorder %v401, 0.0
  %vm638 = vcmp.gt.f32.partialorder %v404, 0.0
  %vm639 = vcmp.gt.f32.partialorder %v409, 0.0
  %vm640 = vcmp.gt.f32.partialorder %v412, 0.0
  %vm641 = vcmp.gt.f32.partialorder %v417, 0.0
  %vm642 = vcmp.gt.f32.partialorder %v420, 0.0
  %vm643 = vcmp.gt.f32.partialorder %v425, 0.0
  %vm644 = vcmp.gt.f32.partialorder %v428, 0.0
  %vm645 = vcmp.gt.f32.partialorder %v433, 0.0
  %vm646 = vcmp.gt.f32.partialorder %v436, 0.0
  %vm647 = vcmp.gt.f32.partialorder %v441, 0.0
  %vm648 = vcmp.gt.f32.partialorder %v444, 0.0
  %vm649 = vcmp.gt.f32.partialorder %v449, 0.0
  %vm650 = vcmp.gt.f32.partialorder %v452, 0.0
  %vm651 = vcmp.gt.f32.partialorder %v457, 0.0
  %vm652 = vcmp.gt.f32.partialorder %v460, 0.0
  %vm653 = vcmp.gt.f32.partialorder %v465, 0.0
  %vm654 = vcmp.gt.f32.partialorder %v468, 0.0
  %vm655 = vcmp.gt.f32.partialorder %v473, 0.0
  %vm656 = vcmp.gt.f32.partialorder %v476, 0.0
  %vm657 = vcmp.gt.f32.partialorder %v481, 0.0
  %vm658 = vcmp.gt.f32.partialorder %v484, 0.0
  %vm659 = vcmp.gt.f32.partialorder %v489, 0.0
  %vm660 = vcmp.gt.f32.partialorder %v492, 0.0
  %vm661 = vcmp.gt.f32.partialorder %v497, 0.0
  %vm662 = vcmp.gt.f32.partialorder %v500, 0.0
  %vm663 = vcmp.gt.f32.partialorder %v505, 0.0
  %vm664 = vcmp.gt.f32.partialorder %v508, 0.0
  %vm665 = vcmp.gt.f32.partialorder %v513, 0.0
  %vm666 = vcmp.gt.f32.partialorder %v516, 0.0
  %vm667 = vcmp.gt.f32.partialorder %v521, 0.0
  %vm668 = vcmp.gt.f32.partialorder %v524, 0.0
  %vm669 = vcmp.gt.f32.partialorder %v529, 0.0
  %vm670 = vcmp.gt.f32.partialorder %v532, 0.0
  %vm671 = vcmp.gt.f32.partialorder %v537, 0.0
  %vm672 = vcmp.gt.f32.partialorder %v540, 0.0
  %vm673 = vcmp.gt.f32.partialorder %v545, 0.0
  %vm674 = vcmp.gt.f32.partialorder %v548, 0.0
  %vm675 = vcmp.gt.f32.partialorder %v553, 0.0
  %vm676 = vcmp.gt.f32.partialorder %v556, 0.0
  %vm677 = vcmp.gt.f32.partialorder %v561, 0.0
  %vm678 = vcmp.gt.f32.partialorder %v564, 0.0
  %vm679 = vcmp.gt.f32.partialorder %v569, 0.0
  %vm680 = vcmp.gt.f32.partialorder %v572, 0.0
  %vm681 = vcmp.gt.f32.partialorder %v577, 0.0
  %vm682 = vcmp.gt.f32.partialorder %v580, 0.0
  %vm683 = vcmp.gt.f32.partialorder %v585, 0.0
  %vm684 = vcmp.gt.f32.partialorder %v588, 0.0
  %vm685 = vcmp.gt.f32.partialorder %v593, 0.0
  %vm686 = vcmp.gt.f32.partialorder %v596, 0.0
  %vm687 = vcmp.gt.f32.partialorder %v601, 0.0
  %vm688 = vcmp.gt.f32.partialorder %v604, 0.0
  %vm689 = vcmp.gt.f32.partialorder %v609, 0.0
  %vm690 = vcmp.gt.f32.partialorder %v612, 0.0
  %vm691 = vcmp.gt.f32.partialorder %v617, 0.0
  %vm692 = vcmp.gt.f32.partialorder %v620, 0.0
  %vm693 = vcmp.gt.f32.partialorder %v625, 0.0
  %vm694 = vcmp.gt.f32.partialorder %v628, 0.0
  %v695 = vmul.f32 %v377, 0.2
  %v696 = vmul.f32 %v380, 0.2
  %v697 = vmul.f32 %v385, 0.2
  %v698 = vmul.f32 %v388, 0.2
  %v699 = vmul.f32 %v393, 0.2
  %v700 = vmul.f32 %v396, 0.2
  %v701 = vmul.f32 %v401, 0.2
  %v702 = vmul.f32 %v404, 0.2
  %v703 = vmul.f32 %v409, 0.2
  %v704 = vmul.f32 %v412, 0.2
  %v705 = vmul.f32 %v417, 0.2
  %v706 = vmul.f32 %v420, 0.2
  %v707 = vmul.f32 %v425, 0.2
  %v708 = vmul.f32 %v428, 0.2
  %v709 = vmul.f32 %v433, 0.2
  %v710 = vmul.f32 %v436, 0.2
  %v711 = vmul.f32 %v441, 0.2
  %v712 = vmul.f32 %v444, 0.2
  %v713 = vmul.f32 %v449, 0.2
  %v714 = vmul.f32 %v452, 0.2
  %v715 = vmul.f32 %v457, 0.2
  %v716 = vmul.f32 %v460, 0.2
  %v717 = vmul.f32 %v465, 0.2
  %v718 = vmul.f32 %v468, 0.2
  %v719 = vmul.f32 %v473, 0.2
  %v720 = vmul.f32 %v476, 0.2
  %v721 = vmul.f32 %v481, 0.2
  %v722 = vmul.f32 %v484, 0.2
  %v723 = vmul.f32 %v489, 0.2
  %v724 = vmul.f32 %v492, 0.2
  %v725 = vmul.f32 %v497, 0.2
  %v726 = vmul.f32 %v500, 0.2
  %v727 = vmul.f32 %v505, 0.2
  %v728 = vmul.f32 %v508, 0.2
  %v729 = vmul.f32 %v513, 0.2
  %v730 = vmul.f32 %v516, 0.2
  %v731 = vmul.f32 %v521, 0.2
  %v732 = vmul.f32 %v524, 0.2
  %v733 = vmul.f32 %v529, 0.2
  %v734 = vmul.f32 %v532, 0.2
  %v735 = vmul.f32 %v537, 0.2
  %v736 = vmul.f32 %v540, 0.2
  %v737 = vmul.f32 %v545, 0.2
  %v738 = vmul.f32 %v548, 0.2
  %v739 = vmul.f32 %v553, 0.2
  %v740 = vmul.f32 %v556, 0.2
  %v741 = vmul.f32 %v561, 0.2
  %v742 = vmul.f32 %v564, 0.2
  %v743 = vmul.f32 %v569, 0.2
  %v744 = vmul.f32 %v572, 0.2
  %v745 = vmul.f32 %v577, 0.2
  %v746 = vmul.f32 %v580, 0.2
  %v747 = vmul.f32 %v585, 0.2
  %v748 = vmul.f32 %v588, 0.2
  %v749 = vmul.f32 %v593, 0.2
  %v750 = vmul.f32 %v596, 0.2
  %v751 = vmul.f32 %v601, 0.2
  %v752 = vmul.f32 %v604, 0.2
  %v753 = vmul.f32 %v609, 0.2
  %v754 = vmul.f32 %v612, 0.2
  %v755 = vmul.f32 %v617, 0.2
  %v756 = vmul.f32 %v620, 0.2
  %v757 = vmul.f32 %v625, 0.2
  %v758 = vmul.f32 %v628, 0.2
  %v759 = vsel %vm631, %v377, %v695
  %v760 = vsel %vm632, %v380, %v696
  %v761 = vsel %vm633, %v385, %v697
  %v762 = vsel %vm634, %v388, %v698
  %v763 = vsel %vm635, %v393, %v699
  %v764 = vsel %vm636, %v396, %v700
  %v765 = vsel %vm637, %v401, %v701
  %v766 = vsel %vm638, %v404, %v702
  %v767 = vsel %vm639, %v409, %v703
  %v768 = vsel %vm640, %v412, %v704
  %v769 = vsel %vm641, %v417, %v705
  %v770 = vsel %vm642, %v420, %v706
  %v771 = vsel %vm643, %v425, %v707
  %v772 = vsel %vm644, %v428, %v708
  %v773 = vsel %vm645, %v433, %v709
  %v774 = vsel %vm646, %v436, %v710
  %v775 = vsel %vm647, %v441, %v711
  %v776 = vsel %vm648, %v444, %v712
  %v777 = vsel %vm649, %v449, %v713
  %v778 = vsel %vm650, %v452, %v714
  %v779 = vsel %vm651, %v457, %v715
  %v780 = vsel %vm652, %v460, %v716
  %v781 = vsel %vm653, %v465, %v717
  %v782 = vsel %vm654, %v468, %v718
  %v783 = vsel %vm655, %v473, %v719
  %v784 = vsel %vm656, %v476, %v720
  %v785 = vsel %vm657, %v481, %v721
  %v786 = vsel %vm658, %v484, %v722
  %v787 = vsel %vm659, %v489, %v723
  %v788 = vsel %vm660, %v492, %v724
  %v789 = vsel %vm661, %v497, %v725
  %v790 = vsel %vm662, %v500, %v726
  %v791 = vsel %vm663, %v505, %v727
  %v792 = vsel %vm664, %v508, %v728
  %v793 = vsel %vm665, %v513, %v729
  %v794 = vsel %vm666, %v516, %v730
  %v795 = vsel %vm667, %v521, %v731
  %v796 = vsel %vm668, %v524, %v732
  %v797 = vsel %vm669, %v529, %v733
  %v798 = vsel %vm670, %v532, %v734
  %v799 = vsel %vm671, %v537, %v735
  %v800 = vsel %vm672, %v540, %v736
  %v801 = vsel %vm673, %v545, %v737
  %v802 = vsel %vm674, %v548, %v738
  %v803 = vsel %vm675, %v553, %v739
  %v804 = vsel %vm676, %v556, %v740
  %v805 = vsel %vm677, %v561, %v741
  %v806 = vsel %vm678, %v564, %v742
  %v807 = vsel %vm679, %v569, %v743
  %v808 = vsel %vm680, %v572, %v744
  %v809 = vsel %vm681, %v577, %v745
  %v810 = vsel %vm682, %v580, %v746
  %v811 = vsel %vm683, %v585, %v747
  %v812 = vsel %vm684, %v588, %v748
  %v813 = vsel %vm685, %v593, %v749
  %v814 = vsel %vm686, %v596, %v750
  %v815 = vsel %vm687, %v601, %v751
  %v816 = vsel %vm688, %v604, %v752
  %v817 = vsel %vm689, %v609, %v753
  %v818 = vsel %vm690, %v612, %v754
  %v819 = vsel %vm691, %v617, %v755
  %v820 = vsel %vm692, %v620, %v756
  %v821 = vsel %vm693, %v625, %v757
  %v822 = vsel %vm694, %v628, %v758
  %v823 = vpack.c.bf16 %v760, %v759
  %v824 = vpack.c.bf16 %v762, %v761
  %v825 = vpack.c.bf16 %v764, %v763
  %v826 = vpack.c.bf16 %v766, %v765
  %v827 = vpack.c.bf16 %v768, %v767
  %v828 = vpack.c.bf16 %v770, %v769
  %v829 = vpack.c.bf16 %v772, %v771
  %v830 = vpack.c.bf16 %v774, %v773
  %v831 = vpack.c.bf16 %v776, %v775
  %v832 = vpack.c.bf16 %v778, %v777
  %v833 = vpack.c.bf16 %v780, %v779
  %v834 = vpack.c.bf16 %v782, %v781
  %v835 = vpack.c.bf16 %v784, %v783
  %v836 = vpack.c.bf16 %v786, %v785
  %v837 = vpack.c.bf16 %v788, %v787
  %v838 = vpack.c.bf16 %v790, %v789
  %v839 = vpack.c.bf16 %v792, %v791
  %v840 = vpack.c.bf16 %v794, %v793
  %v841 = vpack.c.bf16 %v796, %v795
  %v842 = vpack.c.bf16 %v798, %v797
  %v843 = vpack.c.bf16 %v800, %v799
  %v844 = vpack.c.bf16 %v802, %v801
  %v845 = vpack.c.bf16 %v804, %v803
  %v846 = vpack.c.bf16 %v806, %v805
  %v847 = vpack.c.bf16 %v808, %v807
  %v848 = vpack.c.bf16 %v810, %v809
  %v849 = vpack.c.bf16 %v812, %v811
  %v850 = vpack.c.bf16 %v814, %v813
  %v851 = vpack.c.bf16 %v816, %v815
  %v852 = vpack.c.bf16 %v818, %v817
  %v853 = vpack.c.bf16 %v820, %v819
  %v854 = vpack.c.bf16 %v822, %v821
  %v887 = vunpack.c.l.b16 %v823
  %v888 = vunpack.c.h.b16 %v823
  %v889 = vunpack.c.l.b16 %v824
  %v890 = vunpack.c.h.b16 %v824
  %v891 = vunpack.c.l.b16 %v825
  %v892 = vunpack.c.h.b16 %v825
  %v893 = vunpack.c.l.b16 %v826
  %v894 = vunpack.c.h.b16 %v826
  %v895 = vunpack.c.l.b16 %v827
  %v896 = vunpack.c.h.b16 %v827
  %v897 = vunpack.c.l.b16 %v828
  %v898 = vunpack.c.h.b16 %v828
  %v899 = vunpack.c.l.b16 %v829
  %v900 = vunpack.c.h.b16 %v829
  %v901 = vunpack.c.l.b16 %v830
  %v902 = vunpack.c.h.b16 %v830
  %v903 = vunpack.c.l.b16 %v831
  %v904 = vunpack.c.h.b16 %v831
  %v905 = vunpack.c.l.b16 %v832
  %v906 = vunpack.c.h.b16 %v832
  %v907 = vunpack.c.l.b16 %v833
  %v908 = vunpack.c.h.b16 %v833
  %v909 = vunpack.c.l.b16 %v834
  %v910 = vunpack.c.h.b16 %v834
  %v911 = vunpack.c.l.b16 %v835
  %v912 = vunpack.c.h.b16 %v835
  %v913 = vunpack.c.l.b16 %v836
  %v914 = vunpack.c.h.b16 %v836
  %v915 = vunpack.c.l.b16 %v837
  %v916 = vunpack.c.h.b16 %v837
  %v917 = vunpack.c.l.b16 %v838
  %v918 = vunpack.c.h.b16 %v838
  %v919 = vunpack.c.l.b16 %v839
  %v920 = vunpack.c.h.b16 %v839
  %v921 = vunpack.c.l.b16 %v840
  %v922 = vunpack.c.h.b16 %v840
  %v923 = vunpack.c.l.b16 %v841
  %v924 = vunpack.c.h.b16 %v841
  %v925 = vunpack.c.l.b16 %v842
  %v926 = vunpack.c.h.b16 %v842
  %v927 = vunpack.c.l.b16 %v843
  %v928 = vunpack.c.h.b16 %v843
  %v929 = vunpack.c.l.b16 %v844
  %v930 = vunpack.c.h.b16 %v844
  %v931 = vunpack.c.l.b16 %v845
  %v932 = vunpack.c.h.b16 %v845
  %v933 = vunpack.c.l.b16 %v846
  %v934 = vunpack.c.h.b16 %v846
  %v935 = vunpack.c.l.b16 %v847
  %v936 = vunpack.c.h.b16 %v847
  %v937 = vunpack.c.l.b16 %v848
  %v938 = vunpack.c.h.b16 %v848
  %v939 = vunpack.c.l.b16 %v849
  %v940 = vunpack.c.h.b16 %v849
  %v941 = vunpack.c.l.b16 %v850
  %v942 = vunpack.c.h.b16 %v850
  %v943 = vunpack.c.l.b16 %v851
  %v944 = vunpack.c.h.b16 %v851
  %v945 = vunpack.c.l.b16 %v852
  %v946 = vunpack.c.h.b16 %v852
  %v947 = vunpack.c.l.b16 %v853
  %v948 = vunpack.c.h.b16 %v853
  %v949 = vunpack.c.l.b16 %v854
  %v950 = vunpack.c.h.b16 %v854
  %v951 = vpack.c.b16 %v887, %v887
  %v952 = vpack.c.b16 %v888, %v888
  %v953 = vpack.c.b16 %v889, %v889
  %v954 = vpack.c.b16 %v890, %v890
  %v955 = vpack.c.b16 %v891, %v891
  %v956 = vpack.c.b16 %v892, %v892
  %v957 = vpack.c.b16 %v893, %v893
  %v958 = vpack.c.b16 %v894, %v894
  %v959 = vpack.c.b16 %v895, %v895
  %v960 = vpack.c.b16 %v896, %v896
  %v961 = vpack.c.b16 %v897, %v897
  %v962 = vpack.c.b16 %v898, %v898
  %v963 = vpack.c.b16 %v899, %v899
  %v964 = vpack.c.b16 %v900, %v900
  %v965 = vpack.c.b16 %v901, %v901
  %v966 = vpack.c.b16 %v902, %v902
  %v967 = vpack.c.b16 %v903, %v903
  %v968 = vpack.c.b16 %v904, %v904
  %v969 = vpack.c.b16 %v905, %v905
  %v970 = vpack.c.b16 %v906, %v906
  %v971 = vpack.c.b16 %v907, %v907
  %v972 = vpack.c.b16 %v908, %v908
  %v973 = vpack.c.b16 %v909, %v909
  %v974 = vpack.c.b16 %v910, %v910
  %v975 = vpack.c.b16 %v911, %v911
  %v976 = vpack.c.b16 %v912, %v912
  %v977 = vpack.c.b16 %v913, %v913
  %v978 = vpack.c.b16 %v914, %v914
  %v979 = vpack.c.b16 %v915, %v915
  %v980 = vpack.c.b16 %v916, %v916
  %v981 = vpack.c.b16 %v917, %v917
  %v982 = vpack.c.b16 %v918, %v918
  %v983 = vpack.c.b16 %v919, %v919
  %v984 = vpack.c.b16 %v920, %v920
  %v985 = vpack.c.b16 %v921, %v921
  %v986 = vpack.c.b16 %v922, %v922
  %v987 = vpack.c.b16 %v923, %v923
  %v988 = vpack.c.b16 %v924, %v924
  %v989 = vpack.c.b16 %v925, %v925
  %v990 = vpack.c.b16 %v926, %v926
  %v991 = vpack.c.b16 %v927, %v927
  %v992 = vpack.c.b16 %v928, %v928
  %v993 = vpack.c.b16 %v929, %v929
  %v994 = vpack.c.b16 %v930, %v930
  %v995 = vpack.c.b16 %v931, %v931
  %v996 = vpack.c.b16 %v932, %v932
  %v997 = vpack.c.b16 %v933, %v933
  %v998 = vpack.c.b16 %v934, %v934
  %v999 = vpack.c.b16 %v935, %v935
  %v1000 = vpack.c.b16 %v936, %v936
  %v1001 = vpack.c.b16 %v937, %v937
  %v1002 = vpack.c.b16 %v938, %v938
  %v1003 = vpack.c.b16 %v939, %v939
  %v1004 = vpack.c.b16 %v940, %v940
  %v1005 = vpack.c.b16 %v941, %v941
  %v1006 = vpack.c.b16 %v942, %v942
  %v1007 = vpack.c.b16 %v943, %v943
  %v1008 = vpack.c.b16 %v944, %v944
  %v1009 = vpack.c.b16 %v945, %v945
  %v1010 = vpack.c.b16 %v946, %v946
  %v1011 = vpack.c.b16 %v947, %v947
  %v1012 = vpack.c.b16 %v948, %v948
  %v1013 = vpack.c.b16 %v949, %v949
  %v1014 = vpack.c.b16 %v950, %v950
  %vm1079 = vcmask 125952
  %1080 = vst.msk [vmem:[%s3] sm:$0xf] %vm1079, %v951
  %1081 = vst.msk [vmem:[%s3 + $0x4] sm:$0xf] %vm1079, %v952
  %1082 = vst.msk [vmem:[%s3 + $0x8] sm:$0xf] %vm1079, %v953
  %1083 = vst.msk [vmem:[%s3 + $0xc] sm:$0xf] %vm1079, %v954
  %1084 = vst.msk [vmem:[%s3 + $0x10] sm:$0xf] %vm1079, %v955
  %1085 = vst.msk [vmem:[%s3 + $0x14] sm:$0xf] %vm1079, %v956
  %1086 = vst.msk [vmem:[%s3 + $0x18] sm:$0xf] %vm1079, %v957
  %1087 = vst.msk [vmem:[%s3 + $0x1c] sm:$0xf] %vm1079, %v958
  %1088 = vst.msk [vmem:[%s3 + $0x20] sm:$0xf] %vm1079, %v959
  %1089 = vst.msk [vmem:[%s3 + $0x24] sm:$0xf] %vm1079, %v960
  %1090 = vst.msk [vmem:[%s3 + $0x28] sm:$0xf] %vm1079, %v961
  %1091 = vst.msk [vmem:[%s3 + $0x2c] sm:$0xf] %vm1079, %v962
  %1092 = vst.msk [vmem:[%s3 + $0x30] sm:$0xf] %vm1079, %v963
  %1093 = vst.msk [vmem:[%s3 + $0x34] sm:$0xf] %vm1079, %v964
  %1094 = vst.msk [vmem:[%s3 + $0x38] sm:$0xf] %vm1079, %v965
  %1095 = vst.msk [vmem:[%s3 + $0x3c] sm:$0xf] %vm1079, %v966
  %1096 = vst.msk [vmem:[%s3 + $0x40] sm:$0xf] %vm1079, %v967
  %1097 = vst.msk [vmem:[%s3 + $0x44] sm:$0xf] %vm1079, %v968
  %1098 = vst.msk [vmem:[%s3 + $0x48] sm:$0xf] %vm1079, %v969
  %1099 = vst.msk [vmem:[%s3 + $0x4c] sm:$0xf] %vm1079, %v970
  %1100 = vst.msk [vmem:[%s3 + $0x50] sm:$0xf] %vm1079, %v971
  %1101 = vst.msk [vmem:[%s3 + $0x54] sm:$0xf] %vm1079, %v972
  %1102 = vst.msk [vmem:[%s3 + $0x58] sm:$0xf] %vm1079, %v973
  %1103 = vst.msk [vmem:[%s3 + $0x5c] sm:$0xf] %vm1079, %v974
  %1104 = vst.msk [vmem:[%s3 + $0x60] sm:$0xf] %vm1079, %v975
  %1105 = vst.msk [vmem:[%s3 + $0x64] sm:$0xf] %vm1079, %v976
  %1106 = vst.msk [vmem:[%s3 + $0x68] sm:$0xf] %vm1079, %v977
  %1107 = vst.msk [vmem:[%s3 + $0x6c] sm:$0xf] %vm1079, %v978
  %1108 = vst.msk [vmem:[%s3 + $0x70] sm:$0xf] %vm1079, %v979
  %1109 = vst.msk [vmem:[%s3 + $0x74] sm:$0xf] %vm1079, %v980
  %1110 = vst.msk [vmem:[%s3 + $0x78] sm:$0xf] %vm1079, %v981
  %1111 = vst.msk [vmem:[%s3 + $0x7c] sm:$0xf] %vm1079, %v982
  %1112 = vst.msk [vmem:[%s3 + $0x80] sm:$0xf] %vm1079, %v983
  %1113 = vst.msk [vmem:[%s3 + $0x84] sm:$0xf] %vm1079, %v984
  %1114 = vst.msk [vmem:[%s3 + $0x88] sm:$0xf] %vm1079, %v985
  %1115 = vst.msk [vmem:[%s3 + $0x8c] sm:$0xf] %vm1079, %v986
  %1116 = vst.msk [vmem:[%s3 + $0x90] sm:$0xf] %vm1079, %v987
  %1117 = vst.msk [vmem:[%s3 + $0x94] sm:$0xf] %vm1079, %v988
  %1118 = vst.msk [vmem:[%s3 + $0x98] sm:$0xf] %vm1079, %v989
  %1119 = vst.msk [vmem:[%s3 + $0x9c] sm:$0xf] %vm1079, %v990
  %1120 = vst.msk [vmem:[%s3 + $0xa0] sm:$0xf] %vm1079, %v991
  %1121 = vst.msk [vmem:[%s3 + $0xa4] sm:$0xf] %vm1079, %v992
  %1122 = vst.msk [vmem:[%s3 + $0xa8] sm:$0xf] %vm1079, %v993
  %1123 = vst.msk [vmem:[%s3 + $0xac] sm:$0xf] %vm1079, %v994
  %1124 = vst.msk [vmem:[%s3 + $0xb0] sm:$0xf] %vm1079, %v995
  %1125 = vst.msk [vmem:[%s3 + $0xb4] sm:$0xf] %vm1079, %v996
  %1126 = vst.msk [vmem:[%s3 + $0xb8] sm:$0xf] %vm1079, %v997
  %1127 = vst.msk [vmem:[%s3 + $0xbc] sm:$0xf] %vm1079, %v998
  %1128 = vst.msk [vmem:[%s3 + $0xc0] sm:$0xf] %vm1079, %v999
  %1129 = vst.msk [vmem:[%s3 + $0xc4] sm:$0xf] %vm1079, %v1000
  %1130 = vst.msk [vmem:[%s3 + $0xc8] sm:$0xf] %vm1079, %v1001
  %1131 = vst.msk [vmem:[%s3 + $0xcc] sm:$0xf] %vm1079, %v1002
  %1132 = vst.msk [vmem:[%s3 + $0xd0] sm:$0xf] %vm1079, %v1003
  %1133 = vst.msk [vmem:[%s3 + $0xd4] sm:$0xf] %vm1079, %v1004
  %1134 = vst.msk [vmem:[%s3 + $0xd8] sm:$0xf] %vm1079, %v1005
  %1135 = vst.msk [vmem:[%s3 + $0xdc] sm:$0xf] %vm1079, %v1006
  %1136 = vst.msk [vmem:[%s3 + $0xe0] sm:$0xf] %vm1079, %v1007
  %1137 = vst.msk [vmem:[%s3 + $0xe4] sm:$0xf] %vm1079, %v1008
  %1138 = vst.msk [vmem:[%s3 + $0xe8] sm:$0xf] %vm1079, %v1009
  %1139 = vst.msk [vmem:[%s3 + $0xec] sm:$0xf] %vm1079, %v1010
  %1140 = vst.msk [vmem:[%s3 + $0xf0] sm:$0xf] %vm1079, %v1011
  %1141 = vst.msk [vmem:[%s3 + $0xf4] sm:$0xf] %vm1079, %v1012
  %1142 = vst.msk [vmem:[%s3 + $0xf8] sm:$0xf] %vm1079, %v1013
  %1143 = vst.msk [vmem:[%s3 + $0xfc] sm:$0xf] %vm1079, %v1014
  // Predicated region
  $region14: #{vae_forward.11} parent=0 // pred_check
    _
  $region15: #{vae_forward.11} parent=0 // pred_check_branch
    %1145 = sbr.rel (0) target = $region17
  $region16: #{vae_forward.11} parent=0 // pred_region
    _
  $region17: #{vae_forward.11} parent=0 // pred_fallthru
    _
  // Predicated region
  $region18: #{vae_forward.11} parent=0 // pred_check
    _
  $region19: #{vae_forward.11} parent=0 // pred_check_branch
    %1147 = sbr.rel (0) target = $region21
  $region20: #{vae_forward.11} parent=0 // pred_region
    _
  $region21: #{vae_forward.11} parent=0 // pred_fallthru
    _

// kernel: vae_forward.12
$region0: #{vae_forward.12}
  #allocation0 [shape = 'u32[]', space=smem, size = 0x4, offset = 0x4, fixed_abs, tag = 'smem constant byte address 0x4 - core index']
  #allocation1 [shape = 'u32[144,128]{1,0:T(1,128)}', space=vmem, size = 0x12000, scoped, tag = 'internal scratch']
  %s0 = inlined_call_operand.vmem [shape: bf16[128,256], index: 0, kind: input, shape index: {}]
  %s1 = inlined_call_operand.vmem [shape: bf16[256,32], index: 1, kind: input, shape index: {}]
  %s2 = inlined_call_operand.vmem [shape: f32[1,32], index: 2, kind: input, shape index: {}]
  %s3 = inlined_call_operand.vmem [shape: bf16[128,32], index: 3, kind: output, shape index: {}]
  %s4 = sld [smem:[#allocation0]]
  $region22: #{vae_forward.12} parent=0
    _
  %s6 = ssub.s32 1, %s4
  %s7 = scalar_select 0, %s6, %s4
  // Predicated region
  $region2: #{vae_forward.12} parent=0 // pred_check
    _
  $region3: #{vae_forward.12} parent=0 // pred_check_branch
    %9 = sbr.rel (0) target = $region5
  $region4: #{vae_forward.12} parent=0 // pred_region
    _
  $region5: #{vae_forward.12} parent=0 // pred_fallthru
    _
  // Predicated region
  $region6: #{vae_forward.12} parent=0 // pred_check
    _
  $region7: #{vae_forward.12} parent=0 // pred_check_branch
    %11 = sbr.rel (0) target = $region9
  $region8: #{vae_forward.12} parent=0 // pred_region
    _
  $region9: #{vae_forward.12} parent=0 // pred_fallthru
    _
  // Predicated region
  $region10: #{vae_forward.12} parent=0 // pred_check
    _
  $region11: #{vae_forward.12} parent=0 // pred_check_branch
    %13 = sbr.rel (0) target = $region13
  $region12: #{vae_forward.12} parent=0 // pred_region
    _
  $region13: #{vae_forward.12} parent=0 // pred_fallthru
    _
  %v15 = vld [vmem:[%s0] sm:$0xff]
  %v16 = vld [vmem:[%s0 + $0x8] sm:$0xff]
  %v17 = vld [vmem:[%s0 + $0x10] sm:$0xff]
  %v18 = vld [vmem:[%s0 + $0x18] sm:$0xff]
  %v19 = vld [vmem:[%s0 + $0x20] sm:$0xff]
  %v20 = vld [vmem:[%s0 + $0x28] sm:$0xff]
  %v21 = vld [vmem:[%s0 + $0x30] sm:$0xff]
  %v22 = vld [vmem:[%s0 + $0x38] sm:$0xff]
  %v23 = vld [vmem:[%s0 + $0x40] sm:$0xff]
  %v24 = vld [vmem:[%s0 + $0x48] sm:$0xff]
  %v25 = vld [vmem:[%s0 + $0x50] sm:$0xff]
  %v26 = vld [vmem:[%s0 + $0x58] sm:$0xff]
  %v27 = vld [vmem:[%s0 + $0x60] sm:$0xff]
  %v28 = vld [vmem:[%s0 + $0x68] sm:$0xff]
  %v29 = vld [vmem:[%s0 + $0x70] sm:$0xff]
  %v30 = vld [vmem:[%s0 + $0x78] sm:$0xff]
  %v31 = vld [vmem:[%s1] sm:$0xf]
  %v32 = vld [vmem:[%s1 + $0x4] sm:$0xf]
  %v33 = vld [vmem:[%s1 + $0x8] sm:$0xf]
  %v34 = vld [vmem:[%s1 + $0xc] sm:$0xf]
  %v35 = vld [vmem:[%s1 + $0x10] sm:$0xf]
  %v36 = vld [vmem:[%s1 + $0x14] sm:$0xf]
  %v37 = vld [vmem:[%s1 + $0x18] sm:$0xf]
  %v38 = vld [vmem:[%s1 + $0x1c] sm:$0xf]
  %v39 = vld [vmem:[%s1 + $0x20] sm:$0xf]
  %v40 = vld [vmem:[%s1 + $0x24] sm:$0xf]
  %v41 = vld [vmem:[%s1 + $0x28] sm:$0xf]
  %v42 = vld [vmem:[%s1 + $0x2c] sm:$0xf]
  %v43 = vld [vmem:[%s1 + $0x30] sm:$0xf]
  %v44 = vld [vmem:[%s1 + $0x34] sm:$0xf]
  %v45 = vld [vmem:[%s1 + $0x38] sm:$0xf]
  %v46 = vld [vmem:[%s1 + $0x3c] sm:$0xf]
  %v47 = vld [vmem:[%s1 + $0x40] sm:$0xf]
  %v48 = vld [vmem:[%s1 + $0x44] sm:$0xf]
  %v49 = vld [vmem:[%s1 + $0x48] sm:$0xf]
  %v50 = vld [vmem:[%s1 + $0x4c] sm:$0xf]
  %v51 = vld [vmem:[%s1 + $0x50] sm:$0xf]
  %v52 = vld [vmem:[%s1 + $0x54] sm:$0xf]
  %v53 = vld [vmem:[%s1 + $0x58] sm:$0xf]
  %v54 = vld [vmem:[%s1 + $0x5c] sm:$0xf]
  %v55 = vld [vmem:[%s1 + $0x60] sm:$0xf]
  %v56 = vld [vmem:[%s1 + $0x64] sm:$0xf]
  %v57 = vld [vmem:[%s1 + $0x68] sm:$0xf]
  %v58 = vld [vmem:[%s1 + $0x6c] sm:$0xf]
  %v59 = vld [vmem:[%s1 + $0x70] sm:$0xf]
  %v60 = vld [vmem:[%s1 + $0x74] sm:$0xf]
  %v61 = vld [vmem:[%s1 + $0x78] sm:$0xf]
  %v62 = vld [vmem:[%s1 + $0x7c] sm:$0xf]
  %v63 = vld [vmem:[%s2] sm:$0x1]
  %v65 = vlaneseq
  %v66 = vshrl.u32 %v65, 7
  %v67 = vsub.s32 0, %v66
  %v68 = vrot.slane %v63, %v67
  %v86 = vunpack.c.l.b16 %v15
  %v87 = vunpack.c.h.b16 %v15
  %v88 = vunpack.c.l.b16 %v16
  %v89 = vunpack.c.h.b16 %v16
  %v90 = vunpack.c.l.b16 %v17
  %v91 = vunpack.c.h.b16 %v17
  %v92 = vunpack.c.l.b16 %v18
  %v93 = vunpack.c.h.b16 %v18
  %v94 = vunpack.c.l.b16 %v19
  %v95 = vunpack.c.h.b16 %v19
  %v96 = vunpack.c.l.b16 %v20
  %v97 = vunpack.c.h.b16 %v20
  %v98 = vunpack.c.l.b16 %v21
  %v99 = vunpack.c.h.b16 %v21
  %v100 = vunpack.c.l.b16 %v22
  %v101 = vunpack.c.h.b16 %v22
  %v102 = vunpack.c.l.b16 %v23
  %v103 = vunpack.c.h.b16 %v23
  %v104 = vunpack.c.l.b16 %v24
  %v105 = vunpack.c.h.b16 %v24
  %v106 = vunpack.c.l.b16 %v25
  %v107 = vunpack.c.h.b16 %v25
  %v108 = vunpack.c.l.b16 %v26
  %v109 = vunpack.c.h.b16 %v26
  %v110 = vunpack.c.l.b16 %v27
  %v111 = vunpack.c.h.b16 %v27
  %v112 = vunpack.c.l.b16 %v28
  %v113 = vunpack.c.h.b16 %v28
  %v114 = vunpack.c.l.b16 %v29
  %v115 = vunpack.c.h.b16 %v29
  %v116 = vunpack.c.l.b16 %v30
  %v117 = vunpack.c.h.b16 %v30
  %v118 = vpack.c.b16 %v88, %v86
  %v119 = vpack.c.b16 %v89, %v87
  %v120 = vpack.c.b16 %v92, %v90
  %v121 = vpack.c.b16 %v93, %v91
  %v122 = vpack.c.b16 %v96, %v94
  %v123 = vpack.c.b16 %v97, %v95
  %v124 = vpack.c.b16 %v100, %v98
  %v125 = vpack.c.b16 %v101, %v99
  %v126 = vpack.c.b16 %v104, %v102
  %v127 = vpack.c.b16 %v105, %v103
  %v128 = vpack.c.b16 %v108, %v106
  %v129 = vpack.c.b16 %v109, %v107
  %v130 = vpack.c.b16 %v112, %v110
  %v131 = vpack.c.b16 %v113, %v111
  %v132 = vpack.c.b16 %v116, %v114
  %v133 = vpack.c.b16 %v117, %v115
  %v182 = vunpack.c.l.b16 %v31
  %v183 = vunpack.c.l.b16 %v32
  %v184 = vunpack.c.l.b16 %v33
  %v185 = vunpack.c.l.b16 %v34
  %v186 = vunpack.c.l.b16 %v35
  %v187 = vunpack.c.l.b16 %v36
  %v188 = vunpack.c.l.b16 %v37
  %v189 = vunpack.c.l.b16 %v38
  %v190 = vunpack.c.l.b16 %v39
  %v191 = vunpack.c.l.b16 %v40
  %v192 = vunpack.c.l.b16 %v41
  %v193 = vunpack.c.l.b16 %v42
  %v194 = vunpack.c.l.b16 %v43
  %v195 = vunpack.c.l.b16 %v44
  %v196 = vunpack.c.l.b16 %v45
  %v197 = vunpack.c.l.b16 %v46
  %v198 = vunpack.c.l.b16 %v47
  %v199 = vunpack.c.l.b16 %v48
  %v200 = vunpack.c.l.b16 %v49
  %v201 = vunpack.c.l.b16 %v50
  %v202 = vunpack.c.l.b16 %v51
  %v203 = vunpack.c.l.b16 %v52
  %v204 = vunpack.c.l.b16 %v53
  %v205 = vunpack.c.l.b16 %v54
  %v206 = vunpack.c.l.b16 %v55
  %v207 = vunpack.c.l.b16 %v56
  %v208 = vunpack.c.l.b16 %v57
  %v209 = vunpack.c.l.b16 %v58
  %v210 = vunpack.c.l.b16 %v59
  %v211 = vunpack.c.l.b16 %v60
  %v212 = vunpack.c.l.b16 %v61
  %v213 = vunpack.c.l.b16 %v62
  %v214 = vpack.c.b16 %v183, %v182
  %v215 = vpack.c.b16 %v185, %v184
  %v216 = vpack.c.b16 %v187, %v186
  %v217 = vpack.c.b16 %v189, %v188
  %v218 = vpack.c.b16 %v191, %v190
  %v219 = vpack.c.b16 %v193, %v192
  %v220 = vpack.c.b16 %v195, %v194
  %v221 = vpack.c.b16 %v197, %v196
  %v222 = vpack.c.b16 %v199, %v198
  %v223 = vpack.c.b16 %v201, %v200
  %v224 = vpack.c.b16 %v203, %v202
  %v225 = vpack.c.b16 %v205, %v204
  %v226 = vpack.c.b16 %v207, %v206
  %v227 = vpack.c.b16 %v209, %v208
  %v228 = vpack.c.b16 %v211, %v210
  %v229 = vpack.c.b16 %v213, %v212
  %246 = vmatprep.subr.bf16.mxu0 0
  %247 = vmatpush1.bf16.msra.mxu0 %v214
  %248 = vmatprep.subr.bf16.mxu0 0
  %249 = vmatpush1.bf16.msra.mxu0 %v215
  %250 = vmatprep.subr.bf16.mxu0 0
  %251 = vmatpush1.bf16.msra.mxu0 %v216
  %252 = vmatprep.subr.bf16.mxu0 0
  %253 = vmatpush1.bf16.msra.mxu0 %v217
  %254 = vmatprep.subr.bf16.mxu0 0
  %255 = vmatpush1.bf16.msra.mxu0 %v218
  %256 = vmatprep.subr.bf16.mxu0 0
  %257 = vmatpush1.bf16.msra.mxu0 %v219
  %258 = vmatprep.subr.bf16.mxu0 0
  %259 = vmatpush1.bf16.msra.mxu0 %v220
  %260 = vmatprep.subr.bf16.mxu0 0
  %261 = vmatpush1.bf16.msra.mxu0 %v221
  %262 = vmatprep.subr.bf16.mxu0 0
  %263 = vmatpush1.bf16.msra.mxu0 %v222
  %264 = vmatprep.subr.bf16.mxu0 0
  %265 = vmatpush1.bf16.msra.mxu0 %v223
  %266 = vmatprep.subr.bf16.mxu0 0
  %267 = vmatpush1.bf16.msra.mxu0 %v224
  %268 = vmatprep.subr.bf16.mxu0 0
  %269 = vmatpush1.bf16.msra.mxu0 %v225
  %270 = vmatprep.subr.bf16.mxu0 0
  %271 = vmatpush1.bf16.msra.mxu0 %v226
  %272 = vmatprep.subr.bf16.mxu0 0
  %273 = vmatpush1.bf16.msra.mxu0 %v227
  %274 = vmatprep.subr.bf16.mxu0 0
  %275 = vmatpush1.bf16.msra.mxu0 %v228
  %276 = vmatprep.subr.bf16.mxu0 0
  %277 = vmatpush1.bf16.msra.mxu0 %v229
  %278 = vmatprep.mubr.bf16.mxu0 %v119
  %279 = vmatmul.mubr.bf16.gmra.mrb[0].mxu0 %v118
  %v280 = vpop.f32.mrb[0].mxu0
  %v281 = vadd.f32 %v68, %v280
  %v282 = vpop.f32.mrb[0].mxu0
  %v283 = vpop.f32.mrb[0].mxu0
  %v284 = vadd.f32 %v68, %v283
  %v285 = vpop.f32.mrb[0].mxu0
  %286 = vmatprep.mubr.bf16.mxu0 %v121
  %287 = vmatmul.mubr.bf16.gmra.mrb[0].mxu0 %v120
  %v288 = vpop.f32.mrb[0].mxu0
  %v289 = vadd.f32 %v68, %v288
  %v290 = vpop.f32.mrb[0].mxu0
  %v291 = vpop.f32.mrb[0].mxu0
  %v292 = vadd.f32 %v68, %v291
  %v293 = vpop.f32.mrb[0].mxu0
  %294 = vmatprep.mubr.bf16.mxu0 %v123
  %295 = vmatmul.mubr.bf16.gmra.mrb[0].mxu0 %v122
  %v296 = vpop.f32.mrb[0].mxu0
  %v297 = vadd.f32 %v68, %v296
  %v298 = vpop.f32.mrb[0].mxu0
  %v299 = vpop.f32.mrb[0].mxu0
  %v300 = vadd.f32 %v68, %v299
  %v301 = vpop.f32.mrb[0].mxu0
  %302 = vmatprep.mubr.bf16.mxu0 %v125
  %303 = vmatmul.mubr.bf16.gmra.mrb[0].mxu0 %v124
  %v304 = vpop.f32.mrb[0].mxu0
  %v305 = vadd.f32 %v68, %v304
  %v306 = vpop.f32.mrb[0].mxu0
  %v307 = vpop.f32.mrb[0].mxu0
  %v308 = vadd.f32 %v68, %v307
  %v309 = vpop.f32.mrb[0].mxu0
  %310 = vmatprep.mubr.bf16.mxu0 %v127
  %311 = vmatmul.mubr.bf16.gmra.mrb[0].mxu0 %v126
  %v312 = vpop.f32.mrb[0].mxu0
  %v313 = vadd.f32 %v68, %v312
  %v314 = vpop.f32.mrb[0].mxu0
  %v315 = vpop.f32.mrb[0].mxu0
  %v316 = vadd.f32 %v68, %v315
  %v317 = vpop.f32.mrb[0].mxu0
  %318 = vmatprep.mubr.bf16.mxu0 %v129
  %319 = vmatmul.mubr.bf16.gmra.mrb[0].mxu0 %v128
  %v320 = vpop.f32.mrb[0].mxu0
  %v321 = vadd.f32 %v68, %v320
  %v322 = vpop.f32.mrb[0].mxu0
  %v323 = vpop.f32.mrb[0].mxu0
  %v324 = vadd.f32 %v68, %v323
  %v325 = vpop.f32.mrb[0].mxu0
  %326 = vmatprep.mubr.bf16.mxu0 %v131
  %327 = vmatmul.mubr.bf16.gmra.mrb[0].mxu0 %v130
  %v328 = vpop.f32.mrb[0].mxu0
  %v329 = vadd.f32 %v68, %v328
  %v330 = vpop.f32.mrb[0].mxu0
  %v331 = vpop.f32.mrb[0].mxu0
  %v332 = vadd.f32 %v68, %v331
  %v333 = vpop.f32.mrb[0].mxu0
  %334 = vmatprep.mubr.bf16.mxu0 %v133
  %335 = vmatmul.mubr.bf16.gmra.mrb[0].mxu0 %v132
  %v336 = vpop.f32.mrb[0].mxu0
  %v337 = vadd.f32 %v68, %v336
  %v338 = vpop.f32.mrb[0].mxu0
  %v339 = vpop.f32.mrb[0].mxu0
  %v340 = vadd.f32 %v68, %v339
  %v341 = vpop.f32.mrb[0].mxu0
  %342 = vdwg.mxu0
  %vm343 = vcmp.gt.f32.partialorder %v281, 0.0
  %vm344 = vcmp.gt.f32.partialorder %v284, 0.0
  %vm345 = vcmp.gt.f32.partialorder %v289, 0.0
  %vm346 = vcmp.gt.f32.partialorder %v292, 0.0
  %vm347 = vcmp.gt.f32.partialorder %v297, 0.0
  %vm348 = vcmp.gt.f32.partialorder %v300, 0.0
  %vm349 = vcmp.gt.f32.partialorder %v305, 0.0
  %vm350 = vcmp.gt.f32.partialorder %v308, 0.0
  %vm351 = vcmp.gt.f32.partialorder %v313, 0.0
  %vm352 = vcmp.gt.f32.partialorder %v316, 0.0
  %vm353 = vcmp.gt.f32.partialorder %v321, 0.0
  %vm354 = vcmp.gt.f32.partialorder %v324, 0.0
  %vm355 = vcmp.gt.f32.partialorder %v329, 0.0
  %vm356 = vcmp.gt.f32.partialorder %v332, 0.0
  %vm357 = vcmp.gt.f32.partialorder %v337, 0.0
  %vm358 = vcmp.gt.f32.partialorder %v340, 0.0
  %v359 = vmul.f32 %v281, 0.2
  %v360 = vmul.f32 %v284, 0.2
  %v361 = vmul.f32 %v289, 0.2
  %v362 = vmul.f32 %v292, 0.2
  %v363 = vmul.f32 %v297, 0.2
  %v364 = vmul.f32 %v300, 0.2
  %v365 = vmul.f32 %v305, 0.2
  %v366 = vmul.f32 %v308, 0.2
  %v367 = vmul.f32 %v313, 0.2
  %v368 = vmul.f32 %v316, 0.2
  %v369 = vmul.f32 %v321, 0.2
  %v370 = vmul.f32 %v324, 0.2
  %v371 = vmul.f32 %v329, 0.2
  %v372 = vmul.f32 %v332, 0.2
  %v373 = vmul.f32 %v337, 0.2
  %v374 = vmul.f32 %v340, 0.2
  %v375 = vsel %vm343, %v281, %v359
  %v376 = vsel %vm344, %v284, %v360
  %v377 = vsel %vm345, %v289, %v361
  %v378 = vsel %vm346, %v292, %v362
  %v379 = vsel %vm347, %v297, %v363
  %v380 = vsel %vm348, %v300, %v364
  %v381 = vsel %vm349, %v305, %v365
  %v382 = vsel %vm350, %v308, %v366
  %v383 = vsel %vm351, %v313, %v367
  %v384 = vsel %vm352, %v316, %v368
  %v385 = vsel %vm353, %v321, %v369
  %v386 = vsel %vm354, %v324, %v370
  %v387 = vsel %vm355, %v329, %v371
  %v388 = vsel %vm356, %v332, %v372
  %v389 = vsel %vm357, %v337, %v373
  %v390 = vsel %vm358, %v340, %v374
  %v391 = vpack.c.bf16 %v376, %v375
  %v392 = vpack.c.bf16 %v378, %v377
  %v393 = vpack.c.bf16 %v380, %v379
  %v394 = vpack.c.bf16 %v382, %v381
  %v395 = vpack.c.bf16 %v384, %v383
  %v396 = vpack.c.bf16 %v386, %v385
  %v397 = vpack.c.bf16 %v388, %v387
  %v398 = vpack.c.bf16 %v390, %v389
  %v407 = vunpack.c.l.b16 %v391
  %v408 = vunpack.c.h.b16 %v391
  %v409 = vunpack.c.l.b16 %v392
  %v410 = vunpack.c.h.b16 %v392
  %v411 = vunpack.c.l.b16 %v393
  %v412 = vunpack.c.h.b16 %v393
  %v413 = vunpack.c.l.b16 %v394
  %v414 = vunpack.c.h.b16 %v394
  %v415 = vunpack.c.l.b16 %v395
  %v416 = vunpack.c.h.b16 %v395
  %v417 = vunpack.c.l.b16 %v396
  %v418 = vunpack.c.h.b16 %v396
  %v419 = vunpack.c.l.b16 %v397
  %v420 = vunpack.c.h.b16 %v397
  %v421 = vunpack.c.l.b16 %v398
  %v422 = vunpack.c.h.b16 %v398
  %v423 = vpack.c.b16 %v407, %v407
  %v424 = vpack.c.b16 %v408, %v408
  %v425 = vpack.c.b16 %v409, %v409
  %v426 = vpack.c.b16 %v410, %v410
  %v427 = vpack.c.b16 %v411, %v411
  %v428 = vpack.c.b16 %v412, %v412
  %v429 = vpack.c.b16 %v413, %v413
  %v430 = vpack.c.b16 %v414, %v414
  %v431 = vpack.c.b16 %v415, %v415
  %v432 = vpack.c.b16 %v416, %v416
  %v433 = vpack.c.b16 %v417, %v417
  %v434 = vpack.c.b16 %v418, %v418
  %v435 = vpack.c.b16 %v419, %v419
  %v436 = vpack.c.b16 %v420, %v420
  %v437 = vpack.c.b16 %v421, %v421
  %v438 = vpack.c.b16 %v422, %v422
  %vm455 = vcmask 257024
  %456 = vst.msk [vmem:[%s3] sm:$0xf] %vm455, %v423
  %457 = vst.msk [vmem:[%s3 + $0x4] sm:$0xf] %vm455, %v424
  %458 = vst.msk [vmem:[%s3 + $0x8] sm:$0xf] %vm455, %v425
  %459 = vst.msk [vmem:[%s3 + $0xc] sm:$0xf] %vm455, %v426
  %460 = vst.msk [vmem:[%s3 + $0x10] sm:$0xf] %vm455, %v427
  %461 = vst.msk [vmem:[%s3 + $0x14] sm:$0xf] %vm455, %v428
  %462 = vst.msk [vmem:[%s3 + $0x18] sm:$0xf] %vm455, %v429
  %463 = vst.msk [vmem:[%s3 + $0x1c] sm:$0xf] %vm455, %v430
  %464 = vst.msk [vmem:[%s3 + $0x20] sm:$0xf] %vm455, %v431
  %465 = vst.msk [vmem:[%s3 + $0x24] sm:$0xf] %vm455, %v432
  %466 = vst.msk [vmem:[%s3 + $0x28] sm:$0xf] %vm455, %v433
  %467 = vst.msk [vmem:[%s3 + $0x2c] sm:$0xf] %vm455, %v434
  %468 = vst.msk [vmem:[%s3 + $0x30] sm:$0xf] %vm455, %v435
  %469 = vst.msk [vmem:[%s3 + $0x34] sm:$0xf] %vm455, %v436
  %470 = vst.msk [vmem:[%s3 + $0x38] sm:$0xf] %vm455, %v437
  %471 = vst.msk [vmem:[%s3 + $0x3c] sm:$0xf] %vm455, %v438
  // Predicated region
  $region14: #{vae_forward.12} parent=0 // pred_check
    _
  $region15: #{vae_forward.12} parent=0 // pred_check_branch
    %473 = sbr.rel (0) target = $region17
  $region16: #{vae_forward.12} parent=0 // pred_region
    _
  $region17: #{vae_forward.12} parent=0 // pred_fallthru
    _
  // Predicated region
  $region18: #{vae_forward.12} parent=0 // pred_check
    _
  $region19: #{vae_forward.12} parent=0 // pred_check_branch
    %475 = sbr.rel (0) target = $region21
  $region20: #{vae_forward.12} parent=0 // pred_region
    _
  $region21: #{vae_forward.12} parent=0 // pred_fallthru
    _

// kernel: vae_forward.13
$region0: #{vae_forward.13}
  #allocation0 [shape = 'u32[]', space=smem, size = 0x4, offset = 0x4, fixed_abs, tag = 'smem constant byte address 0x4 - core index']
  #allocation1 [shape = 'u32[144,128]{1,0:T(1,128)}', space=vmem, size = 0x12000, scoped, tag = 'internal scratch']
  %s0 = inlined_call_operand.vmem [shape: bf16[32,512], index: 0, kind: input, shape index: {}]
  %s1 = inlined_call_operand.vmem [shape: bf16[512,64], index: 1, kind: input, shape index: {}]
  %s2 = inlined_call_operand.vmem [shape: f32[1,64], index: 2, kind: input, shape index: {}]
  %s3 = inlined_call_operand.vmem [shape: bf16[32,64], index: 3, kind: output, shape index: {}]
  %s4 = sld [smem:[#allocation0]]
  $region22: #{vae_forward.13} parent=0
    _
  %s6 = ssub.s32 1, %s4
  %s7 = scalar_select 0, %s6, %s4
  // Predicated region
  $region2: #{vae_forward.13} parent=0 // pred_check
    _
  $region3: #{vae_forward.13} parent=0 // pred_check_branch
    %9 = sbr.rel (0) target = $region5
  $region4: #{vae_forward.13} parent=0 // pred_region
    _
  $region5: #{vae_forward.13} parent=0 // pred_fallthru
    _
  // Predicated region
  $region6: #{vae_forward.13} parent=0 // pred_check
    _
  $region7: #{vae_forward.13} parent=0 // pred_check_branch
    %11 = sbr.rel (0) target = $region9
  $region8: #{vae_forward.13} parent=0 // pred_region
    _
  $region9: #{vae_forward.13} parent=0 // pred_fallthru
    _
  // Predicated region
  $region10: #{vae_forward.13} parent=0 // pred_check
    _
  $region11: #{vae_forward.13} parent=0 // pred_check_branch
    %13 = sbr.rel (0) target = $region13
  $region12: #{vae_forward.13} parent=0 // pred_region
    _
  $region13: #{vae_forward.13} parent=0 // pred_fallthru
    _
  %v15 = vld [vmem:[%s0] sm:$0xff]
  %v16 = vld [vmem:[%s0 + $0x8] sm:$0xff]
  %v17 = vld [vmem:[%s0 + $0x10] sm:$0xff]
  %v18 = vld [vmem:[%s0 + $0x18] sm:$0xff]
  %v19 = vld [vmem:[%s0 + $0x20] sm:$0xff]
  %v20 = vld [vmem:[%s0 + $0x28] sm:$0xff]
  %v21 = vld [vmem:[%s0 + $0x30] sm:$0xff]
  %v22 = vld [vmem:[%s0 + $0x38] sm:$0xff]
  %v23 = vld [vmem:[%s1] sm:$0xf]
  %v24 = vld [vmem:[%s1 + $0x4] sm:$0xf]
  %v25 = vld [vmem:[%s1 + $0x8] sm:$0xf]
  %v26 = vld [vmem:[%s1 + $0xc] sm:$0xf]
  %v27 = vld [vmem:[%s1 + $0x10] sm:$0xf]
  %v28 = vld [vmem:[%s1 + $0x14] sm:$0xf]
  %v29 = vld [vmem:[%s1 + $0x18] sm:$0xf]
  %v30 = vld [vmem:[%s1 + $0x1c] sm:$0xf]
  %v31 = vld [vmem:[%s1 + $0x20] sm:$0xf]
  %v32 = vld [vmem:[%s1 + $0x24] sm:$0xf]
  %v33 = vld [vmem:[%s1 + $0x28] sm:$0xf]
  %v34 = vld [vmem:[%s1 + $0x2c] sm:$0xf]
  %v35 = vld [vmem:[%s1 + $0x30] sm:$0xf]
  %v36 = vld [vmem:[%s1 + $0x34] sm:$0xf]
  %v37 = vld [vmem:[%s1 + $0x38] sm:$0xf]
  %v38 = vld [vmem:[%s1 + $0x3c] sm:$0xf]
  %v39 = vld [vmem:[%s1 + $0x40] sm:$0xf]
  %v40 = vld [vmem:[%s1 + $0x44] sm:$0xf]
  %v41 = vld [vmem:[%s1 + $0x48] sm:$0xf]
  %v42 = vld [vmem:[%s1 + $0x4c] sm:$0xf]
  %v43 = vld [vmem:[%s1 + $0x50] sm:$0xf]
  %v44 = vld [vmem:[%s1 + $0x54] sm:$0xf]
  %v45 = vld [vmem:[%s1 + $0x58] sm:$0xf]
  %v46 = vld [vmem:[%s1 + $0x5c] sm:$0xf]
  %v47 = vld [vmem:[%s1 + $0x60] sm:$0xf]
  %v48 = vld [vmem:[%s1 + $0x64] sm:$0xf]
  %v49 = vld [vmem:[%s1 + $0x68] sm:$0xf]
  %v50 = vld [vmem:[%s1 + $0x6c] sm:$0xf]
  %v51 = vld [vmem:[%s1 + $0x70] sm:$0xf]
  %v52 = vld [vmem:[%s1 + $0x74] sm:$0xf]
  %v53 = vld [vmem:[%s1 + $0x78] sm:$0xf]
  %v54 = vld [vmem:[%s1 + $0x7c] sm:$0xf]
  %v55 = vld [vmem:[%s1 + $0x80] sm:$0xf]
  %v56 = vld [vmem:[%s1 + $0x84] sm:$0xf]
  %v57 = vld [vmem:[%s1 + $0x88] sm:$0xf]
  %v58 = vld [vmem:[%s1 + $0x8c] sm:$0xf]
  %v59 = vld [vmem:[%s1 + $0x90] sm:$0xf]
  %v60 = vld [vmem:[%s1 + $0x94] sm:$0xf]
  %v61 = vld [vmem:[%s1 + $0x98] sm:$0xf]
  %v62 = vld [vmem:[%s1 + $0x9c] sm:$0xf]
  %v63 = vld [vmem:[%s1 + $0xa0] sm:$0xf]
  %v64 = vld [vmem:[%s1 + $0xa4] sm:$0xf]
  %v65 = vld [vmem:[%s1 + $0xa8] sm:$0xf]
  %v66 = vld [vmem:[%s1 + $0xac] sm:$0xf]
  %v67 = vld [vmem:[%s1 + $0xb0] sm:$0xf]
  %v68 = vld [vmem:[%s1 + $0xb4] sm:$0xf]
  %v69 = vld [vmem:[%s1 + $0xb8] sm:$0xf]
  %v70 = vld [vmem:[%s1 + $0xbc] sm:$0xf]
  %v71 = vld [vmem:[%s1 + $0xc0] sm:$0xf]
  %v72 = vld [vmem:[%s1 + $0xc4] sm:$0xf]
  %v73 = vld [vmem:[%s1 + $0xc8] sm:$0xf]
  %v74 = vld [vmem:[%s1 + $0xcc] sm:$0xf]
  %v75 = vld [vmem:[%s1 + $0xd0] sm:$0xf]
  %v76 = vld [vmem:[%s1 + $0xd4] sm:$0xf]
  %v77 = vld [vmem:[%s1 + $0xd8] sm:$0xf]
  %v78 = vld [vmem:[%s1 + $0xdc] sm:$0xf]
  %v79 = vld [vmem:[%s1 + $0xe0] sm:$0xf]
  %v80 = vld [vmem:[%s1 + $0xe4] sm:$0xf]
  %v81 = vld [vmem:[%s1 + $0xe8] sm:$0xf]
  %v82 = vld [vmem:[%s1 + $0xec] sm:$0xf]
  %v83 = vld [vmem:[%s1 + $0xf0] sm:$0xf]
  %v84 = vld [vmem:[%s1 + $0xf4] sm:$0xf]
  %v85 = vld [vmem:[%s1 + $0xf8] sm:$0xf]
  %v86 = vld [vmem:[%s1 + $0xfc] sm:$0xf]
  %v87 = vld [vmem:[%s2] sm:$0x1]
  %v89 = vlaneseq
  %v90 = vshrl.u32 %v89, 7
  %v91 = vsub.s32 0, %v90
  %v92 = vrot.slane %v87, %v91
  %v102 = vunpack.c.l.b16 %v15
  %v103 = vunpack.c.h.b16 %v15
  %v104 = vunpack.c.l.b16 %v16
  %v105 = vunpack.c.h.b16 %v16
  %v106 = vunpack.c.l.b16 %v17
  %v107 = vunpack.c.h.b16 %v17
  %v108 = vunpack.c.l.b16 %v18
  %v109 = vunpack.c.h.b16 %v18
  %v110 = vunpack.c.l.b16 %v19
  %v111 = vunpack.c.h.b16 %v19
  %v112 = vunpack.c.l.b16 %v20
  %v113 = vunpack.c.h.b16 %v20
  %v114 = vunpack.c.l.b16 %v21
  %v115 = vunpack.c.h.b16 %v21
  %v116 = vunpack.c.l.b16 %v22
  %v117 = vunpack.c.h.b16 %v22
  %v118 = vpack.c.b16 %v106, %v102
  %v119 = vpack.c.b16 %v107, %v103
  %v120 = vpack.c.b16 %v108, %v104
  %v121 = vpack.c.b16 %v109, %v105
  %v122 = vpack.c.b16 %v114, %v110
  %v123 = vpack.c.b16 %v115, %v111
  %v124 = vpack.c.b16 %v116, %v112
  %v125 = vpack.c.b16 %v117, %v113
  %v198 = vunpack.c.l.b16 %v23
  %v199 = vunpack.c.l.b16 %v24
  %v200 = vunpack.c.l.b16 %v25
  %v201 = vunpack.c.l.b16 %v26
  %v202 = vunpack.c.l.b16 %v27
  %v203 = vunpack.c.l.b16 %v28
  %v204 = vunpack.c.l.b16 %v29
  %v205 = vunpack.c.l.b16 %v30
  %v206 = vunpack.c.l.b16 %v31
  %v207 = vunpack.c.l.b16 %v32
  %v208 = vunpack.c.l.b16 %v33
  %v209 = vunpack.c.l.b16 %v34
  %v210 = vunpack.c.l.b16 %v35
  %v211 = vunpack.c.l.b16 %v36
  %v212 = vunpack.c.l.b16 %v37
  %v213 = vunpack.c.l.b16 %v38
  %v214 = vunpack.c.l.b16 %v39
  %v215 = vunpack.c.l.b16 %v40
  %v216 = vunpack.c.l.b16 %v41
  %v217 = vunpack.c.l.b16 %v42
  %v218 = vunpack.c.l.b16 %v43
  %v219 = vunpack.c.l.b16 %v44
  %v220 = vunpack.c.l.b16 %v45
  %v221 = vunpack.c.l.b16 %v46
  %v222 = vunpack.c.l.b16 %v47
  %v223 = vunpack.c.l.b16 %v48
  %v224 = vunpack.c.l.b16 %v49
  %v225 = vunpack.c.l.b16 %v50
  %v226 = vunpack.c.l.b16 %v51
  %v227 = vunpack.c.l.b16 %v52
  %v228 = vunpack.c.l.b16 %v53
  %v229 = vunpack.c.l.b16 %v54
  %v230 = vunpack.c.l.b16 %v55
  %v231 = vunpack.c.l.b16 %v56
  %v232 = vunpack.c.l.b16 %v57
  %v233 = vunpack.c.l.b16 %v58
  %v234 = vunpack.c.l.b16 %v59
  %v235 = vunpack.c.l.b16 %v60
  %v236 = vunpack.c.l.b16 %v61
  %v237 = vunpack.c.l.b16 %v62
  %v238 = vunpack.c.l.b16 %v63
  %v239 = vunpack.c.l.b16 %v64
  %v240 = vunpack.c.l.b16 %v65
  %v241 = vunpack.c.l.b16 %v66
  %v242 = vunpack.c.l.b16 %v67
  %v243 = vunpack.c.l.b16 %v68
  %v244 = vunpack.c.l.b16 %v69
  %v245 = vunpack.c.l.b16 %v70
  %v246 = vunpack.c.l.b16 %v71
  %v247 = vunpack.c.l.b16 %v72
  %v248 = vunpack.c.l.b16 %v73
  %v249 = vunpack.c.l.b16 %v74
  %v250 = vunpack.c.l.b16 %v75
  %v251 = vunpack.c.l.b16 %v76
  %v252 = vunpack.c.l.b16 %v77
  %v253 = vunpack.c.l.b16 %v78
  %v254 = vunpack.c.l.b16 %v79
  %v255 = vunpack.c.l.b16 %v80
  %v256 = vunpack.c.l.b16 %v81
  %v257 = vunpack.c.l.b16 %v82
  %v258 = vunpack.c.l.b16 %v83
  %v259 = vunpack.c.l.b16 %v84
  %v260 = vunpack.c.l.b16 %v85
  %v261 = vunpack.c.l.b16 %v86
  %v262 = vpack.c.b16 %v199, %v198
  %v263 = vpack.c.b16 %v201, %v200
  %v264 = vpack.c.b16 %v203, %v202
  %v265 = vpack.c.b16 %v205, %v204
  %v266 = vpack.c.b16 %v207, %v206
  %v267 = vpack.c.b16 %v209, %v208
  %v268 = vpack.c.b16 %v211, %v210
  %v269 = vpack.c.b16 %v213, %v212
  %v270 = vpack.c.b16 %v215, %v214
  %v271 = vpack.c.b16 %v217, %v216
  %v272 = vpack.c.b16 %v219, %v218
  %v273 = vpack.c.b16 %v221, %v220
  %v274 = vpack.c.b16 %v223, %v222
  %v275 = vpack.c.b16 %v225, %v224
  %v276 = vpack.c.b16 %v227, %v226
  %v277 = vpack.c.b16 %v229, %v228
  %v278 = vpack.c.b16 %v231, %v230
  %v279 = vpack.c.b16 %v233, %v232
  %v280 = vpack.c.b16 %v235, %v234
  %v281 = vpack.c.b16 %v237, %v236
  %v282 = vpack.c.b16 %v239, %v238
  %v283 = vpack.c.b16 %v241, %v240
  %v284 = vpack.c.b16 %v243, %v242
  %v285 = vpack.c.b16 %v245, %v244
  %v286 = vpack.c.b16 %v247, %v246
  %v287 = vpack.c.b16 %v249, %v248
  %v288 = vpack.c.b16 %v251, %v250
  %v289 = vpack.c.b16 %v253, %v252
  %v290 = vpack.c.b16 %v255, %v254
  %v291 = vpack.c.b16 %v257, %v256
  %v292 = vpack.c.b16 %v259, %v258
  %v293 = vpack.c.b16 %v261, %v260
  %326 = vmatprep.subr.bf16.mxu0 0
  %327 = vmatpush1.bf16.msra.mxu0 %v262
  %328 = vmatprep.subr.bf16.mxu0 0
  %329 = vmatpush1.bf16.msra.mxu0 %v263
  %330 = vmatprep.subr.bf16.mxu0 0
  %331 = vmatpush1.bf16.msra.mxu0 %v264
  %332 = vmatprep.subr.bf16.mxu0 0
  %333 = vmatpush1.bf16.msra.mxu0 %v265
  %334 = vmatprep.subr.bf16.mxu0 0
  %335 = vmatpush1.bf16.msra.mxu0 %v266
  %336 = vmatprep.subr.bf16.mxu0 0
  %337 = vmatpush1.bf16.msra.mxu0 %v267
  %338 = vmatprep.subr.bf16.mxu0 0
  %339 = vmatpush1.bf16.msra.mxu0 %v268
  %340 = vmatprep.subr.bf16.mxu0 0
  %341 = vmatpush1.bf16.msra.mxu0 %v269
  %342 = vmatprep.subr.bf16.mxu0 0
  %343 = vmatpush1.bf16.msra.mxu0 %v270
  %344 = vmatprep.subr.bf16.mxu0 0
  %345 = vmatpush1.bf16.msra.mxu0 %v271
  %346 = vmatprep.subr.bf16.mxu0 0
  %347 = vmatpush1.bf16.msra.mxu0 %v272
  %348 = vmatprep.subr.bf16.mxu0 0
  %349 = vmatpush1.bf16.msra.mxu0 %v273
  %350 = vmatprep.subr.bf16.mxu0 0
  %351 = vmatpush1.bf16.msra.mxu0 %v274
  %352 = vmatprep.subr.bf16.mxu0 0
  %353 = vmatpush1.bf16.msra.mxu0 %v275
  %354 = vmatprep.subr.bf16.mxu0 0
  %355 = vmatpush1.bf16.msra.mxu0 %v276
  %356 = vmatprep.subr.bf16.mxu0 0
  %357 = vmatpush1.bf16.msra.mxu0 %v277
  %358 = vmatprep.mubr.bf16.mxu0 %v119
  %359 = vmatmul.mubr.bf16.gmra.mrb[0].mxu0 %v118
  %v360 = vpop.f32.mrb[0].mxu0
  %v361 = vadd.f32 %v92, %v360
  %v362 = vpop.f32.mrb[0].mxu0
  %v363 = vpop.f32.mrb[0].mxu0
  %v364 = vadd.f32 %v92, %v363
  %v365 = vpop.f32.mrb[0].mxu0
  %366 = vmatprep.mubr.bf16.mxu0 %v123
  %367 = vmatmul.mubr.bf16.gmra.mrb[0].mxu0 %v122
  %v368 = vpop.f32.mrb[0].mxu0
  %v369 = vadd.f32 %v92, %v368
  %v370 = vpop.f32.mrb[0].mxu0
  %v371 = vpop.f32.mrb[0].mxu0
  %v372 = vadd.f32 %v92, %v371
  %v373 = vpop.f32.mrb[0].mxu0
  %374 = vdwg.mxu0
  %375 = vmatprep.subr.bf16.mxu0 0
  %376 = vmatpush1.bf16.msra.mxu0 %v278
  %377 = vmatprep.subr.bf16.mxu0 0
  %378 = vmatpush1.bf16.msra.mxu0 %v279
  %379 = vmatprep.subr.bf16.mxu0 0
  %380 = vmatpush1.bf16.msra.mxu0 %v280
  %381 = vmatprep.subr.bf16.mxu0 0
  %382 = vmatpush1.bf16.msra.mxu0 %v281
  %383 = vmatprep.subr.bf16.mxu0 0
  %384 = vmatpush1.bf16.msra.mxu0 %v282
  %385 = vmatprep.subr.bf16.mxu0 0
  %386 = vmatpush1.bf16.msra.mxu0 %v283
  %387 = vmatprep.subr.bf16.mxu0 0
  %388 = vmatpush1.bf16.msra.mxu0 %v284
  %389 = vmatprep.subr.bf16.mxu0 0
  %390 = vmatpush1.bf16.msra.mxu0 %v285
  %391 = vmatprep.subr.bf16.mxu0 0
  %392 = vmatpush1.bf16.msra.mxu0 %v286
  %393 = vmatprep.subr.bf16.mxu0 0
  %394 = vmatpush1.bf16.msra.mxu0 %v287
  %395 = vmatprep.subr.bf16.mxu0 0
  %396 = vmatpush1.bf16.msra.mxu0 %v288
  %397 = vmatprep.subr.bf16.mxu0 0
  %398 = vmatpush1.bf16.msra.mxu0 %v289
  %399 = vmatprep.subr.bf16.mxu0 0
  %400 = vmatpush1.bf16.msra.mxu0 %v290
  %401 = vmatprep.subr.bf16.mxu0 0
  %402 = vmatpush1.bf16.msra.mxu0 %v291
  %403 = vmatprep.subr.bf16.mxu0 0
  %404 = vmatpush1.bf16.msra.mxu0 %v292
  %405 = vmatprep.subr.bf16.mxu0 0
  %406 = vmatpush1.bf16.msra.mxu0 %v293
  %407 = vmatprep.mubr.bf16.mxu0 %v121
  %408 = vmatmul.mubr.bf16.gmra.mrb[0].mxu0 %v120
  %v409 = vpop.f32.mrb[0].mxu0
  %v410 = vadd.f32 %v361, %v409
  %v411 = vpop.f32.mrb[0].mxu0
  %v412 = vpop.f32.mrb[0].mxu0
  %v413 = vadd.f32 %v364, %v412
  %v414 = vpop.f32.mrb[0].mxu0
  %415 = vmatprep.mubr.bf16.mxu0 %v125
  %416 = vmatmul.mubr.bf16.gmra.mrb[0].mxu0 %v124
  %v417 = vpop.f32.mrb[0].mxu0
  %v418 = vadd.f32 %v369, %v417
  %v419 = vpop.f32.mrb[0].mxu0
  %v420 = vpop.f32.mrb[0].mxu0
  %v421 = vadd.f32 %v372, %v420
  %v422 = vpop.f32.mrb[0].mxu0
  %423 = vdwg.mxu0
  %vm424 = vcmp.gt.f32.partialorder %v410, 0.0
  %vm425 = vcmp.gt.f32.partialorder %v413, 0.0
  %vm426 = vcmp.gt.f32.partialorder %v418, 0.0
  %vm427 = vcmp.gt.f32.partialorder %v421, 0.0
  %v428 = vmul.f32 %v410, 0.2
  %v429 = vmul.f32 %v413, 0.2
  %v430 = vmul.f32 %v418, 0.2
  %v431 = vmul.f32 %v421, 0.2
  %v432 = vsel %vm424, %v410, %v428
  %v433 = vsel %vm425, %v413, %v429
  %v434 = vsel %vm426, %v418, %v430
  %v435 = vsel %vm427, %v421, %v431
  %v436 = vpack.c.bf16 %v433, %v432
  %v437 = vpack.c.bf16 %v435, %v434
  %v440 = vunpack.c.l.b16 %v436
  %v441 = vunpack.c.h.b16 %v436
  %v442 = vunpack.c.l.b16 %v437
  %v443 = vunpack.c.h.b16 %v437
  %v444 = vpack.c.b16 %v440, %v440
  %v445 = vpack.c.b16 %v441, %v441
  %v446 = vpack.c.b16 %v442, %v442
  %v447 = vpack.c.b16 %v443, %v443
  %vm452 = vcmask 519168
  %453 = vst.msk [vmem:[%s3] sm:$0xf] %vm452, %v444
  %454 = vst.msk [vmem:[%s3 + $0x4] sm:$0xf] %vm452, %v445
  %455 = vst.msk [vmem:[%s3 + $0x8] sm:$0xf] %vm452, %v446
  %456 = vst.msk [vmem:[%s3 + $0xc] sm:$0xf] %vm452, %v447
  // Predicated region
  $region14: #{vae_forward.13} parent=0 // pred_check
    _
  $region15: #{vae_forward.13} parent=0 // pred_check_branch
    %458 = sbr.rel (0) target = $region17
  $region16: #{vae_forward.13} parent=0 // pred_region
    _
  $region17: #{vae_forward.13} parent=0 // pred_fallthru
    _
  // Predicated region
  $region18: #{vae_forward.13} parent=0 // pred_check
    _
  $region19: #{vae_forward.13} parent=0 // pred_check_branch
    %460 = sbr.rel (0) target = $region21
  $region20: #{vae_forward.13} parent=0 // pred_region
    _
  $region21: #{vae_forward.13} parent=0 // pred_fallthru
    _

// kernel: tile.23
$region0: #{tile.23}
  #allocation0 [shape = 's32[1]{0}', space=sflag, size = 0x4, scoped, tag = 'scoped memory for tile.23']
  %s0 = inlined_call_operand.vmem [shape: f32[64], index: 0, kind: input, shape index: {}]
  %s1 = inlined_call_operand.vmem [shape: f32[16,64], index: 1, kind: output, shape index: {}]
  // Predicated region
  $region2: #{tile.23} parent=0 // pred_check
    _
  $region3: #{tile.23} parent=0 // pred_check_branch
    %3 = sbr.rel (0) target = $region5
  $region4: #{tile.23} parent=0 // pred_region
    _
  $region5: #{tile.23} parent=0 // pred_fallthru
    _
  %v4 = vld [vmem:[%s0] ss:$0 sm:$0xff]
  %5 = vst [vmem:[%s1] sm:$0xff] %v4
  %s6 = scalar_lea.vmem %s1, 8
  %7 = vst [vmem:[%s6] sm:$0xff] %v4

// kernel: tile.24
$region0: #{tile.24}
  %s0 = inlined_call_operand.vmem [shape: f32[16,64], index: 0, kind: input, shape index: {}]
  %s1 = inlined_call_operand.vmem [shape: f32[1,1024], index: 1, kind: output, shape index: {}]
  $region1: #{tile.24} parent=0
    #allocation0 [shape = 'u8[32768]{0}', space=vmem, size = 0x8000, scoped, tag = 'scoped mem for output reshape']
    %v2 = vld [vmem:[%s0] ss:$2 sm:$0xff]
    %vm3 = vcmask 523264
    %4 = vst.msk [vmem:[#allocation0] ss:$8 sm:$0xf] %vm3, %v2
    %5 = vst.msk [vmem:[#allocation0] ss:$8 sm:$0xf0] %vm3, %v2
    %s6 = scalar_lea.vmem %s0, 1
    %v7 = vld [vmem:[%s6] ss:$2 sm:$0xff]
    %8 = vrot.lane.b32.xlu0 %v7, 64
    %v9 = vpop.permute.xlu0 %8
    %vm10 = vcmask 1048064
    %11 = vst.msk [vmem:[#allocation0] ss:$8 sm:$0xf] %vm10, %v9
    %12 = vst.msk [vmem:[#allocation0] ss:$8 sm:$0xf0] %vm10, %v9
    %s14 = sshllo.u32 0, 1
    %v16 = vld [vmem:[#allocation0] sm:%s14]
    %s17 = sshllo.u32 0, 1
    %18 = vst [vmem:[%s1] sm:%s17] %v16
    %s19 = scalar_lea.vmem [#allocation0], 8
    %v20 = vld [vmem:[%s19] sm:%s14]
    %s21 = sshllo.u32 0, 1
    %s22 = scalar_lea.vmem %s1, 1
    %23 = vst [vmem:[%s22] sm:%s21] %v20
    %s24 = scalar_lea.vmem [#allocation0], 16
    %v25 = vld [vmem:[%s24] sm:%s14]
    %s26 = sshllo.u32 0, 1
    %s27 = smul.addr 1, 2
    %s28 = scalar_lea.vmem %s1, %s27
    %29 = vst [vmem:[%s28] sm:%s26] %v25
    %s30 = scalar_lea.vmem [#allocation0], 24
    %v31 = vld [vmem:[%s30] sm:%s14]
    %s32 = sshllo.u32 0, 1
    %s33 = smul.addr 1, 3
    %s34 = scalar_lea.vmem %s1, %s33
    %35 = vst [vmem:[%s34] sm:%s32] %v31
    %s36 = scalar_lea.vmem [#allocation0], 32
    %v37 = vld [vmem:[%s36] sm:%s14]
    %s38 = sshllo.u32 0, 1
    %s39 = smul.addr 1, 4
    %s40 = scalar_lea.vmem %s1, %s39
    %41 = vst [vmem:[%s40] sm:%s38] %v37
    %s42 = scalar_lea.vmem [#allocation0], 40
    %v43 = vld [vmem:[%s42] sm:%s14]
    %s44 = sshllo.u32 0, 1
    %s45 = smul.addr 1, 5
    %s46 = scalar_lea.vmem %s1, %s45
    %47 = vst [vmem:[%s46] sm:%s44] %v43
    %s48 = scalar_lea.vmem [#allocation0], 48
    %v49 = vld [vmem:[%s48] sm:%s14]
    %s50 = sshllo.u32 0, 1
    %s51 = smul.addr 1, 6
    %s52 = scalar_lea.vmem %s1, %s51
    %53 = vst [vmem:[%s52] sm:%s50] %v49
    %s54 = scalar_lea.vmem [#allocation0], 56
    %v55 = vld [vmem:[%s54] sm:%s14]
    %s56 = sshllo.u32 0, 1
    %s57 = smul.addr 1, 7
    %s58 = scalar_lea.vmem %s1, %s57
    %59 = vst [vmem:[%s58] sm:%s56] %v55

// kernel: vae_forward.14
$region0: #{vae_forward.14}
  #allocation0 [shape = 'u32[]', space=smem, size = 0x4, offset = 0x4, fixed_abs, tag = 'smem constant byte address 0x4 - core index']
  #allocation1 [shape = 'u32[144,128]{1,0:T(1,128)}', space=vmem, size = 0x12000, scoped, tag = 'internal scratch']
  %s0 = inlined_call_operand.vmem [shape: bf16[2,1024], index: 0, kind: input, shape index: {}]
  %s1 = inlined_call_operand.vmem [shape: bf16[1024,32], index: 1, kind: input, shape index: {}]
  %s2 = inlined_call_operand.vmem [shape: bf16[32,16], index: 2, kind: input, shape index: {}]
  %s3 = inlined_call_operand.vmem [shape: f32[1,16], index: 3, kind: input, shape index: {}]
  %s4 = inlined_call_operand.vmem [shape: f32[2,16], index: 4, kind: output, shape index: {}]
  %s5 = sld [smem:[#allocation0]]
  $region26: #{vae_forward.14} parent=0
    _
  %s7 = ssub.s32 1, %s5
  %s8 = scalar_select 0, %s7, %s5
  // Predicated region
  $region2: #{vae_forward.14} parent=0 // pred_check
    _
  $region3: #{vae_forward.14} parent=0 // pred_check_branch
    %10 = sbr.rel (0) target = $region5
  $region4: #{vae_forward.14} parent=0 // pred_region
    _
  $region5: #{vae_forward.14} parent=0 // pred_fallthru
    _
  // Predicated region
  $region6: #{vae_forward.14} parent=0 // pred_check
    _
  $region7: #{vae_forward.14} parent=0 // pred_check_branch
    %12 = sbr.rel (0) target = $region9
  $region8: #{vae_forward.14} parent=0 // pred_region
    _
  $region9: #{vae_forward.14} parent=0 // pred_fallthru
    _
  // Predicated region
  $region10: #{vae_forward.14} parent=0 // pred_check
    _
  $region11: #{vae_forward.14} parent=0 // pred_check_branch
    %14 = sbr.rel (0) target = $region13
  $region12: #{vae_forward.14} parent=0 // pred_region
    _
  $region13: #{vae_forward.14} parent=0 // pred_fallthru
    _
  // Predicated region
  $region14: #{vae_forward.14} parent=0 // pred_check
    _
  $region15: #{vae_forward.14} parent=0 // pred_check_branch
    %16 = sbr.rel (0) target = $region17
  $region16: #{vae_forward.14} parent=0 // pred_region
    _
  $region17: #{vae_forward.14} parent=0 // pred_fallthru
    _
  %v18 = vld [vmem:[%s0] sm:$0xff]
  %v19 = vld [vmem:[%s1] sm:$0xf]
  %v20 = vld [vmem:[%s1 + $0x4] sm:$0xf]
  %v21 = vld [vmem:[%s1 + $0x8] sm:$0xf]
  %v22 = vld [vmem:[%s1 + $0xc] sm:$0xf]
  %v23 = vld [vmem:[%s1 + $0x10] sm:$0xf]
  %v24 = vld [vmem:[%s1 + $0x14] sm:$0xf]
  %v25 = vld [vmem:[%s1 + $0x18] sm:$0xf]
  %v26 = vld [vmem:[%s1 + $0x1c] sm:$0xf]
  %v27 = vld [vmem:[%s1 + $0x20] sm:$0xf]
  %v28 = vld [vmem:[%s1 + $0x24] sm:$0xf]
  %v29 = vld [vmem:[%s1 + $0x28] sm:$0xf]
  %v30 = vld [vmem:[%s1 + $0x2c] sm:$0xf]
  %v31 = vld [vmem:[%s1 + $0x30] sm:$0xf]
  %v32 = vld [vmem:[%s1 + $0x34] sm:$0xf]
  %v33 = vld [vmem:[%s1 + $0x38] sm:$0xf]
  %v34 = vld [vmem:[%s1 + $0x3c] sm:$0xf]
  %v35 = vld [vmem:[%s1 + $0x40] sm:$0xf]
  %v36 = vld [vmem:[%s1 + $0x44] sm:$0xf]
  %v37 = vld [vmem:[%s1 + $0x48] sm:$0xf]
  %v38 = vld [vmem:[%s1 + $0x4c] sm:$0xf]
  %v39 = vld [vmem:[%s1 + $0x50] sm:$0xf]
  %v40 = vld [vmem:[%s1 + $0x54] sm:$0xf]
  %v41 = vld [vmem:[%s1 + $0x58] sm:$0xf]
  %v42 = vld [vmem:[%s1 + $0x5c] sm:$0xf]
  %v43 = vld [vmem:[%s1 + $0x60] sm:$0xf]
  %v44 = vld [vmem:[%s1 + $0x64] sm:$0xf]
  %v45 = vld [vmem:[%s1 + $0x68] sm:$0xf]
  %v46 = vld [vmem:[%s1 + $0x6c] sm:$0xf]
  %v47 = vld [vmem:[%s1 + $0x70] sm:$0xf]
  %v48 = vld [vmem:[%s1 + $0x74] sm:$0xf]
  %v49 = vld [vmem:[%s1 + $0x78] sm:$0xf]
  %v50 = vld [vmem:[%s1 + $0x7c] sm:$0xf]
  %v51 = vld [vmem:[%s1 + $0x80] sm:$0xf]
  %v52 = vld [vmem:[%s1 + $0x84] sm:$0xf]
  %v53 = vld [vmem:[%s1 + $0x88] sm:$0xf]
  %v54 = vld [vmem:[%s1 + $0x8c] sm:$0xf]
  %v55 = vld [vmem:[%s1 + $0x90] sm:$0xf]
  %v56 = vld [vmem:[%s1 + $0x94] sm:$0xf]
  %v57 = vld [vmem:[%s1 + $0x98] sm:$0xf]
  %v58 = vld [vmem:[%s1 + $0x9c] sm:$0xf]
  %v59 = vld [vmem:[%s1 + $0xa0] sm:$0xf]
  %v60 = vld [vmem:[%s1 + $0xa4] sm:$0xf]
  %v61 = vld [vmem:[%s1 + $0xa8] sm:$0xf]
  %v62 = vld [vmem:[%s1 + $0xac] sm:$0xf]
  %v63 = vld [vmem:[%s1 + $0xb0] sm:$0xf]
  %v64 = vld [vmem:[%s1 + $0xb4] sm:$0xf]
  %v65 = vld [vmem:[%s1 + $0xb8] sm:$0xf]
  %v66 = vld [vmem:[%s1 + $0xbc] sm:$0xf]
  %v67 = vld [vmem:[%s1 + $0xc0] sm:$0xf]
  %v68 = vld [vmem:[%s1 + $0xc4] sm:$0xf]
  %v69 = vld [vmem:[%s1 + $0xc8] sm:$0xf]
  %v70 = vld [vmem:[%s1 + $0xcc] sm:$0xf]
  %v71 = vld [vmem:[%s1 + $0xd0] sm:$0xf]
  %v72 = vld [vmem:[%s1 + $0xd4] sm:$0xf]
  %v73 = vld [vmem:[%s1 + $0xd8] sm:$0xf]
  %v74 = vld [vmem:[%s1 + $0xdc] sm:$0xf]
  %v75 = vld [vmem:[%s1 + $0xe0] sm:$0xf]
  %v76 = vld [vmem:[%s1 + $0xe4] sm:$0xf]
  %v77 = vld [vmem:[%s1 + $0xe8] sm:$0xf]
  %v78 = vld [vmem:[%s1 + $0xec] sm:$0xf]
  %v79 = vld [vmem:[%s1 + $0xf0] sm:$0xf]
  %v80 = vld [vmem:[%s1 + $0xf4] sm:$0xf]
  %v81 = vld [vmem:[%s1 + $0xf8] sm:$0xf]
  %v82 = vld [vmem:[%s1 + $0xfc] sm:$0xf]
  %v83 = vld [vmem:[%s1 + $0x100] sm:$0xf]
  %v84 = vld [vmem:[%s1 + $0x104] sm:$0xf]
  %v85 = vld [vmem:[%s1 + $0x108] sm:$0xf]
  %v86 = vld [vmem:[%s1 + $0x10c] sm:$0xf]
  %v87 = vld [vmem:[%s1 + $0x110] sm:$0xf]
  %v88 = vld [vmem:[%s1 + $0x114] sm:$0xf]
  %v89 = vld [vmem:[%s1 + $0x118] sm:$0xf]
  %v90 = vld [vmem:[%s1 + $0x11c] sm:$0xf]
  %v91 = vld [vmem:[%s1 + $0x120] sm:$0xf]
  %v92 = vld [vmem:[%s1 + $0x124] sm:$0xf]
  %v93 = vld [vmem:[%s1 + $0x128] sm:$0xf]
  %v94 = vld [vmem:[%s1 + $0x12c] sm:$0xf]
  %v95 = vld [vmem:[%s1 + $0x130] sm:$0xf]
  %v96 = vld [vmem:[%s1 + $0x134] sm:$0xf]
  %v97 = vld [vmem:[%s1 + $0x138] sm:$0xf]
  %v98 = vld [vmem:[%s1 + $0x13c] sm:$0xf]
  %v99 = vld [vmem:[%s1 + $0x140] sm:$0xf]
  %v100 = vld [vmem:[%s1 + $0x144] sm:$0xf]
  %v101 = vld [vmem:[%s1 + $0x148] sm:$0xf]
  %v102 = vld [vmem:[%s1 + $0x14c] sm:$0xf]
  %v103 = vld [vmem:[%s1 + $0x150] sm:$0xf]
  %v104 = vld [vmem:[%s1 + $0x154] sm:$0xf]
  %v105 = vld [vmem:[%s1 + $0x158] sm:$0xf]
  %v106 = vld [vmem:[%s1 + $0x15c] sm:$0xf]
  %v107 = vld [vmem:[%s1 + $0x160] sm:$0xf]
  %v108 = vld [vmem:[%s1 + $0x164] sm:$0xf]
  %v109 = vld [vmem:[%s1 + $0x168] sm:$0xf]
  %v110 = vld [vmem:[%s1 + $0x16c] sm:$0xf]
  %v111 = vld [vmem:[%s1 + $0x170] sm:$0xf]
  %v112 = vld [vmem:[%s1 + $0x174] sm:$0xf]
  %v113 = vld [vmem:[%s1 + $0x178] sm:$0xf]
  %v114 = vld [vmem:[%s1 + $0x17c] sm:$0xf]
  %v115 = vld [vmem:[%s1 + $0x180] sm:$0xf]
  %v116 = vld [vmem:[%s1 + $0x184] sm:$0xf]
  %v117 = vld [vmem:[%s1 + $0x188] sm:$0xf]
  %v118 = vld [vmem:[%s1 + $0x18c] sm:$0xf]
  %v119 = vld [vmem:[%s1 + $0x190] sm:$0xf]
  %v120 = vld [vmem:[%s1 + $0x194] sm:$0xf]
  %v121 = vld [vmem:[%s1 + $0x198] sm:$0xf]
  %v122 = vld [vmem:[%s1 + $0x19c] sm:$0xf]
  %v123 = vld [vmem:[%s1 + $0x1a0] sm:$0xf]
  %v124 = vld [vmem:[%s1 + $0x1a4] sm:$0xf]
  %v125 = vld [vmem:[%s1 + $0x1a8] sm:$0xf]
  %v126 = vld [vmem:[%s1 + $0x1ac] sm:$0xf]
  %v127 = vld [vmem:[%s1 + $0x1b0] sm:$0xf]
  %v128 = vld [vmem:[%s1 + $0x1b4] sm:$0xf]
  %v129 = vld [vmem:[%s1 + $0x1b8] sm:$0xf]
  %v130 = vld [vmem:[%s1 + $0x1bc] sm:$0xf]
  %v131 = vld [vmem:[%s1 + $0x1c0] sm:$0xf]
  %v132 = vld [vmem:[%s1 + $0x1c4] sm:$0xf]
  %v133 = vld [vmem:[%s1 + $0x1c8] sm:$0xf]
  %v134 = vld [vmem:[%s1 + $0x1cc] sm:$0xf]
  %v135 = vld [vmem:[%s1 + $0x1d0] sm:$0xf]
  %v136 = vld [vmem:[%s1 + $0x1d4] sm:$0xf]
  %v137 = vld [vmem:[%s1 + $0x1d8] sm:$0xf]
  %v138 = vld [vmem:[%s1 + $0x1dc] sm:$0xf]
  %v139 = vld [vmem:[%s1 + $0x1e0] sm:$0xf]
  %v140 = vld [vmem:[%s1 + $0x1e4] sm:$0xf]
  %v141 = vld [vmem:[%s1 + $0x1e8] sm:$0xf]
  %v142 = vld [vmem:[%s1 + $0x1ec] sm:$0xf]
  %v143 = vld [vmem:[%s1 + $0x1f0] sm:$0xf]
  %v144 = vld [vmem:[%s1 + $0x1f4] sm:$0xf]
  %v145 = vld [vmem:[%s1 + $0x1f8] sm:$0xf]
  %v146 = vld [vmem:[%s1 + $0x1fc] sm:$0xf]
  %v148 = vcombine.high %v18, %v18
  %v150 = vunpack.c.l.s4 1966171168
  %v151 = vunpack.c.0.s8 %v150
  %v152 = vlaneseq
  %v153 = vshrl.u32 %v152, 7
  %v154 = vsub.s32 %v151, %v153
  %v155 = vrot.slane %v18, %v154
  %v157 = vunpack.c.l.s4 1966171168
  %v158 = vunpack.c.0.s8 %v157
  %v159 = vlaneseq
  %v160 = vshrl.u32 %v159, 7
  %v161 = vsub.s32 %v158, %v160
  %v162 = vrot.slane %v148, %v161
  %v163 = vcombine.high %v155, %v155
  %v164 = vcombine.high %v162, %v162
  %v166 = vunpack.c.l.s4 1966171168
  %v167 = vunpack.c.0.s8 %v166
  %v168 = vlaneseq
  %v169 = vshrl.u32 %v168, 7
  %v170 = vsub.s32 %v167, %v169
  %v171 = vrot.slane %v155, %v170
  %v173 = vunpack.c.l.s4 1966171168
  %v174 = vunpack.c.0.s8 %v173
  %v175 = vlaneseq
  %v176 = vshrl.u32 %v175, 7
  %v177 = vsub.s32 %v174, %v176
  %v178 = vrot.slane %v162, %v177
  %v180 = vunpack.c.l.s4 1966171168
  %v181 = vunpack.c.0.s8 %v180
  %v182 = vlaneseq
  %v183 = vshrl.u32 %v182, 7
  %v184 = vsub.s32 %v181, %v183
  %v185 = vrot.slane %v163, %v184
  %v187 = vunpack.c.l.s4 1966171168
  %v188 = vunpack.c.0.s8 %v187
  %v189 = vlaneseq
  %v190 = vshrl.u32 %v189, 7
  %v191 = vsub.s32 %v188, %v190
  %v192 = vrot.slane %v164, %v191
  %v193 = vcombine.high %v171, %v171
  %v194 = vcombine.high %v178, %v178
  %v195 = vcombine.high %v185, %v185
  %v196 = vcombine.high %v192, %v192
  %v333 = vunpack.c.l.b16 %v19
  %v334 = vunpack.c.l.b16 %v20
  %v335 = vunpack.c.l.b16 %v21
  %v336 = vunpack.c.l.b16 %v22
  %v337 = vunpack.c.l.b16 %v23
  %v338 = vunpack.c.l.b16 %v24
  %v339 = vunpack.c.l.b16 %v25
  %v340 = vunpack.c.l.b16 %v26
  %v341 = vunpack.c.l.b16 %v27
  %v342 = vunpack.c.l.b16 %v28
  %v343 = vunpack.c.l.b16 %v29
  %v344 = vunpack.c.l.b16 %v30
  %v345 = vunpack.c.l.b16 %v31
  %v346 = vunpack.c.l.b16 %v32
  %v347 = vunpack.c.l.b16 %v33
  %v348 = vunpack.c.l.b16 %v34
  %v349 = vunpack.c.l.b16 %v35
  %v350 = vunpack.c.l.b16 %v36
  %v351 = vunpack.c.l.b16 %v37
  %v352 = vunpack.c.l.b16 %v38
  %v353 = vunpack.c.l.b16 %v39
  %v354 = vunpack.c.l.b16 %v40
  %v355 = vunpack.c.l.b16 %v41
  %v356 = vunpack.c.l.b16 %v42
  %v357 = vunpack.c.l.b16 %v43
  %v358 = vunpack.c.l.b16 %v44
  %v359 = vunpack.c.l.b16 %v45
  %v360 = vunpack.c.l.b16 %v46
  %v361 = vunpack.c.l.b16 %v47
  %v362 = vunpack.c.l.b16 %v48
  %v363 = vunpack.c.l.b16 %v49
  %v364 = vunpack.c.l.b16 %v50
  %v365 = vunpack.c.l.b16 %v51
  %v366 = vunpack.c.l.b16 %v52
  %v367 = vunpack.c.l.b16 %v53
  %v368 = vunpack.c.l.b16 %v54
  %v369 = vunpack.c.l.b16 %v55
  %v370 = vunpack.c.l.b16 %v56
  %v371 = vunpack.c.l.b16 %v57
  %v372 = vunpack.c.l.b16 %v58
  %v373 = vunpack.c.l.b16 %v59
  %v374 = vunpack.c.l.b16 %v60
  %v375 = vunpack.c.l.b16 %v61
  %v376 = vunpack.c.l.b16 %v62
  %v377 = vunpack.c.l.b16 %v63
  %v378 = vunpack.c.l.b16 %v64
  %v379 = vunpack.c.l.b16 %v65
  %v380 = vunpack.c.l.b16 %v66
  %v381 = vunpack.c.l.b16 %v67
  %v382 = vunpack.c.l.b16 %v68
  %v383 = vunpack.c.l.b16 %v69
  %v384 = vunpack.c.l.b16 %v70
  %v385 = vunpack.c.l.b16 %v71
  %v386 = vunpack.c.l.b16 %v72
  %v387 = vunpack.c.l.b16 %v73
  %v388 = vunpack.c.l.b16 %v74
  %v389 = vunpack.c.l.b16 %v75
  %v390 = vunpack.c.l.b16 %v76
  %v391 = vunpack.c.l.b16 %v77
  %v392 = vunpack.c.l.b16 %v78
  %v393 = vunpack.c.l.b16 %v79
  %v394 = vunpack.c.l.b16 %v80
  %v395 = vunpack.c.l.b16 %v81
  %v396 = vunpack.c.l.b16 %v82
  %v397 = vunpack.c.l.b16 %v83
  %v398 = vunpack.c.l.b16 %v84
  %v399 = vunpack.c.l.b16 %v85
  %v400 = vunpack.c.l.b16 %v86
  %v401 = vunpack.c.l.b16 %v87
  %v402 = vunpack.c.l.b16 %v88
  %v403 = vunpack.c.l.b16 %v89
  %v404 = vunpack.c.l.b16 %v90
  %v405 = vunpack.c.l.b16 %v91
  %v406 = vunpack.c.l.b16 %v92
  %v407 = vunpack.c.l.b16 %v93
  %v408 = vunpack.c.l.b16 %v94
  %v409 = vunpack.c.l.b16 %v95
  %v410 = vunpack.c.l.b16 %v96
  %v411 = vunpack.c.l.b16 %v97
  %v412 = vunpack.c.l.b16 %v98
  %v413 = vunpack.c.l.b16 %v99
  %v414 = vunpack.c.l.b16 %v100
  %v415 = vunpack.c.l.b16 %v101
  %v416 = vunpack.c.l.b16 %v102
  %v417 = vunpack.c.l.b16 %v103
  %v418 = vunpack.c.l.b16 %v104
  %v419 = vunpack.c.l.b16 %v105
  %v420 = vunpack.c.l.b16 %v106
  %v421 = vunpack.c.l.b16 %v107
  %v422 = vunpack.c.l.b16 %v108
  %v423 = vunpack.c.l.b16 %v109
  %v424 = vunpack.c.l.b16 %v110
  %v425 = vunpack.c.l.b16 %v111
  %v426 = vunpack.c.l.b16 %v112
  %v427 = vunpack.c.l.b16 %v113
  %v428 = vunpack.c.l.b16 %v114
  %v429 = vunpack.c.l.b16 %v115
  %v430 = vunpack.c.l.b16 %v116
  %v431 = vunpack.c.l.b16 %v117
  %v432 = vunpack.c.l.b16 %v118
  %v433 = vunpack.c.l.b16 %v119
  %v434 = vunpack.c.l.b16 %v120
  %v435 = vunpack.c.l.b16 %v121
  %v436 = vunpack.c.l.b16 %v122
  %v437 = vunpack.c.l.b16 %v123
  %v438 = vunpack.c.l.b16 %v124
  %v439 = vunpack.c.l.b16 %v125
  %v440 = vunpack.c.l.b16 %v126
  %v441 = vunpack.c.l.b16 %v127
  %v442 = vunpack.c.l.b16 %v128
  %v443 = vunpack.c.l.b16 %v129
  %v444 = vunpack.c.l.b16 %v130
  %v445 = vunpack.c.l.b16 %v131
  %v446 = vunpack.c.l.b16 %v132
  %v447 = vunpack.c.l.b16 %v133
  %v448 = vunpack.c.l.b16 %v134
  %v449 = vunpack.c.l.b16 %v135
  %v450 = vunpack.c.l.b16 %v136
  %v451 = vunpack.c.l.b16 %v137
  %v452 = vunpack.c.l.b16 %v138
  %v453 = vunpack.c.l.b16 %v139
  %v454 = vunpack.c.l.b16 %v140
  %v455 = vunpack.c.l.b16 %v141
  %v456 = vunpack.c.l.b16 %v142
  %v457 = vunpack.c.l.b16 %v143
  %v458 = vunpack.c.l.b16 %v144
  %v459 = vunpack.c.l.b16 %v145
  %v460 = vunpack.c.l.b16 %v146
  %v461 = vpack.c.b16 %v334, %v333
  %v462 = vpack.c.b16 %v336, %v335
  %v463 = vpack.c.b16 %v338, %v337
  %v464 = vpack.c.b16 %v340, %v339
  %v465 = vpack.c.b16 %v342, %v341
  %v466 = vpack.c.b16 %v344, %v343
  %v467 = vpack.c.b16 %v346, %v345
  %v468 = vpack.c.b16 %v348, %v347
  %v469 = vpack.c.b16 %v350, %v349
  %v470 = vpack.c.b16 %v352, %v351
  %v471 = vpack.c.b16 %v354, %v353
  %v472 = vpack.c.b16 %v356, %v355
  %v473 = vpack.c.b16 %v358, %v357
  %v474 = vpack.c.b16 %v360, %v359
  %v475 = vpack.c.b16 %v362, %v361
  %v476 = vpack.c.b16 %v364, %v363
  %v477 = vpack.c.b16 %v366, %v365
  %v478 = vpack.c.b16 %v368, %v367
  %v479 = vpack.c.b16 %v370, %v369
  %v480 = vpack.c.b16 %v372, %v371
  %v481 = vpack.c.b16 %v374, %v373
  %v482 = vpack.c.b16 %v376, %v375
  %v483 = vpack.c.b16 %v378, %v377
  %v484 = vpack.c.b16 %v380, %v379
  %v485 = vpack.c.b16 %v382, %v381
  %v486 = vpack.c.b16 %v384, %v383
  %v487 = vpack.c.b16 %v386, %v385
  %v488 = vpack.c.b16 %v388, %v387
  %v489 = vpack.c.b16 %v390, %v389
  %v490 = vpack.c.b16 %v392, %v391
  %v491 = vpack.c.b16 %v394, %v393
  %v492 = vpack.c.b16 %v396, %v395
  %v493 = vpack.c.b16 %v398, %v397
  %v494 = vpack.c.b16 %v400, %v399
  %v495 = vpack.c.b16 %v402, %v401
  %v496 = vpack.c.b16 %v404, %v403
  %v497 = vpack.c.b16 %v406, %v405
  %v498 = vpack.c.b16 %v408, %v407
  %v499 = vpack.c.b16 %v410, %v409
  %v500 = vpack.c.b16 %v412, %v411
  %v501 = vpack.c.b16 %v414, %v413
  %v502 = vpack.c.b16 %v416, %v415
  %v503 = vpack.c.b16 %v418, %v417
  %v504 = vpack.c.b16 %v420, %v419
  %v505 = vpack.c.b16 %v422, %v421
  %v506 = vpack.c.b16 %v424, %v423
  %v507 = vpack.c.b16 %v426, %v425
  %v508 = vpack.c.b16 %v428, %v427
  %v509 = vpack.c.b16 %v430, %v429
  %v510 = vpack.c.b16 %v432, %v431
  %v511 = vpack.c.b16 %v434, %v433
  %v512 = vpack.c.b16 %v436, %v435
  %v513 = vpack.c.b16 %v438, %v437
  %v514 = vpack.c.b16 %v440, %v439
  %v515 = vpack.c.b16 %v442, %v441
  %v516 = vpack.c.b16 %v444, %v443
  %v517 = vpack.c.b16 %v446, %v445
  %v518 = vpack.c.b16 %v448, %v447
  %v519 = vpack.c.b16 %v450, %v449
  %v520 = vpack.c.b16 %v452, %v451
  %v521 = vpack.c.b16 %v454, %v453
  %v522 = vpack.c.b16 %v456, %v455
  %v523 = vpack.c.b16 %v458, %v457
  %v524 = vpack.c.b16 %v460, %v459
  %589 = vmatprep.subr.bf16.mxu0 0
  %590 = vmatpush1.bf16.msra.mxu0 %v461
  %591 = vmatprep.subr.bf16.mxu0 0
  %592 = vmatpush1.bf16.msra.mxu0 %v462
  %593 = vmatprep.subr.bf16.mxu0 0
  %594 = vmatpush1.bf16.msra.mxu0 %v463
  %595 = vmatprep.subr.bf16.mxu0 0
  %596 = vmatpush1.bf16.msra.mxu0 %v464
  %597 = vmatprep.subr.bf16.mxu0 0
  %598 = vmatpush1.bf16.msra.mxu0 %v465
  %599 = vmatprep.subr.bf16.mxu0 0
  %600 = vmatpush1.bf16.msra.mxu0 %v466
  %601 = vmatprep.subr.bf16.mxu0 0
  %602 = vmatpush1.bf16.msra.mxu0 %v467
  %603 = vmatprep.subr.bf16.mxu0 0
  %604 = vmatpush1.bf16.msra.mxu0 %v468
  %605 = vmatprep.subr.bf16.mxu0 0
  %606 = vmatpush1.bf16.msra.mxu0 %v469
  %607 = vmatprep.subr.bf16.mxu0 0
  %608 = vmatpush1.bf16.msra.mxu0 %v470
  %609 = vmatprep.subr.bf16.mxu0 0
  %610 = vmatpush1.bf16.msra.mxu0 %v471
  %611 = vmatprep.subr.bf16.mxu0 0
  %612 = vmatpush1.bf16.msra.mxu0 %v472
  %613 = vmatprep.subr.bf16.mxu0 0
  %614 = vmatpush1.bf16.msra.mxu0 %v473
  %615 = vmatprep.subr.bf16.mxu0 0
  %616 = vmatpush1.bf16.msra.mxu0 %v474
  %617 = vmatprep.subr.bf16.mxu0 0
  %618 = vmatpush1.bf16.msra.mxu0 %v475
  %619 = vmatprep.subr.bf16.mxu0 0
  %620 = vmatpush1.bf16.msra.mxu0 %v476
  %621 = vmatprep.mubr.bf16.mxu0 %v185
  %622 = vmatmul.mubr.bf16.gmra.mrb[0].mxu0 %v171
  %v623 = vpop.f32.mrb[0].mxu0
  %v624 = vadd.f32 0.0, %v623
  %v625 = vpop.f32.mrb[0].mxu0
  %v626 = vpop.f32.mrb[0].mxu0
  %v627 = vpop.f32.mrb[0].mxu0
  %628 = vdwg.mxu0
  %629 = vmatprep.subr.bf16.mxu0 0
  %630 = vmatpush1.bf16.msra.mxu0 %v477
  %631 = vmatprep.subr.bf16.mxu0 0
  %632 = vmatpush1.bf16.msra.mxu0 %v478
  %633 = vmatprep.subr.bf16.mxu0 0
  %634 = vmatpush1.bf16.msra.mxu0 %v479
  %635 = vmatprep.subr.bf16.mxu0 0
  %636 = vmatpush1.bf16.msra.mxu0 %v480
  %637 = vmatprep.subr.bf16.mxu0 0
  %638 = vmatpush1.bf16.msra.mxu0 %v481
  %639 = vmatprep.subr.bf16.mxu0 0
  %640 = vmatpush1.bf16.msra.mxu0 %v482
  %641 = vmatprep.subr.bf16.mxu0 0
  %642 = vmatpush1.bf16.msra.mxu0 %v483
  %643 = vmatprep.subr.bf16.mxu0 0
  %644 = vmatpush1.bf16.msra.mxu0 %v484
  %645 = vmatprep.subr.bf16.mxu0 0
  %646 = vmatpush1.bf16.msra.mxu0 %v485
  %647 = vmatprep.subr.bf16.mxu0 0
  %648 = vmatpush1.bf16.msra.mxu0 %v486
  %649 = vmatprep.subr.bf16.mxu0 0
  %650 = vmatpush1.bf16.msra.mxu0 %v487
  %651 = vmatprep.subr.bf16.mxu0 0
  %652 = vmatpush1.bf16.msra.mxu0 %v488
  %653 = vmatprep.subr.bf16.mxu0 0
  %654 = vmatpush1.bf16.msra.mxu0 %v489
  %655 = vmatprep.subr.bf16.mxu0 0
  %656 = vmatpush1.bf16.msra.mxu0 %v490
  %657 = vmatprep.subr.bf16.mxu0 0
  %658 = vmatpush1.bf16.msra.mxu0 %v491
  %659 = vmatprep.subr.bf16.mxu0 0
  %660 = vmatpush1.bf16.msra.mxu0 %v492
  %661 = vmatprep.mubr.bf16.mxu0 %v195
  %662 = vmatmul.mubr.bf16.gmra.mrb[0].mxu0 %v193
  %v663 = vpop.f32.mrb[0].mxu0
  %v664 = vadd.f32 %v624, %v663
  %v665 = vpop.f32.mrb[0].mxu0
  %v666 = vpop.f32.mrb[0].mxu0
  %v667 = vpop.f32.mrb[0].mxu0
  %668 = vdwg.mxu0
  %669 = vmatprep.subr.bf16.mxu0 0
  %670 = vmatpush1.bf16.msra.mxu0 %v493
  %671 = vmatprep.subr.bf16.mxu0 0
  %672 = vmatpush1.bf16.msra.mxu0 %v494
  %673 = vmatprep.subr.bf16.mxu0 0
  %674 = vmatpush1.bf16.msra.mxu0 %v495
  %675 = vmatprep.subr.bf16.mxu0 0
  %676 = vmatpush1.bf16.msra.mxu0 %v496
  %677 = vmatprep.subr.bf16.mxu0 0
  %678 = vmatpush1.bf16.msra.mxu0 %v497
  %679 = vmatprep.subr.bf16.mxu0 0
  %680 = vmatpush1.bf16.msra.mxu0 %v498
  %681 = vmatprep.subr.bf16.mxu0 0
  %682 = vmatpush1.bf16.msra.mxu0 %v499
  %683 = vmatprep.subr.bf16.mxu0 0
  %684 = vmatpush1.bf16.msra.mxu0 %v500
  %685 = vmatprep.subr.bf16.mxu0 0
  %686 = vmatpush1.bf16.msra.mxu0 %v501
  %687 = vmatprep.subr.bf16.mxu0 0
  %688 = vmatpush1.bf16.msra.mxu0 %v502
  %689 = vmatprep.subr.bf16.mxu0 0
  %690 = vmatpush1.bf16.msra.mxu0 %v503
  %691 = vmatprep.subr.bf16.mxu0 0
  %692 = vmatpush1.bf16.msra.mxu0 %v504
  %693 = vmatprep.subr.bf16.mxu0 0
  %694 = vmatpush1.bf16.msra.mxu0 %v505
  %695 = vmatprep.subr.bf16.mxu0 0
  %696 = vmatpush1.bf16.msra.mxu0 %v506
  %697 = vmatprep.subr.bf16.mxu0 0
  %698 = vmatpush1.bf16.msra.mxu0 %v507
  %699 = vmatprep.subr.bf16.mxu0 0
  %700 = vmatpush1.bf16.msra.mxu0 %v508
  %701 = vmatprep.mubr.bf16.mxu0 %v192
  %702 = vmatmul.mubr.bf16.gmra.mrb[0].mxu0 %v178
  %v703 = vpop.f32.mrb[0].mxu0
  %v704 = vadd.f32 %v664, %v703
  %v705 = vpop.f32.mrb[0].mxu0
  %v706 = vpop.f32.mrb[0].mxu0
  %v707 = vpop.f32.mrb[0].mxu0
  %708 = vdwg.mxu0
  %709 = vmatprep.subr.bf16.mxu0 0
  %710 = vmatpush1.bf16.msra.mxu0 %v509
  %711 = vmatprep.subr.bf16.mxu0 0
  %712 = vmatpush1.bf16.msra.mxu0 %v510
  %713 = vmatprep.subr.bf16.mxu0 0
  %714 = vmatpush1.bf16.msra.mxu0 %v511
  %715 = vmatprep.subr.bf16.mxu0 0
  %716 = vmatpush1.bf16.msra.mxu0 %v512
  %717 = vmatprep.subr.bf16.mxu0 0
  %718 = vmatpush1.bf16.msra.mxu0 %v513
  %719 = vmatprep.subr.bf16.mxu0 0
  %720 = vmatpush1.bf16.msra.mxu0 %v514
  %721 = vmatprep.subr.bf16.mxu0 0
  %722 = vmatpush1.bf16.msra.mxu0 %v515
  %723 = vmatprep.subr.bf16.mxu0 0
  %724 = vmatpush1.bf16.msra.mxu0 %v516
  %725 = vmatprep.subr.bf16.mxu0 0
  %726 = vmatpush1.bf16.msra.mxu0 %v517
  %727 = vmatprep.subr.bf16.mxu0 0
  %728 = vmatpush1.bf16.msra.mxu0 %v518
  %729 = vmatprep.subr.bf16.mxu0 0
  %730 = vmatpush1.bf16.msra.mxu0 %v519
  %731 = vmatprep.subr.bf16.mxu0 0
  %732 = vmatpush1.bf16.msra.mxu0 %v520
  %733 = vmatprep.subr.bf16.mxu0 0
  %734 = vmatpush1.bf16.msra.mxu0 %v521
  %735 = vmatprep.subr.bf16.mxu0 0
  %736 = vmatpush1.bf16.msra.mxu0 %v522
  %737 = vmatprep.subr.bf16.mxu0 0
  %738 = vmatpush1.bf16.msra.mxu0 %v523
  %739 = vmatprep.subr.bf16.mxu0 0
  %740 = vmatpush1.bf16.msra.mxu0 %v524
  %741 = vmatprep.mubr.bf16.mxu0 %v196
  %742 = vmatmul.mubr.bf16.gmra.mrb[0].mxu0 %v194
  %v743 = vpop.f32.mrb[0].mxu0
  %v744 = vadd.f32 %v704, %v743
  %v745 = vpop.f32.mrb[0].mxu0
  %v746 = vpop.f32.mrb[0].mxu0
  %v747 = vpop.f32.mrb[0].mxu0
  %748 = vdwg.mxu0
  %vm749 = vcmp.gt.f32.partialorder %v744, 0.0
  %v750 = vmul.f32 %v744, 0.2
  %v751 = vsel %vm749, %v744, %v750
  %v752 = vpack.c.bf16 %v751, %v751
  %v753 = vld [vmem:[%s2] sm:$0xf]
  %v754 = vld [vmem:[%s2 + $0x4] sm:$0xf]
  %v755 = vld [vmem:[%s2 + $0x8] sm:$0xf]
  %v756 = vld [vmem:[%s2 + $0xc] sm:$0xf]
  %v757 = vld [vmem:[%s3] sm:$0x1]
  %v759 = vlaneseq
  %v760 = vshrl.u32 %v759, 7
  %v761 = vsub.s32 0, %v760
  %v762 = vrot.slane %v757, %v761
  %v768 = vunpack.c.l.b16 %v753
  %v769 = vunpack.c.l.b16 %v754
  %v770 = vunpack.c.l.b16 %v755
  %v771 = vunpack.c.l.b16 %v756
  %v772 = vpack.c.b16 %v769, %v768
  %v773 = vpack.c.b16 %v771, %v770
  %vm776 = vcmask 261120
  %v778 = vsel %vm776, %v752, 0
  %780 = vmatprep.subr.bf16.mxu0 0
  %781 = vmatpush1.bf16.msra.mxu0 %v772
  %782 = vmatprep.subr.bf16.mxu0 0
  %783 = vmatpush1.bf16.msra.mxu0 %v773
  %784 = vmatprep.subr.bf16.mxu0 0
  %785 = vmatpush1.bf16.msra.mxu0 0
  %786 = vmatprep.subr.bf16.mxu0 0
  %787 = vmatpush1.bf16.msra.mxu0 0
  %788 = vmatprep.subr.bf16.mxu0 0
  %789 = vmatpush1.bf16.msra.mxu0 0
  %790 = vmatprep.subr.bf16.mxu0 0
  %791 = vmatpush1.bf16.msra.mxu0 0
  %792 = vmatprep.subr.bf16.mxu0 0
  %793 = vmatpush1.bf16.msra.mxu0 0
  %794 = vmatprep.subr.bf16.mxu0 0
  %795 = vmatpush1.bf16.msra.mxu0 0
  %796 = vmatprep.subr.bf16.mxu0 0
  %797 = vmatpush1.bf16.msra.mxu0 0
  %798 = vmatprep.subr.bf16.mxu0 0
  %799 = vmatpush1.bf16.msra.mxu0 0
  %800 = vmatprep.subr.bf16.mxu0 0
  %801 = vmatpush1.bf16.msra.mxu0 0
  %802 = vmatprep.subr.bf16.mxu0 0
  %803 = vmatpush1.bf16.msra.mxu0 0
  %804 = vmatprep.subr.bf16.mxu0 0
  %805 = vmatpush1.bf16.msra.mxu0 0
  %806 = vmatprep.subr.bf16.mxu0 0
  %807 = vmatpush1.bf16.msra.mxu0 0
  %808 = vmatprep.subr.bf16.mxu0 0
  %809 = vmatpush1.bf16.msra.mxu0 0
  %810 = vmatprep.subr.bf16.mxu0 0
  %811 = vmatpush1.bf16.msra.mxu0 0
  %812 = vmatprep.mubr.bf16.mxu0 0
  %813 = vmatmul.mubr.bf16.gmra.mrb[0].mxu0 %v778
  %v814 = vpop.f32.mrb[0].mxu0
  %v815 = vadd.f32 %v762, %v814
  %v816 = vpop.f32.mrb[0].mxu0
  %v817 = vpop.f32.mrb[0].mxu0
  %v818 = vpop.f32.mrb[0].mxu0
  %819 = vdwg.mxu0
  %vm820 = vcmask 123904
  %821 = vst.msk [vmem:[%s4] sm:$0x3] %vm820, %v815
  // Predicated region
  $region18: #{vae_forward.14} parent=0 // pred_check
    _
  $region19: #{vae_forward.14} parent=0 // pred_check_branch
    %823 = sbr.rel (0) target = $region21
  $region20: #{vae_forward.14} parent=0 // pred_region
    _
  $region21: #{vae_forward.14} parent=0 // pred_fallthru
    _
  // Predicated region
  $region22: #{vae_forward.14} parent=0 // pred_check
    _
  $region23: #{vae_forward.14} parent=0 // pred_check_branch
    %825 = sbr.rel (0) target = $region25
  $region24: #{vae_forward.14} parent=0 // pred_region
    _
  $region25: #{vae_forward.14} parent=0 // pred_fallthru
    _

// kernel: vae_forward.15
$region0: #{vae_forward.15}
  #allocation0 [shape = 'u32[]', space=smem, size = 0x4, offset = 0x4, fixed_abs, tag = 'smem constant byte address 0x4 - core index']
  #allocation1 [shape = 'u32[144,128]{1,0:T(1,128)}', space=vmem, size = 0x12000, scoped, tag = 'internal scratch']
  %s0 = inlined_call_operand.vmem [shape: f32[2,8], index: 0, kind: input, shape index: {}]
  %s1 = inlined_call_operand.vmem [shape: f32[8,8], index: 1, kind: input, shape index: {}]
  %s2 = inlined_call_operand.vmem [shape: f32[1,8], index: 2, kind: input, shape index: {}]
  %s3 = inlined_call_operand.vmem [shape: bf16[8,1024], index: 3, kind: input, shape index: {}]
  %s4 = inlined_call_operand.vmem [shape: f32[1,1024], index: 4, kind: input, shape index: {}]
  %s5 = inlined_call_operand.vmem [shape: bf16[2,1024], index: 5, kind: output, shape index: {}]
  %s6 = sld [smem:[#allocation0]]
  $region30: #{vae_forward.15} parent=0
    _
  %s8 = ssub.s32 1, %s6
  %s9 = scalar_select 0, %s8, %s6
  // Predicated region
  $region2: #{vae_forward.15} parent=0 // pred_check
    _
  $region3: #{vae_forward.15} parent=0 // pred_check_branch
    %11 = sbr.rel (0) target = $region5
  $region4: #{vae_forward.15} parent=0 // pred_region
    _
  $region5: #{vae_forward.15} parent=0 // pred_fallthru
    _
  // Predicated region
  $region6: #{vae_forward.15} parent=0 // pred_check
    _
  $region7: #{vae_forward.15} parent=0 // pred_check_branch
    %13 = sbr.rel (0) target = $region9
  $region8: #{vae_forward.15} parent=0 // pred_region
    _
  $region9: #{vae_forward.15} parent=0 // pred_fallthru
    _
  // Predicated region
  $region10: #{vae_forward.15} parent=0 // pred_check
    _
  $region11: #{vae_forward.15} parent=0 // pred_check_branch
    %15 = sbr.rel (0) target = $region13
  $region12: #{vae_forward.15} parent=0 // pred_region
    _
  $region13: #{vae_forward.15} parent=0 // pred_fallthru
    _
  // Predicated region
  $region14: #{vae_forward.15} parent=0 // pred_check
    _
  $region15: #{vae_forward.15} parent=0 // pred_check_branch
    %17 = sbr.rel (0) target = $region17
  $region16: #{vae_forward.15} parent=0 // pred_region
    _
  $region17: #{vae_forward.15} parent=0 // pred_fallthru
    _
  // Predicated region
  $region18: #{vae_forward.15} parent=0 // pred_check
    _
  $region19: #{vae_forward.15} parent=0 // pred_check_branch
    %19 = sbr.rel (0) target = $region21
  $region20: #{vae_forward.15} parent=0 // pred_region
    _
  $region21: #{vae_forward.15} parent=0 // pred_fallthru
    _
  %v21 = vld [vmem:[%s0] sm:$0x3]
  %v22 = vld [vmem:[%s1] sm:$0xff]
  %v23 = vld [vmem:[%s2] sm:$0x1]
  %v25 = vlaneseq
  %v26 = vshrl.u32 %v25, 7
  %v27 = vsub.s32 0, %v26
  %v28 = vrot.slane %v23, %v27
  %vm30 = vcmask 64512
  %v32 = vsel %vm30, %v21, 0
  %34 = vmatprep.subr.mxu0 0.0
  %35 = vmatpush1.msra.mxu0 %v22
  %36 = vmatprep.subr.mxu0 0.0
  %37 = vmatpush1.msra.mxu0 0.0
  %38 = vmatprep.subr.mxu0 0.0
  %39 = vmatpush1.msra.mxu0 0.0
  %40 = vmatprep.subr.mxu0 0.0
  %41 = vmatpush1.msra.mxu0 0.0
  %42 = vmatprep.subr.mxu0 0.0
  %43 = vmatpush1.msra.mxu0 0.0
  %44 = vmatprep.subr.mxu0 0.0
  %45 = vmatpush1.msra.mxu0 0.0
  %46 = vmatprep.subr.mxu0 0.0
  %47 = vmatpush1.msra.mxu0 0.0
  %48 = vmatprep.subr.mxu0 0.0
  %49 = vmatpush1.msra.mxu0 0.0
  %50 = vmatprep.subr.mxu0 0.0
  %51 = vmatpush1.msra.mxu0 0.0
  %52 = vmatprep.subr.mxu0 0.0
  %53 = vmatpush1.msra.mxu0 0.0
  %54 = vmatprep.subr.mxu0 0.0
  %55 = vmatpush1.msra.mxu0 0.0
  %56 = vmatprep.subr.mxu0 0.0
  %57 = vmatpush1.msra.mxu0 0.0
  %58 = vmatprep.subr.mxu0 0.0
  %59 = vmatpush1.msra.mxu0 0.0
  %60 = vmatprep.subr.mxu0 0.0
  %61 = vmatpush1.msra.mxu0 0.0
  %62 = vmatprep.subr.mxu0 0.0
  %63 = vmatpush1.msra.mxu0 0.0
  %64 = vmatprep.subr.mxu0 0.0
  %65 = vmatpush1.msra.mxu0 0.0
  %66 = vmatprep.subr.mxu0 0.0
  %67 = vmatpush1.msra.mxu0 0.0
  %68 = vmatprep.subr.mxu0 0.0
  %69 = vmatpush1.msra.mxu0 0.0
  %70 = vmatprep.subr.mxu0 0.0
  %71 = vmatpush1.msra.mxu0 0.0
  %72 = vmatprep.subr.mxu0 0.0
  %73 = vmatpush1.msra.mxu0 0.0
  %74 = vmatprep.subr.mxu0 0.0
  %75 = vmatpush1.msra.mxu0 0.0
  %76 = vmatprep.subr.mxu0 0.0
  %77 = vmatpush1.msra.mxu0 0.0
  %78 = vmatprep.subr.mxu0 0.0
  %79 = vmatpush1.msra.mxu0 0.0
  %80 = vmatprep.subr.mxu0 0.0
  %81 = vmatpush1.msra.mxu0 0.0
  %82 = vmatprep.subr.mxu0 0.0
  %83 = vmatpush1.msra.mxu0 0.0
  %84 = vmatprep.subr.mxu0 0.0
  %85 = vmatpush1.msra.mxu0 0.0
  %86 = vmatprep.subr.mxu0 0.0
  %87 = vmatpush1.msra.mxu0 0.0
  %88 = vmatprep.subr.mxu0 0.0
  %89 = vmatpush1.msra.mxu0 0.0
  %90 = vmatprep.subr.mxu0 0.0
  %91 = vmatpush1.msra.mxu0 0.0
  %92 = vmatprep.subr.mxu0 0.0
  %93 = vmatpush1.msra.mxu0 0.0
  %94 = vmatprep.subr.mxu0 0.0
  %95 = vmatpush1.msra.mxu0 0.0
  %96 = vmatprep.subr.mxu0 0.0
  %97 = vmatpush1.msra.mxu0 0.0
  %98 = vmatprep.mubr.f32.mxu0 0.0
  %99 = vmatmul.mubr.f32.gmra.mrb[0].mxu0 %v32
  %v100 = vpop.f32.mrb[0].mxu0
  %v101 = vadd.f32 %v28, %v100
  %v102 = vpop.f32.mrb[0].mxu0
  %103 = vdwg.mxu0
  %v104 = vpack.c.bf16 %v101, %v101
  %v105 = vld [vmem:[%s3] sm:$0xff]
  %v106 = vld [vmem:[%s3 + $0x8] sm:$0xff]
  %v107 = vld [vmem:[%s3 + $0x10] sm:$0xff]
  %v108 = vld [vmem:[%s3 + $0x18] sm:$0xff]
  %v109 = vld [vmem:[%s4] sm:$0xff]
  %v111 = vlaneseq
  %v112 = vshrl.u32 %v111, 7
  %v113 = vsub.s32 0, %v112
  %v114 = vrot.slane %v109, %v113
  %v115 = vlaneseq
  %v116 = vshrl.u32 %v115, 7
  %v117 = vsub.s32 1, %v116
  %v118 = vrot.slane %v109, %v117
  %v119 = vlaneseq
  %v120 = vshrl.u32 %v119, 7
  %v121 = vsub.s32 2, %v120
  %v122 = vrot.slane %v109, %v121
  %v123 = vlaneseq
  %v124 = vshrl.u32 %v123, 7
  %v125 = vsub.s32 3, %v124
  %v126 = vrot.slane %v109, %v125
  %v127 = vlaneseq
  %v128 = vshrl.u32 %v127, 7
  %v129 = vsub.s32 4, %v128
  %v130 = vrot.slane %v109, %v129
  %v131 = vlaneseq
  %v132 = vshrl.u32 %v131, 7
  %v133 = vsub.s32 5, %v132
  %v134 = vrot.slane %v109, %v133
  %v135 = vlaneseq
  %v136 = vshrl.u32 %v135, 7
  %v137 = vsub.s32 6, %v136
  %v138 = vrot.slane %v109, %v137
  %v139 = vlaneseq
  %v140 = vshrl.u32 %v139, 7
  %v141 = vsub.s32 7, %v140
  %v142 = vrot.slane %v109, %v141
  %v155 = vunpack.c.l.b16 %v105
  %v156 = vunpack.c.h.b16 %v105
  %v157 = vunpack.c.l.b16 %v106
  %v158 = vunpack.c.h.b16 %v106
  %v159 = vunpack.c.l.b16 %v107
  %v160 = vunpack.c.h.b16 %v107
  %v161 = vunpack.c.l.b16 %v108
  %v162 = vunpack.c.h.b16 %v108
  %v163 = vpack.c.b16 %v155, %v155
  %v164 = vpack.c.b16 %v156, %v156
  %v165 = vpack.c.b16 %v157, %v157
  %v166 = vpack.c.b16 %v158, %v158
  %v167 = vpack.c.b16 %v159, %v159
  %v168 = vpack.c.b16 %v160, %v160
  %v169 = vpack.c.b16 %v161, %v161
  %v170 = vpack.c.b16 %v162, %v162
  %v172 = vsel %vm30, %v104, 0
  %vm174 = vcmask 1043456
  %v176 = vsel %vm174, %v163, 0
  %v179 = vsel %vm174, %v164, 0
  %v182 = vsel %vm174, %v165, 0
  %v185 = vsel %vm174, %v166, 0
  %v188 = vsel %vm174, %v167, 0
  %v191 = vsel %vm174, %v168, 0
  %v194 = vsel %vm174, %v169, 0
  %v197 = vsel %vm174, %v170, 0
  %199 = vmatprep.subr.bf16.mxu0 %v179
  %200 = vmatpush1.bf16.msra.mxu0 %v176
  %201 = vmatprep.subr.bf16.mxu0 0
  %202 = vmatpush1.bf16.msra.mxu0 0
  %203 = vmatprep.subr.bf16.mxu0 0
  %204 = vmatpush1.bf16.msra.mxu0 0
  %205 = vmatprep.subr.bf16.mxu0 0
  %206 = vmatpush1.bf16.msra.mxu0 0
  %207 = vmatprep.subr.bf16.mxu0 0
  %208 = vmatpush1.bf16.msra.mxu0 0
  %209 = vmatprep.subr.bf16.mxu0 0
  %210 = vmatpush1.bf16.msra.mxu0 0
  %211 = vmatprep.subr.bf16.mxu0 0
  %212 = vmatpush1.bf16.msra.mxu0 0
  %213 = vmatprep.subr.bf16.mxu0 0
  %214 = vmatpush1.bf16.msra.mxu0 0
  %215 = vmatprep.subr.bf16.mxu0 0
  %216 = vmatpush1.bf16.msra.mxu0 0
  %217 = vmatprep.subr.bf16.mxu0 0
  %218 = vmatpush1.bf16.msra.mxu0 0
  %219 = vmatprep.subr.bf16.mxu0 0
  %220 = vmatpush1.bf16.msra.mxu0 0
  %221 = vmatprep.subr.bf16.mxu0 0
  %222 = vmatpush1.bf16.msra.mxu0 0
  %223 = vmatprep.subr.bf16.mxu0 0
  %224 = vmatpush1.bf16.msra.mxu0 0
  %225 = vmatprep.subr.bf16.mxu0 0
  %226 = vmatpush1.bf16.msra.mxu0 0
  %227 = vmatprep.subr.bf16.mxu0 0
  %228 = vmatpush1.bf16.msra.mxu0 0
  %229 = vmatprep.subr.bf16.mxu0 0
  %230 = vmatpush1.bf16.msra.mxu0 0
  %231 = vmatprep.mubr.bf16.mxu0 0
  %232 = vmatmul.mubr.bf16.gmra.mrb[0].mxu0 %v172
  %v233 = vpop.f32.mrb[0].mxu0
  %v234 = vadd.f32 %v114, %v233
  %v235 = vpop.f32.mrb[0].mxu0
  %v236 = vadd.f32 %v118, %v235
  %v237 = vpop.f32.mrb[0].mxu0
  %v238 = vpop.f32.mrb[0].mxu0
  %239 = vdwg.mxu0
  %240 = vmatprep.subr.bf16.mxu0 %v185
  %241 = vmatpush1.bf16.msra.mxu0 %v182
  %242 = vmatprep.subr.bf16.mxu0 0
  %243 = vmatpush1.bf16.msra.mxu0 0
  %244 = vmatprep.subr.bf16.mxu0 0
  %245 = vmatpush1.bf16.msra.mxu0 0
  %246 = vmatprep.subr.bf16.mxu0 0
  %247 = vmatpush1.bf16.msra.mxu0 0
  %248 = vmatprep.subr.bf16.mxu0 0
  %249 = vmatpush1.bf16.msra.mxu0 0
  %250 = vmatprep.subr.bf16.mxu0 0
  %251 = vmatpush1.bf16.msra.mxu0 0
  %252 = vmatprep.subr.bf16.mxu0 0
  %253 = vmatpush1.bf16.msra.mxu0 0
  %254 = vmatprep.subr.bf16.mxu0 0
  %255 = vmatpush1.bf16.msra.mxu0 0
  %256 = vmatprep.subr.bf16.mxu0 0
  %257 = vmatpush1.bf16.msra.mxu0 0
  %258 = vmatprep.subr.bf16.mxu0 0
  %259 = vmatpush1.bf16.msra.mxu0 0
  %260 = vmatprep.subr.bf16.mxu0 0
  %261 = vmatpush1.bf16.msra.mxu0 0
  %262 = vmatprep.subr.bf16.mxu0 0
  %263 = vmatpush1.bf16.msra.mxu0 0
  %264 = vmatprep.subr.bf16.mxu0 0
  %265 = vmatpush1.bf16.msra.mxu0 0
  %266 = vmatprep.subr.bf16.mxu0 0
  %267 = vmatpush1.bf16.msra.mxu0 0
  %268 = vmatprep.subr.bf16.mxu0 0
  %269 = vmatpush1.bf16.msra.mxu0 0
  %270 = vmatprep.subr.bf16.mxu0 0
  %271 = vmatpush1.bf16.msra.mxu0 0
  %272 = vmatprep.mubr.bf16.mxu0 0
  %273 = vmatmul.mubr.bf16.gmra.mrb[0].mxu0 %v172
  %v274 = vpop.f32.mrb[0].mxu0
  %v275 = vadd.f32 %v122, %v274
  %v276 = vpop.f32.mrb[0].mxu0
  %v277 = vadd.f32 %v126, %v276
  %v278 = vpop.f32.mrb[0].mxu0
  %v279 = vpop.f32.mrb[0].mxu0
  %280 = vdwg.mxu0
  %281 = vmatprep.subr.bf16.mxu0 %v191
  %282 = vmatpush1.bf16.msra.mxu0 %v188
  %283 = vmatprep.subr.bf16.mxu0 0
  %284 = vmatpush1.bf16.msra.mxu0 0
  %285 = vmatprep.subr.bf16.mxu0 0
  %286 = vmatpush1.bf16.msra.mxu0 0
  %287 = vmatprep.subr.bf16.mxu0 0
  %288 = vmatpush1.bf16.msra.mxu0 0
  %289 = vmatprep.subr.bf16.mxu0 0
  %290 = vmatpush1.bf16.msra.mxu0 0
  %291 = vmatprep.subr.bf16.mxu0 0
  %292 = vmatpush1.bf16.msra.mxu0 0
  %293 = vmatprep.subr.bf16.mxu0 0
  %294 = vmatpush1.bf16.msra.mxu0 0
  %295 = vmatprep.subr.bf16.mxu0 0
  %296 = vmatpush1.bf16.msra.mxu0 0
  %297 = vmatprep.subr.bf16.mxu0 0
  %298 = vmatpush1.bf16.msra.mxu0 0
  %299 = vmatprep.subr.bf16.mxu0 0
  %300 = vmatpush1.bf16.msra.mxu0 0
  %301 = vmatprep.subr.bf16.mxu0 0
  %302 = vmatpush1.bf16.msra.mxu0 0
  %303 = vmatprep.subr.bf16.mxu0 0
  %304 = vmatpush1.bf16.msra.mxu0 0
  %305 = vmatprep.subr.bf16.mxu0 0
  %306 = vmatpush1.bf16.msra.mxu0 0
  %307 = vmatprep.subr.bf16.mxu0 0
  %308 = vmatpush1.bf16.msra.mxu0 0
  %309 = vmatprep.subr.bf16.mxu0 0
  %310 = vmatpush1.bf16.msra.mxu0 0
  %311 = vmatprep.subr.bf16.mxu0 0
  %312 = vmatpush1.bf16.msra.mxu0 0
  %313 = vmatprep.mubr.bf16.mxu0 0
  %314 = vmatmul.mubr.bf16.gmra.mrb[0].mxu0 %v172
  %v315 = vpop.f32.mrb[0].mxu0
  %v316 = vadd.f32 %v130, %v315
  %v317 = vpop.f32.mrb[0].mxu0
  %v318 = vadd.f32 %v134, %v317
  %v319 = vpop.f32.mrb[0].mxu0
  %v320 = vpop.f32.mrb[0].mxu0
  %321 = vdwg.mxu0
  %322 = vmatprep.subr.bf16.mxu0 %v197
  %323 = vmatpush1.bf16.msra.mxu0 %v194
  %324 = vmatprep.subr.bf16.mxu0 0
  %325 = vmatpush1.bf16.msra.mxu0 0
  %326 = vmatprep.subr.bf16.mxu0 0
  %327 = vmatpush1.bf16.msra.mxu0 0
  %328 = vmatprep.subr.bf16.mxu0 0
  %329 = vmatpush1.bf16.msra.mxu0 0
  %330 = vmatprep.subr.bf16.mxu0 0
  %331 = vmatpush1.bf16.msra.mxu0 0
  %332 = vmatprep.subr.bf16.mxu0 0
  %333 = vmatpush1.bf16.msra.mxu0 0
  %334 = vmatprep.subr.bf16.mxu0 0
  %335 = vmatpush1.bf16.msra.mxu0 0
  %336 = vmatprep.subr.bf16.mxu0 0
  %337 = vmatpush1.bf16.msra.mxu0 0
  %338 = vmatprep.subr.bf16.mxu0 0
  %339 = vmatpush1.bf16.msra.mxu0 0
  %340 = vmatprep.subr.bf16.mxu0 0
  %341 = vmatpush1.bf16.msra.mxu0 0
  %342 = vmatprep.subr.bf16.mxu0 0
  %343 = vmatpush1.bf16.msra.mxu0 0
  %344 = vmatprep.subr.bf16.mxu0 0
  %345 = vmatpush1.bf16.msra.mxu0 0
  %346 = vmatprep.subr.bf16.mxu0 0
  %347 = vmatpush1.bf16.msra.mxu0 0
  %348 = vmatprep.subr.bf16.mxu0 0
  %349 = vmatpush1.bf16.msra.mxu0 0
  %350 = vmatprep.subr.bf16.mxu0 0
  %351 = vmatpush1.bf16.msra.mxu0 0
  %352 = vmatprep.subr.bf16.mxu0 0
  %353 = vmatpush1.bf16.msra.mxu0 0
  %354 = vmatprep.mubr.bf16.mxu0 0
  %355 = vmatmul.mubr.bf16.gmra.mrb[0].mxu0 %v172
  %v356 = vpop.f32.mrb[0].mxu0
  %v357 = vadd.f32 %v138, %v356
  %v358 = vpop.f32.mrb[0].mxu0
  %v359 = vadd.f32 %v142, %v358
  %v360 = vpop.f32.mrb[0].mxu0
  %v361 = vpop.f32.mrb[0].mxu0
  %362 = vdwg.mxu0
  %v363 = vmax.f32 %v234, 0.0
  %v364 = vmax.f32 %v236, 0.0
  %v365 = vmax.f32 %v275, 0.0
  %v366 = vmax.f32 %v277, 0.0
  %v367 = vmax.f32 %v316, 0.0
  %v368 = vmax.f32 %v318, 0.0
  %v369 = vmax.f32 %v357, 0.0
  %v370 = vmax.f32 %v359, 0.0
  %v371 = vpack.c.bf16 %v363, %v363
  %v372 = vpack.c.bf16 %v364, %v364
  %v373 = vpack.c.bf16 %v365, %v365
  %v374 = vpack.c.bf16 %v366, %v366
  %v375 = vpack.c.bf16 %v367, %v367
  %v376 = vpack.c.bf16 %v368, %v368
  %v377 = vpack.c.bf16 %v369, %v369
  %v378 = vpack.c.bf16 %v370, %v370
  %v387 = vcombine.low %v371, %v372
  %v388 = vcombine.low %v373, %v374
  %v389 = vcombine.low %v375, %v376
  %v390 = vcombine.low %v377, %v378
  %v392 = vunpack.c.l.s4 1966171168
  %v393 = vunpack.c.0.s8 %v392
  %v394 = vlaneseq
  %v395 = vshrl.u32 %v394, 7
  %v396 = vsub.s32 %v393, %v395
  %v397 = vrot.slane %v387, %v396
  %v399 = vunpack.c.l.s4 1966171168
  %v400 = vunpack.c.0.s8 %v399
  %v401 = vlaneseq
  %v402 = vshrl.u32 %v401, 7
  %v403 = vsub.s32 %v400, %v402
  %v404 = vrot.slane %v388, %v403
  %v406 = vunpack.c.l.s4 1966171168
  %v407 = vunpack.c.0.s8 %v406
  %v408 = vlaneseq
  %v409 = vshrl.u32 %v408, 7
  %v410 = vsub.s32 %v407, %v409
  %v411 = vrot.slane %v389, %v410
  %v413 = vunpack.c.l.s4 1966171168
  %v414 = vunpack.c.0.s8 %v413
  %v415 = vlaneseq
  %v416 = vshrl.u32 %v415, 7
  %v417 = vsub.s32 %v414, %v416
  %v418 = vrot.slane %v390, %v417
  %v419 = vcombine.low %v397, %v404
  %v420 = vcombine.low %v411, %v418
  %v422 = vunpack.c.l.s4 1966171168
  %v423 = vunpack.c.0.s8 %v422
  %v424 = vlaneseq
  %v425 = vshrl.u32 %v424, 7
  %v426 = vsub.s32 %v423, %v425
  %v427 = vrot.slane %v419, %v426
  %v429 = vunpack.c.l.s4 1966171168
  %v430 = vunpack.c.0.s8 %v429
  %v431 = vlaneseq
  %v432 = vshrl.u32 %v431, 7
  %v433 = vsub.s32 %v430, %v432
  %v434 = vrot.slane %v420, %v433
  %v435 = vcombine.low %v427, %v434
  %437 = vst [vmem:[%s5] sm:$0xff] %v435
  // Predicated region
  $region22: #{vae_forward.15} parent=0 // pred_check
    _
  $region23: #{vae_forward.15} parent=0 // pred_check_branch
    %439 = sbr.rel (0) target = $region25
  $region24: #{vae_forward.15} parent=0 // pred_region
    _
  $region25: #{vae_forward.15} parent=0 // pred_fallthru
    _
  // Predicated region
  $region26: #{vae_forward.15} parent=0 // pred_check
    _
  $region27: #{vae_forward.15} parent=0 // pred_check_branch
    %441 = sbr.rel (0) target = $region29
  $region28: #{vae_forward.15} parent=0 // pred_region
    _
  $region29: #{vae_forward.15} parent=0 // pred_fallthru
    _

// kernel: tile.28
$region0: #{tile.28}
  #allocation0 [shape = 's32[1]{0}', space=sflag, size = 0x4, scoped, tag = 'scoped memory for tile.28']
  %s0 = inlined_call_operand.vmem [shape: f32[32], index: 0, kind: input, shape index: {}]
  %s1 = inlined_call_operand.vmem [shape: f32[4,32], index: 1, kind: output, shape index: {}]
  // Predicated region
  $region2: #{tile.28} parent=0 // pred_check
    _
  $region3: #{tile.28} parent=0 // pred_check_branch
    %3 = sbr.rel (0) target = $region5
  $region4: #{tile.28} parent=0 // pred_region
    _
  $region5: #{tile.28} parent=0 // pred_fallthru
    _
  %v4 = vld [vmem:[%s0] ss:$0 sm:$0xff]
  %5 = vst [vmem:[%s1] sm:$0xf] %v4

// kernel: tile.29
$region0: #{tile.29}
  %s0 = inlined_call_operand.vmem [shape: f32[4,32], index: 0, kind: input, shape index: {}]
  %s1 = inlined_call_operand.vmem [shape: f32[1,128], index: 1, kind: output, shape index: {}]
  $region1: #{tile.29} parent=0
    #allocation0 [shape = 'u8[4096]{0}', space=vmem, size = 0x1000, scoped, tag = 'scoped mem for output reshape']
    #allocation1 [shape = 'u8[4096]{0}', space=vmem, size = 0x1000, scoped, tag = 'scoped mem for input reshape']
    %s3 = sshllo.u32 0, 4
    %v4 = vld [vmem:[%s0] sm:%s3]
    %5 = vst [vmem:[#allocation1] sm:%s3] %v4
    %v6 = vld [vmem:[#allocation1] sm:$0x1]
    %vm7 = vcmask 261120
    %8 = vst.msk [vmem:[#allocation0] sm:$0x1] %vm7, %v6
    %s9 = scalar_lea.vmem [#allocation1], 3
    %v10 = vld [vmem:[%s9] sm:$0x1]
    %11 = vrot.lane.b32.xlu0 %v10, 96
    %v12 = vpop.permute.xlu0 %11
    %vm13 = vcmask 1048320
    %14 = vst.msk [vmem:[#allocation0] sm:$0x1] %vm13, %v12
    %s15 = scalar_lea.vmem [#allocation1], 2
    %v16 = vld [vmem:[%s15] sm:$0x1]
    %17 = vrot.lane.b32.xlu0 %v16, 64
    %v18 = vpop.permute.xlu0 %17
    %vm19 = vcmask 785920
    %20 = vst.msk [vmem:[#allocation0] sm:$0x1] %vm19, %v18
    %s21 = scalar_lea.vmem [#allocation1], 1
    %v22 = vld [vmem:[%s21] sm:$0x1]
    %23 = vrot.lane.b32.xlu0 %v22, 32
    %v24 = vpop.permute.xlu0 %23
    %vm25 = vcmask 523520
    %26 = vst.msk [vmem:[#allocation0] sm:$0x1] %vm25, %v24
    %s28 = sshllo.u32 0, 1
    %v30 = vld [vmem:[#allocation0] sm:%s28]
    %s31 = sshllo.u32 0, 1
    %32 = vst [vmem:[%s1] sm:%s31] %v30

// kernel: vae_forward.16
$region0: #{vae_forward.16}
  #allocation0 [shape = 'u32[]', space=smem, size = 0x4, offset = 0x4, fixed_abs, tag = 'smem constant byte address 0x4 - core index']
  #allocation1 [shape = 'u32[144,128]{1,0:T(1,128)}', space=vmem, size = 0x12000, scoped, tag = 'internal scratch']
  %s0 = inlined_call_operand.vmem [shape: bf16[32,576], index: 0, kind: input, shape index: {}]
  %s1 = inlined_call_operand.vmem [shape: bf16[576,128], index: 1, kind: input, shape index: {}]
  %s2 = inlined_call_operand.vmem [shape: f32[1,128], index: 2, kind: input, shape index: {}]
  %s3 = inlined_call_operand.vmem [shape: bf16[32,128], index: 3, kind: output, shape index: {}]
  %s4 = sld [smem:[#allocation0]]
  $region22: #{vae_forward.16} parent=0
    _
  %s6 = ssub.s32 1, %s4
  %s7 = scalar_select 0, %s6, %s4
  // Predicated region
  $region2: #{vae_forward.16} parent=0 // pred_check
    _
  $region3: #{vae_forward.16} parent=0 // pred_check_branch
    %9 = sbr.rel (0) target = $region5
  $region4: #{vae_forward.16} parent=0 // pred_region
    _
  $region5: #{vae_forward.16} parent=0 // pred_fallthru
    _
  // Predicated region
  $region6: #{vae_forward.16} parent=0 // pred_check
    _
  $region7: #{vae_forward.16} parent=0 // pred_check_branch
    %11 = sbr.rel (0) target = $region9
  $region8: #{vae_forward.16} parent=0 // pred_region
    _
  $region9: #{vae_forward.16} parent=0 // pred_fallthru
    _
  // Predicated region
  $region10: #{vae_forward.16} parent=0 // pred_check
    _
  $region11: #{vae_forward.16} parent=0 // pred_check_branch
    %13 = sbr.rel (0) target = $region13
  $region12: #{vae_forward.16} parent=0 // pred_region
    _
  $region13: #{vae_forward.16} parent=0 // pred_fallthru
    _
  %v15 = vld [vmem:[%s0] sm:$0xff]
  %v16 = vld [vmem:[%s0 + $0x8] sm:$0xff]
  %v17 = vld [vmem:[%s0 + $0x10] sm:$0xf]
  %v18 = vld [vmem:[%s0 + $0x14] sm:$0xff]
  %v19 = vld [vmem:[%s0 + $0x1c] sm:$0xff]
  %v20 = vld [vmem:[%s0 + $0x24] sm:$0xf]
  %v21 = vld [vmem:[%s0 + $0x28] sm:$0xff]
  %v22 = vld [vmem:[%s0 + $0x30] sm:$0xff]
  %v23 = vld [vmem:[%s0 + $0x38] sm:$0xf]
  %v24 = vld [vmem:[%s0 + $0x3c] sm:$0xff]
  %v25 = vld [vmem:[%s0 + $0x44] sm:$0xff]
  %v26 = vld [vmem:[%s0 + $0x4c] sm:$0xf]
  %v27 = vld [vmem:[%s1] sm:$0xf]
  %v28 = vld [vmem:[%s1 + $0x4] sm:$0xf]
  %v29 = vld [vmem:[%s1 + $0x8] sm:$0xf]
  %v30 = vld [vmem:[%s1 + $0xc] sm:$0xf]
  %v31 = vld [vmem:[%s1 + $0x10] sm:$0xf]
  %v32 = vld [vmem:[%s1 + $0x14] sm:$0xf]
  %v33 = vld [vmem:[%s1 + $0x18] sm:$0xf]
  %v34 = vld [vmem:[%s1 + $0x1c] sm:$0xf]
  %v35 = vld [vmem:[%s1 + $0x20] sm:$0xf]
  %v36 = vld [vmem:[%s1 + $0x24] sm:$0xf]
  %v37 = vld [vmem:[%s1 + $0x28] sm:$0xf]
  %v38 = vld [vmem:[%s1 + $0x2c] sm:$0xf]
  %v39 = vld [vmem:[%s1 + $0x30] sm:$0xf]
  %v40 = vld [vmem:[%s1 + $0x34] sm:$0xf]
  %v41 = vld [vmem:[%s1 + $0x38] sm:$0xf]
  %v42 = vld [vmem:[%s1 + $0x3c] sm:$0xf]
  %v43 = vld [vmem:[%s1 + $0x40] sm:$0xf]
  %v44 = vld [vmem:[%s1 + $0x44] sm:$0xf]
  %v45 = vld [vmem:[%s1 + $0x48] sm:$0xf]
  %v46 = vld [vmem:[%s1 + $0x4c] sm:$0xf]
  %v47 = vld [vmem:[%s1 + $0x50] sm:$0xf]
  %v48 = vld [vmem:[%s1 + $0x54] sm:$0xf]
  %v49 = vld [vmem:[%s1 + $0x58] sm:$0xf]
  %v50 = vld [vmem:[%s1 + $0x5c] sm:$0xf]
  %v51 = vld [vmem:[%s1 + $0x60] sm:$0xf]
  %v52 = vld [vmem:[%s1 + $0x64] sm:$0xf]
  %v53 = vld [vmem:[%s1 + $0x68] sm:$0xf]
  %v54 = vld [vmem:[%s1 + $0x6c] sm:$0xf]
  %v55 = vld [vmem:[%s1 + $0x70] sm:$0xf]
  %v56 = vld [vmem:[%s1 + $0x74] sm:$0xf]
  %v57 = vld [vmem:[%s1 + $0x78] sm:$0xf]
  %v58 = vld [vmem:[%s1 + $0x7c] sm:$0xf]
  %v59 = vld [vmem:[%s1 + $0x80] sm:$0xf]
  %v60 = vld [vmem:[%s1 + $0x84] sm:$0xf]
  %v61 = vld [vmem:[%s1 + $0x88] sm:$0xf]
  %v62 = vld [vmem:[%s1 + $0x8c] sm:$0xf]
  %v63 = vld [vmem:[%s1 + $0x90] sm:$0xf]
  %v64 = vld [vmem:[%s1 + $0x94] sm:$0xf]
  %v65 = vld [vmem:[%s1 + $0x98] sm:$0xf]
  %v66 = vld [vmem:[%s1 + $0x9c] sm:$0xf]
  %v67 = vld [vmem:[%s1 + $0xa0] sm:$0xf]
  %v68 = vld [vmem:[%s1 + $0xa4] sm:$0xf]
  %v69 = vld [vmem:[%s1 + $0xa8] sm:$0xf]
  %v70 = vld [vmem:[%s1 + $0xac] sm:$0xf]
  %v71 = vld [vmem:[%s1 + $0xb0] sm:$0xf]
  %v72 = vld [vmem:[%s1 + $0xb4] sm:$0xf]
  %v73 = vld [vmem:[%s1 + $0xb8] sm:$0xf]
  %v74 = vld [vmem:[%s1 + $0xbc] sm:$0xf]
  %v75 = vld [vmem:[%s1 + $0xc0] sm:$0xf]
  %v76 = vld [vmem:[%s1 + $0xc4] sm:$0xf]
  %v77 = vld [vmem:[%s1 + $0xc8] sm:$0xf]
  %v78 = vld [vmem:[%s1 + $0xcc] sm:$0xf]
  %v79 = vld [vmem:[%s1 + $0xd0] sm:$0xf]
  %v80 = vld [vmem:[%s1 + $0xd4] sm:$0xf]
  %v81 = vld [vmem:[%s1 + $0xd8] sm:$0xf]
  %v82 = vld [vmem:[%s1 + $0xdc] sm:$0xf]
  %v83 = vld [vmem:[%s1 + $0xe0] sm:$0xf]
  %v84 = vld [vmem:[%s1 + $0xe4] sm:$0xf]
  %v85 = vld [vmem:[%s1 + $0xe8] sm:$0xf]
  %v86 = vld [vmem:[%s1 + $0xec] sm:$0xf]
  %v87 = vld [vmem:[%s1 + $0xf0] sm:$0xf]
  %v88 = vld [vmem:[%s1 + $0xf4] sm:$0xf]
  %v89 = vld [vmem:[%s1 + $0xf8] sm:$0xf]
  %v90 = vld [vmem:[%s1 + $0xfc] sm:$0xf]
  %v91 = vld [vmem:[%s1 + $0x100] sm:$0xf]
  %v92 = vld [vmem:[%s1 + $0x104] sm:$0xf]
  %v93 = vld [vmem:[%s1 + $0x108] sm:$0xf]
  %v94 = vld [vmem:[%s1 + $0x10c] sm:$0xf]
  %v95 = vld [vmem:[%s1 + $0x110] sm:$0xf]
  %v96 = vld [vmem:[%s1 + $0x114] sm:$0xf]
  %v97 = vld [vmem:[%s1 + $0x118] sm:$0xf]
  %v98 = vld [vmem:[%s1 + $0x11c] sm:$0xf]
  %v99 = vld [vmem:[%s2] sm:$0x1]
  %v101 = vlaneseq
  %v102 = vshrl.u32 %v101, 7
  %v103 = vsub.s32 0, %v102
  %v104 = vrot.slane %v99, %v103
  %v118 = vunpack.c.l.b16 %v15
  %v119 = vunpack.c.h.b16 %v15
  %v120 = vunpack.c.l.b16 %v16
  %v121 = vunpack.c.h.b16 %v16
  %v122 = vunpack.c.l.b16 %v17
  %v123 = vunpack.c.l.b16 %v18
  %v124 = vunpack.c.h.b16 %v18
  %v125 = vunpack.c.l.b16 %v19
  %v126 = vunpack.c.h.b16 %v19
  %v127 = vunpack.c.l.b16 %v20
  %v128 = vunpack.c.l.b16 %v21
  %v129 = vunpack.c.h.b16 %v21
  %v130 = vunpack.c.l.b16 %v22
  %v131 = vunpack.c.h.b16 %v22
  %v132 = vunpack.c.l.b16 %v23
  %v133 = vunpack.c.l.b16 %v24
  %v134 = vunpack.c.h.b16 %v24
  %v135 = vunpack.c.l.b16 %v25
  %v136 = vunpack.c.h.b16 %v25
  %v137 = vunpack.c.l.b16 %v26
  %v138 = vpack.c.b16 %v123, %v118
  %v139 = vpack.c.b16 %v124, %v119
  %v140 = vpack.c.b16 %v125, %v120
  %v141 = vpack.c.b16 %v126, %v121
  %v142 = vpack.c.b16 %v127, %v122
  %v143 = vpack.c.b16 %v133, %v128
  %v144 = vpack.c.b16 %v134, %v129
  %v145 = vpack.c.b16 %v135, %v130
  %v146 = vpack.c.b16 %v136, %v131
  %v147 = vpack.c.b16 %v137, %v132
  %v228 = vunpack.c.l.b16 %v27
  %v229 = vunpack.c.l.b16 %v28
  %v230 = vunpack.c.l.b16 %v29
  %v231 = vunpack.c.l.b16 %v30
  %v232 = vunpack.c.l.b16 %v31
  %v233 = vunpack.c.l.b16 %v32
  %v234 = vunpack.c.l.b16 %v33
  %v235 = vunpack.c.l.b16 %v34
  %v236 = vunpack.c.l.b16 %v35
  %v237 = vunpack.c.l.b16 %v36
  %v238 = vunpack.c.l.b16 %v37
  %v239 = vunpack.c.l.b16 %v38
  %v240 = vunpack.c.l.b16 %v39
  %v241 = vunpack.c.l.b16 %v40
  %v242 = vunpack.c.l.b16 %v41
  %v243 = vunpack.c.l.b16 %v42
  %v244 = vunpack.c.l.b16 %v43
  %v245 = vunpack.c.l.b16 %v44
  %v246 = vunpack.c.l.b16 %v45
  %v247 = vunpack.c.l.b16 %v46
  %v248 = vunpack.c.l.b16 %v47
  %v249 = vunpack.c.l.b16 %v48
  %v250 = vunpack.c.l.b16 %v49
  %v251 = vunpack.c.l.b16 %v50
  %v252 = vunpack.c.l.b16 %v51
  %v253 = vunpack.c.l.b16 %v52
  %v254 = vunpack.c.l.b16 %v53
  %v255 = vunpack.c.l.b16 %v54
  %v256 = vunpack.c.l.b16 %v55
  %v257 = vunpack.c.l.b16 %v56
  %v258 = vunpack.c.l.b16 %v57
  %v259 = vunpack.c.l.b16 %v58
  %v260 = vunpack.c.l.b16 %v59
  %v261 = vunpack.c.l.b16 %v60
  %v262 = vunpack.c.l.b16 %v61
  %v263 = vunpack.c.l.b16 %v62
  %v264 = vunpack.c.l.b16 %v63
  %v265 = vunpack.c.l.b16 %v64
  %v266 = vunpack.c.l.b16 %v65
  %v267 = vunpack.c.l.b16 %v66
  %v268 = vunpack.c.l.b16 %v67
  %v269 = vunpack.c.l.b16 %v68
  %v270 = vunpack.c.l.b16 %v69
  %v271 = vunpack.c.l.b16 %v70
  %v272 = vunpack.c.l.b16 %v71
  %v273 = vunpack.c.l.b16 %v72
  %v274 = vunpack.c.l.b16 %v73
  %v275 = vunpack.c.l.b16 %v74
  %v276 = vunpack.c.l.b16 %v75
  %v277 = vunpack.c.l.b16 %v76
  %v278 = vunpack.c.l.b16 %v77
  %v279 = vunpack.c.l.b16 %v78
  %v280 = vunpack.c.l.b16 %v79
  %v281 = vunpack.c.l.b16 %v80
  %v282 = vunpack.c.l.b16 %v81
  %v283 = vunpack.c.l.b16 %v82
  %v284 = vunpack.c.l.b16 %v83
  %v285 = vunpack.c.l.b16 %v84
  %v286 = vunpack.c.l.b16 %v85
  %v287 = vunpack.c.l.b16 %v86
  %v288 = vunpack.c.l.b16 %v87
  %v289 = vunpack.c.l.b16 %v88
  %v290 = vunpack.c.l.b16 %v89
  %v291 = vunpack.c.l.b16 %v90
  %v292 = vunpack.c.l.b16 %v91
  %v293 = vunpack.c.l.b16 %v92
  %v294 = vunpack.c.l.b16 %v93
  %v295 = vunpack.c.l.b16 %v94
  %v296 = vunpack.c.l.b16 %v95
  %v297 = vunpack.c.l.b16 %v96
  %v298 = vunpack.c.l.b16 %v97
  %v299 = vunpack.c.l.b16 %v98
  %v300 = vpack.c.b16 %v229, %v228
  %v301 = vpack.c.b16 %v231, %v230
  %v302 = vpack.c.b16 %v233, %v232
  %v303 = vpack.c.b16 %v235, %v234
  %v304 = vpack.c.b16 %v237, %v236
  %v305 = vpack.c.b16 %v239, %v238
  %v306 = vpack.c.b16 %v241, %v240
  %v307 = vpack.c.b16 %v243, %v242
  %v308 = vpack.c.b16 %v245, %v244
  %v309 = vpack.c.b16 %v247, %v246
  %v310 = vpack.c.b16 %v249, %v248
  %v311 = vpack.c.b16 %v251, %v250
  %v312 = vpack.c.b16 %v253, %v252
  %v313 = vpack.c.b16 %v255, %v254
  %v314 = vpack.c.b16 %v257, %v256
  %v315 = vpack.c.b16 %v259, %v258
  %v316 = vpack.c.b16 %v261, %v260
  %v317 = vpack.c.b16 %v263, %v262
  %v318 = vpack.c.b16 %v265, %v264
  %v319 = vpack.c.b16 %v267, %v266
  %v320 = vpack.c.b16 %v269, %v268
  %v321 = vpack.c.b16 %v271, %v270
  %v322 = vpack.c.b16 %v273, %v272
  %v323 = vpack.c.b16 %v275, %v274
  %v324 = vpack.c.b16 %v277, %v276
  %v325 = vpack.c.b16 %v279, %v278
  %v326 = vpack.c.b16 %v281, %v280
  %v327 = vpack.c.b16 %v283, %v282
  %v328 = vpack.c.b16 %v285, %v284
  %v329 = vpack.c.b16 %v287, %v286
  %v330 = vpack.c.b16 %v289, %v288
  %v331 = vpack.c.b16 %v291, %v290
  %v332 = vpack.c.b16 %v293, %v292
  %v333 = vpack.c.b16 %v295, %v294
  %v334 = vpack.c.b16 %v297, %v296
  %v335 = vpack.c.b16 %v299, %v298
  %vm372 = vcmask 523264
  %v374 = vsel %vm372, %v142, 0
  %v377 = vsel %vm372, %v147, 0
  %379 = vmatprep.subr.bf16.mxu0 0
  %380 = vmatpush1.bf16.msra.mxu0 %v300
  %381 = vmatprep.subr.bf16.mxu0 0
  %382 = vmatpush1.bf16.msra.mxu0 %v301
  %383 = vmatprep.subr.bf16.mxu0 0
  %384 = vmatpush1.bf16.msra.mxu0 %v302
  %385 = vmatprep.subr.bf16.mxu0 0
  %386 = vmatpush1.bf16.msra.mxu0 %v303
  %387 = vmatprep.subr.bf16.mxu0 0
  %388 = vmatpush1.bf16.msra.mxu0 %v304
  %389 = vmatprep.subr.bf16.mxu0 0
  %390 = vmatpush1.bf16.msra.mxu0 %v305
  %391 = vmatprep.subr.bf16.mxu0 0
  %392 = vmatpush1.bf16.msra.mxu0 %v306
  %393 = vmatprep.subr.bf16.mxu0 0
  %394 = vmatpush1.bf16.msra.mxu0 %v307
  %395 = vmatprep.subr.bf16.mxu0 0
  %396 = vmatpush1.bf16.msra.mxu0 %v308
  %397 = vmatprep.subr.bf16.mxu0 0
  %398 = vmatpush1.bf16.msra.mxu0 %v309
  %399 = vmatprep.subr.bf16.mxu0 0
  %400 = vmatpush1.bf16.msra.mxu0 %v310
  %401 = vmatprep.subr.bf16.mxu0 0
  %402 = vmatpush1.bf16.msra.mxu0 %v311
  %403 = vmatprep.subr.bf16.mxu0 0
  %404 = vmatpush1.bf16.msra.mxu0 %v312
  %405 = vmatprep.subr.bf16.mxu0 0
  %406 = vmatpush1.bf16.msra.mxu0 %v313
  %407 = vmatprep.subr.bf16.mxu0 0
  %408 = vmatpush1.bf16.msra.mxu0 %v314
  %409 = vmatprep.subr.bf16.mxu0 0
  %410 = vmatpush1.bf16.msra.mxu0 %v315
  %411 = vmatprep.mubr.bf16.mxu0 %v139
  %412 = vmatmul.mubr.bf16.gmra.mrb[0].mxu0 %v138
  %v413 = vpop.f32.mrb[0].mxu0
  %v414 = vadd.f32 %v104, %v413
  %v415 = vpop.f32.mrb[0].mxu0
  %v416 = vpop.f32.mrb[0].mxu0
  %v417 = vadd.f32 %v104, %v416
  %v418 = vpop.f32.mrb[0].mxu0
  %419 = vmatprep.mubr.bf16.mxu0 %v144
  %420 = vmatmul.mubr.bf16.gmra.mrb[0].mxu0 %v143
  %v421 = vpop.f32.mrb[0].mxu0
  %v422 = vadd.f32 %v104, %v421
  %v423 = vpop.f32.mrb[0].mxu0
  %v424 = vpop.f32.mrb[0].mxu0
  %v425 = vadd.f32 %v104, %v424
  %v426 = vpop.f32.mrb[0].mxu0
  %427 = vdwg.mxu0
  %428 = vmatprep.subr.bf16.mxu0 0
  %429 = vmatpush1.bf16.msra.mxu0 %v316
  %430 = vmatprep.subr.bf16.mxu0 0
  %431 = vmatpush1.bf16.msra.mxu0 %v317
  %432 = vmatprep.subr.bf16.mxu0 0
  %433 = vmatpush1.bf16.msra.mxu0 %v318
  %434 = vmatprep.subr.bf16.mxu0 0
  %435 = vmatpush1.bf16.msra.mxu0 %v319
  %436 = vmatprep.subr.bf16.mxu0 0
  %437 = vmatpush1.bf16.msra.mxu0 %v320
  %438 = vmatprep.subr.bf16.mxu0 0
  %439 = vmatpush1.bf16.msra.mxu0 %v321
  %440 = vmatprep.subr.bf16.mxu0 0
  %441 = vmatpush1.bf16.msra.mxu0 %v322
  %442 = vmatprep.subr.bf16.mxu0 0
  %443 = vmatpush1.bf16.msra.mxu0 %v323
  %444 = vmatprep.subr.bf16.mxu0 0
  %445 = vmatpush1.bf16.msra.mxu0 %v324
  %446 = vmatprep.subr.bf16.mxu0 0
  %447 = vmatpush1.bf16.msra.mxu0 %v325
  %448 = vmatprep.subr.bf16.mxu0 0
  %449 = vmatpush1.bf16.msra.mxu0 %v326
  %450 = vmatprep.subr.bf16.mxu0 0
  %451 = vmatpush1.bf16.msra.mxu0 %v327
  %452 = vmatprep.subr.bf16.mxu0 0
  %453 = vmatpush1.bf16.msra.mxu0 %v328
  %454 = vmatprep.subr.bf16.mxu0 0
  %455 = vmatpush1.bf16.msra.mxu0 %v329
  %456 = vmatprep.subr.bf16.mxu0 0
  %457 = vmatpush1.bf16.msra.mxu0 %v330
  %458 = vmatprep.subr.bf16.mxu0 0
  %459 = vmatpush1.bf16.msra.mxu0 %v331
  %460 = vmatprep.mubr.bf16.mxu0 %v141
  %461 = vmatmul.mubr.bf16.gmra.mrb[0].mxu0 %v140
  %v462 = vpop.f32.mrb[0].mxu0
  %v463 = vadd.f32 %v414, %v462
  %v464 = vpop.f32.mrb[0].mxu0
  %v465 = vpop.f32.mrb[0].mxu0
  %v466 = vadd.f32 %v417, %v465
  %v467 = vpop.f32.mrb[0].mxu0
  %468 = vmatprep.mubr.bf16.mxu0 %v146
  %469 = vmatmul.mubr.bf16.gmra.mrb[0].mxu0 %v145
  %v470 = vpop.f32.mrb[0].mxu0
  %v471 = vadd.f32 %v422, %v470
  %v472 = vpop.f32.mrb[0].mxu0
  %v473 = vpop.f32.mrb[0].mxu0
  %v474 = vadd.f32 %v425, %v473
  %v475 = vpop.f32.mrb[0].mxu0
  %476 = vdwg.mxu0
  %477 = vmatprep.subr.bf16.mxu0 0
  %478 = vmatpush1.bf16.msra.mxu0 %v332
  %479 = vmatprep.subr.bf16.mxu0 0
  %480 = vmatpush1.bf16.msra.mxu0 %v333
  %481 = vmatprep.subr.bf16.mxu0 0
  %482 = vmatpush1.bf16.msra.mxu0 %v334
  %483 = vmatprep.subr.bf16.mxu0 0
  %484 = vmatpush1.bf16.msra.mxu0 %v335
  %485 = vmatprep.subr.bf16.mxu0 0
  %486 = vmatpush1.bf16.msra.mxu0 0
  %487 = vmatprep.subr.bf16.mxu0 0
  %488 = vmatpush1.bf16.msra.mxu0 0
  %489 = vmatprep.subr.bf16.mxu0 0
  %490 = vmatpush1.bf16.msra.mxu0 0
  %491 = vmatprep.subr.bf16.mxu0 0
  %492 = vmatpush1.bf16.msra.mxu0 0
  %493 = vmatprep.subr.bf16.mxu0 0
  %494 = vmatpush1.bf16.msra.mxu0 0
  %495 = vmatprep.subr.bf16.mxu0 0
  %496 = vmatpush1.bf16.msra.mxu0 0
  %497 = vmatprep.subr.bf16.mxu0 0
  %498 = vmatpush1.bf16.msra.mxu0 0
  %499 = vmatprep.subr.bf16.mxu0 0
  %500 = vmatpush1.bf16.msra.mxu0 0
  %501 = vmatprep.subr.bf16.mxu0 0
  %502 = vmatpush1.bf16.msra.mxu0 0
  %503 = vmatprep.subr.bf16.mxu0 0
  %504 = vmatpush1.bf16.msra.mxu0 0
  %505 = vmatprep.subr.bf16.mxu0 0
  %506 = vmatpush1.bf16.msra.mxu0 0
  %507 = vmatprep.subr.bf16.mxu0 0
  %508 = vmatpush1.bf16.msra.mxu0 0
  %509 = vmatprep.mubr.bf16.mxu0 0
  %510 = vmatmul.mubr.bf16.gmra.mrb[0].mxu0 %v374
  %v511 = vpop.f32.mrb[0].mxu0
  %v512 = vadd.f32 %v463, %v511
  %v513 = vpop.f32.mrb[0].mxu0
  %v514 = vpop.f32.mrb[0].mxu0
  %v515 = vadd.f32 %v466, %v514
  %v516 = vpop.f32.mrb[0].mxu0
  %517 = vmatprep.mubr.bf16.mxu0 0
  %518 = vmatmul.mubr.bf16.gmra.mrb[0].mxu0 %v377
  %v519 = vpop.f32.mrb[0].mxu0
  %v520 = vadd.f32 %v471, %v519
  %v521 = vpop.f32.mrb[0].mxu0
  %v522 = vpop.f32.mrb[0].mxu0
  %v523 = vadd.f32 %v474, %v522
  %v524 = vpop.f32.mrb[0].mxu0
  %525 = vdwg.mxu0
  %v526 = vmax.f32 %v512, 0.0
  %v527 = vmax.f32 %v515, 0.0
  %v528 = vmax.f32 %v520, 0.0
  %v529 = vmax.f32 %v523, 0.0
  %v530 = vpack.c.bf16 %v527, %v526
  %v531 = vpack.c.bf16 %v529, %v528
  %v534 = vunpack.c.l.b16 %v530
  %v535 = vunpack.c.h.b16 %v530
  %v536 = vunpack.c.l.b16 %v531
  %v537 = vunpack.c.h.b16 %v531
  %v538 = vpack.c.b16 %v534, %v534
  %v539 = vpack.c.b16 %v535, %v535
  %v540 = vpack.c.b16 %v536, %v536
  %v541 = vpack.c.b16 %v537, %v537
  %546 = vst [vmem:[%s3] sm:$0xf] %v538
  %547 = vst [vmem:[%s3 + $0x4] sm:$0xf] %v539
  %548 = vst [vmem:[%s3 + $0x8] sm:$0xf] %v540
  %549 = vst [vmem:[%s3 + $0xc] sm:$0xf] %v541
  // Predicated region
  $region14: #{vae_forward.16} parent=0 // pred_check
    _
  $region15: #{vae_forward.16} parent=0 // pred_check_branch
    %551 = sbr.rel (0) target = $region17
  $region16: #{vae_forward.16} parent=0 // pred_region
    _
  $region17: #{vae_forward.16} parent=0 // pred_fallthru
    _
  // Predicated region
  $region18: #{vae_forward.16} parent=0 // pred_check
    _
  $region19: #{vae_forward.16} parent=0 // pred_check_branch
    %553 = sbr.rel (0) target = $region21
  $region20: #{vae_forward.16} parent=0 // pred_region
    _
  $region21: #{vae_forward.16} parent=0 // pred_fallthru
    _

// kernel: tile.33
$region0: #{tile.33}
  #allocation0 [shape = 's32[1]{0}', space=sflag, size = 0x4, scoped, tag = 'scoped memory for tile.33']
  %s0 = inlined_call_operand.vmem [shape: f32[16], index: 0, kind: input, shape index: {}]
  %s1 = inlined_call_operand.vmem [shape: f32[4,16], index: 1, kind: output, shape index: {}]
  // Predicated region
  $region2: #{tile.33} parent=0 // pred_check
    _
  $region3: #{tile.33} parent=0 // pred_check_branch
    %3 = sbr.rel (0) target = $region5
  $region4: #{tile.33} parent=0 // pred_region
    _
  $region5: #{tile.33} parent=0 // pred_fallthru
    _
  %v4 = vld [vmem:[%s0] ss:$0 sm:$0xff]
  %5 = vst [vmem:[%s1] sm:$0xf] %v4

// kernel: tile.34
$region0: #{tile.34}
  %s0 = inlined_call_operand.vmem [shape: f32[4,16], index: 0, kind: input, shape index: {}]
  %s1 = inlined_call_operand.vmem [shape: f32[1,64], index: 1, kind: output, shape index: {}]
  $region1: #{tile.34} parent=0
    #allocation0 [shape = 'u8[4096]{0}', space=vmem, size = 0x1000, scoped, tag = 'scoped mem for output reshape']
    #allocation1 [shape = 'u8[4096]{0}', space=vmem, size = 0x1000, scoped, tag = 'scoped mem for input reshape']
    %s3 = sshllo.u32 0, 4
    %v4 = vld [vmem:[%s0] sm:%s3]
    %5 = vst [vmem:[#allocation1] sm:%s3] %v4
    %v6 = vld [vmem:[#allocation1] sm:$0x1]
    %vm7 = vcmask 130048
    %8 = vst.msk [vmem:[#allocation0] sm:$0x1] %vm7, %v6
    %s9 = scalar_lea.vmem [#allocation1], 3
    %v10 = vld [vmem:[%s9] sm:$0x1]
    %11 = vrot.lane.b32.xlu0 %v10, 48
    %v12 = vpop.permute.xlu0 %11
    %vm13 = vcmask 523648
    %14 = vst.msk [vmem:[#allocation0] sm:$0x1] %vm13, %v12
    %s15 = scalar_lea.vmem [#allocation1], 2
    %v16 = vld [vmem:[%s15] sm:$0x1]
    %17 = vrot.lane.b32.xlu0 %v16, 32
    %v18 = vpop.permute.xlu0 %17
    %vm19 = vcmask 392448
    %20 = vst.msk [vmem:[#allocation0] sm:$0x1] %vm19, %v18
    %s21 = scalar_lea.vmem [#allocation1], 1
    %v22 = vld [vmem:[%s21] sm:$0x1]
    %23 = vrot.lane.b32.xlu0 %v22, 16
    %v24 = vpop.permute.xlu0 %23
    %vm25 = vcmask 261248
    %26 = vst.msk [vmem:[#allocation0] sm:$0x1] %vm25, %v24
    %s28 = sshllo.u32 0, 1
    %v30 = vld [vmem:[#allocation0] sm:%s28]
    %s31 = sshllo.u32 0, 1
    %32 = vst [vmem:[%s1] sm:%s31] %v30

// kernel: vae_forward.17
$region0: #{vae_forward.17}
  #allocation0 [shape = 'u32[]', space=smem, size = 0x4, offset = 0x4, fixed_abs, tag = 'smem constant byte address 0x4 - core index']
  #allocation1 [shape = 'u32[144,128]{1,0:T(1,128)}', space=vmem, size = 0x12000, scoped, tag = 'internal scratch']
  %s0 = inlined_call_operand.vmem [shape: bf16[128,288], index: 0, kind: input, shape index: {}]
  %s1 = inlined_call_operand.vmem [shape: bf16[288,64], index: 1, kind: input, shape index: {}]
  %s2 = inlined_call_operand.vmem [shape: f32[1,64], index: 2, kind: input, shape index: {}]
  %s3 = inlined_call_operand.vmem [shape: bf16[128,64], index: 3, kind: output, shape index: {}]
  %s4 = sld [smem:[#allocation0]]
  $region22: #{vae_forward.17} parent=0
    _
  %s6 = ssub.s32 1, %s4
  %s7 = scalar_select 0, %s6, %s4
  // Predicated region
  $region2: #{vae_forward.17} parent=0 // pred_check
    _
  $region3: #{vae_forward.17} parent=0 // pred_check_branch
    %9 = sbr.rel (0) target = $region5
  $region4: #{vae_forward.17} parent=0 // pred_region
    _
  $region5: #{vae_forward.17} parent=0 // pred_fallthru
    _
  // Predicated region
  $region6: #{vae_forward.17} parent=0 // pred_check
    _
  $region7: #{vae_forward.17} parent=0 // pred_check_branch
    %11 = sbr.rel (0) target = $region9
  $region8: #{vae_forward.17} parent=0 // pred_region
    _
  $region9: #{vae_forward.17} parent=0 // pred_fallthru
    _
  // Predicated region
  $region10: #{vae_forward.17} parent=0 // pred_check
    _
  $region11: #{vae_forward.17} parent=0 // pred_check_branch
    %13 = sbr.rel (0) target = $region13
  $region12: #{vae_forward.17} parent=0 // pred_region
    _
  $region13: #{vae_forward.17} parent=0 // pred_fallthru
    _
  %v15 = vld [vmem:[%s0] sm:$0xff]
  %v16 = vld [vmem:[%s0 + $0x8] sm:$0xf]
  %v17 = vld [vmem:[%s0 + $0xc] sm:$0xff]
  %v18 = vld [vmem:[%s0 + $0x14] sm:$0xf]
  %v19 = vld [vmem:[%s0 + $0x18] sm:$0xff]
  %v20 = vld [vmem:[%s0 + $0x20] sm:$0xf]
  %v21 = vld [vmem:[%s0 + $0x24] sm:$0xff]
  %v22 = vld [vmem:[%s0 + $0x2c] sm:$0xf]
  %v23 = vld [vmem:[%s0 + $0x30] sm:$0xff]
  %v24 = vld [vmem:[%s0 + $0x38] sm:$0xf]
  %v25 = vld [vmem:[%s0 + $0x3c] sm:$0xff]
  %v26 = vld [vmem:[%s0 + $0x44] sm:$0xf]
  %v27 = vld [vmem:[%s0 + $0x48] sm:$0xff]
  %v28 = vld [vmem:[%s0 + $0x50] sm:$0xf]
  %v29 = vld [vmem:[%s0 + $0x54] sm:$0xff]
  %v30 = vld [vmem:[%s0 + $0x5c] sm:$0xf]
  %v31 = vld [vmem:[%s0 + $0x60] sm:$0xff]
  %v32 = vld [vmem:[%s0 + $0x68] sm:$0xf]
  %v33 = vld [vmem:[%s0 + $0x6c] sm:$0xff]
  %v34 = vld [vmem:[%s0 + $0x74] sm:$0xf]
  %v35 = vld [vmem:[%s0 + $0x78] sm:$0xff]
  %v36 = vld [vmem:[%s0 + $0x80] sm:$0xf]
  %v37 = vld [vmem:[%s0 + $0x84] sm:$0xff]
  %v38 = vld [vmem:[%s0 + $0x8c] sm:$0xf]
  %v39 = vld [vmem:[%s0 + $0x90] sm:$0xff]
  %v40 = vld [vmem:[%s0 + $0x98] sm:$0xf]
  %v41 = vld [vmem:[%s0 + $0x9c] sm:$0xff]
  %v42 = vld [vmem:[%s0 + $0xa4] sm:$0xf]
  %v43 = vld [vmem:[%s0 + $0xa8] sm:$0xff]
  %v44 = vld [vmem:[%s0 + $0xb0] sm:$0xf]
  %v45 = vld [vmem:[%s0 + $0xb4] sm:$0xff]
  %v46 = vld [vmem:[%s0 + $0xbc] sm:$0xf]
  %v47 = vld [vmem:[%s1] sm:$0xf]
  %v48 = vld [vmem:[%s1 + $0x4] sm:$0xf]
  %v49 = vld [vmem:[%s1 + $0x8] sm:$0xf]
  %v50 = vld [vmem:[%s1 + $0xc] sm:$0xf]
  %v51 = vld [vmem:[%s1 + $0x10] sm:$0xf]
  %v52 = vld [vmem:[%s1 + $0x14] sm:$0xf]
  %v53 = vld [vmem:[%s1 + $0x18] sm:$0xf]
  %v54 = vld [vmem:[%s1 + $0x1c] sm:$0xf]
  %v55 = vld [vmem:[%s1 + $0x20] sm:$0xf]
  %v56 = vld [vmem:[%s1 + $0x24] sm:$0xf]
  %v57 = vld [vmem:[%s1 + $0x28] sm:$0xf]
  %v58 = vld [vmem:[%s1 + $0x2c] sm:$0xf]
  %v59 = vld [vmem:[%s1 + $0x30] sm:$0xf]
  %v60 = vld [vmem:[%s1 + $0x34] sm:$0xf]
  %v61 = vld [vmem:[%s1 + $0x38] sm:$0xf]
  %v62 = vld [vmem:[%s1 + $0x3c] sm:$0xf]
  %v63 = vld [vmem:[%s1 + $0x40] sm:$0xf]
  %v64 = vld [vmem:[%s1 + $0x44] sm:$0xf]
  %v65 = vld [vmem:[%s1 + $0x48] sm:$0xf]
  %v66 = vld [vmem:[%s1 + $0x4c] sm:$0xf]
  %v67 = vld [vmem:[%s1 + $0x50] sm:$0xf]
  %v68 = vld [vmem:[%s1 + $0x54] sm:$0xf]
  %v69 = vld [vmem:[%s1 + $0x58] sm:$0xf]
  %v70 = vld [vmem:[%s1 + $0x5c] sm:$0xf]
  %v71 = vld [vmem:[%s1 + $0x60] sm:$0xf]
  %v72 = vld [vmem:[%s1 + $0x64] sm:$0xf]
  %v73 = vld [vmem:[%s1 + $0x68] sm:$0xf]
  %v74 = vld [vmem:[%s1 + $0x6c] sm:$0xf]
  %v75 = vld [vmem:[%s1 + $0x70] sm:$0xf]
  %v76 = vld [vmem:[%s1 + $0x74] sm:$0xf]
  %v77 = vld [vmem:[%s1 + $0x78] sm:$0xf]
  %v78 = vld [vmem:[%s1 + $0x7c] sm:$0xf]
  %v79 = vld [vmem:[%s1 + $0x80] sm:$0xf]
  %v80 = vld [vmem:[%s1 + $0x84] sm:$0xf]
  %v81 = vld [vmem:[%s1 + $0x88] sm:$0xf]
  %v82 = vld [vmem:[%s1 + $0x8c] sm:$0xf]
  %v83 = vld [vmem:[%s2] sm:$0x1]
  %v85 = vlaneseq
  %v86 = vshrl.u32 %v85, 7
  %v87 = vsub.s32 0, %v86
  %v88 = vrot.slane %v83, %v87
  %v122 = vunpack.c.l.b16 %v15
  %v123 = vunpack.c.h.b16 %v15
  %v124 = vunpack.c.l.b16 %v16
  %v125 = vunpack.c.l.b16 %v17
  %v126 = vunpack.c.h.b16 %v17
  %v127 = vunpack.c.l.b16 %v18
  %v128 = vunpack.c.l.b16 %v19
  %v129 = vunpack.c.h.b16 %v19
  %v130 = vunpack.c.l.b16 %v20
  %v131 = vunpack.c.l.b16 %v21
  %v132 = vunpack.c.h.b16 %v21
  %v133 = vunpack.c.l.b16 %v22
  %v134 = vunpack.c.l.b16 %v23
  %v135 = vunpack.c.h.b16 %v23
  %v136 = vunpack.c.l.b16 %v24
  %v137 = vunpack.c.l.b16 %v25
  %v138 = vunpack.c.h.b16 %v25
  %v139 = vunpack.c.l.b16 %v26
  %v140 = vunpack.c.l.b16 %v27
  %v141 = vunpack.c.h.b16 %v27
  %v142 = vunpack.c.l.b16 %v28
  %v143 = vunpack.c.l.b16 %v29
  %v144 = vunpack.c.h.b16 %v29
  %v145 = vunpack.c.l.b16 %v30
  %v146 = vunpack.c.l.b16 %v31
  %v147 = vunpack.c.h.b16 %v31
  %v148 = vunpack.c.l.b16 %v32
  %v149 = vunpack.c.l.b16 %v33
  %v150 = vunpack.c.h.b16 %v33
  %v151 = vunpack.c.l.b16 %v34
  %v152 = vunpack.c.l.b16 %v35
  %v153 = vunpack.c.h.b16 %v35
  %v154 = vunpack.c.l.b16 %v36
  %v155 = vunpack.c.l.b16 %v37
  %v156 = vunpack.c.h.b16 %v37
  %v157 = vunpack.c.l.b16 %v38
  %v158 = vunpack.c.l.b16 %v39
  %v159 = vunpack.c.h.b16 %v39
  %v160 = vunpack.c.l.b16 %v40
  %v161 = vunpack.c.l.b16 %v41
  %v162 = vunpack.c.h.b16 %v41
  %v163 = vunpack.c.l.b16 %v42
  %v164 = vunpack.c.l.b16 %v43
  %v165 = vunpack.c.h.b16 %v43
  %v166 = vunpack.c.l.b16 %v44
  %v167 = vunpack.c.l.b16 %v45
  %v168 = vunpack.c.h.b16 %v45
  %v169 = vunpack.c.l.b16 %v46
  %v170 = vpack.c.b16 %v125, %v122
  %v171 = vpack.c.b16 %v126, %v123
  %v172 = vpack.c.b16 %v127, %v124
  %v173 = vpack.c.b16 %v131, %v128
  %v174 = vpack.c.b16 %v132, %v129
  %v175 = vpack.c.b16 %v133, %v130
  %v176 = vpack.c.b16 %v137, %v134
  %v177 = vpack.c.b16 %v138, %v135
  %v178 = vpack.c.b16 %v139, %v136
  %v179 = vpack.c.b16 %v143, %v140
  %v180 = vpack.c.b16 %v144, %v141
  %v181 = vpack.c.b16 %v145, %v142
  %v182 = vpack.c.b16 %v149, %v146
  %v183 = vpack.c.b16 %v150, %v147
  %v184 = vpack.c.b16 %v151, %v148
  %v185 = vpack.c.b16 %v155, %v152
  %v186 = vpack.c.b16 %v156, %v153
  %v187 = vpack.c.b16 %v157, %v154
  %v188 = vpack.c.b16 %v161, %v158
  %v189 = vpack.c.b16 %v162, %v159
  %v190 = vpack.c.b16 %v163, %v160
  %v191 = vpack.c.b16 %v167, %v164
  %v192 = vpack.c.b16 %v168, %v165
  %v193 = vpack.c.b16 %v169, %v166
  %v246 = vunpack.c.l.b16 %v47
  %v247 = vunpack.c.l.b16 %v48
  %v248 = vunpack.c.l.b16 %v49
  %v249 = vunpack.c.l.b16 %v50
  %v250 = vunpack.c.l.b16 %v51
  %v251 = vunpack.c.l.b16 %v52
  %v252 = vunpack.c.l.b16 %v53
  %v253 = vunpack.c.l.b16 %v54
  %v254 = vunpack.c.l.b16 %v55
  %v255 = vunpack.c.l.b16 %v56
  %v256 = vunpack.c.l.b16 %v57
  %v257 = vunpack.c.l.b16 %v58
  %v258 = vunpack.c.l.b16 %v59
  %v259 = vunpack.c.l.b16 %v60
  %v260 = vunpack.c.l.b16 %v61
  %v261 = vunpack.c.l.b16 %v62
  %v262 = vunpack.c.l.b16 %v63
  %v263 = vunpack.c.l.b16 %v64
  %v264 = vunpack.c.l.b16 %v65
  %v265 = vunpack.c.l.b16 %v66
  %v266 = vunpack.c.l.b16 %v67
  %v267 = vunpack.c.l.b16 %v68
  %v268 = vunpack.c.l.b16 %v69
  %v269 = vunpack.c.l.b16 %v70
  %v270 = vunpack.c.l.b16 %v71
  %v271 = vunpack.c.l.b16 %v72
  %v272 = vunpack.c.l.b16 %v73
  %v273 = vunpack.c.l.b16 %v74
  %v274 = vunpack.c.l.b16 %v75
  %v275 = vunpack.c.l.b16 %v76
  %v276 = vunpack.c.l.b16 %v77
  %v277 = vunpack.c.l.b16 %v78
  %v278 = vunpack.c.l.b16 %v79
  %v279 = vunpack.c.l.b16 %v80
  %v280 = vunpack.c.l.b16 %v81
  %v281 = vunpack.c.l.b16 %v82
  %v282 = vpack.c.b16 %v247, %v246
  %v283 = vpack.c.b16 %v249, %v248
  %v284 = vpack.c.b16 %v251, %v250
  %v285 = vpack.c.b16 %v253, %v252
  %v286 = vpack.c.b16 %v255, %v254
  %v287 = vpack.c.b16 %v257, %v256
  %v288 = vpack.c.b16 %v259, %v258
  %v289 = vpack.c.b16 %v261, %v260
  %v290 = vpack.c.b16 %v263, %v262
  %v291 = vpack.c.b16 %v265, %v264
  %v292 = vpack.c.b16 %v267, %v266
  %v293 = vpack.c.b16 %v269, %v268
  %v294 = vpack.c.b16 %v271, %v270
  %v295 = vpack.c.b16 %v273, %v272
  %v296 = vpack.c.b16 %v275, %v274
  %v297 = vpack.c.b16 %v277, %v276
  %v298 = vpack.c.b16 %v279, %v278
  %v299 = vpack.c.b16 %v281, %v280
  %vm318 = vcmask 261120
  %v320 = vsel %vm318, %v172, 0
  %v323 = vsel %vm318, %v175, 0
  %v326 = vsel %vm318, %v178, 0
  %v329 = vsel %vm318, %v181, 0
  %v332 = vsel %vm318, %v184, 0
  %v335 = vsel %vm318, %v187, 0
  %v338 = vsel %vm318, %v190, 0
  %v341 = vsel %vm318, %v193, 0
  %343 = vmatprep.subr.bf16.mxu0 0
  %344 = vmatpush1.bf16.msra.mxu0 %v282
  %345 = vmatprep.subr.bf16.mxu0 0
  %346 = vmatpush1.bf16.msra.mxu0 %v283
  %347 = vmatprep.subr.bf16.mxu0 0
  %348 = vmatpush1.bf16.msra.mxu0 %v284
  %349 = vmatprep.subr.bf16.mxu0 0
  %350 = vmatpush1.bf16.msra.mxu0 %v285
  %351 = vmatprep.subr.bf16.mxu0 0
  %352 = vmatpush1.bf16.msra.mxu0 %v286
  %353 = vmatprep.subr.bf16.mxu0 0
  %354 = vmatpush1.bf16.msra.mxu0 %v287
  %355 = vmatprep.subr.bf16.mxu0 0
  %356 = vmatpush1.bf16.msra.mxu0 %v288
  %357 = vmatprep.subr.bf16.mxu0 0
  %358 = vmatpush1.bf16.msra.mxu0 %v289
  %359 = vmatprep.subr.bf16.mxu0 0
  %360 = vmatpush1.bf16.msra.mxu0 %v290
  %361 = vmatprep.subr.bf16.mxu0 0
  %362 = vmatpush1.bf16.msra.mxu0 %v291
  %363 = vmatprep.subr.bf16.mxu0 0
  %364 = vmatpush1.bf16.msra.mxu0 %v292
  %365 = vmatprep.subr.bf16.mxu0 0
  %366 = vmatpush1.bf16.msra.mxu0 %v293
  %367 = vmatprep.subr.bf16.mxu0 0
  %368 = vmatpush1.bf16.msra.mxu0 %v294
  %369 = vmatprep.subr.bf16.mxu0 0
  %370 = vmatpush1.bf16.msra.mxu0 %v295
  %371 = vmatprep.subr.bf16.mxu0 0
  %372 = vmatpush1.bf16.msra.mxu0 %v296
  %373 = vmatprep.subr.bf16.mxu0 0
  %374 = vmatpush1.bf16.msra.mxu0 %v297
  %375 = vmatprep.mubr.bf16.mxu0 %v171
  %376 = vmatmul.mubr.bf16.gmra.mrb[0].mxu0 %v170
  %v377 = vpop.f32.mrb[0].mxu0
  %v378 = vadd.f32 %v88, %v377
  %v379 = vpop.f32.mrb[0].mxu0
  %v380 = vpop.f32.mrb[0].mxu0
  %v381 = vadd.f32 %v88, %v380
  %v382 = vpop.f32.mrb[0].mxu0
  %383 = vmatprep.mubr.bf16.mxu0 %v174
  %384 = vmatmul.mubr.bf16.gmra.mrb[0].mxu0 %v173
  %v385 = vpop.f32.mrb[0].mxu0
  %v386 = vadd.f32 %v88, %v385
  %v387 = vpop.f32.mrb[0].mxu0
  %v388 = vpop.f32.mrb[0].mxu0
  %v389 = vadd.f32 %v88, %v388
  %v390 = vpop.f32.mrb[0].mxu0
  %391 = vmatprep.mubr.bf16.mxu0 %v177
  %392 = vmatmul.mubr.bf16.gmra.mrb[0].mxu0 %v176
  %v393 = vpop.f32.mrb[0].mxu0
  %v394 = vadd.f32 %v88, %v393
  %v395 = vpop.f32.mrb[0].mxu0
  %v396 = vpop.f32.mrb[0].mxu0
  %v397 = vadd.f32 %v88, %v396
  %v398 = vpop.f32.mrb[0].mxu0
  %399 = vmatprep.mubr.bf16.mxu0 %v180
  %400 = vmatmul.mubr.bf16.gmra.mrb[0].mxu0 %v179
  %v401 = vpop.f32.mrb[0].mxu0
  %v402 = vadd.f32 %v88, %v401
  %v403 = vpop.f32.mrb[0].mxu0
  %v404 = vpop.f32.mrb[0].mxu0
  %v405 = vadd.f32 %v88, %v404
  %v406 = vpop.f32.mrb[0].mxu0
  %407 = vmatprep.mubr.bf16.mxu0 %v183
  %408 = vmatmul.mubr.bf16.gmra.mrb[0].mxu0 %v182
  %v409 = vpop.f32.mrb[0].mxu0
  %v410 = vadd.f32 %v88, %v409
  %v411 = vpop.f32.mrb[0].mxu0
  %v412 = vpop.f32.mrb[0].mxu0
  %v413 = vadd.f32 %v88, %v412
  %v414 = vpop.f32.mrb[0].mxu0
  %415 = vmatprep.mubr.bf16.mxu0 %v186
  %416 = vmatmul.mubr.bf16.gmra.mrb[0].mxu0 %v185
  %v417 = vpop.f32.mrb[0].mxu0
  %v418 = vadd.f32 %v88, %v417
  %v419 = vpop.f32.mrb[0].mxu0
  %v420 = vpop.f32.mrb[0].mxu0
  %v421 = vadd.f32 %v88, %v420
  %v422 = vpop.f32.mrb[0].mxu0
  %423 = vmatprep.mubr.bf16.mxu0 %v189
  %424 = vmatmul.mubr.bf16.gmra.mrb[0].mxu0 %v188
  %v425 = vpop.f32.mrb[0].mxu0
  %v426 = vadd.f32 %v88, %v425
  %v427 = vpop.f32.mrb[0].mxu0
  %v428 = vpop.f32.mrb[0].mxu0
  %v429 = vadd.f32 %v88, %v428
  %v430 = vpop.f32.mrb[0].mxu0
  %431 = vmatprep.mubr.bf16.mxu0 %v192
  %432 = vmatmul.mubr.bf16.gmra.mrb[0].mxu0 %v191
  %v433 = vpop.f32.mrb[0].mxu0
  %v434 = vadd.f32 %v88, %v433
  %v435 = vpop.f32.mrb[0].mxu0
  %v436 = vpop.f32.mrb[0].mxu0
  %v437 = vadd.f32 %v88, %v436
  %v438 = vpop.f32.mrb[0].mxu0
  %439 = vdwg.mxu0
  %440 = vmatprep.subr.bf16.mxu0 0
  %441 = vmatpush1.bf16.msra.mxu0 %v298
  %442 = vmatprep.subr.bf16.mxu0 0
  %443 = vmatpush1.bf16.msra.mxu0 %v299
  %444 = vmatprep.subr.bf16.mxu0 0
  %445 = vmatpush1.bf16.msra.mxu0 0
  %446 = vmatprep.subr.bf16.mxu0 0
  %447 = vmatpush1.bf16.msra.mxu0 0
  %448 = vmatprep.subr.bf16.mxu0 0
  %449 = vmatpush1.bf16.msra.mxu0 0
  %450 = vmatprep.subr.bf16.mxu0 0
  %451 = vmatpush1.bf16.msra.mxu0 0
  %452 = vmatprep.subr.bf16.mxu0 0
  %453 = vmatpush1.bf16.msra.mxu0 0
  %454 = vmatprep.subr.bf16.mxu0 0
  %455 = vmatpush1.bf16.msra.mxu0 0
  %456 = vmatprep.subr.bf16.mxu0 0
  %457 = vmatpush1.bf16.msra.mxu0 0
  %458 = vmatprep.subr.bf16.mxu0 0
  %459 = vmatpush1.bf16.msra.mxu0 0
  %460 = vmatprep.subr.bf16.mxu0 0
  %461 = vmatpush1.bf16.msra.mxu0 0
  %462 = vmatprep.subr.bf16.mxu0 0
  %463 = vmatpush1.bf16.msra.mxu0 0
  %464 = vmatprep.subr.bf16.mxu0 0
  %465 = vmatpush1.bf16.msra.mxu0 0
  %466 = vmatprep.subr.bf16.mxu0 0
  %467 = vmatpush1.bf16.msra.mxu0 0
  %468 = vmatprep.subr.bf16.mxu0 0
  %469 = vmatpush1.bf16.msra.mxu0 0
  %470 = vmatprep.subr.bf16.mxu0 0
  %471 = vmatpush1.bf16.msra.mxu0 0
  %472 = vmatprep.mubr.bf16.mxu0 0
  %473 = vmatmul.mubr.bf16.gmra.mrb[0].mxu0 %v320
  %v474 = vpop.f32.mrb[0].mxu0
  %v475 = vadd.f32 %v378, %v474
  %v476 = vpop.f32.mrb[0].mxu0
  %v477 = vpop.f32.mrb[0].mxu0
  %v478 = vadd.f32 %v381, %v477
  %v479 = vpop.f32.mrb[0].mxu0
  %480 = vmatprep.mubr.bf16.mxu0 0
  %481 = vmatmul.mubr.bf16.gmra.mrb[0].mxu0 %v323
  %v482 = vpop.f32.mrb[0].mxu0
  %v483 = vadd.f32 %v386, %v482
  %v484 = vpop.f32.mrb[0].mxu0
  %v485 = vpop.f32.mrb[0].mxu0
  %v486 = vadd.f32 %v389, %v485
  %v487 = vpop.f32.mrb[0].mxu0
  %488 = vmatprep.mubr.bf16.mxu0 0
  %489 = vmatmul.mubr.bf16.gmra.mrb[0].mxu0 %v326
  %v490 = vpop.f32.mrb[0].mxu0
  %v491 = vadd.f32 %v394, %v490
  %v492 = vpop.f32.mrb[0].mxu0
  %v493 = vpop.f32.mrb[0].mxu0
  %v494 = vadd.f32 %v397, %v493
  %v495 = vpop.f32.mrb[0].mxu0
  %496 = vmatprep.mubr.bf16.mxu0 0
  %497 = vmatmul.mubr.bf16.gmra.mrb[0].mxu0 %v329
  %v498 = vpop.f32.mrb[0].mxu0
  %v499 = vadd.f32 %v402, %v498
  %v500 = vpop.f32.mrb[0].mxu0
  %v501 = vpop.f32.mrb[0].mxu0
  %v502 = vadd.f32 %v405, %v501
  %v503 = vpop.f32.mrb[0].mxu0
  %504 = vmatprep.mubr.bf16.mxu0 0
  %505 = vmatmul.mubr.bf16.gmra.mrb[0].mxu0 %v332
  %v506 = vpop.f32.mrb[0].mxu0
  %v507 = vadd.f32 %v410, %v506
  %v508 = vpop.f32.mrb[0].mxu0
  %v509 = vpop.f32.mrb[0].mxu0
  %v510 = vadd.f32 %v413, %v509
  %v511 = vpop.f32.mrb[0].mxu0
  %512 = vmatprep.mubr.bf16.mxu0 0
  %513 = vmatmul.mubr.bf16.gmra.mrb[0].mxu0 %v335
  %v514 = vpop.f32.mrb[0].mxu0
  %v515 = vadd.f32 %v418, %v514
  %v516 = vpop.f32.mrb[0].mxu0
  %v517 = vpop.f32.mrb[0].mxu0
  %v518 = vadd.f32 %v421, %v517
  %v519 = vpop.f32.mrb[0].mxu0
  %520 = vmatprep.mubr.bf16.mxu0 0
  %521 = vmatmul.mubr.bf16.gmra.mrb[0].mxu0 %v338
  %v522 = vpop.f32.mrb[0].mxu0
  %v523 = vadd.f32 %v426, %v522
  %v524 = vpop.f32.mrb[0].mxu0
  %v525 = vpop.f32.mrb[0].mxu0
  %v526 = vadd.f32 %v429, %v525
  %v527 = vpop.f32.mrb[0].mxu0
  %528 = vmatprep.mubr.bf16.mxu0 0
  %529 = vmatmul.mubr.bf16.gmra.mrb[0].mxu0 %v341
  %v530 = vpop.f32.mrb[0].mxu0
  %v531 = vadd.f32 %v434, %v530
  %v532 = vpop.f32.mrb[0].mxu0
  %v533 = vpop.f32.mrb[0].mxu0
  %v534 = vadd.f32 %v437, %v533
  %v535 = vpop.f32.mrb[0].mxu0
  %536 = vdwg.mxu0
  %v537 = vmax.f32 %v475, 0.0
  %v538 = vmax.f32 %v478, 0.0
  %v539 = vmax.f32 %v483, 0.0
  %v540 = vmax.f32 %v486, 0.0
  %v541 = vmax.f32 %v491, 0.0
  %v542 = vmax.f32 %v494, 0.0
  %v543 = vmax.f32 %v499, 0.0
  %v544 = vmax.f32 %v502, 0.0
  %v545 = vmax.f32 %v507, 0.0
  %v546 = vmax.f32 %v510, 0.0
  %v547 = vmax.f32 %v515, 0.0
  %v548 = vmax.f32 %v518, 0.0
  %v549 = vmax.f32 %v523, 0.0
  %v550 = vmax.f32 %v526, 0.0
  %v551 = vmax.f32 %v531, 0.0
  %v552 = vmax.f32 %v534, 0.0
  %v553 = vpack.c.bf16 %v538, %v537
  %v554 = vpack.c.bf16 %v540, %v539
  %v555 = vpack.c.bf16 %v542, %v541
  %v556 = vpack.c.bf16 %v544, %v543
  %v557 = vpack.c.bf16 %v546, %v545
  %v558 = vpack.c.bf16 %v548, %v547
  %v559 = vpack.c.bf16 %v550, %v549
  %v560 = vpack.c.bf16 %v552, %v551
  %v569 = vunpack.c.l.b16 %v553
  %v570 = vunpack.c.h.b16 %v553
  %v571 = vunpack.c.l.b16 %v554
  %v572 = vunpack.c.h.b16 %v554
  %v573 = vunpack.c.l.b16 %v555
  %v574 = vunpack.c.h.b16 %v555
  %v575 = vunpack.c.l.b16 %v556
  %v576 = vunpack.c.h.b16 %v556
  %v577 = vunpack.c.l.b16 %v557
  %v578 = vunpack.c.h.b16 %v557
  %v579 = vunpack.c.l.b16 %v558
  %v580 = vunpack.c.h.b16 %v558
  %v581 = vunpack.c.l.b16 %v559
  %v582 = vunpack.c.h.b16 %v559
  %v583 = vunpack.c.l.b16 %v560
  %v584 = vunpack.c.h.b16 %v560
  %v585 = vpack.c.b16 %v569, %v569
  %v586 = vpack.c.b16 %v570, %v570
  %v587 = vpack.c.b16 %v571, %v571
  %v588 = vpack.c.b16 %v572, %v572
  %v589 = vpack.c.b16 %v573, %v573
  %v590 = vpack.c.b16 %v574, %v574
  %v591 = vpack.c.b16 %v575, %v575
  %v592 = vpack.c.b16 %v576, %v576
  %v593 = vpack.c.b16 %v577, %v577
  %v594 = vpack.c.b16 %v578, %v578
  %v595 = vpack.c.b16 %v579, %v579
  %v596 = vpack.c.b16 %v580, %v580
  %v597 = vpack.c.b16 %v581, %v581
  %v598 = vpack.c.b16 %v582, %v582
  %v599 = vpack.c.b16 %v583, %v583
  %v600 = vpack.c.b16 %v584, %v584
  %vm617 = vcmask 519168
  %618 = vst.msk [vmem:[%s3] sm:$0xf] %vm617, %v585
  %619 = vst.msk [vmem:[%s3 + $0x4] sm:$0xf] %vm617, %v586
  %620 = vst.msk [vmem:[%s3 + $0x8] sm:$0xf] %vm617, %v587
  %621 = vst.msk [vmem:[%s3 + $0xc] sm:$0xf] %vm617, %v588
  %622 = vst.msk [vmem:[%s3 + $0x10] sm:$0xf] %vm617, %v589
  %623 = vst.msk [vmem:[%s3 + $0x14] sm:$0xf] %vm617, %v590
  %624 = vst.msk [vmem:[%s3 + $0x18] sm:$0xf] %vm617, %v591
  %625 = vst.msk [vmem:[%s3 + $0x1c] sm:$0xf] %vm617, %v592
  %626 = vst.msk [vmem:[%s3 + $0x20] sm:$0xf] %vm617, %v593
  %627 = vst.msk [vmem:[%s3 + $0x24] sm:$0xf] %vm617, %v594
  %628 = vst.msk [vmem:[%s3 + $0x28] sm:$0xf] %vm617, %v595
  %629 = vst.msk [vmem:[%s3 + $0x2c] sm:$0xf] %vm617, %v596
  %630 = vst.msk [vmem:[%s3 + $0x30] sm:$0xf] %vm617, %v597
  %631 = vst.msk [vmem:[%s3 + $0x34] sm:$0xf] %vm617, %v598
  %632 = vst.msk [vmem:[%s3 + $0x38] sm:$0xf] %vm617, %v599
  %633 = vst.msk [vmem:[%s3 + $0x3c] sm:$0xf] %vm617, %v600
  // Predicated region
  $region14: #{vae_forward.17} parent=0 // pred_check
    _
  $region15: #{vae_forward.17} parent=0 // pred_check_branch
    %635 = sbr.rel (0) target = $region17
  $region16: #{vae_forward.17} parent=0 // pred_region
    _
  $region17: #{vae_forward.17} parent=0 // pred_fallthru
    _
  // Predicated region
  $region18: #{vae_forward.17} parent=0 // pred_check
    _
  $region19: #{vae_forward.17} parent=0 // pred_check_branch
    %637 = sbr.rel (0) target = $region21
  $region20: #{vae_forward.17} parent=0 // pred_region
    _
  $region21: #{vae_forward.17} parent=0 // pred_fallthru
    _

// kernel: tile.38
$region0: #{tile.38}
  #allocation0 [shape = 's32[1]{0}', space=sflag, size = 0x4, scoped, tag = 'scoped memory for tile.38']
  %s0 = inlined_call_operand.vmem [shape: f32[8], index: 0, kind: input, shape index: {}]
  %s1 = inlined_call_operand.vmem [shape: f32[4,8], index: 1, kind: output, shape index: {}]
  // Predicated region
  $region2: #{tile.38} parent=0 // pred_check
    _
  $region3: #{tile.38} parent=0 // pred_check_branch
    %3 = sbr.rel (0) target = $region5
  $region4: #{tile.38} parent=0 // pred_region
    _
  $region5: #{tile.38} parent=0 // pred_fallthru
    _
  %v4 = vld [vmem:[%s0] ss:$0 sm:$0xff]
  %5 = vst [vmem:[%s1] sm:$0xf] %v4

// kernel: tile.39
$region0: #{tile.39}
  %s0 = inlined_call_operand.vmem [shape: f32[4,8], index: 0, kind: input, shape index: {}]
  %s1 = inlined_call_operand.vmem [shape: f32[1,32], index: 1, kind: output, shape index: {}]
  $region1: #{tile.39} parent=0
    #allocation0 [shape = 'u8[4096]{0}', space=vmem, size = 0x1000, scoped, tag = 'scoped mem for output reshape']
    #allocation1 [shape = 'u8[4096]{0}', space=vmem, size = 0x1000, scoped, tag = 'scoped mem for input reshape']
    %s3 = sshllo.u32 0, 4
    %v4 = vld [vmem:[%s0] sm:%s3]
    %5 = vst [vmem:[#allocation1] sm:%s3] %v4
    %v6 = vld [vmem:[#allocation1] sm:$0x1]
    %vm7 = vcmask 64512
    %8 = vst.msk [vmem:[#allocation0] sm:$0x1] %vm7, %v6
    %s9 = scalar_lea.vmem [#allocation1], 3
    %v10 = vld [vmem:[%s9] sm:$0x1]
    %11 = vrot.lane.b32.xlu0 %v10, 24
    %v12 = vpop.permute.xlu0 %11
    %vm13 = vcmask 261312
    %14 = vst.msk [vmem:[#allocation0] sm:$0x1] %vm13, %v12
    %s15 = scalar_lea.vmem [#allocation1], 2
    %v16 = vld [vmem:[%s15] sm:$0x1]
    %17 = vrot.lane.b32.xlu0 %v16, 16
    %v18 = vpop.permute.xlu0 %17
    %vm19 = vcmask 195712
    %20 = vst.msk [vmem:[#allocation0] sm:$0x1] %vm19, %v18
    %s21 = scalar_lea.vmem [#allocation1], 1
    %v22 = vld [vmem:[%s21] sm:$0x1]
    %23 = vrot.lane.b32.xlu0 %v22, 8
    %v24 = vpop.permute.xlu0 %23
    %vm25 = vcmask 130112
    %26 = vst.msk [vmem:[#allocation0] sm:$0x1] %vm25, %v24
    %s28 = sshllo.u32 0, 1
    %v30 = vld [vmem:[#allocation0] sm:%s28]
    %s31 = sshllo.u32 0, 1
    %32 = vst [vmem:[%s1] sm:%s31] %v30

// kernel: vae_forward.18
$region0: #{vae_forward.18}
  #allocation0 [shape = 'u32[]', space=smem, size = 0x4, offset = 0x4, fixed_abs, tag = 'smem constant byte address 0x4 - core index']
  #allocation1 [shape = 'u32[144,128]{1,0:T(1,128)}', space=vmem, size = 0x12000, scoped, tag = 'internal scratch']
  %s0 = inlined_call_operand.vmem [shape: bf16[512,144], index: 0, kind: input, shape index: {}]
  %s1 = inlined_call_operand.vmem [shape: bf16[144,32], index: 1, kind: input, shape index: {}]
  %s2 = inlined_call_operand.vmem [shape: f32[1,32], index: 2, kind: input, shape index: {}]
  %s3 = inlined_call_operand.vmem [shape: bf16[512,32], index: 3, kind: output, shape index: {}]
  %s4 = sld [smem:[#allocation0]]
  $region22: #{vae_forward.18} parent=0
    _
  %s6 = ssub.s32 1, %s4
  %s7 = scalar_select 0, %s6, %s4
  // Predicated region
  $region2: #{vae_forward.18} parent=0 // pred_check
    _
  $region3: #{vae_forward.18} parent=0 // pred_check_branch
    %9 = sbr.rel (0) target = $region5
  $region4: #{vae_forward.18} parent=0 // pred_region
    _
  $region5: #{vae_forward.18} parent=0 // pred_fallthru
    _
  // Predicated region
  $region6: #{vae_forward.18} parent=0 // pred_check
    _
  $region7: #{vae_forward.18} parent=0 // pred_check_branch
    %11 = sbr.rel (0) target = $region9
  $region8: #{vae_forward.18} parent=0 // pred_region
    _
  $region9: #{vae_forward.18} parent=0 // pred_fallthru
    _
  // Predicated region
  $region10: #{vae_forward.18} parent=0 // pred_check
    _
  $region11: #{vae_forward.18} parent=0 // pred_check_branch
    %13 = sbr.rel (0) target = $region13
  $region12: #{vae_forward.18} parent=0 // pred_region
    _
  $region13: #{vae_forward.18} parent=0 // pred_fallthru
    _
  %v15 = vld [vmem:[%s0] sm:$0xff]
  %v16 = vld [vmem:[%s0 + $0x8] sm:$0xff]
  %v17 = vld [vmem:[%s0 + $0x10] sm:$0xff]
  %v18 = vld [vmem:[%s0 + $0x18] sm:$0xff]
  %v19 = vld [vmem:[%s0 + $0x20] sm:$0xff]
  %v20 = vld [vmem:[%s0 + $0x28] sm:$0xff]
  %v21 = vld [vmem:[%s0 + $0x30] sm:$0xff]
  %v22 = vld [vmem:[%s0 + $0x38] sm:$0xff]
  %v23 = vld [vmem:[%s0 + $0x40] sm:$0xff]
  %v24 = vld [vmem:[%s0 + $0x48] sm:$0xff]
  %v25 = vld [vmem:[%s0 + $0x50] sm:$0xff]
  %v26 = vld [vmem:[%s0 + $0x58] sm:$0xff]
  %v27 = vld [vmem:[%s0 + $0x60] sm:$0xff]
  %v28 = vld [vmem:[%s0 + $0x68] sm:$0xff]
  %v29 = vld [vmem:[%s0 + $0x70] sm:$0xff]
  %v30 = vld [vmem:[%s0 + $0x78] sm:$0xff]
  %v31 = vld [vmem:[%s0 + $0x80] sm:$0xff]
  %v32 = vld [vmem:[%s0 + $0x88] sm:$0xff]
  %v33 = vld [vmem:[%s0 + $0x90] sm:$0xff]
  %v34 = vld [vmem:[%s0 + $0x98] sm:$0xff]
  %v35 = vld [vmem:[%s0 + $0xa0] sm:$0xff]
  %v36 = vld [vmem:[%s0 + $0xa8] sm:$0xff]
  %v37 = vld [vmem:[%s0 + $0xb0] sm:$0xff]
  %v38 = vld [vmem:[%s0 + $0xb8] sm:$0xff]
  %v39 = vld [vmem:[%s0 + $0xc0] sm:$0xff]
  %v40 = vld [vmem:[%s0 + $0xc8] sm:$0xff]
  %v41 = vld [vmem:[%s0 + $0xd0] sm:$0xff]
  %v42 = vld [vmem:[%s0 + $0xd8] sm:$0xff]
  %v43 = vld [vmem:[%s0 + $0xe0] sm:$0xff]
  %v44 = vld [vmem:[%s0 + $0xe8] sm:$0xff]
  %v45 = vld [vmem:[%s0 + $0xf0] sm:$0xff]
  %v46 = vld [vmem:[%s0 + $0xf8] sm:$0xff]
  %v47 = vld [vmem:[%s0 + $0x100] sm:$0xff]
  %v48 = vld [vmem:[%s0 + $0x108] sm:$0xff]
  %v49 = vld [vmem:[%s0 + $0x110] sm:$0xff]
  %v50 = vld [vmem:[%s0 + $0x118] sm:$0xff]
  %v51 = vld [vmem:[%s0 + $0x120] sm:$0xff]
  %v52 = vld [vmem:[%s0 + $0x128] sm:$0xff]
  %v53 = vld [vmem:[%s0 + $0x130] sm:$0xff]
  %v54 = vld [vmem:[%s0 + $0x138] sm:$0xff]
  %v55 = vld [vmem:[%s0 + $0x140] sm:$0xff]
  %v56 = vld [vmem:[%s0 + $0x148] sm:$0xff]
  %v57 = vld [vmem:[%s0 + $0x150] sm:$0xff]
  %v58 = vld [vmem:[%s0 + $0x158] sm:$0xff]
  %v59 = vld [vmem:[%s0 + $0x160] sm:$0xff]
  %v60 = vld [vmem:[%s0 + $0x168] sm:$0xff]
  %v61 = vld [vmem:[%s0 + $0x170] sm:$0xff]
  %v62 = vld [vmem:[%s0 + $0x178] sm:$0xff]
  %v63 = vld [vmem:[%s0 + $0x180] sm:$0xff]
  %v64 = vld [vmem:[%s0 + $0x188] sm:$0xff]
  %v65 = vld [vmem:[%s0 + $0x190] sm:$0xff]
  %v66 = vld [vmem:[%s0 + $0x198] sm:$0xff]
  %v67 = vld [vmem:[%s0 + $0x1a0] sm:$0xff]
  %v68 = vld [vmem:[%s0 + $0x1a8] sm:$0xff]
  %v69 = vld [vmem:[%s0 + $0x1b0] sm:$0xff]
  %v70 = vld [vmem:[%s0 + $0x1b8] sm:$0xff]
  %v71 = vld [vmem:[%s0 + $0x1c0] sm:$0xff]
  %v72 = vld [vmem:[%s0 + $0x1c8] sm:$0xff]
  %v73 = vld [vmem:[%s0 + $0x1d0] sm:$0xff]
  %v74 = vld [vmem:[%s0 + $0x1d8] sm:$0xff]
  %v75 = vld [vmem:[%s0 + $0x1e0] sm:$0xff]
  %v76 = vld [vmem:[%s0 + $0x1e8] sm:$0xff]
  %v77 = vld [vmem:[%s0 + $0x1f0] sm:$0xff]
  %v78 = vld [vmem:[%s0 + $0x1f8] sm:$0xff]
  %v79 = vld [vmem:[%s1] sm:$0xf]
  %v80 = vld [vmem:[%s1 + $0x4] sm:$0xf]
  %v81 = vld [vmem:[%s1 + $0x8] sm:$0xf]
  %v82 = vld [vmem:[%s1 + $0xc] sm:$0xf]
  %v83 = vld [vmem:[%s1 + $0x10] sm:$0xf]
  %v84 = vld [vmem:[%s1 + $0x14] sm:$0xf]
  %v85 = vld [vmem:[%s1 + $0x18] sm:$0xf]
  %v86 = vld [vmem:[%s1 + $0x1c] sm:$0xf]
  %v87 = vld [vmem:[%s1 + $0x20] sm:$0xf]
  %v88 = vld [vmem:[%s1 + $0x24] sm:$0xf]
  %v89 = vld [vmem:[%s1 + $0x28] sm:$0xf]
  %v90 = vld [vmem:[%s1 + $0x2c] sm:$0xf]
  %v91 = vld [vmem:[%s1 + $0x30] sm:$0xf]
  %v92 = vld [vmem:[%s1 + $0x34] sm:$0xf]
  %v93 = vld [vmem:[%s1 + $0x38] sm:$0xf]
  %v94 = vld [vmem:[%s1 + $0x3c] sm:$0xf]
  %v95 = vld [vmem:[%s1 + $0x40] sm:$0xf]
  %v96 = vld [vmem:[%s1 + $0x44] sm:$0xf]
  %v97 = vld [vmem:[%s2] sm:$0x1]
  %v99 = vlaneseq
  %v100 = vshrl.u32 %v99, 7
  %v101 = vsub.s32 0, %v100
  %v102 = vrot.slane %v97, %v101
  %v168 = vunpack.c.l.b16 %v15
  %v169 = vunpack.c.h.b16 %v15
  %v170 = vunpack.c.l.b16 %v16
  %v171 = vunpack.c.h.b16 %v16
  %v172 = vunpack.c.l.b16 %v17
  %v173 = vunpack.c.h.b16 %v17
  %v174 = vunpack.c.l.b16 %v18
  %v175 = vunpack.c.h.b16 %v18
  %v176 = vunpack.c.l.b16 %v19
  %v177 = vunpack.c.h.b16 %v19
  %v178 = vunpack.c.l.b16 %v20
  %v179 = vunpack.c.h.b16 %v20
  %v180 = vunpack.c.l.b16 %v21
  %v181 = vunpack.c.h.b16 %v21
  %v182 = vunpack.c.l.b16 %v22
  %v183 = vunpack.c.h.b16 %v22
  %v184 = vunpack.c.l.b16 %v23
  %v185 = vunpack.c.h.b16 %v23
  %v186 = vunpack.c.l.b16 %v24
  %v187 = vunpack.c.h.b16 %v24
  %v188 = vunpack.c.l.b16 %v25
  %v189 = vunpack.c.h.b16 %v25
  %v190 = vunpack.c.l.b16 %v26
  %v191 = vunpack.c.h.b16 %v26
  %v192 = vunpack.c.l.b16 %v27
  %v193 = vunpack.c.h.b16 %v27
  %v194 = vunpack.c.l.b16 %v28
  %v195 = vunpack.c.h.b16 %v28
  %v196 = vunpack.c.l.b16 %v29
  %v197 = vunpack.c.h.b16 %v29
  %v198 = vunpack.c.l.b16 %v30
  %v199 = vunpack.c.h.b16 %v30
  %v200 = vunpack.c.l.b16 %v31
  %v201 = vunpack.c.h.b16 %v31
  %v202 = vunpack.c.l.b16 %v32
  %v203 = vunpack.c.h.b16 %v32
  %v204 = vunpack.c.l.b16 %v33
  %v205 = vunpack.c.h.b16 %v33
  %v206 = vunpack.c.l.b16 %v34
  %v207 = vunpack.c.h.b16 %v34
  %v208 = vunpack.c.l.b16 %v35
  %v209 = vunpack.c.h.b16 %v35
  %v210 = vunpack.c.l.b16 %v36
  %v211 = vunpack.c.h.b16 %v36
  %v212 = vunpack.c.l.b16 %v37
  %v213 = vunpack.c.h.b16 %v37
  %v214 = vunpack.c.l.b16 %v38
  %v215 = vunpack.c.h.b16 %v38
  %v216 = vunpack.c.l.b16 %v39
  %v217 = vunpack.c.h.b16 %v39
  %v218 = vunpack.c.l.b16 %v40
  %v219 = vunpack.c.h.b16 %v40
  %v220 = vunpack.c.l.b16 %v41
  %v221 = vunpack.c.h.b16 %v41
  %v222 = vunpack.c.l.b16 %v42
  %v223 = vunpack.c.h.b16 %v42
  %v224 = vunpack.c.l.b16 %v43
  %v225 = vunpack.c.h.b16 %v43
  %v226 = vunpack.c.l.b16 %v44
  %v227 = vunpack.c.h.b16 %v44
  %v228 = vunpack.c.l.b16 %v45
  %v229 = vunpack.c.h.b16 %v45
  %v230 = vunpack.c.l.b16 %v46
  %v231 = vunpack.c.h.b16 %v46
  %v232 = vunpack.c.l.b16 %v47
  %v233 = vunpack.c.h.b16 %v47
  %v234 = vunpack.c.l.b16 %v48
  %v235 = vunpack.c.h.b16 %v48
  %v236 = vunpack.c.l.b16 %v49
  %v237 = vunpack.c.h.b16 %v49
  %v238 = vunpack.c.l.b16 %v50
  %v239 = vunpack.c.h.b16 %v50
  %v240 = vunpack.c.l.b16 %v51
  %v241 = vunpack.c.h.b16 %v51
  %v242 = vunpack.c.l.b16 %v52
  %v243 = vunpack.c.h.b16 %v52
  %v244 = vunpack.c.l.b16 %v53
  %v245 = vunpack.c.h.b16 %v53
  %v246 = vunpack.c.l.b16 %v54
  %v247 = vunpack.c.h.b16 %v54
  %v248 = vunpack.c.l.b16 %v55
  %v249 = vunpack.c.h.b16 %v55
  %v250 = vunpack.c.l.b16 %v56
  %v251 = vunpack.c.h.b16 %v56
  %v252 = vunpack.c.l.b16 %v57
  %v253 = vunpack.c.h.b16 %v57
  %v254 = vunpack.c.l.b16 %v58
  %v255 = vunpack.c.h.b16 %v58
  %v256 = vunpack.c.l.b16 %v59
  %v257 = vunpack.c.h.b16 %v59
  %v258 = vunpack.c.l.b16 %v60
  %v259 = vunpack.c.h.b16 %v60
  %v260 = vunpack.c.l.b16 %v61
  %v261 = vunpack.c.h.b16 %v61
  %v262 = vunpack.c.l.b16 %v62
  %v263 = vunpack.c.h.b16 %v62
  %v264 = vunpack.c.l.b16 %v63
  %v265 = vunpack.c.h.b16 %v63
  %v266 = vunpack.c.l.b16 %v64
  %v267 = vunpack.c.h.b16 %v64
  %v268 = vunpack.c.l.b16 %v65
  %v269 = vunpack.c.h.b16 %v65
  %v270 = vunpack.c.l.b16 %v66
  %v271 = vunpack.c.h.b16 %v66
  %v272 = vunpack.c.l.b16 %v67
  %v273 = vunpack.c.h.b16 %v67
  %v274 = vunpack.c.l.b16 %v68
  %v275 = vunpack.c.h.b16 %v68
  %v276 = vunpack.c.l.b16 %v69
  %v277 = vunpack.c.h.b16 %v69
  %v278 = vunpack.c.l.b16 %v70
  %v279 = vunpack.c.h.b16 %v70
  %v280 = vunpack.c.l.b16 %v71
  %v281 = vunpack.c.h.b16 %v71
  %v282 = vunpack.c.l.b16 %v72
  %v283 = vunpack.c.h.b16 %v72
  %v284 = vunpack.c.l.b16 %v73
  %v285 = vunpack.c.h.b16 %v73
  %v286 = vunpack.c.l.b16 %v74
  %v287 = vunpack.c.h.b16 %v74
  %v288 = vunpack.c.l.b16 %v75
  %v289 = vunpack.c.h.b16 %v75
  %v290 = vunpack.c.l.b16 %v76
  %v291 = vunpack.c.h.b16 %v76
  %v292 = vunpack.c.l.b16 %v77
  %v293 = vunpack.c.h.b16 %v77
  %v294 = vunpack.c.l.b16 %v78
  %v295 = vunpack.c.h.b16 %v78
  %v296 = vpack.c.b16 %v170, %v168
  %v297 = vpack.c.b16 %v171, %v169
  %v298 = vpack.c.b16 %v174, %v172
  %v299 = vpack.c.b16 %v175, %v173
  %v300 = vpack.c.b16 %v178, %v176
  %v301 = vpack.c.b16 %v179, %v177
  %v302 = vpack.c.b16 %v182, %v180
  %v303 = vpack.c.b16 %v183, %v181
  %v304 = vpack.c.b16 %v186, %v184
  %v305 = vpack.c.b16 %v187, %v185
  %v306 = vpack.c.b16 %v190, %v188
  %v307 = vpack.c.b16 %v191, %v189
  %v308 = vpack.c.b16 %v194, %v192
  %v309 = vpack.c.b16 %v195, %v193
  %v310 = vpack.c.b16 %v198, %v196
  %v311 = vpack.c.b16 %v199, %v197
  %v312 = vpack.c.b16 %v202, %v200
  %v313 = vpack.c.b16 %v203, %v201
  %v314 = vpack.c.b16 %v206, %v204
  %v315 = vpack.c.b16 %v207, %v205
  %v316 = vpack.c.b16 %v210, %v208
  %v317 = vpack.c.b16 %v211, %v209
  %v318 = vpack.c.b16 %v214, %v212
  %v319 = vpack.c.b16 %v215, %v213
  %v320 = vpack.c.b16 %v218, %v216
  %v321 = vpack.c.b16 %v219, %v217
  %v322 = vpack.c.b16 %v222, %v220
  %v323 = vpack.c.b16 %v223, %v221
  %v324 = vpack.c.b16 %v226, %v224
  %v325 = vpack.c.b16 %v227, %v225
  %v326 = vpack.c.b16 %v230, %v228
  %v327 = vpack.c.b16 %v231, %v229
  %v328 = vpack.c.b16 %v234, %v232
  %v329 = vpack.c.b16 %v235, %v233
  %v330 = vpack.c.b16 %v238, %v236
  %v331 = vpack.c.b16 %v239, %v237
  %v332 = vpack.c.b16 %v242, %v240
  %v333 = vpack.c.b16 %v243, %v241
  %v334 = vpack.c.b16 %v246, %v244
  %v335 = vpack.c.b16 %v247, %v245
  %v336 = vpack.c.b16 %v250, %v248
  %v337 = vpack.c.b16 %v251, %v249
  %v338 = vpack.c.b16 %v254, %v252
  %v339 = vpack.c.b16 %v255, %v253
  %v340 = vpack.c.b16 %v258, %v256
  %v341 = vpack.c.b16 %v259, %v257
  %v342 = vpack.c.b16 %v262, %v260
  %v343 = vpack.c.b16 %v263, %v261
  %v344 = vpack.c.b16 %v266, %v264
  %v345 = vpack.c.b16 %v267, %v265
  %v346 = vpack.c.b16 %v270, %v268
  %v347 = vpack.c.b16 %v271, %v269
  %v348 = vpack.c.b16 %v274, %v272
  %v349 = vpack.c.b16 %v275, %v273
  %v350 = vpack.c.b16 %v278, %v276
  %v351 = vpack.c.b16 %v279, %v277
  %v352 = vpack.c.b16 %v282, %v280
  %v353 = vpack.c.b16 %v283, %v281
  %v354 = vpack.c.b16 %v286, %v284
  %v355 = vpack.c.b16 %v287, %v285
  %v356 = vpack.c.b16 %v290, %v288
  %v357 = vpack.c.b16 %v291, %v289
  %v358 = vpack.c.b16 %v294, %v292
  %v359 = vpack.c.b16 %v295, %v293
  %v410 = vunpack.c.l.b16 %v79
  %v411 = vunpack.c.l.b16 %v80
  %v412 = vunpack.c.l.b16 %v81
  %v413 = vunpack.c.l.b16 %v82
  %v414 = vunpack.c.l.b16 %v83
  %v415 = vunpack.c.l.b16 %v84
  %v416 = vunpack.c.l.b16 %v85
  %v417 = vunpack.c.l.b16 %v86
  %v418 = vunpack.c.l.b16 %v87
  %v419 = vunpack.c.l.b16 %v88
  %v420 = vunpack.c.l.b16 %v89
  %v421 = vunpack.c.l.b16 %v90
  %v422 = vunpack.c.l.b16 %v91
  %v423 = vunpack.c.l.b16 %v92
  %v424 = vunpack.c.l.b16 %v93
  %v425 = vunpack.c.l.b16 %v94
  %v426 = vunpack.c.l.b16 %v95
  %v427 = vunpack.c.l.b16 %v96
  %v428 = vpack.c.b16 %v411, %v410
  %v429 = vpack.c.b16 %v413, %v412
  %v430 = vpack.c.b16 %v415, %v414
  %v431 = vpack.c.b16 %v417, %v416
  %v432 = vpack.c.b16 %v419, %v418
  %v433 = vpack.c.b16 %v421, %v420
  %v434 = vpack.c.b16 %v423, %v422
  %v435 = vpack.c.b16 %v425, %v424
  %v436 = vpack.c.b16 %v427, %v426
  %vm446 = vcmask 130048
  %v448 = vsel %vm446, %v297, 0
  %v451 = vsel %vm446, %v299, 0
  %v454 = vsel %vm446, %v301, 0
  %v457 = vsel %vm446, %v303, 0
  %v460 = vsel %vm446, %v305, 0
  %v463 = vsel %vm446, %v307, 0
  %v466 = vsel %vm446, %v309, 0
  %v469 = vsel %vm446, %v311, 0
  %v472 = vsel %vm446, %v313, 0
  %v475 = vsel %vm446, %v315, 0
  %v478 = vsel %vm446, %v317, 0
  %v481 = vsel %vm446, %v319, 0
  %v484 = vsel %vm446, %v321, 0
  %v487 = vsel %vm446, %v323, 0
  %v490 = vsel %vm446, %v325, 0
  %v493 = vsel %vm446, %v327, 0
  %v496 = vsel %vm446, %v329, 0
  %v499 = vsel %vm446, %v331, 0
  %v502 = vsel %vm446, %v333, 0
  %v505 = vsel %vm446, %v335, 0
  %v508 = vsel %vm446, %v337, 0
  %v511 = vsel %vm446, %v339, 0
  %v514 = vsel %vm446, %v341, 0
  %v517 = vsel %vm446, %v343, 0
  %v520 = vsel %vm446, %v345, 0
  %v523 = vsel %vm446, %v347, 0
  %v526 = vsel %vm446, %v349, 0
  %v529 = vsel %vm446, %v351, 0
  %v532 = vsel %vm446, %v353, 0
  %v535 = vsel %vm446, %v355, 0
  %v538 = vsel %vm446, %v357, 0
  %v541 = vsel %vm446, %v359, 0
  %543 = vmatprep.subr.bf16.mxu0 0
  %544 = vmatpush1.bf16.msra.mxu0 %v428
  %545 = vmatprep.subr.bf16.mxu0 0
  %546 = vmatpush1.bf16.msra.mxu0 %v429
  %547 = vmatprep.subr.bf16.mxu0 0
  %548 = vmatpush1.bf16.msra.mxu0 %v430
  %549 = vmatprep.subr.bf16.mxu0 0
  %550 = vmatpush1.bf16.msra.mxu0 %v431
  %551 = vmatprep.subr.bf16.mxu0 0
  %552 = vmatpush1.bf16.msra.mxu0 %v432
  %553 = vmatprep.subr.bf16.mxu0 0
  %554 = vmatpush1.bf16.msra.mxu0 %v433
  %555 = vmatprep.subr.bf16.mxu0 0
  %556 = vmatpush1.bf16.msra.mxu0 %v434
  %557 = vmatprep.subr.bf16.mxu0 0
  %558 = vmatpush1.bf16.msra.mxu0 %v435
  %559 = vmatprep.subr.bf16.mxu0 0
  %560 = vmatpush1.bf16.msra.mxu0 %v436
  %561 = vmatprep.subr.bf16.mxu0 0
  %562 = vmatpush1.bf16.msra.mxu0 0
  %563 = vmatprep.subr.bf16.mxu0 0
  %564 = vmatpush1.bf16.msra.mxu0 0
  %565 = vmatprep.subr.bf16.mxu0 0
  %566 = vmatpush1.bf16.msra.mxu0 0
  %567 = vmatprep.subr.bf16.mxu0 0
  %568 = vmatpush1.bf16.msra.mxu0 0
  %569 = vmatprep.subr.bf16.mxu0 0
  %570 = vmatpush1.bf16.msra.mxu0 0
  %571 = vmatprep.subr.bf16.mxu0 0
  %572 = vmatpush1.bf16.msra.mxu0 0
  %573 = vmatprep.subr.bf16.mxu0 0
  %574 = vmatpush1.bf16.msra.mxu0 0
  %575 = vmatprep.mubr.bf16.mxu0 %v448
  %576 = vmatmul.mubr.bf16.gmra.mrb[0].mxu0 %v296
  %v577 = vpop.f32.mrb[0].mxu0
  %v578 = vadd.f32 %v102, %v577
  %v579 = vpop.f32.mrb[0].mxu0
  %v580 = vpop.f32.mrb[0].mxu0
  %v581 = vadd.f32 %v102, %v580
  %v582 = vpop.f32.mrb[0].mxu0
  %583 = vmatprep.mubr.bf16.mxu0 %v451
  %584 = vmatmul.mubr.bf16.gmra.mrb[0].mxu0 %v298
  %v585 = vpop.f32.mrb[0].mxu0
  %v586 = vadd.f32 %v102, %v585
  %v587 = vpop.f32.mrb[0].mxu0
  %v588 = vpop.f32.mrb[0].mxu0
  %v589 = vadd.f32 %v102, %v588
  %v590 = vpop.f32.mrb[0].mxu0
  %591 = vmatprep.mubr.bf16.mxu0 %v454
  %592 = vmatmul.mubr.bf16.gmra.mrb[0].mxu0 %v300
  %v593 = vpop.f32.mrb[0].mxu0
  %v594 = vadd.f32 %v102, %v593
  %v595 = vpop.f32.mrb[0].mxu0
  %v596 = vpop.f32.mrb[0].mxu0
  %v597 = vadd.f32 %v102, %v596
  %v598 = vpop.f32.mrb[0].mxu0
  %599 = vmatprep.mubr.bf16.mxu0 %v457
  %600 = vmatmul.mubr.bf16.gmra.mrb[0].mxu0 %v302
  %v601 = vpop.f32.mrb[0].mxu0
  %v602 = vadd.f32 %v102, %v601
  %v603 = vpop.f32.mrb[0].mxu0
  %v604 = vpop.f32.mrb[0].mxu0
  %v605 = vadd.f32 %v102, %v604
  %v606 = vpop.f32.mrb[0].mxu0
  %607 = vmatprep.mubr.bf16.mxu0 %v460
  %608 = vmatmul.mubr.bf16.gmra.mrb[0].mxu0 %v304
  %v609 = vpop.f32.mrb[0].mxu0
  %v610 = vadd.f32 %v102, %v609
  %v611 = vpop.f32.mrb[0].mxu0
  %v612 = vpop.f32.mrb[0].mxu0
  %v613 = vadd.f32 %v102, %v612
  %v614 = vpop.f32.mrb[0].mxu0
  %615 = vmatprep.mubr.bf16.mxu0 %v463
  %616 = vmatmul.mubr.bf16.gmra.mrb[0].mxu0 %v306
  %v617 = vpop.f32.mrb[0].mxu0
  %v618 = vadd.f32 %v102, %v617
  %v619 = vpop.f32.mrb[0].mxu0
  %v620 = vpop.f32.mrb[0].mxu0
  %v621 = vadd.f32 %v102, %v620
  %v622 = vpop.f32.mrb[0].mxu0
  %623 = vmatprep.mubr.bf16.mxu0 %v466
  %624 = vmatmul.mubr.bf16.gmra.mrb[0].mxu0 %v308
  %v625 = vpop.f32.mrb[0].mxu0
  %v626 = vadd.f32 %v102, %v625
  %v627 = vpop.f32.mrb[0].mxu0
  %v628 = vpop.f32.mrb[0].mxu0
  %v629 = vadd.f32 %v102, %v628
  %v630 = vpop.f32.mrb[0].mxu0
  %631 = vmatprep.mubr.bf16.mxu0 %v469
  %632 = vmatmul.mubr.bf16.gmra.mrb[0].mxu0 %v310
  %v633 = vpop.f32.mrb[0].mxu0
  %v634 = vadd.f32 %v102, %v633
  %v635 = vpop.f32.mrb[0].mxu0
  %v636 = vpop.f32.mrb[0].mxu0
  %v637 = vadd.f32 %v102, %v636
  %v638 = vpop.f32.mrb[0].mxu0
  %639 = vmatprep.mubr.bf16.mxu0 %v472
  %640 = vmatmul.mubr.bf16.gmra.mrb[0].mxu0 %v312
  %v641 = vpop.f32.mrb[0].mxu0
  %v642 = vadd.f32 %v102, %v641
  %v643 = vpop.f32.mrb[0].mxu0
  %v644 = vpop.f32.mrb[0].mxu0
  %v645 = vadd.f32 %v102, %v644
  %v646 = vpop.f32.mrb[0].mxu0
  %647 = vmatprep.mubr.bf16.mxu0 %v475
  %648 = vmatmul.mubr.bf16.gmra.mrb[0].mxu0 %v314
  %v649 = vpop.f32.mrb[0].mxu0
  %v650 = vadd.f32 %v102, %v649
  %v651 = vpop.f32.mrb[0].mxu0
  %v652 = vpop.f32.mrb[0].mxu0
  %v653 = vadd.f32 %v102, %v652
  %v654 = vpop.f32.mrb[0].mxu0
  %655 = vmatprep.mubr.bf16.mxu0 %v478
  %656 = vmatmul.mubr.bf16.gmra.mrb[0].mxu0 %v316
  %v657 = vpop.f32.mrb[0].mxu0
  %v658 = vadd.f32 %v102, %v657
  %v659 = vpop.f32.mrb[0].mxu0
  %v660 = vpop.f32.mrb[0].mxu0
  %v661 = vadd.f32 %v102, %v660
  %v662 = vpop.f32.mrb[0].mxu0
  %663 = vmatprep.mubr.bf16.mxu0 %v481
  %664 = vmatmul.mubr.bf16.gmra.mrb[0].mxu0 %v318
  %v665 = vpop.f32.mrb[0].mxu0
  %v666 = vadd.f32 %v102, %v665
  %v667 = vpop.f32.mrb[0].mxu0
  %v668 = vpop.f32.mrb[0].mxu0
  %v669 = vadd.f32 %v102, %v668
  %v670 = vpop.f32.mrb[0].mxu0
  %671 = vmatprep.mubr.bf16.mxu0 %v484
  %672 = vmatmul.mubr.bf16.gmra.mrb[0].mxu0 %v320
  %v673 = vpop.f32.mrb[0].mxu0
  %v674 = vadd.f32 %v102, %v673
  %v675 = vpop.f32.mrb[0].mxu0
  %v676 = vpop.f32.mrb[0].mxu0
  %v677 = vadd.f32 %v102, %v676
  %v678 = vpop.f32.mrb[0].mxu0
  %679 = vmatprep.mubr.bf16.mxu0 %v487
  %680 = vmatmul.mubr.bf16.gmra.mrb[0].mxu0 %v322
  %v681 = vpop.f32.mrb[0].mxu0
  %v682 = vadd.f32 %v102, %v681
  %v683 = vpop.f32.mrb[0].mxu0
  %v684 = vpop.f32.mrb[0].mxu0
  %v685 = vadd.f32 %v102, %v684
  %v686 = vpop.f32.mrb[0].mxu0
  %687 = vmatprep.mubr.bf16.mxu0 %v490
  %688 = vmatmul.mubr.bf16.gmra.mrb[0].mxu0 %v324
  %v689 = vpop.f32.mrb[0].mxu0
  %v690 = vadd.f32 %v102, %v689
  %v691 = vpop.f32.mrb[0].mxu0
  %v692 = vpop.f32.mrb[0].mxu0
  %v693 = vadd.f32 %v102, %v692
  %v694 = vpop.f32.mrb[0].mxu0
  %695 = vmatprep.mubr.bf16.mxu0 %v493
  %696 = vmatmul.mubr.bf16.gmra.mrb[0].mxu0 %v326
  %v697 = vpop.f32.mrb[0].mxu0
  %v698 = vadd.f32 %v102, %v697
  %v699 = vpop.f32.mrb[0].mxu0
  %v700 = vpop.f32.mrb[0].mxu0
  %v701 = vadd.f32 %v102, %v700
  %v702 = vpop.f32.mrb[0].mxu0
  %703 = vmatprep.mubr.bf16.mxu0 %v496
  %704 = vmatmul.mubr.bf16.gmra.mrb[0].mxu0 %v328
  %v705 = vpop.f32.mrb[0].mxu0
  %v706 = vadd.f32 %v102, %v705
  %v707 = vpop.f32.mrb[0].mxu0
  %v708 = vpop.f32.mrb[0].mxu0
  %v709 = vadd.f32 %v102, %v708
  %v710 = vpop.f32.mrb[0].mxu0
  %711 = vmatprep.mubr.bf16.mxu0 %v499
  %712 = vmatmul.mubr.bf16.gmra.mrb[0].mxu0 %v330
  %v713 = vpop.f32.mrb[0].mxu0
  %v714 = vadd.f32 %v102, %v713
  %v715 = vpop.f32.mrb[0].mxu0
  %v716 = vpop.f32.mrb[0].mxu0
  %v717 = vadd.f32 %v102, %v716
  %v718 = vpop.f32.mrb[0].mxu0
  %719 = vmatprep.mubr.bf16.mxu0 %v502
  %720 = vmatmul.mubr.bf16.gmra.mrb[0].mxu0 %v332
  %v721 = vpop.f32.mrb[0].mxu0
  %v722 = vadd.f32 %v102, %v721
  %v723 = vpop.f32.mrb[0].mxu0
  %v724 = vpop.f32.mrb[0].mxu0
  %v725 = vadd.f32 %v102, %v724
  %v726 = vpop.f32.mrb[0].mxu0
  %727 = vmatprep.mubr.bf16.mxu0 %v505
  %728 = vmatmul.mubr.bf16.gmra.mrb[0].mxu0 %v334
  %v729 = vpop.f32.mrb[0].mxu0
  %v730 = vadd.f32 %v102, %v729
  %v731 = vpop.f32.mrb[0].mxu0
  %v732 = vpop.f32.mrb[0].mxu0
  %v733 = vadd.f32 %v102, %v732
  %v734 = vpop.f32.mrb[0].mxu0
  %735 = vmatprep.mubr.bf16.mxu0 %v508
  %736 = vmatmul.mubr.bf16.gmra.mrb[0].mxu0 %v336
  %v737 = vpop.f32.mrb[0].mxu0
  %v738 = vadd.f32 %v102, %v737
  %v739 = vpop.f32.mrb[0].mxu0
  %v740 = vpop.f32.mrb[0].mxu0
  %v741 = vadd.f32 %v102, %v740
  %v742 = vpop.f32.mrb[0].mxu0
  %743 = vmatprep.mubr.bf16.mxu0 %v511
  %744 = vmatmul.mubr.bf16.gmra.mrb[0].mxu0 %v338
  %v745 = vpop.f32.mrb[0].mxu0
  %v746 = vadd.f32 %v102, %v745
  %v747 = vpop.f32.mrb[0].mxu0
  %v748 = vpop.f32.mrb[0].mxu0
  %v749 = vadd.f32 %v102, %v748
  %v750 = vpop.f32.mrb[0].mxu0
  %751 = vmatprep.mubr.bf16.mxu0 %v514
  %752 = vmatmul.mubr.bf16.gmra.mrb[0].mxu0 %v340
  %v753 = vpop.f32.mrb[0].mxu0
  %v754 = vadd.f32 %v102, %v753
  %v755 = vpop.f32.mrb[0].mxu0
  %v756 = vpop.f32.mrb[0].mxu0
  %v757 = vadd.f32 %v102, %v756
  %v758 = vpop.f32.mrb[0].mxu0
  %759 = vmatprep.mubr.bf16.mxu0 %v517
  %760 = vmatmul.mubr.bf16.gmra.mrb[0].mxu0 %v342
  %v761 = vpop.f32.mrb[0].mxu0
  %v762 = vadd.f32 %v102, %v761
  %v763 = vpop.f32.mrb[0].mxu0
  %v764 = vpop.f32.mrb[0].mxu0
  %v765 = vadd.f32 %v102, %v764
  %v766 = vpop.f32.mrb[0].mxu0
  %767 = vmatprep.mubr.bf16.mxu0 %v520
  %768 = vmatmul.mubr.bf16.gmra.mrb[0].mxu0 %v344
  %v769 = vpop.f32.mrb[0].mxu0
  %v770 = vadd.f32 %v102, %v769
  %v771 = vpop.f32.mrb[0].mxu0
  %v772 = vpop.f32.mrb[0].mxu0
  %v773 = vadd.f32 %v102, %v772
  %v774 = vpop.f32.mrb[0].mxu0
  %775 = vmatprep.mubr.bf16.mxu0 %v523
  %776 = vmatmul.mubr.bf16.gmra.mrb[0].mxu0 %v346
  %v777 = vpop.f32.mrb[0].mxu0
  %v778 = vadd.f32 %v102, %v777
  %v779 = vpop.f32.mrb[0].mxu0
  %v780 = vpop.f32.mrb[0].mxu0
  %v781 = vadd.f32 %v102, %v780
  %v782 = vpop.f32.mrb[0].mxu0
  %783 = vmatprep.mubr.bf16.mxu0 %v526
  %784 = vmatmul.mubr.bf16.gmra.mrb[0].mxu0 %v348
  %v785 = vpop.f32.mrb[0].mxu0
  %v786 = vadd.f32 %v102, %v785
  %v787 = vpop.f32.mrb[0].mxu0
  %v788 = vpop.f32.mrb[0].mxu0
  %v789 = vadd.f32 %v102, %v788
  %v790 = vpop.f32.mrb[0].mxu0
  %791 = vmatprep.mubr.bf16.mxu0 %v529
  %792 = vmatmul.mubr.bf16.gmra.mrb[0].mxu0 %v350
  %v793 = vpop.f32.mrb[0].mxu0
  %v794 = vadd.f32 %v102, %v793
  %v795 = vpop.f32.mrb[0].mxu0
  %v796 = vpop.f32.mrb[0].mxu0
  %v797 = vadd.f32 %v102, %v796
  %v798 = vpop.f32.mrb[0].mxu0
  %799 = vmatprep.mubr.bf16.mxu0 %v532
  %800 = vmatmul.mubr.bf16.gmra.mrb[0].mxu0 %v352
  %v801 = vpop.f32.mrb[0].mxu0
  %v802 = vadd.f32 %v102, %v801
  %v803 = vpop.f32.mrb[0].mxu0
  %v804 = vpop.f32.mrb[0].mxu0
  %v805 = vadd.f32 %v102, %v804
  %v806 = vpop.f32.mrb[0].mxu0
  %807 = vmatprep.mubr.bf16.mxu0 %v535
  %808 = vmatmul.mubr.bf16.gmra.mrb[0].mxu0 %v354
  %v809 = vpop.f32.mrb[0].mxu0
  %v810 = vadd.f32 %v102, %v809
  %v811 = vpop.f32.mrb[0].mxu0
  %v812 = vpop.f32.mrb[0].mxu0
  %v813 = vadd.f32 %v102, %v812
  %v814 = vpop.f32.mrb[0].mxu0
  %815 = vmatprep.mubr.bf16.mxu0 %v538
  %816 = vmatmul.mubr.bf16.gmra.mrb[0].mxu0 %v356
  %v817 = vpop.f32.mrb[0].mxu0
  %v818 = vadd.f32 %v102, %v817
  %v819 = vpop.f32.mrb[0].mxu0
  %v820 = vpop.f32.mrb[0].mxu0
  %v821 = vadd.f32 %v102, %v820
  %v822 = vpop.f32.mrb[0].mxu0
  %823 = vmatprep.mubr.bf16.mxu0 %v541
  %824 = vmatmul.mubr.bf16.gmra.mrb[0].mxu0 %v358
  %v825 = vpop.f32.mrb[0].mxu0
  %v826 = vadd.f32 %v102, %v825
  %v827 = vpop.f32.mrb[0].mxu0
  %v828 = vpop.f32.mrb[0].mxu0
  %v829 = vadd.f32 %v102, %v828
  %v830 = vpop.f32.mrb[0].mxu0
  %831 = vdwg.mxu0
  %v832 = vmax.f32 %v578, 0.0
  %v833 = vmax.f32 %v581, 0.0
  %v834 = vmax.f32 %v586, 0.0
  %v835 = vmax.f32 %v589, 0.0
  %v836 = vmax.f32 %v594, 0.0
  %v837 = vmax.f32 %v597, 0.0
  %v838 = vmax.f32 %v602, 0.0
  %v839 = vmax.f32 %v605, 0.0
  %v840 = vmax.f32 %v610, 0.0
  %v841 = vmax.f32 %v613, 0.0
  %v842 = vmax.f32 %v618, 0.0
  %v843 = vmax.f32 %v621, 0.0
  %v844 = vmax.f32 %v626, 0.0
  %v845 = vmax.f32 %v629, 0.0
  %v846 = vmax.f32 %v634, 0.0
  %v847 = vmax.f32 %v637, 0.0
  %v848 = vmax.f32 %v642, 0.0
  %v849 = vmax.f32 %v645, 0.0
  %v850 = vmax.f32 %v650, 0.0
  %v851 = vmax.f32 %v653, 0.0
  %v852 = vmax.f32 %v658, 0.0
  %v853 = vmax.f32 %v661, 0.0
  %v854 = vmax.f32 %v666, 0.0
  %v855 = vmax.f32 %v669, 0.0
  %v856 = vmax.f32 %v674, 0.0
  %v857 = vmax.f32 %v677, 0.0
  %v858 = vmax.f32 %v682, 0.0
  %v859 = vmax.f32 %v685, 0.0
  %v860 = vmax.f32 %v690, 0.0
  %v861 = vmax.f32 %v693, 0.0
  %v862 = vmax.f32 %v698, 0.0
  %v863 = vmax.f32 %v701, 0.0
  %v864 = vmax.f32 %v706, 0.0
  %v865 = vmax.f32 %v709, 0.0
  %v866 = vmax.f32 %v714, 0.0
  %v867 = vmax.f32 %v717, 0.0
  %v868 = vmax.f32 %v722, 0.0
  %v869 = vmax.f32 %v725, 0.0
  %v870 = vmax.f32 %v730, 0.0
  %v871 = vmax.f32 %v733, 0.0
  %v872 = vmax.f32 %v738, 0.0
  %v873 = vmax.f32 %v741, 0.0
  %v874 = vmax.f32 %v746, 0.0
  %v875 = vmax.f32 %v749, 0.0
  %v876 = vmax.f32 %v754, 0.0
  %v877 = vmax.f32 %v757, 0.0
  %v878 = vmax.f32 %v762, 0.0
  %v879 = vmax.f32 %v765, 0.0
  %v880 = vmax.f32 %v770, 0.0
  %v881 = vmax.f32 %v773, 0.0
  %v882 = vmax.f32 %v778, 0.0
  %v883 = vmax.f32 %v781, 0.0
  %v884 = vmax.f32 %v786, 0.0
  %v885 = vmax.f32 %v789, 0.0
  %v886 = vmax.f32 %v794, 0.0
  %v887 = vmax.f32 %v797, 0.0
  %v888 = vmax.f32 %v802, 0.0
  %v889 = vmax.f32 %v805, 0.0
  %v890 = vmax.f32 %v810, 0.0
  %v891 = vmax.f32 %v813, 0.0
  %v892 = vmax.f32 %v818, 0.0
  %v893 = vmax.f32 %v821, 0.0
  %v894 = vmax.f32 %v826, 0.0
  %v895 = vmax.f32 %v829, 0.0
  %v896 = vpack.c.bf16 %v833, %v832
  %v897 = vpack.c.bf16 %v835, %v834
  %v898 = vpack.c.bf16 %v837, %v836
  %v899 = vpack.c.bf16 %v839, %v838
  %v900 = vpack.c.bf16 %v841, %v840
  %v901 = vpack.c.bf16 %v843, %v842
  %v902 = vpack.c.bf16 %v845, %v844
  %v903 = vpack.c.bf16 %v847, %v846
  %v904 = vpack.c.bf16 %v849, %v848
  %v905 = vpack.c.bf16 %v851, %v850
  %v906 = vpack.c.bf16 %v853, %v852
  %v907 = vpack.c.bf16 %v855, %v854
  %v908 = vpack.c.bf16 %v857, %v856
  %v909 = vpack.c.bf16 %v859, %v858
  %v910 = vpack.c.bf16 %v861, %v860
  %v911 = vpack.c.bf16 %v863, %v862
  %v912 = vpack.c.bf16 %v865, %v864
  %v913 = vpack.c.bf16 %v867, %v866
  %v914 = vpack.c.bf16 %v869, %v868
  %v915 = vpack.c.bf16 %v871, %v870
  %v916 = vpack.c.bf16 %v873, %v872
  %v917 = vpack.c.bf16 %v875, %v874
  %v918 = vpack.c.bf16 %v877, %v876
  %v919 = vpack.c.bf16 %v879, %v878
  %v920 = vpack.c.bf16 %v881, %v880
  %v921 = vpack.c.bf16 %v883, %v882
  %v922 = vpack.c.bf16 %v885, %v884
  %v923 = vpack.c.bf16 %v887, %v886
  %v924 = vpack.c.bf16 %v889, %v888
  %v925 = vpack.c.bf16 %v891, %v890
  %v926 = vpack.c.bf16 %v893, %v892
  %v927 = vpack.c.bf16 %v895, %v894
  %v960 = vunpack.c.l.b16 %v896
  %v961 = vunpack.c.h.b16 %v896
  %v962 = vunpack.c.l.b16 %v897
  %v963 = vunpack.c.h.b16 %v897
  %v964 = vunpack.c.l.b16 %v898
  %v965 = vunpack.c.h.b16 %v898
  %v966 = vunpack.c.l.b16 %v899
  %v967 = vunpack.c.h.b16 %v899
  %v968 = vunpack.c.l.b16 %v900
  %v969 = vunpack.c.h.b16 %v900
  %v970 = vunpack.c.l.b16 %v901
  %v971 = vunpack.c.h.b16 %v901
  %v972 = vunpack.c.l.b16 %v902
  %v973 = vunpack.c.h.b16 %v902
  %v974 = vunpack.c.l.b16 %v903
  %v975 = vunpack.c.h.b16 %v903
  %v976 = vunpack.c.l.b16 %v904
  %v977 = vunpack.c.h.b16 %v904
  %v978 = vunpack.c.l.b16 %v905
  %v979 = vunpack.c.h.b16 %v905
  %v980 = vunpack.c.l.b16 %v906
  %v981 = vunpack.c.h.b16 %v906
  %v982 = vunpack.c.l.b16 %v907
  %v983 = vunpack.c.h.b16 %v907
  %v984 = vunpack.c.l.b16 %v908
  %v985 = vunpack.c.h.b16 %v908
  %v986 = vunpack.c.l.b16 %v909
  %v987 = vunpack.c.h.b16 %v909
  %v988 = vunpack.c.l.b16 %v910
  %v989 = vunpack.c.h.b16 %v910
  %v990 = vunpack.c.l.b16 %v911
  %v991 = vunpack.c.h.b16 %v911
  %v992 = vunpack.c.l.b16 %v912
  %v993 = vunpack.c.h.b16 %v912
  %v994 = vunpack.c.l.b16 %v913
  %v995 = vunpack.c.h.b16 %v913
  %v996 = vunpack.c.l.b16 %v914
  %v997 = vunpack.c.h.b16 %v914
  %v998 = vunpack.c.l.b16 %v915
  %v999 = vunpack.c.h.b16 %v915
  %v1000 = vunpack.c.l.b16 %v916
  %v1001 = vunpack.c.h.b16 %v916
  %v1002 = vunpack.c.l.b16 %v917
  %v1003 = vunpack.c.h.b16 %v917
  %v1004 = vunpack.c.l.b16 %v918
  %v1005 = vunpack.c.h.b16 %v918
  %v1006 = vunpack.c.l.b16 %v919
  %v1007 = vunpack.c.h.b16 %v919
  %v1008 = vunpack.c.l.b16 %v920
  %v1009 = vunpack.c.h.b16 %v920
  %v1010 = vunpack.c.l.b16 %v921
  %v1011 = vunpack.c.h.b16 %v921
  %v1012 = vunpack.c.l.b16 %v922
  %v1013 = vunpack.c.h.b16 %v922
  %v1014 = vunpack.c.l.b16 %v923
  %v1015 = vunpack.c.h.b16 %v923
  %v1016 = vunpack.c.l.b16 %v924
  %v1017 = vunpack.c.h.b16 %v924
  %v1018 = vunpack.c.l.b16 %v925
  %v1019 = vunpack.c.h.b16 %v925
  %v1020 = vunpack.c.l.b16 %v926
  %v1021 = vunpack.c.h.b16 %v926
  %v1022 = vunpack.c.l.b16 %v927
  %v1023 = vunpack.c.h.b16 %v927
  %v1024 = vpack.c.b16 %v960, %v960
  %v1025 = vpack.c.b16 %v961, %v961
  %v1026 = vpack.c.b16 %v962, %v962
  %v1027 = vpack.c.b16 %v963, %v963
  %v1028 = vpack.c.b16 %v964, %v964
  %v1029 = vpack.c.b16 %v965, %v965
  %v1030 = vpack.c.b16 %v966, %v966
  %v1031 = vpack.c.b16 %v967, %v967
  %v1032 = vpack.c.b16 %v968, %v968
  %v1033 = vpack.c.b16 %v969, %v969
  %v1034 = vpack.c.b16 %v970, %v970
  %v1035 = vpack.c.b16 %v971, %v971
  %v1036 = vpack.c.b16 %v972, %v972
  %v1037 = vpack.c.b16 %v973, %v973
  %v1038 = vpack.c.b16 %v974, %v974
  %v1039 = vpack.c.b16 %v975, %v975
  %v1040 = vpack.c.b16 %v976, %v976
  %v1041 = vpack.c.b16 %v977, %v977
  %v1042 = vpack.c.b16 %v978, %v978
  %v1043 = vpack.c.b16 %v979, %v979
  %v1044 = vpack.c.b16 %v980, %v980
  %v1045 = vpack.c.b16 %v981, %v981
  %v1046 = vpack.c.b16 %v982, %v982
  %v1047 = vpack.c.b16 %v983, %v983
  %v1048 = vpack.c.b16 %v984, %v984
  %v1049 = vpack.c.b16 %v985, %v985
  %v1050 = vpack.c.b16 %v986, %v986
  %v1051 = vpack.c.b16 %v987, %v987
  %v1052 = vpack.c.b16 %v988, %v988
  %v1053 = vpack.c.b16 %v989, %v989
  %v1054 = vpack.c.b16 %v990, %v990
  %v1055 = vpack.c.b16 %v991, %v991
  %v1056 = vpack.c.b16 %v992, %v992
  %v1057 = vpack.c.b16 %v993, %v993
  %v1058 = vpack.c.b16 %v994, %v994
  %v1059 = vpack.c.b16 %v995, %v995
  %v1060 = vpack.c.b16 %v996, %v996
  %v1061 = vpack.c.b16 %v997, %v997
  %v1062 = vpack.c.b16 %v998, %v998
  %v1063 = vpack.c.b16 %v999, %v999
  %v1064 = vpack.c.b16 %v1000, %v1000
  %v1065 = vpack.c.b16 %v1001, %v1001
  %v1066 = vpack.c.b16 %v1002, %v1002
  %v1067 = vpack.c.b16 %v1003, %v1003
  %v1068 = vpack.c.b16 %v1004, %v1004
  %v1069 = vpack.c.b16 %v1005, %v1005
  %v1070 = vpack.c.b16 %v1006, %v1006
  %v1071 = vpack.c.b16 %v1007, %v1007
  %v1072 = vpack.c.b16 %v1008, %v1008
  %v1073 = vpack.c.b16 %v1009, %v1009
  %v1074 = vpack.c.b16 %v1010, %v1010
  %v1075 = vpack.c.b16 %v1011, %v1011
  %v1076 = vpack.c.b16 %v1012, %v1012
  %v1077 = vpack.c.b16 %v1013, %v1013
  %v1078 = vpack.c.b16 %v1014, %v1014
  %v1079 = vpack.c.b16 %v1015, %v1015
  %v1080 = vpack.c.b16 %v1016, %v1016
  %v1081 = vpack.c.b16 %v1017, %v1017
  %v1082 = vpack.c.b16 %v1018, %v1018
  %v1083 = vpack.c.b16 %v1019, %v1019
  %v1084 = vpack.c.b16 %v1020, %v1020
  %v1085 = vpack.c.b16 %v1021, %v1021
  %v1086 = vpack.c.b16 %v1022, %v1022
  %v1087 = vpack.c.b16 %v1023, %v1023
  %vm1152 = vcmask 257024
  %1153 = vst.msk [vmem:[%s3] sm:$0xf] %vm1152, %v1024
  %1154 = vst.msk [vmem:[%s3 + $0x4] sm:$0xf] %vm1152, %v1025
  %1155 = vst.msk [vmem:[%s3 + $0x8] sm:$0xf] %vm1152, %v1026
  %1156 = vst.msk [vmem:[%s3 + $0xc] sm:$0xf] %vm1152, %v1027
  %1157 = vst.msk [vmem:[%s3 + $0x10] sm:$0xf] %vm1152, %v1028
  %1158 = vst.msk [vmem:[%s3 + $0x14] sm:$0xf] %vm1152, %v1029
  %1159 = vst.msk [vmem:[%s3 + $0x18] sm:$0xf] %vm1152, %v1030
  %1160 = vst.msk [vmem:[%s3 + $0x1c] sm:$0xf] %vm1152, %v1031
  %1161 = vst.msk [vmem:[%s3 + $0x20] sm:$0xf] %vm1152, %v1032
  %1162 = vst.msk [vmem:[%s3 + $0x24] sm:$0xf] %vm1152, %v1033
  %1163 = vst.msk [vmem:[%s3 + $0x28] sm:$0xf] %vm1152, %v1034
  %1164 = vst.msk [vmem:[%s3 + $0x2c] sm:$0xf] %vm1152, %v1035
  %1165 = vst.msk [vmem:[%s3 + $0x30] sm:$0xf] %vm1152, %v1036
  %1166 = vst.msk [vmem:[%s3 + $0x34] sm:$0xf] %vm1152, %v1037
  %1167 = vst.msk [vmem:[%s3 + $0x38] sm:$0xf] %vm1152, %v1038
  %1168 = vst.msk [vmem:[%s3 + $0x3c] sm:$0xf] %vm1152, %v1039
  %1169 = vst.msk [vmem:[%s3 + $0x40] sm:$0xf] %vm1152, %v1040
  %1170 = vst.msk [vmem:[%s3 + $0x44] sm:$0xf] %vm1152, %v1041
  %1171 = vst.msk [vmem:[%s3 + $0x48] sm:$0xf] %vm1152, %v1042
  %1172 = vst.msk [vmem:[%s3 + $0x4c] sm:$0xf] %vm1152, %v1043
  %1173 = vst.msk [vmem:[%s3 + $0x50] sm:$0xf] %vm1152, %v1044
  %1174 = vst.msk [vmem:[%s3 + $0x54] sm:$0xf] %vm1152, %v1045
  %1175 = vst.msk [vmem:[%s3 + $0x58] sm:$0xf] %vm1152, %v1046
  %1176 = vst.msk [vmem:[%s3 + $0x5c] sm:$0xf] %vm1152, %v1047
  %1177 = vst.msk [vmem:[%s3 + $0x60] sm:$0xf] %vm1152, %v1048
  %1178 = vst.msk [vmem:[%s3 + $0x64] sm:$0xf] %vm1152, %v1049
  %1179 = vst.msk [vmem:[%s3 + $0x68] sm:$0xf] %vm1152, %v1050
  %1180 = vst.msk [vmem:[%s3 + $0x6c] sm:$0xf] %vm1152, %v1051
  %1181 = vst.msk [vmem:[%s3 + $0x70] sm:$0xf] %vm1152, %v1052
  %1182 = vst.msk [vmem:[%s3 + $0x74] sm:$0xf] %vm1152, %v1053
  %1183 = vst.msk [vmem:[%s3 + $0x78] sm:$0xf] %vm1152, %v1054
  %1184 = vst.msk [vmem:[%s3 + $0x7c] sm:$0xf] %vm1152, %v1055
  %1185 = vst.msk [vmem:[%s3 + $0x80] sm:$0xf] %vm1152, %v1056
  %1186 = vst.msk [vmem:[%s3 + $0x84] sm:$0xf] %vm1152, %v1057
  %1187 = vst.msk [vmem:[%s3 + $0x88] sm:$0xf] %vm1152, %v1058
  %1188 = vst.msk [vmem:[%s3 + $0x8c] sm:$0xf] %vm1152, %v1059
  %1189 = vst.msk [vmem:[%s3 + $0x90] sm:$0xf] %vm1152, %v1060
  %1190 = vst.msk [vmem:[%s3 + $0x94] sm:$0xf] %vm1152, %v1061
  %1191 = vst.msk [vmem:[%s3 + $0x98] sm:$0xf] %vm1152, %v1062
  %1192 = vst.msk [vmem:[%s3 + $0x9c] sm:$0xf] %vm1152, %v1063
  %1193 = vst.msk [vmem:[%s3 + $0xa0] sm:$0xf] %vm1152, %v1064
  %1194 = vst.msk [vmem:[%s3 + $0xa4] sm:$0xf] %vm1152, %v1065
  %1195 = vst.msk [vmem:[%s3 + $0xa8] sm:$0xf] %vm1152, %v1066
  %1196 = vst.msk [vmem:[%s3 + $0xac] sm:$0xf] %vm1152, %v1067
  %1197 = vst.msk [vmem:[%s3 + $0xb0] sm:$0xf] %vm1152, %v1068
  %1198 = vst.msk [vmem:[%s3 + $0xb4] sm:$0xf] %vm1152, %v1069
  %1199 = vst.msk [vmem:[%s3 + $0xb8] sm:$0xf] %vm1152, %v1070
  %1200 = vst.msk [vmem:[%s3 + $0xbc] sm:$0xf] %vm1152, %v1071
  %1201 = vst.msk [vmem:[%s3 + $0xc0] sm:$0xf] %vm1152, %v1072
  %1202 = vst.msk [vmem:[%s3 + $0xc4] sm:$0xf] %vm1152, %v1073
  %1203 = vst.msk [vmem:[%s3 + $0xc8] sm:$0xf] %vm1152, %v1074
  %1204 = vst.msk [vmem:[%s3 + $0xcc] sm:$0xf] %vm1152, %v1075
  %1205 = vst.msk [vmem:[%s3 + $0xd0] sm:$0xf] %vm1152, %v1076
  %1206 = vst.msk [vmem:[%s3 + $0xd4] sm:$0xf] %vm1152, %v1077
  %1207 = vst.msk [vmem:[%s3 + $0xd8] sm:$0xf] %vm1152, %v1078
  %1208 = vst.msk [vmem:[%s3 + $0xdc] sm:$0xf] %vm1152, %v1079
  %1209 = vst.msk [vmem:[%s3 + $0xe0] sm:$0xf] %vm1152, %v1080
  %1210 = vst.msk [vmem:[%s3 + $0xe4] sm:$0xf] %vm1152, %v1081
  %1211 = vst.msk [vmem:[%s3 + $0xe8] sm:$0xf] %vm1152, %v1082
  %1212 = vst.msk [vmem:[%s3 + $0xec] sm:$0xf] %vm1152, %v1083
  %1213 = vst.msk [vmem:[%s3 + $0xf0] sm:$0xf] %vm1152, %v1084
  %1214 = vst.msk [vmem:[%s3 + $0xf4] sm:$0xf] %vm1152, %v1085
  %1215 = vst.msk [vmem:[%s3 + $0xf8] sm:$0xf] %vm1152, %v1086
  %1216 = vst.msk [vmem:[%s3 + $0xfc] sm:$0xf] %vm1152, %v1087
  // Predicated region
  $region14: #{vae_forward.18} parent=0 // pred_check
    _
  $region15: #{vae_forward.18} parent=0 // pred_check_branch
    %1218 = sbr.rel (0) target = $region17
  $region16: #{vae_forward.18} parent=0 // pred_region
    _
  $region17: #{vae_forward.18} parent=0 // pred_fallthru
    _
  // Predicated region
  $region18: #{vae_forward.18} parent=0 // pred_check
    _
  $region19: #{vae_forward.18} parent=0 // pred_check_branch
    %1220 = sbr.rel (0) target = $region21
  $region20: #{vae_forward.18} parent=0 // pred_region
    _
  $region21: #{vae_forward.18} parent=0 // pred_fallthru
    _

// kernel: vae_forward.19
$region0: #{vae_forward.19}
  #allocation0 [shape = 'u32[]', space=smem, size = 0x4, offset = 0x4, fixed_abs, tag = 'smem constant byte address 0x4 - core index']
  #allocation1 [shape = 'u32[144,128]{1,0:T(1,128)}', space=vmem, size = 0x12000, scoped, tag = 'internal scratch']
  %s0 = inlined_call_operand.vmem [shape: bf16[2048,72], index: 0, kind: input, shape index: {}]
  %s1 = inlined_call_operand.vmem [shape: bf16[72,12], index: 1, kind: input, shape index: {}]
  %s2 = inlined_call_operand.vmem [shape: f32[1,12], index: 2, kind: input, shape index: {}]
  %s3 = inlined_call_operand.vmem [shape: f32[2048,12], index: 3, kind: output, shape index: {}]
  %s4 = sld [smem:[#allocation0]]
  $region45: #{vae_forward.19} parent=0
    _
  %s6 = ssub.s32 1, %s4
  %s7 = scalar_select 0, %s6, %s4
  loop: start=0, step=1, limit=4
  $region2: #{vae_forward.19} parent=0 // loop_pre_header
    _
  $region3: #{vae_forward.19} parent=0 // loop_header
    %s9 = sphi 0, %s13
    %p10 = scmp.ge.s32.totalorder %s9, 4
    %s19 = sphi 0, %s21
    %s22 = sphi 0, %s19
    %s23 = sphi 0, %s22
    %s39 = sphi 0, %s23
    %s43 = sphi 0, %s43
    %s45 = sphi 0, %s43
    %s46 = sphi 0, %s45
    %s60 = sphi 0, %s46
    %s64 = sphi 0, %s64
    %s66 = sphi 0, %s64
    %s67 = sphi 0, %s66
    %s81 = sphi 0, %s67
    %s87 = sphi 0, %s89
    %s90 = sphi 0, %s87
    %s91 = sphi 0, %s90
    %s107 = sphi 0, %s91
  $region4: #{vae_forward.19} parent=0 // loop_header_branch
    %12 = sbr.rel (%p10) target = $region8
  $region5: #{vae_forward.19} parent=0 // loop_body
    %s14 = ssub.s32 %s9, 1
    %s15 = ssub.s32 %s9, 2
    %s16 = sadd.s32 %s9, 1
    %s17 = ssub.s32 %s9, %s16
    %p18 = scmp.eq.s32.totalorder %s17, 0
    %s20 = sadd.s32 %s19, 1
    %s21 = scalar_select %p18, %s19, %s20
    %p24 = pneg %p18
    %p25 = scmp.eq.s32.totalorder %s9, 1
    %p26 = por %p24, %p25
    %p27 = scmp.ne.s32.totalorder %s19, %s22
    %p28 = scmp.eq.s32.totalorder %s9, 0
    %p29 = por %p27, %p28
    %p30 = scmp.ne.s32.totalorder %s19, %s22
    %p31 = scmp.eq.s32.totalorder %s14, 1
    %p32 = por %p30, %p31
    %p33 = scmp.ne.s32.totalorder %s22, %s23
    %p34 = scmp.eq.s32.totalorder %s14, 0
    %p35 = por %p33, %p34
    %p36 = scmp.ne.s32.totalorder %s22, %s23
    %p37 = scmp.eq.s32.totalorder %s15, 1
    %p38 = por %p36, %p37
    %p40 = scmp.ne.s32.totalorder %s23, %s39
    %p41 = scmp.eq.s32.totalorder %s15, 0
    %p42 = por %p40, %p41
    %s44 = sadd.s32 %s43, 1
    %p47 = scmp.eq.s32.totalorder %s9, 1
    %p48 = scmp.ne.s32.totalorder %s43, %s45
    %p49 = scmp.eq.s32.totalorder %s9, 0
    %p50 = por %p48, %p49
    %p51 = scmp.ne.s32.totalorder %s43, %s45
    %p52 = scmp.eq.s32.totalorder %s14, 1
    %p53 = por %p51, %p52
    %p54 = scmp.ne.s32.totalorder %s45, %s46
    %p55 = scmp.eq.s32.totalorder %s14, 0
    %p56 = por %p54, %p55
    %p57 = scmp.ne.s32.totalorder %s45, %s46
    %p58 = scmp.eq.s32.totalorder %s15, 1
    %p59 = por %p57, %p58
    %p61 = scmp.ne.s32.totalorder %s46, %s60
    %p62 = scmp.eq.s32.totalorder %s15, 0
    %p63 = por %p61, %p62
    %s65 = sadd.s32 %s64, 1
    %p68 = scmp.eq.s32.totalorder %s9, 1
    %p69 = scmp.ne.s32.totalorder %s64, %s66
    %p70 = scmp.eq.s32.totalorder %s9, 0
    %p71 = por %p69, %p70
    %p72 = scmp.ne.s32.totalorder %s64, %s66
    %p73 = scmp.eq.s32.totalorder %s14, 1
    %p74 = por %p72, %p73
    %p75 = scmp.ne.s32.totalorder %s66, %s67
    %p76 = scmp.eq.s32.totalorder %s14, 0
    %p77 = por %p75, %p76
    %p78 = scmp.ne.s32.totalorder %s66, %s67
    %p79 = scmp.eq.s32.totalorder %s15, 1
    %p80 = por %p78, %p79
    %p82 = scmp.ne.s32.totalorder %s67, %s81
    %p83 = scmp.eq.s32.totalorder %s15, 0
    %p84 = por %p82, %p83
    %s85 = ssub.s32 %s9, %s16
    %p86 = scmp.eq.s32.totalorder %s85, 0
    %s88 = sadd.s32 %s87, 1
    %s89 = scalar_select %p86, %s87, %s88
    %p92 = pneg %p86
    %p93 = scmp.eq.s32.totalorder %s9, 1
    %p94 = por %p92, %p93
    %p95 = scmp.ne.s32.totalorder %s87, %s90
    %p96 = scmp.eq.s32.totalorder %s9, 0
    %p97 = por %p95, %p96
    %p98 = scmp.ne.s32.totalorder %s87, %s90
    %p99 = scmp.eq.s32.totalorder %s14, 1
    %p100 = por %p98, %p99
    %p101 = scmp.ne.s32.totalorder %s90, %s91
    %p102 = scmp.eq.s32.totalorder %s14, 0
    %p103 = por %p101, %p102
    %p104 = scmp.ne.s32.totalorder %s90, %s91
    %p105 = scmp.eq.s32.totalorder %s15, 1
    %p106 = por %p104, %p105
    %p108 = scmp.ne.s32.totalorder %s91, %s107
    %p109 = scmp.eq.s32.totalorder %s15, 0
    %p110 = por %p108, %p109
    %p111 = scmp.le.s32.totalorder 1, %s9
    %p112 = scmp.lt.s32.totalorder %s9, 3
    %p113 = pnand %p111, %p112
    %p114 = pneg %p113
    // Predicated region
    $region9: #{vae_forward.19} parent=5 // pred_check
      _
    $region10: #{vae_forward.19} parent=5 // pred_check_branch
      %116 = sbr.rel (%p113) target = $region12
    $region11: #{vae_forward.19} parent=5 // pred_region
      %s117 = ssub.s32 %s9, 1
      // Predicated region
      $region13: #{vae_forward.19} parent=11 // pred_check
        %p118 = pneg %p56
      $region14: #{vae_forward.19} parent=11 // pred_check_branch
        %120 = sbr.rel (%p118) target = $region16
      $region15: #{vae_forward.19} parent=11 // pred_region
        _
      $region16: #{vae_forward.19} parent=11 // pred_fallthru
        _
      // Predicated region
      $region17: #{vae_forward.19} parent=11 // pred_check
        %p121 = pneg %p77
      $region18: #{vae_forward.19} parent=11 // pred_check_branch
        %123 = sbr.rel (%p121) target = $region20
      $region19: #{vae_forward.19} parent=11 // pred_region
        _
      $region20: #{vae_forward.19} parent=11 // pred_fallthru
        _
    $region12: #{vae_forward.19} parent=5 // pred_fallthru
      _
    %p124 = scmp.lt.s32.totalorder %s9, 2
    // Predicated region
    $region21: #{vae_forward.19} parent=5 // pred_check
      %p125 = pneg %p124
    $region22: #{vae_forward.19} parent=5 // pred_check_branch
      %127 = sbr.rel (%p125) target = $region24
    $region23: #{vae_forward.19} parent=5 // pred_region
      // Predicated region
      $region25: #{vae_forward.19} parent=23 // pred_check
        %p128 = pneg %p29
      $region26: #{vae_forward.19} parent=23 // pred_check_branch
        %130 = sbr.rel (%p128) target = $region28
      $region27: #{vae_forward.19} parent=23 // pred_region
        %s131 = smul.u32 128, %s9
        %p132 = scmp.lt.s32.totalorder %s131, 255
        %s133 = scalar_select %p132, %s131, 255
        %s134 = smul.addr %s133, 4
        %s135 = scalar_lea.vmem %s0, %s134
        %s136 = smul.u32 128, %s9
      $region28: #{vae_forward.19} parent=23 // pred_fallthru
        _
    $region24: #{vae_forward.19} parent=5 // pred_fallthru
      _
    %p137 = scmp.le.s32.totalorder 1, %s9
    %p138 = scmp.lt.s32.totalorder %s9, 3
    %p139 = pnand %p137, %p138
    %p140 = pneg %p139
    // Predicated region
    $region29: #{vae_forward.19} parent=5 // pred_check
      _
    $region30: #{vae_forward.19} parent=5 // pred_check_branch
      %142 = sbr.rel (%p139) target = $region32
    $region31: #{vae_forward.19} parent=5 // pred_region
      %s143 = ssub.s32 %s9, 1
      %s144 = smul.u32 128, %s14
      %p145 = scmp.lt.s32.totalorder %s144, 255
      %s146 = scalar_select %p145, %s144, 255
      %s147 = smul.addr %s146, 4
      %s148 = scalar_lea.vmem %s0, %s147
      %p149 = pneg %p35
      %p150 = pneg %p32
      %p151 = pneg %p56
      %p152 = pneg %p53
      %p153 = pneg %p77
      %p154 = pneg %p74
      %p155 = pneg %p103
      %p156 = pneg %p100
      %s157 = smul.u32 128, %s14
      %p158 = scmp.lt.s32.totalorder %s157, 255
      %s159 = scalar_select %p158, %s157, 255
      %s160 = smul.addr %s159, 8
      %s161 = scalar_lea.vmem %s3, %s160
      %s162 = smul.u32 128, %s14
      %p163 = scmp.lt.s32.totalorder %s162, 255
      %s164 = scalar_select %p163, %s162, 255
      %s165 = smul.addr %s164, 4
      %s166 = scalar_lea.vmem %s0, %s165
      %s167 = smul.u32 128, %s14
      %s168 = smul.u32 128, %s14
      %p169 = scmp.lt.s32.totalorder %s168, 255
      %s170 = scalar_select %p169, %s168, 255
      %s171 = smul.addr %s170, 8
      %s172 = scalar_lea.vmem %s3, %s171
      %s173 = smul.u32 128, %s14
      %v175 = vld [vmem:[%s166] sm:$0xf]
      %v176 = vld [vmem:[%s166 + $0x4] sm:$0xf]
      %v177 = vld [vmem:[%s166 + $0x8] sm:$0xf]
      %v178 = vld [vmem:[%s166 + $0xc] sm:$0xf]
      %v179 = vld [vmem:[%s166 + $0x10] sm:$0xf]
      %v180 = vld [vmem:[%s166 + $0x14] sm:$0xf]
      %v181 = vld [vmem:[%s166 + $0x18] sm:$0xf]
      %v182 = vld [vmem:[%s166 + $0x1c] sm:$0xf]
      %v183 = vld [vmem:[%s166 + $0x20] sm:$0xf]
      %v184 = vld [vmem:[%s166 + $0x24] sm:$0xf]
      %v185 = vld [vmem:[%s166 + $0x28] sm:$0xf]
      %v186 = vld [vmem:[%s166 + $0x2c] sm:$0xf]
      %v187 = vld [vmem:[%s166 + $0x30] sm:$0xf]
      %v188 = vld [vmem:[%s166 + $0x34] sm:$0xf]
      %v189 = vld [vmem:[%s166 + $0x38] sm:$0xf]
      %v190 = vld [vmem:[%s166 + $0x3c] sm:$0xf]
      %v191 = vld [vmem:[%s166 + $0x40] sm:$0xf]
      %v192 = vld [vmem:[%s166 + $0x44] sm:$0xf]
      %v193 = vld [vmem:[%s166 + $0x48] sm:$0xf]
      %v194 = vld [vmem:[%s166 + $0x4c] sm:$0xf]
      %v195 = vld [vmem:[%s166 + $0x50] sm:$0xf]
      %v196 = vld [vmem:[%s166 + $0x54] sm:$0xf]
      %v197 = vld [vmem:[%s166 + $0x58] sm:$0xf]
      %v198 = vld [vmem:[%s166 + $0x5c] sm:$0xf]
      %v199 = vld [vmem:[%s166 + $0x60] sm:$0xf]
      %v200 = vld [vmem:[%s166 + $0x64] sm:$0xf]
      %v201 = vld [vmem:[%s166 + $0x68] sm:$0xf]
      %v202 = vld [vmem:[%s166 + $0x6c] sm:$0xf]
      %v203 = vld [vmem:[%s166 + $0x70] sm:$0xf]
      %v204 = vld [vmem:[%s166 + $0x74] sm:$0xf]
      %v205 = vld [vmem:[%s166 + $0x78] sm:$0xf]
      %v206 = vld [vmem:[%s166 + $0x7c] sm:$0xf]
      %v207 = vld [vmem:[%s166 + $0x80] sm:$0xf]
      %v208 = vld [vmem:[%s166 + $0x84] sm:$0xf]
      %v209 = vld [vmem:[%s166 + $0x88] sm:$0xf]
      %v210 = vld [vmem:[%s166 + $0x8c] sm:$0xf]
      %v211 = vld [vmem:[%s166 + $0x90] sm:$0xf]
      %v212 = vld [vmem:[%s166 + $0x94] sm:$0xf]
      %v213 = vld [vmem:[%s166 + $0x98] sm:$0xf]
      %v214 = vld [vmem:[%s166 + $0x9c] sm:$0xf]
      %v215 = vld [vmem:[%s166 + $0xa0] sm:$0xf]
      %v216 = vld [vmem:[%s166 + $0xa4] sm:$0xf]
      %v217 = vld [vmem:[%s166 + $0xa8] sm:$0xf]
      %v218 = vld [vmem:[%s166 + $0xac] sm:$0xf]
      %v219 = vld [vmem:[%s166 + $0xb0] sm:$0xf]
      %v220 = vld [vmem:[%s166 + $0xb4] sm:$0xf]
      %v221 = vld [vmem:[%s166 + $0xb8] sm:$0xf]
      %v222 = vld [vmem:[%s166 + $0xbc] sm:$0xf]
      %v223 = vld [vmem:[%s166 + $0xc0] sm:$0xf]
      %v224 = vld [vmem:[%s166 + $0xc4] sm:$0xf]
      %v225 = vld [vmem:[%s166 + $0xc8] sm:$0xf]
      %v226 = vld [vmem:[%s166 + $0xcc] sm:$0xf]
      %v227 = vld [vmem:[%s166 + $0xd0] sm:$0xf]
      %v228 = vld [vmem:[%s166 + $0xd4] sm:$0xf]
      %v229 = vld [vmem:[%s166 + $0xd8] sm:$0xf]
      %v230 = vld [vmem:[%s166 + $0xdc] sm:$0xf]
      %v231 = vld [vmem:[%s166 + $0xe0] sm:$0xf]
      %v232 = vld [vmem:[%s166 + $0xe4] sm:$0xf]
      %v233 = vld [vmem:[%s166 + $0xe8] sm:$0xf]
      %v234 = vld [vmem:[%s166 + $0xec] sm:$0xf]
      %v235 = vld [vmem:[%s166 + $0xf0] sm:$0xf]
      %v236 = vld [vmem:[%s166 + $0xf4] sm:$0xf]
      %v237 = vld [vmem:[%s166 + $0xf8] sm:$0xf]
      %v238 = vld [vmem:[%s166 + $0xfc] sm:$0xf]
      %v239 = vld [vmem:[%s166 + $0x100] sm:$0xf]
      %v240 = vld [vmem:[%s166 + $0x104] sm:$0xf]
      %v241 = vld [vmem:[%s166 + $0x108] sm:$0xf]
      %v242 = vld [vmem:[%s166 + $0x10c] sm:$0xf]
      %v243 = vld [vmem:[%s166 + $0x110] sm:$0xf]
      %v244 = vld [vmem:[%s166 + $0x114] sm:$0xf]
      %v245 = vld [vmem:[%s166 + $0x118] sm:$0xf]
      %v246 = vld [vmem:[%s166 + $0x11c] sm:$0xf]
      %v247 = vld [vmem:[%s166 + $0x120] sm:$0xf]
      %v248 = vld [vmem:[%s166 + $0x124] sm:$0xf]
      %v249 = vld [vmem:[%s166 + $0x128] sm:$0xf]
      %v250 = vld [vmem:[%s166 + $0x12c] sm:$0xf]
      %v251 = vld [vmem:[%s166 + $0x130] sm:$0xf]
      %v252 = vld [vmem:[%s166 + $0x134] sm:$0xf]
      %v253 = vld [vmem:[%s166 + $0x138] sm:$0xf]
      %v254 = vld [vmem:[%s166 + $0x13c] sm:$0xf]
      %v255 = vld [vmem:[%s166 + $0x140] sm:$0xf]
      %v256 = vld [vmem:[%s166 + $0x144] sm:$0xf]
      %v257 = vld [vmem:[%s166 + $0x148] sm:$0xf]
      %v258 = vld [vmem:[%s166 + $0x14c] sm:$0xf]
      %v259 = vld [vmem:[%s166 + $0x150] sm:$0xf]
      %v260 = vld [vmem:[%s166 + $0x154] sm:$0xf]
      %v261 = vld [vmem:[%s166 + $0x158] sm:$0xf]
      %v262 = vld [vmem:[%s166 + $0x15c] sm:$0xf]
      %v263 = vld [vmem:[%s166 + $0x160] sm:$0xf]
      %v264 = vld [vmem:[%s166 + $0x164] sm:$0xf]
      %v265 = vld [vmem:[%s166 + $0x168] sm:$0xf]
      %v266 = vld [vmem:[%s166 + $0x16c] sm:$0xf]
      %v267 = vld [vmem:[%s166 + $0x170] sm:$0xf]
      %v268 = vld [vmem:[%s166 + $0x174] sm:$0xf]
      %v269 = vld [vmem:[%s166 + $0x178] sm:$0xf]
      %v270 = vld [vmem:[%s166 + $0x17c] sm:$0xf]
      %v271 = vld [vmem:[%s166 + $0x180] sm:$0xf]
      %v272 = vld [vmem:[%s166 + $0x184] sm:$0xf]
      %v273 = vld [vmem:[%s166 + $0x188] sm:$0xf]
      %v274 = vld [vmem:[%s166 + $0x18c] sm:$0xf]
      %v275 = vld [vmem:[%s166 + $0x190] sm:$0xf]
      %v276 = vld [vmem:[%s166 + $0x194] sm:$0xf]
      %v277 = vld [vmem:[%s166 + $0x198] sm:$0xf]
      %v278 = vld [vmem:[%s166 + $0x19c] sm:$0xf]
      %v279 = vld [vmem:[%s166 + $0x1a0] sm:$0xf]
      %v280 = vld [vmem:[%s166 + $0x1a4] sm:$0xf]
      %v281 = vld [vmem:[%s166 + $0x1a8] sm:$0xf]
      %v282 = vld [vmem:[%s166 + $0x1ac] sm:$0xf]
      %v283 = vld [vmem:[%s166 + $0x1b0] sm:$0xf]
      %v284 = vld [vmem:[%s166 + $0x1b4] sm:$0xf]
      %v285 = vld [vmem:[%s166 + $0x1b8] sm:$0xf]
      %v286 = vld [vmem:[%s166 + $0x1bc] sm:$0xf]
      %v287 = vld [vmem:[%s166 + $0x1c0] sm:$0xf]
      %v288 = vld [vmem:[%s166 + $0x1c4] sm:$0xf]
      %v289 = vld [vmem:[%s166 + $0x1c8] sm:$0xf]
      %v290 = vld [vmem:[%s166 + $0x1cc] sm:$0xf]
      %v291 = vld [vmem:[%s166 + $0x1d0] sm:$0xf]
      %v292 = vld [vmem:[%s166 + $0x1d4] sm:$0xf]
      %v293 = vld [vmem:[%s166 + $0x1d8] sm:$0xf]
      %v294 = vld [vmem:[%s166 + $0x1dc] sm:$0xf]
      %v295 = vld [vmem:[%s166 + $0x1e0] sm:$0xf]
      %v296 = vld [vmem:[%s166 + $0x1e4] sm:$0xf]
      %v297 = vld [vmem:[%s166 + $0x1e8] sm:$0xf]
      %v298 = vld [vmem:[%s166 + $0x1ec] sm:$0xf]
      %v299 = vld [vmem:[%s166 + $0x1f0] sm:$0xf]
      %v300 = vld [vmem:[%s166 + $0x1f4] sm:$0xf]
      %v301 = vld [vmem:[%s166 + $0x1f8] sm:$0xf]
      %v302 = vld [vmem:[%s166 + $0x1fc] sm:$0xf]
      %v303 = vld [vmem:[%s1] sm:$0xf]
      %v304 = vld [vmem:[%s1 + $0x4] sm:$0xf]
      %v305 = vld [vmem:[%s1 + $0x8] sm:$0xf]
      %v306 = vld [vmem:[%s1 + $0xc] sm:$0xf]
      %v307 = vld [vmem:[%s1 + $0x10] sm:$0xf]
      %v308 = vld [vmem:[%s1 + $0x14] sm:$0xf]
      %v309 = vld [vmem:[%s1 + $0x18] sm:$0xf]
      %v310 = vld [vmem:[%s1 + $0x1c] sm:$0xf]
      %v311 = vld [vmem:[%s1 + $0x20] sm:$0xf]
      %v312 = vld [vmem:[%s2] sm:$0x1]
      %v314 = vlaneseq
      %v315 = vshrl.u32 %v314, 7
      %v316 = vsub.s32 0, %v315
      %v317 = vrot.slane %v312, %v316
      %v447 = vunpack.c.l.b16 %v175
      %v448 = vunpack.c.l.b16 %v176
      %v449 = vunpack.c.l.b16 %v177
      %v450 = vunpack.c.l.b16 %v178
      %v451 = vunpack.c.l.b16 %v179
      %v452 = vunpack.c.l.b16 %v180
      %v453 = vunpack.c.l.b16 %v181
      %v454 = vunpack.c.l.b16 %v182
      %v455 = vunpack.c.l.b16 %v183
      %v456 = vunpack.c.l.b16 %v184
      %v457 = vunpack.c.l.b16 %v185
      %v458 = vunpack.c.l.b16 %v186
      %v459 = vunpack.c.l.b16 %v187
      %v460 = vunpack.c.l.b16 %v188
      %v461 = vunpack.c.l.b16 %v189
      %v462 = vunpack.c.l.b16 %v190
      %v463 = vunpack.c.l.b16 %v191
      %v464 = vunpack.c.l.b16 %v192
      %v465 = vunpack.c.l.b16 %v193
      %v466 = vunpack.c.l.b16 %v194
      %v467 = vunpack.c.l.b16 %v195
      %v468 = vunpack.c.l.b16 %v196
      %v469 = vunpack.c.l.b16 %v197
      %v470 = vunpack.c.l.b16 %v198
      %v471 = vunpack.c.l.b16 %v199
      %v472 = vunpack.c.l.b16 %v200
      %v473 = vunpack.c.l.b16 %v201
      %v474 = vunpack.c.l.b16 %v202
      %v475 = vunpack.c.l.b16 %v203
      %v476 = vunpack.c.l.b16 %v204
      %v477 = vunpack.c.l.b16 %v205
      %v478 = vunpack.c.l.b16 %v206
      %v479 = vunpack.c.l.b16 %v207
      %v480 = vunpack.c.l.b16 %v208
      %v481 = vunpack.c.l.b16 %v209
      %v482 = vunpack.c.l.b16 %v210
      %v483 = vunpack.c.l.b16 %v211
      %v484 = vunpack.c.l.b16 %v212
      %v485 = vunpack.c.l.b16 %v213
      %v486 = vunpack.c.l.b16 %v214
      %v487 = vunpack.c.l.b16 %v215
      %v488 = vunpack.c.l.b16 %v216
      %v489 = vunpack.c.l.b16 %v217
      %v490 = vunpack.c.l.b16 %v218
      %v491 = vunpack.c.l.b16 %v219
      %v492 = vunpack.c.l.b16 %v220
      %v493 = vunpack.c.l.b16 %v221
      %v494 = vunpack.c.l.b16 %v222
      %v495 = vunpack.c.l.b16 %v223
      %v496 = vunpack.c.l.b16 %v224
      %v497 = vunpack.c.l.b16 %v225
      %v498 = vunpack.c.l.b16 %v226
      %v499 = vunpack.c.l.b16 %v227
      %v500 = vunpack.c.l.b16 %v228
      %v501 = vunpack.c.l.b16 %v229
      %v502 = vunpack.c.l.b16 %v230
      %v503 = vunpack.c.l.b16 %v231
      %v504 = vunpack.c.l.b16 %v232
      %v505 = vunpack.c.l.b16 %v233
      %v506 = vunpack.c.l.b16 %v234
      %v507 = vunpack.c.l.b16 %v235
      %v508 = vunpack.c.l.b16 %v236
      %v509 = vunpack.c.l.b16 %v237
      %v510 = vunpack.c.l.b16 %v238
      %v511 = vunpack.c.l.b16 %v239
      %v512 = vunpack.c.l.b16 %v240
      %v513 = vunpack.c.l.b16 %v241
      %v514 = vunpack.c.l.b16 %v242
      %v515 = vunpack.c.l.b16 %v243
      %v516 = vunpack.c.l.b16 %v244
      %v517 = vunpack.c.l.b16 %v245
      %v518 = vunpack.c.l.b16 %v246
      %v519 = vunpack.c.l.b16 %v247
      %v520 = vunpack.c.l.b16 %v248
      %v521 = vunpack.c.l.b16 %v249
      %v522 = vunpack.c.l.b16 %v250
      %v523 = vunpack.c.l.b16 %v251
      %v524 = vunpack.c.l.b16 %v252
      %v525 = vunpack.c.l.b16 %v253
      %v526 = vunpack.c.l.b16 %v254
      %v527 = vunpack.c.l.b16 %v255
      %v528 = vunpack.c.l.b16 %v256
      %v529 = vunpack.c.l.b16 %v257
      %v530 = vunpack.c.l.b16 %v258
      %v531 = vunpack.c.l.b16 %v259
      %v532 = vunpack.c.l.b16 %v260
      %v533 = vunpack.c.l.b16 %v261
      %v534 = vunpack.c.l.b16 %v262
      %v535 = vunpack.c.l.b16 %v263
      %v536 = vunpack.c.l.b16 %v264
      %v537 = vunpack.c.l.b16 %v265
      %v538 = vunpack.c.l.b16 %v266
      %v539 = vunpack.c.l.b16 %v267
      %v540 = vunpack.c.l.b16 %v268
      %v541 = vunpack.c.l.b16 %v269
      %v542 = vunpack.c.l.b16 %v270
      %v543 = vunpack.c.l.b16 %v271
      %v544 = vunpack.c.l.b16 %v272
      %v545 = vunpack.c.l.b16 %v273
      %v546 = vunpack.c.l.b16 %v274
      %v547 = vunpack.c.l.b16 %v275
      %v548 = vunpack.c.l.b16 %v276
      %v549 = vunpack.c.l.b16 %v277
      %v550 = vunpack.c.l.b16 %v278
      %v551 = vunpack.c.l.b16 %v279
      %v552 = vunpack.c.l.b16 %v280
      %v553 = vunpack.c.l.b16 %v281
      %v554 = vunpack.c.l.b16 %v282
      %v555 = vunpack.c.l.b16 %v283
      %v556 = vunpack.c.l.b16 %v284
      %v557 = vunpack.c.l.b16 %v285
      %v558 = vunpack.c.l.b16 %v286
      %v559 = vunpack.c.l.b16 %v287
      %v560 = vunpack.c.l.b16 %v288
      %v561 = vunpack.c.l.b16 %v289
      %v562 = vunpack.c.l.b16 %v290
      %v563 = vunpack.c.l.b16 %v291
      %v564 = vunpack.c.l.b16 %v292
      %v565 = vunpack.c.l.b16 %v293
      %v566 = vunpack.c.l.b16 %v294
      %v567 = vunpack.c.l.b16 %v295
      %v568 = vunpack.c.l.b16 %v296
      %v569 = vunpack.c.l.b16 %v297
      %v570 = vunpack.c.l.b16 %v298
      %v571 = vunpack.c.l.b16 %v299
      %v572 = vunpack.c.l.b16 %v300
      %v573 = vunpack.c.l.b16 %v301
      %v574 = vunpack.c.l.b16 %v302
      %v575 = vpack.c.b16 %v448, %v447
      %v576 = vpack.c.b16 %v450, %v449
      %v577 = vpack.c.b16 %v452, %v451
      %v578 = vpack.c.b16 %v454, %v453
      %v579 = vpack.c.b16 %v456, %v455
      %v580 = vpack.c.b16 %v458, %v457
      %v581 = vpack.c.b16 %v460, %v459
      %v582 = vpack.c.b16 %v462, %v461
      %v583 = vpack.c.b16 %v464, %v463
      %v584 = vpack.c.b16 %v466, %v465
      %v585 = vpack.c.b16 %v468, %v467
      %v586 = vpack.c.b16 %v470, %v469
      %v587 = vpack.c.b16 %v472, %v471
      %v588 = vpack.c.b16 %v474, %v473
      %v589 = vpack.c.b16 %v476, %v475
      %v590 = vpack.c.b16 %v478, %v477
      %v591 = vpack.c.b16 %v480, %v479
      %v592 = vpack.c.b16 %v482, %v481
      %v593 = vpack.c.b16 %v484, %v483
      %v594 = vpack.c.b16 %v486, %v485
      %v595 = vpack.c.b16 %v488, %v487
      %v596 = vpack.c.b16 %v490, %v489
      %v597 = vpack.c.b16 %v492, %v491
      %v598 = vpack.c.b16 %v494, %v493
      %v599 = vpack.c.b16 %v496, %v495
      %v600 = vpack.c.b16 %v498, %v497
      %v601 = vpack.c.b16 %v500, %v499
      %v602 = vpack.c.b16 %v502, %v501
      %v603 = vpack.c.b16 %v504, %v503
      %v604 = vpack.c.b16 %v506, %v505
      %v605 = vpack.c.b16 %v508, %v507
      %v606 = vpack.c.b16 %v510, %v509
      %v607 = vpack.c.b16 %v512, %v511
      %v608 = vpack.c.b16 %v514, %v513
      %v609 = vpack.c.b16 %v516, %v515
      %v610 = vpack.c.b16 %v518, %v517
      %v611 = vpack.c.b16 %v520, %v519
      %v612 = vpack.c.b16 %v522, %v521
      %v613 = vpack.c.b16 %v524, %v523
      %v614 = vpack.c.b16 %v526, %v525
      %v615 = vpack.c.b16 %v528, %v527
      %v616 = vpack.c.b16 %v530, %v529
      %v617 = vpack.c.b16 %v532, %v531
      %v618 = vpack.c.b16 %v534, %v533
      %v619 = vpack.c.b16 %v536, %v535
      %v620 = vpack.c.b16 %v538, %v537
      %v621 = vpack.c.b16 %v540, %v539
      %v622 = vpack.c.b16 %v542, %v541
      %v623 = vpack.c.b16 %v544, %v543
      %v624 = vpack.c.b16 %v546, %v545
      %v625 = vpack.c.b16 %v548, %v547
      %v626 = vpack.c.b16 %v550, %v549
      %v627 = vpack.c.b16 %v552, %v551
      %v628 = vpack.c.b16 %v554, %v553
      %v629 = vpack.c.b16 %v556, %v555
      %v630 = vpack.c.b16 %v558, %v557
      %v631 = vpack.c.b16 %v560, %v559
      %v632 = vpack.c.b16 %v562, %v561
      %v633 = vpack.c.b16 %v564, %v563
      %v634 = vpack.c.b16 %v566, %v565
      %v635 = vpack.c.b16 %v568, %v567
      %v636 = vpack.c.b16 %v570, %v569
      %v637 = vpack.c.b16 %v572, %v571
      %v638 = vpack.c.b16 %v574, %v573
      %v648 = vunpack.c.l.b16 %v303
      %v649 = vunpack.c.l.b16 %v304
      %v650 = vunpack.c.l.b16 %v305
      %v651 = vunpack.c.l.b16 %v306
      %v652 = vunpack.c.l.b16 %v307
      %v653 = vunpack.c.l.b16 %v308
      %v654 = vunpack.c.l.b16 %v309
      %v655 = vunpack.c.l.b16 %v310
      %v656 = vunpack.c.l.b16 %v311
      %v657 = vpack.c.b16 %v649, %v648
      %v658 = vpack.c.b16 %v651, %v650
      %v659 = vpack.c.b16 %v653, %v652
      %v660 = vpack.c.b16 %v655, %v654
      %v661 = vpack.c.b16 %v656, %v656
      %vm666 = vcmask 588800
      %v668 = vsel %vm666, %v575, 0
      %v671 = vsel %vm666, %v576, 0
      %v674 = vsel %vm666, %v577, 0
      %v677 = vsel %vm666, %v578, 0
      %v680 = vsel %vm666, %v579, 0
      %v683 = vsel %vm666, %v580, 0
      %v686 = vsel %vm666, %v581, 0
      %v689 = vsel %vm666, %v582, 0
      %v692 = vsel %vm666, %v583, 0
      %v695 = vsel %vm666, %v584, 0
      %v698 = vsel %vm666, %v585, 0
      %v701 = vsel %vm666, %v586, 0
      %v704 = vsel %vm666, %v587, 0
      %v707 = vsel %vm666, %v588, 0
      %v710 = vsel %vm666, %v589, 0
      %v713 = vsel %vm666, %v590, 0
      %v716 = vsel %vm666, %v591, 0
      %v719 = vsel %vm666, %v592, 0
      %v722 = vsel %vm666, %v593, 0
      %v725 = vsel %vm666, %v594, 0
      %v728 = vsel %vm666, %v595, 0
      %v731 = vsel %vm666, %v596, 0
      %v734 = vsel %vm666, %v597, 0
      %v737 = vsel %vm666, %v598, 0
      %v740 = vsel %vm666, %v599, 0
      %v743 = vsel %vm666, %v600, 0
      %v746 = vsel %vm666, %v601, 0
      %v749 = vsel %vm666, %v602, 0
      %v752 = vsel %vm666, %v603, 0
      %v755 = vsel %vm666, %v604, 0
      %v758 = vsel %vm666, %v605, 0
      %v761 = vsel %vm666, %v606, 0
      %v764 = vsel %vm666, %v607, 0
      %v767 = vsel %vm666, %v608, 0
      %v770 = vsel %vm666, %v609, 0
      %v773 = vsel %vm666, %v610, 0
      %v776 = vsel %vm666, %v611, 0
      %v779 = vsel %vm666, %v612, 0
      %v782 = vsel %vm666, %v613, 0
      %v785 = vsel %vm666, %v614, 0
      %v788 = vsel %vm666, %v615, 0
      %v791 = vsel %vm666, %v616, 0
      %v794 = vsel %vm666, %v617, 0
      %v797 = vsel %vm666, %v618, 0
      %v800 = vsel %vm666, %v619, 0
      %v803 = vsel %vm666, %v620, 0
      %v806 = vsel %vm666, %v621, 0
      %v809 = vsel %vm666, %v622, 0
      %v812 = vsel %vm666, %v623, 0
      %v815 = vsel %vm666, %v624, 0
      %v818 = vsel %vm666, %v625, 0
      %v821 = vsel %vm666, %v626, 0
      %v824 = vsel %vm666, %v627, 0
      %v827 = vsel %vm666, %v628, 0
      %v830 = vsel %vm666, %v629, 0
      %v833 = vsel %vm666, %v630, 0
      %v836 = vsel %vm666, %v631, 0
      %v839 = vsel %vm666, %v632, 0
      %v842 = vsel %vm666, %v633, 0
      %v845 = vsel %vm666, %v634, 0
      %v848 = vsel %vm666, %v635, 0
      %v851 = vsel %vm666, %v636, 0
      %v854 = vsel %vm666, %v637, 0
      %v857 = vsel %vm666, %v638, 0
      %vm859 = vcmask 1043456
      %v861 = vsel %vm859, %v661, 0
      %863 = vmatprep.subr.bf16.mxu0 0
      %864 = vmatpush1.bf16.msra.mxu0 %v657
      %865 = vmatprep.subr.bf16.mxu0 0
      %866 = vmatpush1.bf16.msra.mxu0 %v658
      %867 = vmatprep.subr.bf16.mxu0 0
      %868 = vmatpush1.bf16.msra.mxu0 %v659
      %869 = vmatprep.subr.bf16.mxu0 0
      %870 = vmatpush1.bf16.msra.mxu0 %v660
      %871 = vmatprep.subr.bf16.mxu0 0
      %872 = vmatpush1.bf16.msra.mxu0 %v861
      %873 = vmatprep.subr.bf16.mxu0 0
      %874 = vmatpush1.bf16.msra.mxu0 0
      %875 = vmatprep.subr.bf16.mxu0 0
      %876 = vmatpush1.bf16.msra.mxu0 0
      %877 = vmatprep.subr.bf16.mxu0 0
      %878 = vmatpush1.bf16.msra.mxu0 0
      %879 = vmatprep.subr.bf16.mxu0 0
      %880 = vmatpush1.bf16.msra.mxu0 0
      %881 = vmatprep.subr.bf16.mxu0 0
      %882 = vmatpush1.bf16.msra.mxu0 0
      %883 = vmatprep.subr.bf16.mxu0 0
      %884 = vmatpush1.bf16.msra.mxu0 0
      %885 = vmatprep.subr.bf16.mxu0 0
      %886 = vmatpush1.bf16.msra.mxu0 0
      %887 = vmatprep.subr.bf16.mxu0 0
      %888 = vmatpush1.bf16.msra.mxu0 0
      %889 = vmatprep.subr.bf16.mxu0 0
      %890 = vmatpush1.bf16.msra.mxu0 0
      %891 = vmatprep.subr.bf16.mxu0 0
      %892 = vmatpush1.bf16.msra.mxu0 0
      %893 = vmatprep.subr.bf16.mxu0 0
      %894 = vmatpush1.bf16.msra.mxu0 0
      %895 = vmatprep.mubr.bf16.mxu0 0
      %896 = vmatmul.mubr.bf16.gmra.mrb[0].mxu0 %v668
      %v897 = vpop.f32.mrb[0].mxu0
      %v898 = vadd.f32 %v317, %v897
      %v899 = vpop.f32.mrb[0].mxu0
      %v900 = vpop.f32.mrb[0].mxu0
      %v901 = vadd.f32 %v317, %v900
      %v902 = vpop.f32.mrb[0].mxu0
      %903 = vmatprep.mubr.bf16.mxu0 0
      %904 = vmatmul.mubr.bf16.gmra.mrb[0].mxu0 %v671
      %v905 = vpop.f32.mrb[0].mxu0
      %v906 = vadd.f32 %v317, %v905
      %v907 = vpop.f32.mrb[0].mxu0
      %v908 = vpop.f32.mrb[0].mxu0
      %v909 = vadd.f32 %v317, %v908
      %v910 = vpop.f32.mrb[0].mxu0
      %911 = vmatprep.mubr.bf16.mxu0 0
      %912 = vmatmul.mubr.bf16.gmra.mrb[0].mxu0 %v674
      %v913 = vpop.f32.mrb[0].mxu0
      %v914 = vadd.f32 %v317, %v913
      %v915 = vpop.f32.mrb[0].mxu0
      %v916 = vpop.f32.mrb[0].mxu0
      %v917 = vadd.f32 %v317, %v916
      %v918 = vpop.f32.mrb[0].mxu0
      %919 = vmatprep.mubr.bf16.mxu0 0
      %920 = vmatmul.mubr.bf16.gmra.mrb[0].mxu0 %v677
      %v921 = vpop.f32.mrb[0].mxu0
      %v922 = vadd.f32 %v317, %v921
      %v923 = vpop.f32.mrb[0].mxu0
      %v924 = vpop.f32.mrb[0].mxu0
      %v925 = vadd.f32 %v317, %v924
      %v926 = vpop.f32.mrb[0].mxu0
      %927 = vmatprep.mubr.bf16.mxu0 0
      %928 = vmatmul.mubr.bf16.gmra.mrb[0].mxu0 %v680
      %v929 = vpop.f32.mrb[0].mxu0
      %v930 = vadd.f32 %v317, %v929
      %v931 = vpop.f32.mrb[0].mxu0
      %v932 = vpop.f32.mrb[0].mxu0
      %v933 = vadd.f32 %v317, %v932
      %v934 = vpop.f32.mrb[0].mxu0
      %935 = vmatprep.mubr.bf16.mxu0 0
      %936 = vmatmul.mubr.bf16.gmra.mrb[0].mxu0 %v683
      %v937 = vpop.f32.mrb[0].mxu0
      %v938 = vadd.f32 %v317, %v937
      %v939 = vpop.f32.mrb[0].mxu0
      %v940 = vpop.f32.mrb[0].mxu0
      %v941 = vadd.f32 %v317, %v940
      %v942 = vpop.f32.mrb[0].mxu0
      %943 = vmatprep.mubr.bf16.mxu0 0
      %944 = vmatmul.mubr.bf16.gmra.mrb[0].mxu0 %v686
      %v945 = vpop.f32.mrb[0].mxu0
      %v946 = vadd.f32 %v317, %v945
      %v947 = vpop.f32.mrb[0].mxu0
      %v948 = vpop.f32.mrb[0].mxu0
      %v949 = vadd.f32 %v317, %v948
      %v950 = vpop.f32.mrb[0].mxu0
      %951 = vmatprep.mubr.bf16.mxu0 0
      %952 = vmatmul.mubr.bf16.gmra.mrb[0].mxu0 %v689
      %v953 = vpop.f32.mrb[0].mxu0
      %v954 = vadd.f32 %v317, %v953
      %v955 = vpop.f32.mrb[0].mxu0
      %v956 = vpop.f32.mrb[0].mxu0
      %v957 = vadd.f32 %v317, %v956
      %v958 = vpop.f32.mrb[0].mxu0
      %959 = vmatprep.mubr.bf16.mxu0 0
      %960 = vmatmul.mubr.bf16.gmra.mrb[0].mxu0 %v692
      %v961 = vpop.f32.mrb[0].mxu0
      %v962 = vadd.f32 %v317, %v961
      %v963 = vpop.f32.mrb[0].mxu0
      %v964 = vpop.f32.mrb[0].mxu0
      %v965 = vadd.f32 %v317, %v964
      %v966 = vpop.f32.mrb[0].mxu0
      %967 = vmatprep.mubr.bf16.mxu0 0
      %968 = vmatmul.mubr.bf16.gmra.mrb[0].mxu0 %v695
      %v969 = vpop.f32.mrb[0].mxu0
      %v970 = vadd.f32 %v317, %v969
      %v971 = vpop.f32.mrb[0].mxu0
      %v972 = vpop.f32.mrb[0].mxu0
      %v973 = vadd.f32 %v317, %v972
      %v974 = vpop.f32.mrb[0].mxu0
      %975 = vmatprep.mubr.bf16.mxu0 0
      %976 = vmatmul.mubr.bf16.gmra.mrb[0].mxu0 %v698
      %v977 = vpop.f32.mrb[0].mxu0
      %v978 = vadd.f32 %v317, %v977
      %v979 = vpop.f32.mrb[0].mxu0
      %v980 = vpop.f32.mrb[0].mxu0
      %v981 = vadd.f32 %v317, %v980
      %v982 = vpop.f32.mrb[0].mxu0
      %983 = vmatprep.mubr.bf16.mxu0 0
      %984 = vmatmul.mubr.bf16.gmra.mrb[0].mxu0 %v701
      %v985 = vpop.f32.mrb[0].mxu0
      %v986 = vadd.f32 %v317, %v985
      %v987 = vpop.f32.mrb[0].mxu0
      %v988 = vpop.f32.mrb[0].mxu0
      %v989 = vadd.f32 %v317, %v988
      %v990 = vpop.f32.mrb[0].mxu0
      %991 = vmatprep.mubr.bf16.mxu0 0
      %992 = vmatmul.mubr.bf16.gmra.mrb[0].mxu0 %v704
      %v993 = vpop.f32.mrb[0].mxu0
      %v994 = vadd.f32 %v317, %v993
      %v995 = vpop.f32.mrb[0].mxu0
      %v996 = vpop.f32.mrb[0].mxu0
      %v997 = vadd.f32 %v317, %v996
      %v998 = vpop.f32.mrb[0].mxu0
      %999 = vmatprep.mubr.bf16.mxu0 0
      %1000 = vmatmul.mubr.bf16.gmra.mrb[0].mxu0 %v707
      %v1001 = vpop.f32.mrb[0].mxu0
      %v1002 = vadd.f32 %v317, %v1001
      %v1003 = vpop.f32.mrb[0].mxu0
      %v1004 = vpop.f32.mrb[0].mxu0
      %v1005 = vadd.f32 %v317, %v1004
      %v1006 = vpop.f32.mrb[0].mxu0
      %1007 = vmatprep.mubr.bf16.mxu0 0
      %1008 = vmatmul.mubr.bf16.gmra.mrb[0].mxu0 %v710
      %v1009 = vpop.f32.mrb[0].mxu0
      %v1010 = vadd.f32 %v317, %v1009
      %v1011 = vpop.f32.mrb[0].mxu0
      %v1012 = vpop.f32.mrb[0].mxu0
      %v1013 = vadd.f32 %v317, %v1012
      %v1014 = vpop.f32.mrb[0].mxu0
      %1015 = vmatprep.mubr.bf16.mxu0 0
      %1016 = vmatmul.mubr.bf16.gmra.mrb[0].mxu0 %v713
      %v1017 = vpop.f32.mrb[0].mxu0
      %v1018 = vadd.f32 %v317, %v1017
      %v1019 = vpop.f32.mrb[0].mxu0
      %v1020 = vpop.f32.mrb[0].mxu0
      %v1021 = vadd.f32 %v317, %v1020
      %v1022 = vpop.f32.mrb[0].mxu0
      %1023 = vmatprep.mubr.bf16.mxu0 0
      %1024 = vmatmul.mubr.bf16.gmra.mrb[0].mxu0 %v716
      %v1025 = vpop.f32.mrb[0].mxu0
      %v1026 = vadd.f32 %v317, %v1025
      %v1027 = vpop.f32.mrb[0].mxu0
      %v1028 = vpop.f32.mrb[0].mxu0
      %v1029 = vadd.f32 %v317, %v1028
      %v1030 = vpop.f32.mrb[0].mxu0
      %1031 = vmatprep.mubr.bf16.mxu0 0
      %1032 = vmatmul.mubr.bf16.gmra.mrb[0].mxu0 %v719
      %v1033 = vpop.f32.mrb[0].mxu0
      %v1034 = vadd.f32 %v317, %v1033
      %v1035 = vpop.f32.mrb[0].mxu0
      %v1036 = vpop.f32.mrb[0].mxu0
      %v1037 = vadd.f32 %v317, %v1036
      %v1038 = vpop.f32.mrb[0].mxu0
      %1039 = vmatprep.mubr.bf16.mxu0 0
      %1040 = vmatmul.mubr.bf16.gmra.mrb[0].mxu0 %v722
      %v1041 = vpop.f32.mrb[0].mxu0
      %v1042 = vadd.f32 %v317, %v1041
      %v1043 = vpop.f32.mrb[0].mxu0
      %v1044 = vpop.f32.mrb[0].mxu0
      %v1045 = vadd.f32 %v317, %v1044
      %v1046 = vpop.f32.mrb[0].mxu0
      %1047 = vmatprep.mubr.bf16.mxu0 0
      %1048 = vmatmul.mubr.bf16.gmra.mrb[0].mxu0 %v725
      %v1049 = vpop.f32.mrb[0].mxu0
      %v1050 = vadd.f32 %v317, %v1049
      %v1051 = vpop.f32.mrb[0].mxu0
      %v1052 = vpop.f32.mrb[0].mxu0
      %v1053 = vadd.f32 %v317, %v1052
      %v1054 = vpop.f32.mrb[0].mxu0
      %1055 = vmatprep.mubr.bf16.mxu0 0
      %1056 = vmatmul.mubr.bf16.gmra.mrb[0].mxu0 %v728
      %v1057 = vpop.f32.mrb[0].mxu0
      %v1058 = vadd.f32 %v317, %v1057
      %v1059 = vpop.f32.mrb[0].mxu0
      %v1060 = vpop.f32.mrb[0].mxu0
      %v1061 = vadd.f32 %v317, %v1060
      %v1062 = vpop.f32.mrb[0].mxu0
      %1063 = vmatprep.mubr.bf16.mxu0 0
      %1064 = vmatmul.mubr.bf16.gmra.mrb[0].mxu0 %v731
      %v1065 = vpop.f32.mrb[0].mxu0
      %v1066 = vadd.f32 %v317, %v1065
      %v1067 = vpop.f32.mrb[0].mxu0
      %v1068 = vpop.f32.mrb[0].mxu0
      %v1069 = vadd.f32 %v317, %v1068
      %v1070 = vpop.f32.mrb[0].mxu0
      %1071 = vmatprep.mubr.bf16.mxu0 0
      %1072 = vmatmul.mubr.bf16.gmra.mrb[0].mxu0 %v734
      %v1073 = vpop.f32.mrb[0].mxu0
      %v1074 = vadd.f32 %v317, %v1073
      %v1075 = vpop.f32.mrb[0].mxu0
      %v1076 = vpop.f32.mrb[0].mxu0
      %v1077 = vadd.f32 %v317, %v1076
      %v1078 = vpop.f32.mrb[0].mxu0
      %1079 = vmatprep.mubr.bf16.mxu0 0
      %1080 = vmatmul.mubr.bf16.gmra.mrb[0].mxu0 %v737
      %v1081 = vpop.f32.mrb[0].mxu0
      %v1082 = vadd.f32 %v317, %v1081
      %v1083 = vpop.f32.mrb[0].mxu0
      %v1084 = vpop.f32.mrb[0].mxu0
      %v1085 = vadd.f32 %v317, %v1084
      %v1086 = vpop.f32.mrb[0].mxu0
      %1087 = vmatprep.mubr.bf16.mxu0 0
      %1088 = vmatmul.mubr.bf16.gmra.mrb[0].mxu0 %v740
      %v1089 = vpop.f32.mrb[0].mxu0
      %v1090 = vadd.f32 %v317, %v1089
      %v1091 = vpop.f32.mrb[0].mxu0
      %v1092 = vpop.f32.mrb[0].mxu0
      %v1093 = vadd.f32 %v317, %v1092
      %v1094 = vpop.f32.mrb[0].mxu0
      %1095 = vmatprep.mubr.bf16.mxu0 0
      %1096 = vmatmul.mubr.bf16.gmra.mrb[0].mxu0 %v743
      %v1097 = vpop.f32.mrb[0].mxu0
      %v1098 = vadd.f32 %v317, %v1097
      %v1099 = vpop.f32.mrb[0].mxu0
      %v1100 = vpop.f32.mrb[0].mxu0
      %v1101 = vadd.f32 %v317, %v1100
      %v1102 = vpop.f32.mrb[0].mxu0
      %1103 = vmatprep.mubr.bf16.mxu0 0
      %1104 = vmatmul.mubr.bf16.gmra.mrb[0].mxu0 %v746
      %v1105 = vpop.f32.mrb[0].mxu0
      %v1106 = vadd.f32 %v317, %v1105
      %v1107 = vpop.f32.mrb[0].mxu0
      %v1108 = vpop.f32.mrb[0].mxu0
      %v1109 = vadd.f32 %v317, %v1108
      %v1110 = vpop.f32.mrb[0].mxu0
      %1111 = vmatprep.mubr.bf16.mxu0 0
      %1112 = vmatmul.mubr.bf16.gmra.mrb[0].mxu0 %v749
      %v1113 = vpop.f32.mrb[0].mxu0
      %v1114 = vadd.f32 %v317, %v1113
      %v1115 = vpop.f32.mrb[0].mxu0
      %v1116 = vpop.f32.mrb[0].mxu0
      %v1117 = vadd.f32 %v317, %v1116
      %v1118 = vpop.f32.mrb[0].mxu0
      %1119 = vmatprep.mubr.bf16.mxu0 0
      %1120 = vmatmul.mubr.bf16.gmra.mrb[0].mxu0 %v752
      %v1121 = vpop.f32.mrb[0].mxu0
      %v1122 = vadd.f32 %v317, %v1121
      %v1123 = vpop.f32.mrb[0].mxu0
      %v1124 = vpop.f32.mrb[0].mxu0
      %v1125 = vadd.f32 %v317, %v1124
      %v1126 = vpop.f32.mrb[0].mxu0
      %1127 = vmatprep.mubr.bf16.mxu0 0
      %1128 = vmatmul.mubr.bf16.gmra.mrb[0].mxu0 %v755
      %v1129 = vpop.f32.mrb[0].mxu0
      %v1130 = vadd.f32 %v317, %v1129
      %v1131 = vpop.f32.mrb[0].mxu0
      %v1132 = vpop.f32.mrb[0].mxu0
      %v1133 = vadd.f32 %v317, %v1132
      %v1134 = vpop.f32.mrb[0].mxu0
      %1135 = vmatprep.mubr.bf16.mxu0 0
      %1136 = vmatmul.mubr.bf16.gmra.mrb[0].mxu0 %v758
      %v1137 = vpop.f32.mrb[0].mxu0
      %v1138 = vadd.f32 %v317, %v1137
      %v1139 = vpop.f32.mrb[0].mxu0
      %v1140 = vpop.f32.mrb[0].mxu0
      %v1141 = vadd.f32 %v317, %v1140
      %v1142 = vpop.f32.mrb[0].mxu0
      %1143 = vmatprep.mubr.bf16.mxu0 0
      %1144 = vmatmul.mubr.bf16.gmra.mrb[0].mxu0 %v761
      %v1145 = vpop.f32.mrb[0].mxu0
      %v1146 = vadd.f32 %v317, %v1145
      %v1147 = vpop.f32.mrb[0].mxu0
      %v1148 = vpop.f32.mrb[0].mxu0
      %v1149 = vadd.f32 %v317, %v1148
      %v1150 = vpop.f32.mrb[0].mxu0
      %1151 = vmatprep.mubr.bf16.mxu0 0
      %1152 = vmatmul.mubr.bf16.gmra.mrb[0].mxu0 %v764
      %v1153 = vpop.f32.mrb[0].mxu0
      %v1154 = vadd.f32 %v317, %v1153
      %v1155 = vpop.f32.mrb[0].mxu0
      %v1156 = vpop.f32.mrb[0].mxu0
      %v1157 = vadd.f32 %v317, %v1156
      %v1158 = vpop.f32.mrb[0].mxu0
      %1159 = vmatprep.mubr.bf16.mxu0 0
      %1160 = vmatmul.mubr.bf16.gmra.mrb[0].mxu0 %v767
      %v1161 = vpop.f32.mrb[0].mxu0
      %v1162 = vadd.f32 %v317, %v1161
      %v1163 = vpop.f32.mrb[0].mxu0
      %v1164 = vpop.f32.mrb[0].mxu0
      %v1165 = vadd.f32 %v317, %v1164
      %v1166 = vpop.f32.mrb[0].mxu0
      %1167 = vmatprep.mubr.bf16.mxu0 0
      %1168 = vmatmul.mubr.bf16.gmra.mrb[0].mxu0 %v770
      %v1169 = vpop.f32.mrb[0].mxu0
      %v1170 = vadd.f32 %v317, %v1169
      %v1171 = vpop.f32.mrb[0].mxu0
      %v1172 = vpop.f32.mrb[0].mxu0
      %v1173 = vadd.f32 %v317, %v1172
      %v1174 = vpop.f32.mrb[0].mxu0
      %1175 = vmatprep.mubr.bf16.mxu0 0
      %1176 = vmatmul.mubr.bf16.gmra.mrb[0].mxu0 %v773
      %v1177 = vpop.f32.mrb[0].mxu0
      %v1178 = vadd.f32 %v317, %v1177
      %v1179 = vpop.f32.mrb[0].mxu0
      %v1180 = vpop.f32.mrb[0].mxu0
      %v1181 = vadd.f32 %v317, %v1180
      %v1182 = vpop.f32.mrb[0].mxu0
      %1183 = vmatprep.mubr.bf16.mxu0 0
      %1184 = vmatmul.mubr.bf16.gmra.mrb[0].mxu0 %v776
      %v1185 = vpop.f32.mrb[0].mxu0
      %v1186 = vadd.f32 %v317, %v1185
      %v1187 = vpop.f32.mrb[0].mxu0
      %v1188 = vpop.f32.mrb[0].mxu0
      %v1189 = vadd.f32 %v317, %v1188
      %v1190 = vpop.f32.mrb[0].mxu0
      %1191 = vmatprep.mubr.bf16.mxu0 0
      %1192 = vmatmul.mubr.bf16.gmra.mrb[0].mxu0 %v779
      %v1193 = vpop.f32.mrb[0].mxu0
      %v1194 = vadd.f32 %v317, %v1193
      %v1195 = vpop.f32.mrb[0].mxu0
      %v1196 = vpop.f32.mrb[0].mxu0
      %v1197 = vadd.f32 %v317, %v1196
      %v1198 = vpop.f32.mrb[0].mxu0
      %1199 = vmatprep.mubr.bf16.mxu0 0
      %1200 = vmatmul.mubr.bf16.gmra.mrb[0].mxu0 %v782
      %v1201 = vpop.f32.mrb[0].mxu0
      %v1202 = vadd.f32 %v317, %v1201
      %v1203 = vpop.f32.mrb[0].mxu0
      %v1204 = vpop.f32.mrb[0].mxu0
      %v1205 = vadd.f32 %v317, %v1204
      %v1206 = vpop.f32.mrb[0].mxu0
      %1207 = vmatprep.mubr.bf16.mxu0 0
      %1208 = vmatmul.mubr.bf16.gmra.mrb[0].mxu0 %v785
      %v1209 = vpop.f32.mrb[0].mxu0
      %v1210 = vadd.f32 %v317, %v1209
      %v1211 = vpop.f32.mrb[0].mxu0
      %v1212 = vpop.f32.mrb[0].mxu0
      %v1213 = vadd.f32 %v317, %v1212
      %v1214 = vpop.f32.mrb[0].mxu0
      %1215 = vmatprep.mubr.bf16.mxu0 0
      %1216 = vmatmul.mubr.bf16.gmra.mrb[0].mxu0 %v788
      %v1217 = vpop.f32.mrb[0].mxu0
      %v1218 = vadd.f32 %v317, %v1217
      %v1219 = vpop.f32.mrb[0].mxu0
      %v1220 = vpop.f32.mrb[0].mxu0
      %v1221 = vadd.f32 %v317, %v1220
      %v1222 = vpop.f32.mrb[0].mxu0
      %1223 = vmatprep.mubr.bf16.mxu0 0
      %1224 = vmatmul.mubr.bf16.gmra.mrb[0].mxu0 %v791
      %v1225 = vpop.f32.mrb[0].mxu0
      %v1226 = vadd.f32 %v317, %v1225
      %v1227 = vpop.f32.mrb[0].mxu0
      %v1228 = vpop.f32.mrb[0].mxu0
      %v1229 = vadd.f32 %v317, %v1228
      %v1230 = vpop.f32.mrb[0].mxu0
      %1231 = vmatprep.mubr.bf16.mxu0 0
      %1232 = vmatmul.mubr.bf16.gmra.mrb[0].mxu0 %v794
      %v1233 = vpop.f32.mrb[0].mxu0
      %v1234 = vadd.f32 %v317, %v1233
      %v1235 = vpop.f32.mrb[0].mxu0
      %v1236 = vpop.f32.mrb[0].mxu0
      %v1237 = vadd.f32 %v317, %v1236
      %v1238 = vpop.f32.mrb[0].mxu0
      %1239 = vmatprep.mubr.bf16.mxu0 0
      %1240 = vmatmul.mubr.bf16.gmra.mrb[0].mxu0 %v797
      %v1241 = vpop.f32.mrb[0].mxu0
      %v1242 = vadd.f32 %v317, %v1241
      %v1243 = vpop.f32.mrb[0].mxu0
      %v1244 = vpop.f32.mrb[0].mxu0
      %v1245 = vadd.f32 %v317, %v1244
      %v1246 = vpop.f32.mrb[0].mxu0
      %1247 = vmatprep.mubr.bf16.mxu0 0
      %1248 = vmatmul.mubr.bf16.gmra.mrb[0].mxu0 %v800
      %v1249 = vpop.f32.mrb[0].mxu0
      %v1250 = vadd.f32 %v317, %v1249
      %v1251 = vpop.f32.mrb[0].mxu0
      %v1252 = vpop.f32.mrb[0].mxu0
      %v1253 = vadd.f32 %v317, %v1252
      %v1254 = vpop.f32.mrb[0].mxu0
      %1255 = vmatprep.mubr.bf16.mxu0 0
      %1256 = vmatmul.mubr.bf16.gmra.mrb[0].mxu0 %v803
      %v1257 = vpop.f32.mrb[0].mxu0
      %v1258 = vadd.f32 %v317, %v1257
      %v1259 = vpop.f32.mrb[0].mxu0
      %v1260 = vpop.f32.mrb[0].mxu0
      %v1261 = vadd.f32 %v317, %v1260
      %v1262 = vpop.f32.mrb[0].mxu0
      %1263 = vmatprep.mubr.bf16.mxu0 0
      %1264 = vmatmul.mubr.bf16.gmra.mrb[0].mxu0 %v806
      %v1265 = vpop.f32.mrb[0].mxu0
      %v1266 = vadd.f32 %v317, %v1265
      %v1267 = vpop.f32.mrb[0].mxu0
      %v1268 = vpop.f32.mrb[0].mxu0
      %v1269 = vadd.f32 %v317, %v1268
      %v1270 = vpop.f32.mrb[0].mxu0
      %1271 = vmatprep.mubr.bf16.mxu0 0
      %1272 = vmatmul.mubr.bf16.gmra.mrb[0].mxu0 %v809
      %v1273 = vpop.f32.mrb[0].mxu0
      %v1274 = vadd.f32 %v317, %v1273
      %v1275 = vpop.f32.mrb[0].mxu0
      %v1276 = vpop.f32.mrb[0].mxu0
      %v1277 = vadd.f32 %v317, %v1276
      %v1278 = vpop.f32.mrb[0].mxu0
      %1279 = vmatprep.mubr.bf16.mxu0 0
      %1280 = vmatmul.mubr.bf16.gmra.mrb[0].mxu0 %v812
      %v1281 = vpop.f32.mrb[0].mxu0
      %v1282 = vadd.f32 %v317, %v1281
      %v1283 = vpop.f32.mrb[0].mxu0
      %v1284 = vpop.f32.mrb[0].mxu0
      %v1285 = vadd.f32 %v317, %v1284
      %v1286 = vpop.f32.mrb[0].mxu0
      %1287 = vmatprep.mubr.bf16.mxu0 0
      %1288 = vmatmul.mubr.bf16.gmra.mrb[0].mxu0 %v815
      %v1289 = vpop.f32.mrb[0].mxu0
      %v1290 = vadd.f32 %v317, %v1289
      %v1291 = vpop.f32.mrb[0].mxu0
      %v1292 = vpop.f32.mrb[0].mxu0
      %v1293 = vadd.f32 %v317, %v1292
      %v1294 = vpop.f32.mrb[0].mxu0
      %1295 = vmatprep.mubr.bf16.mxu0 0
      %1296 = vmatmul.mubr.bf16.gmra.mrb[0].mxu0 %v818
      %v1297 = vpop.f32.mrb[0].mxu0
      %v1298 = vadd.f32 %v317, %v1297
      %v1299 = vpop.f32.mrb[0].mxu0
      %v1300 = vpop.f32.mrb[0].mxu0
      %v1301 = vadd.f32 %v317, %v1300
      %v1302 = vpop.f32.mrb[0].mxu0
      %1303 = vmatprep.mubr.bf16.mxu0 0
      %1304 = vmatmul.mubr.bf16.gmra.mrb[0].mxu0 %v821
      %v1305 = vpop.f32.mrb[0].mxu0
      %v1306 = vadd.f32 %v317, %v1305
      %v1307 = vpop.f32.mrb[0].mxu0
      %v1308 = vpop.f32.mrb[0].mxu0
      %v1309 = vadd.f32 %v317, %v1308
      %v1310 = vpop.f32.mrb[0].mxu0
      %1311 = vmatprep.mubr.bf16.mxu0 0
      %1312 = vmatmul.mubr.bf16.gmra.mrb[0].mxu0 %v824
      %v1313 = vpop.f32.mrb[0].mxu0
      %v1314 = vadd.f32 %v317, %v1313
      %v1315 = vpop.f32.mrb[0].mxu0
      %v1316 = vpop.f32.mrb[0].mxu0
      %v1317 = vadd.f32 %v317, %v1316
      %v1318 = vpop.f32.mrb[0].mxu0
      %1319 = vmatprep.mubr.bf16.mxu0 0
      %1320 = vmatmul.mubr.bf16.gmra.mrb[0].mxu0 %v827
      %v1321 = vpop.f32.mrb[0].mxu0
      %v1322 = vadd.f32 %v317, %v1321
      %v1323 = vpop.f32.mrb[0].mxu0
      %v1324 = vpop.f32.mrb[0].mxu0
      %v1325 = vadd.f32 %v317, %v1324
      %v1326 = vpop.f32.mrb[0].mxu0
      %1327 = vmatprep.mubr.bf16.mxu0 0
      %1328 = vmatmul.mubr.bf16.gmra.mrb[0].mxu0 %v830
      %v1329 = vpop.f32.mrb[0].mxu0
      %v1330 = vadd.f32 %v317, %v1329
      %v1331 = vpop.f32.mrb[0].mxu0
      %v1332 = vpop.f32.mrb[0].mxu0
      %v1333 = vadd.f32 %v317, %v1332
      %v1334 = vpop.f32.mrb[0].mxu0
      %1335 = vmatprep.mubr.bf16.mxu0 0
      %1336 = vmatmul.mubr.bf16.gmra.mrb[0].mxu0 %v833
      %v1337 = vpop.f32.mrb[0].mxu0
      %v1338 = vadd.f32 %v317, %v1337
      %v1339 = vpop.f32.mrb[0].mxu0
      %v1340 = vpop.f32.mrb[0].mxu0
      %v1341 = vadd.f32 %v317, %v1340
      %v1342 = vpop.f32.mrb[0].mxu0
      %1343 = vmatprep.mubr.bf16.mxu0 0
      %1344 = vmatmul.mubr.bf16.gmra.mrb[0].mxu0 %v836
      %v1345 = vpop.f32.mrb[0].mxu0
      %v1346 = vadd.f32 %v317, %v1345
      %v1347 = vpop.f32.mrb[0].mxu0
      %v1348 = vpop.f32.mrb[0].mxu0
      %v1349 = vadd.f32 %v317, %v1348
      %v1350 = vpop.f32.mrb[0].mxu0
      %1351 = vmatprep.mubr.bf16.mxu0 0
      %1352 = vmatmul.mubr.bf16.gmra.mrb[0].mxu0 %v839
      %v1353 = vpop.f32.mrb[0].mxu0
      %v1354 = vadd.f32 %v317, %v1353
      %v1355 = vpop.f32.mrb[0].mxu0
      %v1356 = vpop.f32.mrb[0].mxu0
      %v1357 = vadd.f32 %v317, %v1356
      %v1358 = vpop.f32.mrb[0].mxu0
      %1359 = vmatprep.mubr.bf16.mxu0 0
      %1360 = vmatmul.mubr.bf16.gmra.mrb[0].mxu0 %v842
      %v1361 = vpop.f32.mrb[0].mxu0
      %v1362 = vadd.f32 %v317, %v1361
      %v1363 = vpop.f32.mrb[0].mxu0
      %v1364 = vpop.f32.mrb[0].mxu0
      %v1365 = vadd.f32 %v317, %v1364
      %v1366 = vpop.f32.mrb[0].mxu0
      %1367 = vmatprep.mubr.bf16.mxu0 0
      %1368 = vmatmul.mubr.bf16.gmra.mrb[0].mxu0 %v845
      %v1369 = vpop.f32.mrb[0].mxu0
      %v1370 = vadd.f32 %v317, %v1369
      %v1371 = vpop.f32.mrb[0].mxu0
      %v1372 = vpop.f32.mrb[0].mxu0
      %v1373 = vadd.f32 %v317, %v1372
      %v1374 = vpop.f32.mrb[0].mxu0
      %1375 = vmatprep.mubr.bf16.mxu0 0
      %1376 = vmatmul.mubr.bf16.gmra.mrb[0].mxu0 %v848
      %v1377 = vpop.f32.mrb[0].mxu0
      %v1378 = vadd.f32 %v317, %v1377
      %v1379 = vpop.f32.mrb[0].mxu0
      %v1380 = vpop.f32.mrb[0].mxu0
      %v1381 = vadd.f32 %v317, %v1380
      %v1382 = vpop.f32.mrb[0].mxu0
      %1383 = vmatprep.mubr.bf16.mxu0 0
      %1384 = vmatmul.mubr.bf16.gmra.mrb[0].mxu0 %v851
      %v1385 = vpop.f32.mrb[0].mxu0
      %v1386 = vadd.f32 %v317, %v1385
      %v1387 = vpop.f32.mrb[0].mxu0
      %v1388 = vpop.f32.mrb[0].mxu0
      %v1389 = vadd.f32 %v317, %v1388
      %v1390 = vpop.f32.mrb[0].mxu0
      %1391 = vmatprep.mubr.bf16.mxu0 0
      %1392 = vmatmul.mubr.bf16.gmra.mrb[0].mxu0 %v854
      %v1393 = vpop.f32.mrb[0].mxu0
      %v1394 = vadd.f32 %v317, %v1393
      %v1395 = vpop.f32.mrb[0].mxu0
      %v1396 = vpop.f32.mrb[0].mxu0
      %v1397 = vadd.f32 %v317, %v1396
      %v1398 = vpop.f32.mrb[0].mxu0
      %1399 = vmatprep.mubr.bf16.mxu0 0
      %1400 = vmatmul.mubr.bf16.gmra.mrb[0].mxu0 %v857
      %v1401 = vpop.f32.mrb[0].mxu0
      %v1402 = vadd.f32 %v317, %v1401
      %v1403 = vpop.f32.mrb[0].mxu0
      %v1404 = vpop.f32.mrb[0].mxu0
      %v1405 = vadd.f32 %v317, %v1404
      %v1406 = vpop.f32.mrb[0].mxu0
      %1407 = vdwg.mxu0
      %v1408 = vxor.u32 %v898, 2147483648
      %v1409 = vxor.u32 %v901, 2147483648
      %v1410 = vxor.u32 %v906, 2147483648
      %v1411 = vxor.u32 %v909, 2147483648
      %v1412 = vxor.u32 %v914, 2147483648
      %v1413 = vxor.u32 %v917, 2147483648
      %v1414 = vxor.u32 %v922, 2147483648
      %v1415 = vxor.u32 %v925, 2147483648
      %v1416 = vxor.u32 %v930, 2147483648
      %v1417 = vxor.u32 %v933, 2147483648
      %v1418 = vxor.u32 %v938, 2147483648
      %v1419 = vxor.u32 %v941, 2147483648
      %v1420 = vxor.u32 %v946, 2147483648
      %v1421 = vxor.u32 %v949, 2147483648
      %v1422 = vxor.u32 %v954, 2147483648
      %v1423 = vxor.u32 %v957, 2147483648
      %v1424 = vxor.u32 %v962, 2147483648
      %v1425 = vxor.u32 %v965, 2147483648
      %v1426 = vxor.u32 %v970, 2147483648
      %v1427 = vxor.u32 %v973, 2147483648
      %v1428 = vxor.u32 %v978, 2147483648
      %v1429 = vxor.u32 %v981, 2147483648
      %v1430 = vxor.u32 %v986, 2147483648
      %v1431 = vxor.u32 %v989, 2147483648
      %v1432 = vxor.u32 %v994, 2147483648
      %v1433 = vxor.u32 %v997, 2147483648
      %v1434 = vxor.u32 %v1002, 2147483648
      %v1435 = vxor.u32 %v1005, 2147483648
      %v1436 = vxor.u32 %v1010, 2147483648
      %v1437 = vxor.u32 %v1013, 2147483648
      %v1438 = vxor.u32 %v1018, 2147483648
      %v1439 = vxor.u32 %v1021, 2147483648
      %v1440 = vxor.u32 %v1026, 2147483648
      %v1441 = vxor.u32 %v1029, 2147483648
      %v1442 = vxor.u32 %v1034, 2147483648
      %v1443 = vxor.u32 %v1037, 2147483648
      %v1444 = vxor.u32 %v1042, 2147483648
      %v1445 = vxor.u32 %v1045, 2147483648
      %v1446 = vxor.u32 %v1050, 2147483648
      %v1447 = vxor.u32 %v1053, 2147483648
      %v1448 = vxor.u32 %v1058, 2147483648
      %v1449 = vxor.u32 %v1061, 2147483648
      %v1450 = vxor.u32 %v1066, 2147483648
      %v1451 = vxor.u32 %v1069, 2147483648
      %v1452 = vxor.u32 %v1074, 2147483648
      %v1453 = vxor.u32 %v1077, 2147483648
      %v1454 = vxor.u32 %v1082, 2147483648
      %v1455 = vxor.u32 %v1085, 2147483648
      %v1456 = vxor.u32 %v1090, 2147483648
      %v1457 = vxor.u32 %v1093, 2147483648
      %v1458 = vxor.u32 %v1098, 2147483648
      %v1459 = vxor.u32 %v1101, 2147483648
      %v1460 = vxor.u32 %v1106, 2147483648
      %v1461 = vxor.u32 %v1109, 2147483648
      %v1462 = vxor.u32 %v1114, 2147483648
      %v1463 = vxor.u32 %v1117, 2147483648
      %v1464 = vxor.u32 %v1122, 2147483648
      %v1465 = vxor.u32 %v1125, 2147483648
      %v1466 = vxor.u32 %v1130, 2147483648
      %v1467 = vxor.u32 %v1133, 2147483648
      %v1468 = vxor.u32 %v1138, 2147483648
      %v1469 = vxor.u32 %v1141, 2147483648
      %v1470 = vxor.u32 %v1146, 2147483648
      %v1471 = vxor.u32 %v1149, 2147483648
      %v1472 = vxor.u32 %v1154, 2147483648
      %v1473 = vxor.u32 %v1157, 2147483648
      %v1474 = vxor.u32 %v1162, 2147483648
      %v1475 = vxor.u32 %v1165, 2147483648
      %v1476 = vxor.u32 %v1170, 2147483648
      %v1477 = vxor.u32 %v1173, 2147483648
      %v1478 = vxor.u32 %v1178, 2147483648
      %v1479 = vxor.u32 %v1181, 2147483648
      %v1480 = vxor.u32 %v1186, 2147483648
      %v1481 = vxor.u32 %v1189, 2147483648
      %v1482 = vxor.u32 %v1194, 2147483648
      %v1483 = vxor.u32 %v1197, 2147483648
      %v1484 = vxor.u32 %v1202, 2147483648
      %v1485 = vxor.u32 %v1205, 2147483648
      %v1486 = vxor.u32 %v1210, 2147483648
      %v1487 = vxor.u32 %v1213, 2147483648
      %v1488 = vxor.u32 %v1218, 2147483648
      %v1489 = vxor.u32 %v1221, 2147483648
      %v1490 = vxor.u32 %v1226, 2147483648
      %v1491 = vxor.u32 %v1229, 2147483648
      %v1492 = vxor.u32 %v1234, 2147483648
      %v1493 = vxor.u32 %v1237, 2147483648
      %v1494 = vxor.u32 %v1242, 2147483648
      %v1495 = vxor.u32 %v1245, 2147483648
      %v1496 = vxor.u32 %v1250, 2147483648
      %v1497 = vxor.u32 %v1253, 2147483648
      %v1498 = vxor.u32 %v1258, 2147483648
      %v1499 = vxor.u32 %v1261, 2147483648
      %v1500 = vxor.u32 %v1266, 2147483648
      %v1501 = vxor.u32 %v1269, 2147483648
      %v1502 = vxor.u32 %v1274, 2147483648
      %v1503 = vxor.u32 %v1277, 2147483648
      %v1504 = vxor.u32 %v1282, 2147483648
      %v1505 = vxor.u32 %v1285, 2147483648
      %v1506 = vxor.u32 %v1290, 2147483648
      %v1507 = vxor.u32 %v1293, 2147483648
      %v1508 = vxor.u32 %v1298, 2147483648
      %v1509 = vxor.u32 %v1301, 2147483648
      %v1510 = vxor.u32 %v1306, 2147483648
      %v1511 = vxor.u32 %v1309, 2147483648
      %v1512 = vxor.u32 %v1314, 2147483648
      %v1513 = vxor.u32 %v1317, 2147483648
      %v1514 = vxor.u32 %v1322, 2147483648
      %v1515 = vxor.u32 %v1325, 2147483648
      %v1516 = vxor.u32 %v1330, 2147483648
      %v1517 = vxor.u32 %v1333, 2147483648
      %v1518 = vxor.u32 %v1338, 2147483648
      %v1519 = vxor.u32 %v1341, 2147483648
      %v1520 = vxor.u32 %v1346, 2147483648
      %v1521 = vxor.u32 %v1349, 2147483648
      %v1522 = vxor.u32 %v1354, 2147483648
      %v1523 = vxor.u32 %v1357, 2147483648
      %v1524 = vxor.u32 %v1362, 2147483648
      %v1525 = vxor.u32 %v1365, 2147483648
      %v1526 = vxor.u32 %v1370, 2147483648
      %v1527 = vxor.u32 %v1373, 2147483648
      %v1528 = vxor.u32 %v1378, 2147483648
      %v1529 = vxor.u32 %v1381, 2147483648
      %v1530 = vxor.u32 %v1386, 2147483648
      %v1531 = vxor.u32 %v1389, 2147483648
      %v1532 = vxor.u32 %v1394, 2147483648
      %v1533 = vxor.u32 %v1397, 2147483648
      %v1534 = vxor.u32 %v1402, 2147483648
      %v1535 = vxor.u32 %v1405, 2147483648
      %v1536 = vmul.f32 %v1408, 1.442695
      %v1537 = vpow.pop %v1536
      %v1538 = vmul.f32 %v1409, 1.442695
      %v1539 = vpow.pop %v1538
      %v1540 = vmul.f32 %v1410, 1.442695
      %v1541 = vpow.pop %v1540
      %v1542 = vmul.f32 %v1411, 1.442695
      %v1543 = vpow.pop %v1542
      %v1544 = vmul.f32 %v1412, 1.442695
      %v1545 = vpow.pop %v1544
      %v1546 = vmul.f32 %v1413, 1.442695
      %v1547 = vpow.pop %v1546
      %v1548 = vmul.f32 %v1414, 1.442695
      %v1549 = vpow.pop %v1548
      %v1550 = vmul.f32 %v1415, 1.442695
      %v1551 = vpow.pop %v1550
      %v1552 = vmul.f32 %v1416, 1.442695
      %v1553 = vpow.pop %v1552
      %v1554 = vmul.f32 %v1417, 1.442695
      %v1555 = vpow.pop %v1554
      %v1556 = vmul.f32 %v1418, 1.442695
      %v1557 = vpow.pop %v1556
      %v1558 = vmul.f32 %v1419, 1.442695
      %v1559 = vpow.pop %v1558
      %v1560 = vmul.f32 %v1420, 1.442695
      %v1561 = vpow.pop %v1560
      %v1562 = vmul.f32 %v1421, 1.442695
      %v1563 = vpow.pop %v1562
      %v1564 = vmul.f32 %v1422, 1.442695
      %v1565 = vpow.pop %v1564
      %v1566 = vmul.f32 %v1423, 1.442695
      %v1567 = vpow.pop %v1566
      %v1568 = vmul.f32 %v1424, 1.442695
      %v1569 = vpow.pop %v1568
      %v1570 = vmul.f32 %v1425, 1.442695
      %v1571 = vpow.pop %v1570
      %v1572 = vmul.f32 %v1426, 1.442695
      %v1573 = vpow.pop %v1572
      %v1574 = vmul.f32 %v1427, 1.442695
      %v1575 = vpow.pop %v1574
      %v1576 = vmul.f32 %v1428, 1.442695
      %v1577 = vpow.pop %v1576
      %v1578 = vmul.f32 %v1429, 1.442695
      %v1579 = vpow.pop %v1578
      %v1580 = vmul.f32 %v1430, 1.442695
      %v1581 = vpow.pop %v1580
      %v1582 = vmul.f32 %v1431, 1.442695
      %v1583 = vpow.pop %v1582
      %v1584 = vmul.f32 %v1432, 1.442695
      %v1585 = vpow.pop %v1584
      %v1586 = vmul.f32 %v1433, 1.442695
      %v1587 = vpow.pop %v1586
      %v1588 = vmul.f32 %v1434, 1.442695
      %v1589 = vpow.pop %v1588
      %v1590 = vmul.f32 %v1435, 1.442695
      %v1591 = vpow.pop %v1590
      %v1592 = vmul.f32 %v1436, 1.442695
      %v1593 = vpow.pop %v1592
      %v1594 = vmul.f32 %v1437, 1.442695
      %v1595 = vpow.pop %v1594
      %v1596 = vmul.f32 %v1438, 1.442695
      %v1597 = vpow.pop %v1596
      %v1598 = vmul.f32 %v1439, 1.442695
      %v1599 = vpow.pop %v1598
      %v1600 = vmul.f32 %v1440, 1.442695
      %v1601 = vpow.pop %v1600
      %v1602 = vmul.f32 %v1441, 1.442695
      %v1603 = vpow.pop %v1602
      %v1604 = vmul.f32 %v1442, 1.442695
      %v1605 = vpow.pop %v1604
      %v1606 = vmul.f32 %v1443, 1.442695
      %v1607 = vpow.pop %v1606
      %v1608 = vmul.f32 %v1444, 1.442695
      %v1609 = vpow.pop %v1608
      %v1610 = vmul.f32 %v1445, 1.442695
      %v1611 = vpow.pop %v1610
      %v1612 = vmul.f32 %v1446, 1.442695
      %v1613 = vpow.pop %v1612
      %v1614 = vmul.f32 %v1447, 1.442695
      %v1615 = vpow.pop %v1614
      %v1616 = vmul.f32 %v1448, 1.442695
      %v1617 = vpow.pop %v1616
      %v1618 = vmul.f32 %v1449, 1.442695
      %v1619 = vpow.pop %v1618
      %v1620 = vmul.f32 %v1450, 1.442695
      %v1621 = vpow.pop %v1620
      %v1622 = vmul.f32 %v1451, 1.442695
      %v1623 = vpow.pop %v1622
      %v1624 = vmul.f32 %v1452, 1.442695
      %v1625 = vpow.pop %v1624
      %v1626 = vmul.f32 %v1453, 1.442695
      %v1627 = vpow.pop %v1626
      %v1628 = vmul.f32 %v1454, 1.442695
      %v1629 = vpow.pop %v1628
      %v1630 = vmul.f32 %v1455, 1.442695
      %v1631 = vpow.pop %v1630
      %v1632 = vmul.f32 %v1456, 1.442695
      %v1633 = vpow.pop %v1632
      %v1634 = vmul.f32 %v1457, 1.442695
      %v1635 = vpow.pop %v1634
      %v1636 = vmul.f32 %v1458, 1.442695
      %v1637 = vpow.pop %v1636
      %v1638 = vmul.f32 %v1459, 1.442695
      %v1639 = vpow.pop %v1638
      %v1640 = vmul.f32 %v1460, 1.442695
      %v1641 = vpow.pop %v1640
      %v1642 = vmul.f32 %v1461, 1.442695
      %v1643 = vpow.pop %v1642
      %v1644 = vmul.f32 %v1462, 1.442695
      %v1645 = vpow.pop %v1644
      %v1646 = vmul.f32 %v1463, 1.442695
      %v1647 = vpow.pop %v1646
      %v1648 = vmul.f32 %v1464, 1.442695
      %v1649 = vpow.pop %v1648
      %v1650 = vmul.f32 %v1465, 1.442695
      %v1651 = vpow.pop %v1650
      %v1652 = vmul.f32 %v1466, 1.442695
      %v1653 = vpow.pop %v1652
      %v1654 = vmul.f32 %v1467, 1.442695
      %v1655 = vpow.pop %v1654
      %v1656 = vmul.f32 %v1468, 1.442695
      %v1657 = vpow.pop %v1656
      %v1658 = vmul.f32 %v1469, 1.442695
      %v1659 = vpow.pop %v1658
      %v1660 = vmul.f32 %v1470, 1.442695
      %v1661 = vpow.pop %v1660
      %v1662 = vmul.f32 %v1471, 1.442695
      %v1663 = vpow.pop %v1662
      %v1664 = vmul.f32 %v1472, 1.442695
      %v1665 = vpow.pop %v1664
      %v1666 = vmul.f32 %v1473, 1.442695
      %v1667 = vpow.pop %v1666
      %v1668 = vmul.f32 %v1474, 1.442695
      %v1669 = vpow.pop %v1668
      %v1670 = vmul.f32 %v1475, 1.442695
      %v1671 = vpow.pop %v1670
      %v1672 = vmul.f32 %v1476, 1.442695
      %v1673 = vpow.pop %v1672
      %v1674 = vmul.f32 %v1477, 1.442695
      %v1675 = vpow.pop %v1674
      %v1676 = vmul.f32 %v1478, 1.442695
      %v1677 = vpow.pop %v1676
      %v1678 = vmul.f32 %v1479, 1.442695
      %v1679 = vpow.pop %v1678
      %v1680 = vmul.f32 %v1480, 1.442695
      %v1681 = vpow.pop %v1680
      %v1682 = vmul.f32 %v1481, 1.442695
      %v1683 = vpow.pop %v1682
      %v1684 = vmul.f32 %v1482, 1.442695
      %v1685 = vpow.pop %v1684
      %v1686 = vmul.f32 %v1483, 1.442695
      %v1687 = vpow.pop %v1686
      %v1688 = vmul.f32 %v1484, 1.442695
      %v1689 = vpow.pop %v1688
      %v1690 = vmul.f32 %v1485, 1.442695
      %v1691 = vpow.pop %v1690
      %v1692 = vmul.f32 %v1486, 1.442695
      %v1693 = vpow.pop %v1692
      %v1694 = vmul.f32 %v1487, 1.442695
      %v1695 = vpow.pop %v1694
      %v1696 = vmul.f32 %v1488, 1.442695
      %v1697 = vpow.pop %v1696
      %v1698 = vmul.f32 %v1489, 1.442695
      %v1699 = vpow.pop %v1698
      %v1700 = vmul.f32 %v1490, 1.442695
      %v1701 = vpow.pop %v1700
      %v1702 = vmul.f32 %v1491, 1.442695
      %v1703 = vpow.pop %v1702
      %v1704 = vmul.f32 %v1492, 1.442695
      %v1705 = vpow.pop %v1704
      %v1706 = vmul.f32 %v1493, 1.442695
      %v1707 = vpow.pop %v1706
      %v1708 = vmul.f32 %v1494, 1.442695
      %v1709 = vpow.pop %v1708
      %v1710 = vmul.f32 %v1495, 1.442695
      %v1711 = vpow.pop %v1710
      %v1712 = vmul.f32 %v1496, 1.442695
      %v1713 = vpow.pop %v1712
      %v1714 = vmul.f32 %v1497, 1.442695
      %v1715 = vpow.pop %v1714
      %v1716 = vmul.f32 %v1498, 1.442695
      %v1717 = vpow.pop %v1716
      %v1718 = vmul.f32 %v1499, 1.442695
      %v1719 = vpow.pop %v1718
      %v1720 = vmul.f32 %v1500, 1.442695
      %v1721 = vpow.pop %v1720
      %v1722 = vmul.f32 %v1501, 1.442695
      %v1723 = vpow.pop %v1722
      %v1724 = vmul.f32 %v1502, 1.442695
      %v1725 = vpow.pop %v1724
      %v1726 = vmul.f32 %v1503, 1.442695
      %v1727 = vpow.pop %v1726
      %v1728 = vmul.f32 %v1504, 1.442695
      %v1729 = vpow.pop %v1728
      %v1730 = vmul.f32 %v1505, 1.442695
      %v1731 = vpow.pop %v1730
      %v1732 = vmul.f32 %v1506, 1.442695
      %v1733 = vpow.pop %v1732
      %v1734 = vmul.f32 %v1507, 1.442695
      %v1735 = vpow.pop %v1734
      %v1736 = vmul.f32 %v1508, 1.442695
      %v1737 = vpow.pop %v1736
      %v1738 = vmul.f32 %v1509, 1.442695
      %v1739 = vpow.pop %v1738
      %v1740 = vmul.f32 %v1510, 1.442695
      %v1741 = vpow.pop %v1740
      %v1742 = vmul.f32 %v1511, 1.442695
      %v1743 = vpow.pop %v1742
      %v1744 = vmul.f32 %v1512, 1.442695
      %v1745 = vpow.pop %v1744
      %v1746 = vmul.f32 %v1513, 1.442695
      %v1747 = vpow.pop %v1746
      %v1748 = vmul.f32 %v1514, 1.442695
      %v1749 = vpow.pop %v1748
      %v1750 = vmul.f32 %v1515, 1.442695
      %v1751 = vpow.pop %v1750
      %v1752 = vmul.f32 %v1516, 1.442695
      %v1753 = vpow.pop %v1752
      %v1754 = vmul.f32 %v1517, 1.442695
      %v1755 = vpow.pop %v1754
      %v1756 = vmul.f32 %v1518, 1.442695
      %v1757 = vpow.pop %v1756
      %v1758 = vmul.f32 %v1519, 1.442695
      %v1759 = vpow.pop %v1758
      %v1760 = vmul.f32 %v1520, 1.442695
      %v1761 = vpow.pop %v1760
      %v1762 = vmul.f32 %v1521, 1.442695
      %v1763 = vpow.pop %v1762
      %v1764 = vmul.f32 %v1522, 1.442695
      %v1765 = vpow.pop %v1764
      %v1766 = vmul.f32 %v1523, 1.442695
      %v1767 = vpow.pop %v1766
      %v1768 = vmul.f32 %v1524, 1.442695
      %v1769 = vpow.pop %v1768
      %v1770 = vmul.f32 %v1525, 1.442695
      %v1771 = vpow.pop %v1770
      %v1772 = vmul.f32 %v1526, 1.442695
      %v1773 = vpow.pop %v1772
      %v1774 = vmul.f32 %v1527, 1.442695
      %v1775 = vpow.pop %v1774
      %v1776 = vmul.f32 %v1528, 1.442695
      %v1777 = vpow.pop %v1776
      %v1778 = vmul.f32 %v1529, 1.442695
      %v1779 = vpow.pop %v1778
      %v1780 = vmul.f32 %v1530, 1.442695
      %v1781 = vpow.pop %v1780
      %v1782 = vmul.f32 %v1531, 1.442695
      %v1783 = vpow.pop %v1782
      %v1784 = vmul.f32 %v1532, 1.442695
      %v1785 = vpow.pop %v1784
      %v1786 = vmul.f32 %v1533, 1.442695
      %v1787 = vpow.pop %v1786
      %v1788 = vmul.f32 %v1534, 1.442695
      %v1789 = vpow.pop %v1788
      %v1790 = vmul.f32 %v1535, 1.442695
      %v1791 = vpow.pop %v1790
      %v1792 = vadd.f32 %v1537, 1.0
      %v1793 = vadd.f32 %v1539, 1.0
      %v1794 = vadd.f32 %v1541, 1.0
      %v1795 = vadd.f32 %v1543, 1.0
      %v1796 = vadd.f32 %v1545, 1.0
      %v1797 = vadd.f32 %v1547, 1.0
      %v1798 = vadd.f32 %v1549, 1.0
      %v1799 = vadd.f32 %v1551, 1.0
      %v1800 = vadd.f32 %v1553, 1.0
      %v1801 = vadd.f32 %v1555, 1.0
      %v1802 = vadd.f32 %v1557, 1.0
      %v1803 = vadd.f32 %v1559, 1.0
      %v1804 = vadd.f32 %v1561, 1.0
      %v1805 = vadd.f32 %v1563, 1.0
      %v1806 = vadd.f32 %v1565, 1.0
      %v1807 = vadd.f32 %v1567, 1.0
      %v1808 = vadd.f32 %v1569, 1.0
      %v1809 = vadd.f32 %v1571, 1.0
      %v1810 = vadd.f32 %v1573, 1.0
      %v1811 = vadd.f32 %v1575, 1.0
      %v1812 = vadd.f32 %v1577, 1.0
      %v1813 = vadd.f32 %v1579, 1.0
      %v1814 = vadd.f32 %v1581, 1.0
      %v1815 = vadd.f32 %v1583, 1.0
      %v1816 = vadd.f32 %v1585, 1.0
      %v1817 = vadd.f32 %v1587, 1.0
      %v1818 = vadd.f32 %v1589, 1.0
      %v1819 = vadd.f32 %v1591, 1.0
      %v1820 = vadd.f32 %v1593, 1.0
      %v1821 = vadd.f32 %v1595, 1.0
      %v1822 = vadd.f32 %v1597, 1.0
      %v1823 = vadd.f32 %v1599, 1.0
      %v1824 = vadd.f32 %v1601, 1.0
      %v1825 = vadd.f32 %v1603, 1.0
      %v1826 = vadd.f32 %v1605, 1.0
      %v1827 = vadd.f32 %v1607, 1.0
      %v1828 = vadd.f32 %v1609, 1.0
      %v1829 = vadd.f32 %v1611, 1.0
      %v1830 = vadd.f32 %v1613, 1.0
      %v1831 = vadd.f32 %v1615, 1.0
      %v1832 = vadd.f32 %v1617, 1.0
      %v1833 = vadd.f32 %v1619, 1.0
      %v1834 = vadd.f32 %v1621, 1.0
      %v1835 = vadd.f32 %v1623, 1.0
      %v1836 = vadd.f32 %v1625, 1.0
      %v1837 = vadd.f32 %v1627, 1.0
      %v1838 = vadd.f32 %v1629, 1.0
      %v1839 = vadd.f32 %v1631, 1.0
      %v1840 = vadd.f32 %v1633, 1.0
      %v1841 = vadd.f32 %v1635, 1.0
      %v1842 = vadd.f32 %v1637, 1.0
      %v1843 = vadd.f32 %v1639, 1.0
      %v1844 = vadd.f32 %v1641, 1.0
      %v1845 = vadd.f32 %v1643, 1.0
      %v1846 = vadd.f32 %v1645, 1.0
      %v1847 = vadd.f32 %v1647, 1.0
      %v1848 = vadd.f32 %v1649, 1.0
      %v1849 = vadd.f32 %v1651, 1.0
      %v1850 = vadd.f32 %v1653, 1.0
      %v1851 = vadd.f32 %v1655, 1.0
      %v1852 = vadd.f32 %v1657, 1.0
      %v1853 = vadd.f32 %v1659, 1.0
      %v1854 = vadd.f32 %v1661, 1.0
      %v1855 = vadd.f32 %v1663, 1.0
      %v1856 = vadd.f32 %v1665, 1.0
      %v1857 = vadd.f32 %v1667, 1.0
      %v1858 = vadd.f32 %v1669, 1.0
      %v1859 = vadd.f32 %v1671, 1.0
      %v1860 = vadd.f32 %v1673, 1.0
      %v1861 = vadd.f32 %v1675, 1.0
      %v1862 = vadd.f32 %v1677, 1.0
      %v1863 = vadd.f32 %v1679, 1.0
      %v1864 = vadd.f32 %v1681, 1.0
      %v1865 = vadd.f32 %v1683, 1.0
      %v1866 = vadd.f32 %v1685, 1.0
      %v1867 = vadd.f32 %v1687, 1.0
      %v1868 = vadd.f32 %v1689, 1.0
      %v1869 = vadd.f32 %v1691, 1.0
      %v1870 = vadd.f32 %v1693, 1.0
      %v1871 = vadd.f32 %v1695, 1.0
      %v1872 = vadd.f32 %v1697, 1.0
      %v1873 = vadd.f32 %v1699, 1.0
      %v1874 = vadd.f32 %v1701, 1.0
      %v1875 = vadd.f32 %v1703, 1.0
      %v1876 = vadd.f32 %v1705, 1.0
      %v1877 = vadd.f32 %v1707, 1.0
      %v1878 = vadd.f32 %v1709, 1.0
      %v1879 = vadd.f32 %v1711, 1.0
      %v1880 = vadd.f32 %v1713, 1.0
      %v1881 = vadd.f32 %v1715, 1.0
      %v1882 = vadd.f32 %v1717, 1.0
      %v1883 = vadd.f32 %v1719, 1.0
      %v1884 = vadd.f32 %v1721, 1.0
      %v1885 = vadd.f32 %v1723, 1.0
      %v1886 = vadd.f32 %v1725, 1.0
      %v1887 = vadd.f32 %v1727, 1.0
      %v1888 = vadd.f32 %v1729, 1.0
      %v1889 = vadd.f32 %v1731, 1.0
      %v1890 = vadd.f32 %v1733, 1.0
      %v1891 = vadd.f32 %v1735, 1.0
      %v1892 = vadd.f32 %v1737, 1.0
      %v1893 = vadd.f32 %v1739, 1.0
      %v1894 = vadd.f32 %v1741, 1.0
      %v1895 = vadd.f32 %v1743, 1.0
      %v1896 = vadd.f32 %v1745, 1.0
      %v1897 = vadd.f32 %v1747, 1.0
      %v1898 = vadd.f32 %v1749, 1.0
      %v1899 = vadd.f32 %v1751, 1.0
      %v1900 = vadd.f32 %v1753, 1.0
      %v1901 = vadd.f32 %v1755, 1.0
      %v1902 = vadd.f32 %v1757, 1.0
      %v1903 = vadd.f32 %v1759, 1.0
      %v1904 = vadd.f32 %v1761, 1.0
      %v1905 = vadd.f32 %v1763, 1.0
      %v1906 = vadd.f32 %v1765, 1.0
      %v1907 = vadd.f32 %v1767, 1.0
      %v1908 = vadd.f32 %v1769, 1.0
      %v1909 = vadd.f32 %v1771, 1.0
      %v1910 = vadd.f32 %v1773, 1.0
      %v1911 = vadd.f32 %v1775, 1.0
      %v1912 = vadd.f32 %v1777, 1.0
      %v1913 = vadd.f32 %v1779, 1.0
      %v1914 = vadd.f32 %v1781, 1.0
      %v1915 = vadd.f32 %v1783, 1.0
      %v1916 = vadd.f32 %v1785, 1.0
      %v1917 = vadd.f32 %v1787, 1.0
      %v1918 = vadd.f32 %v1789, 1.0
      %v1919 = vadd.f32 %v1791, 1.0
      %v1920 = vrcp.pop %v1792
      %v1921 = vmul.f32 1.0, %v1920
      %v1922 = vrcp.pop %v1793
      %v1923 = vmul.f32 1.0, %v1922
      %v1924 = vrcp.pop %v1794
      %v1925 = vmul.f32 1.0, %v1924
      %v1926 = vrcp.pop %v1795
      %v1927 = vmul.f32 1.0, %v1926
      %v1928 = vrcp.pop %v1796
      %v1929 = vmul.f32 1.0, %v1928
      %v1930 = vrcp.pop %v1797
      %v1931 = vmul.f32 1.0, %v1930
      %v1932 = vrcp.pop %v1798
      %v1933 = vmul.f32 1.0, %v1932
      %v1934 = vrcp.pop %v1799
      %v1935 = vmul.f32 1.0, %v1934
      %v1936 = vrcp.pop %v1800
      %v1937 = vmul.f32 1.0, %v1936
      %v1938 = vrcp.pop %v1801
      %v1939 = vmul.f32 1.0, %v1938
      %v1940 = vrcp.pop %v1802
      %v1941 = vmul.f32 1.0, %v1940
      %v1942 = vrcp.pop %v1803
      %v1943 = vmul.f32 1.0, %v1942
      %v1944 = vrcp.pop %v1804
      %v1945 = vmul.f32 1.0, %v1944
      %v1946 = vrcp.pop %v1805
      %v1947 = vmul.f32 1.0, %v1946
      %v1948 = vrcp.pop %v1806
      %v1949 = vmul.f32 1.0, %v1948
      %v1950 = vrcp.pop %v1807
      %v1951 = vmul.f32 1.0, %v1950
      %v1952 = vrcp.pop %v1808
      %v1953 = vmul.f32 1.0, %v1952
      %v1954 = vrcp.pop %v1809
      %v1955 = vmul.f32 1.0, %v1954
      %v1956 = vrcp.pop %v1810
      %v1957 = vmul.f32 1.0, %v1956
      %v1958 = vrcp.pop %v1811
      %v1959 = vmul.f32 1.0, %v1958
      %v1960 = vrcp.pop %v1812
      %v1961 = vmul.f32 1.0, %v1960
      %v1962 = vrcp.pop %v1813
      %v1963 = vmul.f32 1.0, %v1962
      %v1964 = vrcp.pop %v1814
      %v1965 = vmul.f32 1.0, %v1964
      %v1966 = vrcp.pop %v1815
      %v1967 = vmul.f32 1.0, %v1966
      %v1968 = vrcp.pop %v1816
      %v1969 = vmul.f32 1.0, %v1968
      %v1970 = vrcp.pop %v1817
      %v1971 = vmul.f32 1.0, %v1970
      %v1972 = vrcp.pop %v1818
      %v1973 = vmul.f32 1.0, %v1972
      %v1974 = vrcp.pop %v1819
      %v1975 = vmul.f32 1.0, %v1974
      %v1976 = vrcp.pop %v1820
      %v1977 = vmul.f32 1.0, %v1976
      %v1978 = vrcp.pop %v1821
      %v1979 = vmul.f32 1.0, %v1978
      %v1980 = vrcp.pop %v1822
      %v1981 = vmul.f32 1.0, %v1980
      %v1982 = vrcp.pop %v1823
      %v1983 = vmul.f32 1.0, %v1982
      %v1984 = vrcp.pop %v1824
      %v1985 = vmul.f32 1.0, %v1984
      %v1986 = vrcp.pop %v1825
      %v1987 = vmul.f32 1.0, %v1986
      %v1988 = vrcp.pop %v1826
      %v1989 = vmul.f32 1.0, %v1988
      %v1990 = vrcp.pop %v1827
      %v1991 = vmul.f32 1.0, %v1990
      %v1992 = vrcp.pop %v1828
      %v1993 = vmul.f32 1.0, %v1992
      %v1994 = vrcp.pop %v1829
      %v1995 = vmul.f32 1.0, %v1994
      %v1996 = vrcp.pop %v1830
      %v1997 = vmul.f32 1.0, %v1996
      %v1998 = vrcp.pop %v1831
      %v1999 = vmul.f32 1.0, %v1998
      %v2000 = vrcp.pop %v1832
      %v2001 = vmul.f32 1.0, %v2000
      %v2002 = vrcp.pop %v1833
      %v2003 = vmul.f32 1.0, %v2002
      %v2004 = vrcp.pop %v1834
      %v2005 = vmul.f32 1.0, %v2004
      %v2006 = vrcp.pop %v1835
      %v2007 = vmul.f32 1.0, %v2006
      %v2008 = vrcp.pop %v1836
      %v2009 = vmul.f32 1.0, %v2008
      %v2010 = vrcp.pop %v1837
      %v2011 = vmul.f32 1.0, %v2010
      %v2012 = vrcp.pop %v1838
      %v2013 = vmul.f32 1.0, %v2012
      %v2014 = vrcp.pop %v1839
      %v2015 = vmul.f32 1.0, %v2014
      %v2016 = vrcp.pop %v1840
      %v2017 = vmul.f32 1.0, %v2016
      %v2018 = vrcp.pop %v1841
      %v2019 = vmul.f32 1.0, %v2018
      %v2020 = vrcp.pop %v1842
      %v2021 = vmul.f32 1.0, %v2020
      %v2022 = vrcp.pop %v1843
      %v2023 = vmul.f32 1.0, %v2022
      %v2024 = vrcp.pop %v1844
      %v2025 = vmul.f32 1.0, %v2024
      %v2026 = vrcp.pop %v1845
      %v2027 = vmul.f32 1.0, %v2026
      %v2028 = vrcp.pop %v1846
      %v2029 = vmul.f32 1.0, %v2028
      %v2030 = vrcp.pop %v1847
      %v2031 = vmul.f32 1.0, %v2030
      %v2032 = vrcp.pop %v1848
      %v2033 = vmul.f32 1.0, %v2032
      %v2034 = vrcp.pop %v1849
      %v2035 = vmul.f32 1.0, %v2034
      %v2036 = vrcp.pop %v1850
      %v2037 = vmul.f32 1.0, %v2036
      %v2038 = vrcp.pop %v1851
      %v2039 = vmul.f32 1.0, %v2038
      %v2040 = vrcp.pop %v1852
      %v2041 = vmul.f32 1.0, %v2040
      %v2042 = vrcp.pop %v1853
      %v2043 = vmul.f32 1.0, %v2042
      %v2044 = vrcp.pop %v1854
      %v2045 = vmul.f32 1.0, %v2044
      %v2046 = vrcp.pop %v1855
      %v2047 = vmul.f32 1.0, %v2046
      %v2048 = vrcp.pop %v1856
      %v2049 = vmul.f32 1.0, %v2048
      %v2050 = vrcp.pop %v1857
      %v2051 = vmul.f32 1.0, %v2050
      %v2052 = vrcp.pop %v1858
      %v2053 = vmul.f32 1.0, %v2052
      %v2054 = vrcp.pop %v1859
      %v2055 = vmul.f32 1.0, %v2054
      %v2056 = vrcp.pop %v1860
      %v2057 = vmul.f32 1.0, %v2056
      %v2058 = vrcp.pop %v1861
      %v2059 = vmul.f32 1.0, %v2058
      %v2060 = vrcp.pop %v1862
      %v2061 = vmul.f32 1.0, %v2060
      %v2062 = vrcp.pop %v1863
      %v2063 = vmul.f32 1.0, %v2062
      %v2064 = vrcp.pop %v1864
      %v2065 = vmul.f32 1.0, %v2064
      %v2066 = vrcp.pop %v1865
      %v2067 = vmul.f32 1.0, %v2066
      %v2068 = vrcp.pop %v1866
      %v2069 = vmul.f32 1.0, %v2068
      %v2070 = vrcp.pop %v1867
      %v2071 = vmul.f32 1.0, %v2070
      %v2072 = vrcp.pop %v1868
      %v2073 = vmul.f32 1.0, %v2072
      %v2074 = vrcp.pop %v1869
      %v2075 = vmul.f32 1.0, %v2074
      %v2076 = vrcp.pop %v1870
      %v2077 = vmul.f32 1.0, %v2076
      %v2078 = vrcp.pop %v1871
      %v2079 = vmul.f32 1.0, %v2078
      %v2080 = vrcp.pop %v1872
      %v2081 = vmul.f32 1.0, %v2080
      %v2082 = vrcp.pop %v1873
      %v2083 = vmul.f32 1.0, %v2082
      %v2084 = vrcp.pop %v1874
      %v2085 = vmul.f32 1.0, %v2084
      %v2086 = vrcp.pop %v1875
      %v2087 = vmul.f32 1.0, %v2086
      %v2088 = vrcp.pop %v1876
      %v2089 = vmul.f32 1.0, %v2088
      %v2090 = vrcp.pop %v1877
      %v2091 = vmul.f32 1.0, %v2090
      %v2092 = vrcp.pop %v1878
      %v2093 = vmul.f32 1.0, %v2092
      %v2094 = vrcp.pop %v1879
      %v2095 = vmul.f32 1.0, %v2094
      %v2096 = vrcp.pop %v1880
      %v2097 = vmul.f32 1.0, %v2096
      %v2098 = vrcp.pop %v1881
      %v2099 = vmul.f32 1.0, %v2098
      %v2100 = vrcp.pop %v1882
      %v2101 = vmul.f32 1.0, %v2100
      %v2102 = vrcp.pop %v1883
      %v2103 = vmul.f32 1.0, %v2102
      %v2104 = vrcp.pop %v1884
      %v2105 = vmul.f32 1.0, %v2104
      %v2106 = vrcp.pop %v1885
      %v2107 = vmul.f32 1.0, %v2106
      %v2108 = vrcp.pop %v1886
      %v2109 = vmul.f32 1.0, %v2108
      %v2110 = vrcp.pop %v1887
      %v2111 = vmul.f32 1.0, %v2110
      %v2112 = vrcp.pop %v1888
      %v2113 = vmul.f32 1.0, %v2112
      %v2114 = vrcp.pop %v1889
      %v2115 = vmul.f32 1.0, %v2114
      %v2116 = vrcp.pop %v1890
      %v2117 = vmul.f32 1.0, %v2116
      %v2118 = vrcp.pop %v1891
      %v2119 = vmul.f32 1.0, %v2118
      %v2120 = vrcp.pop %v1892
      %v2121 = vmul.f32 1.0, %v2120
      %v2122 = vrcp.pop %v1893
      %v2123 = vmul.f32 1.0, %v2122
      %v2124 = vrcp.pop %v1894
      %v2125 = vmul.f32 1.0, %v2124
      %v2126 = vrcp.pop %v1895
      %v2127 = vmul.f32 1.0, %v2126
      %v2128 = vrcp.pop %v1896
      %v2129 = vmul.f32 1.0, %v2128
      %v2130 = vrcp.pop %v1897
      %v2131 = vmul.f32 1.0, %v2130
      %v2132 = vrcp.pop %v1898
      %v2133 = vmul.f32 1.0, %v2132
      %v2134 = vrcp.pop %v1899
      %v2135 = vmul.f32 1.0, %v2134
      %v2136 = vrcp.pop %v1900
      %v2137 = vmul.f32 1.0, %v2136
      %v2138 = vrcp.pop %v1901
      %v2139 = vmul.f32 1.0, %v2138
      %v2140 = vrcp.pop %v1902
      %v2141 = vmul.f32 1.0, %v2140
      %v2142 = vrcp.pop %v1903
      %v2143 = vmul.f32 1.0, %v2142
      %v2144 = vrcp.pop %v1904
      %v2145 = vmul.f32 1.0, %v2144
      %v2146 = vrcp.pop %v1905
      %v2147 = vmul.f32 1.0, %v2146
      %v2148 = vrcp.pop %v1906
      %v2149 = vmul.f32 1.0, %v2148
      %v2150 = vrcp.pop %v1907
      %v2151 = vmul.f32 1.0, %v2150
      %v2152 = vrcp.pop %v1908
      %v2153 = vmul.f32 1.0, %v2152
      %v2154 = vrcp.pop %v1909
      %v2155 = vmul.f32 1.0, %v2154
      %v2156 = vrcp.pop %v1910
      %v2157 = vmul.f32 1.0, %v2156
      %v2158 = vrcp.pop %v1911
      %v2159 = vmul.f32 1.0, %v2158
      %v2160 = vrcp.pop %v1912
      %v2161 = vmul.f32 1.0, %v2160
      %v2162 = vrcp.pop %v1913
      %v2163 = vmul.f32 1.0, %v2162
      %v2164 = vrcp.pop %v1914
      %v2165 = vmul.f32 1.0, %v2164
      %v2166 = vrcp.pop %v1915
      %v2167 = vmul.f32 1.0, %v2166
      %v2168 = vrcp.pop %v1916
      %v2169 = vmul.f32 1.0, %v2168
      %v2170 = vrcp.pop %v1917
      %v2171 = vmul.f32 1.0, %v2170
      %v2172 = vrcp.pop %v1918
      %v2173 = vmul.f32 1.0, %v2172
      %v2174 = vrcp.pop %v1919
      %v2175 = vmul.f32 1.0, %v2174
      %vm2176 = vcmask 97280
      %2177 = vst.msk [vmem:[%s172] sm:$0xff] %vm2176, %v1921
      %2178 = vst.msk [vmem:[%s172 + $0x8] sm:$0xff] %vm2176, %v1923
      %2179 = vst.msk [vmem:[%s172 + $0x10] sm:$0xff] %vm2176, %v1925
      %2180 = vst.msk [vmem:[%s172 + $0x18] sm:$0xff] %vm2176, %v1927
      %2181 = vst.msk [vmem:[%s172 + $0x20] sm:$0xff] %vm2176, %v1929
      %2182 = vst.msk [vmem:[%s172 + $0x28] sm:$0xff] %vm2176, %v1931
      %2183 = vst.msk [vmem:[%s172 + $0x30] sm:$0xff] %vm2176, %v1933
      %2184 = vst.msk [vmem:[%s172 + $0x38] sm:$0xff] %vm2176, %v1935
      %2185 = vst.msk [vmem:[%s172 + $0x40] sm:$0xff] %vm2176, %v1937
      %2186 = vst.msk [vmem:[%s172 + $0x48] sm:$0xff] %vm2176, %v1939
      %2187 = vst.msk [vmem:[%s172 + $0x50] sm:$0xff] %vm2176, %v1941
      %2188 = vst.msk [vmem:[%s172 + $0x58] sm:$0xff] %vm2176, %v1943
      %2189 = vst.msk [vmem:[%s172 + $0x60] sm:$0xff] %vm2176, %v1945
      %2190 = vst.msk [vmem:[%s172 + $0x68] sm:$0xff] %vm2176, %v1947
      %2191 = vst.msk [vmem:[%s172 + $0x70] sm:$0xff] %vm2176, %v1949
      %2192 = vst.msk [vmem:[%s172 + $0x78] sm:$0xff] %vm2176, %v1951
      %2193 = vst.msk [vmem:[%s172 + $0x80] sm:$0xff] %vm2176, %v1953
      %2194 = vst.msk [vmem:[%s172 + $0x88] sm:$0xff] %vm2176, %v1955
      %2195 = vst.msk [vmem:[%s172 + $0x90] sm:$0xff] %vm2176, %v1957
      %2196 = vst.msk [vmem:[%s172 + $0x98] sm:$0xff] %vm2176, %v1959
      %2197 = vst.msk [vmem:[%s172 + $0xa0] sm:$0xff] %vm2176, %v1961
      %2198 = vst.msk [vmem:[%s172 + $0xa8] sm:$0xff] %vm2176, %v1963
      %2199 = vst.msk [vmem:[%s172 + $0xb0] sm:$0xff] %vm2176, %v1965
      %2200 = vst.msk [vmem:[%s172 + $0xb8] sm:$0xff] %vm2176, %v1967
      %2201 = vst.msk [vmem:[%s172 + $0xc0] sm:$0xff] %vm2176, %v1969
      %2202 = vst.msk [vmem:[%s172 + $0xc8] sm:$0xff] %vm2176, %v1971
      %2203 = vst.msk [vmem:[%s172 + $0xd0] sm:$0xff] %vm2176, %v1973
      %2204 = vst.msk [vmem:[%s172 + $0xd8] sm:$0xff] %vm2176, %v1975
      %2205 = vst.msk [vmem:[%s172 + $0xe0] sm:$0xff] %vm2176, %v1977
      %2206 = vst.msk [vmem:[%s172 + $0xe8] sm:$0xff] %vm2176, %v1979
      %2207 = vst.msk [vmem:[%s172 + $0xf0] sm:$0xff] %vm2176, %v1981
      %2208 = vst.msk [vmem:[%s172 + $0xf8] sm:$0xff] %vm2176, %v1983
      %2209 = vst.msk [vmem:[%s172 + $0x100] sm:$0xff] %vm2176, %v1985
      %2210 = vst.msk [vmem:[%s172 + $0x108] sm:$0xff] %vm2176, %v1987
      %2211 = vst.msk [vmem:[%s172 + $0x110] sm:$0xff] %vm2176, %v1989
      %2212 = vst.msk [vmem:[%s172 + $0x118] sm:$0xff] %vm2176, %v1991
      %2213 = vst.msk [vmem:[%s172 + $0x120] sm:$0xff] %vm2176, %v1993
      %2214 = vst.msk [vmem:[%s172 + $0x128] sm:$0xff] %vm2176, %v1995
      %2215 = vst.msk [vmem:[%s172 + $0x130] sm:$0xff] %vm2176, %v1997
      %2216 = vst.msk [vmem:[%s172 + $0x138] sm:$0xff] %vm2176, %v1999
      %2217 = vst.msk [vmem:[%s172 + $0x140] sm:$0xff] %vm2176, %v2001
      %2218 = vst.msk [vmem:[%s172 + $0x148] sm:$0xff] %vm2176, %v2003
      %2219 = vst.msk [vmem:[%s172 + $0x150] sm:$0xff] %vm2176, %v2005
      %2220 = vst.msk [vmem:[%s172 + $0x158] sm:$0xff] %vm2176, %v2007
      %2221 = vst.msk [vmem:[%s172 + $0x160] sm:$0xff] %vm2176, %v2009
      %2222 = vst.msk [vmem:[%s172 + $0x168] sm:$0xff] %vm2176, %v2011
      %2223 = vst.msk [vmem:[%s172 + $0x170] sm:$0xff] %vm2176, %v2013
      %2224 = vst.msk [vmem:[%s172 + $0x178] sm:$0xff] %vm2176, %v2015
      %2225 = vst.msk [vmem:[%s172 + $0x180] sm:$0xff] %vm2176, %v2017
      %2226 = vst.msk [vmem:[%s172 + $0x188] sm:$0xff] %vm2176, %v2019
      %2227 = vst.msk [vmem:[%s172 + $0x190] sm:$0xff] %vm2176, %v2021
      %2228 = vst.msk [vmem:[%s172 + $0x198] sm:$0xff] %vm2176, %v2023
      %2229 = vst.msk [vmem:[%s172 + $0x1a0] sm:$0xff] %vm2176, %v2025
      %2230 = vst.msk [vmem:[%s172 + $0x1a8] sm:$0xff] %vm2176, %v2027
      %2231 = vst.msk [vmem:[%s172 + $0x1b0] sm:$0xff] %vm2176, %v2029
      %2232 = vst.msk [vmem:[%s172 + $0x1b8] sm:$0xff] %vm2176, %v2031
      %2233 = vst.msk [vmem:[%s172 + $0x1c0] sm:$0xff] %vm2176, %v2033
      %2234 = vst.msk [vmem:[%s172 + $0x1c8] sm:$0xff] %vm2176, %v2035
      %2235 = vst.msk [vmem:[%s172 + $0x1d0] sm:$0xff] %vm2176, %v2037
      %2236 = vst.msk [vmem:[%s172 + $0x1d8] sm:$0xff] %vm2176, %v2039
      %2237 = vst.msk [vmem:[%s172 + $0x1e0] sm:$0xff] %vm2176, %v2041
      %2238 = vst.msk [vmem:[%s172 + $0x1e8] sm:$0xff] %vm2176, %v2043
      %2239 = vst.msk [vmem:[%s172 + $0x1f0] sm:$0xff] %vm2176, %v2045
      %2240 = vst.msk [vmem:[%s172 + $0x1f8] sm:$0xff] %vm2176, %v2047
      %2241 = vst.msk [vmem:[%s172 + $0x200] sm:$0xff] %vm2176, %v2049
      %2242 = vst.msk [vmem:[%s172 + $0x208] sm:$0xff] %vm2176, %v2051
      %2243 = vst.msk [vmem:[%s172 + $0x210] sm:$0xff] %vm2176, %v2053
      %2244 = vst.msk [vmem:[%s172 + $0x218] sm:$0xff] %vm2176, %v2055
      %2245 = vst.msk [vmem:[%s172 + $0x220] sm:$0xff] %vm2176, %v2057
      %2246 = vst.msk [vmem:[%s172 + $0x228] sm:$0xff] %vm2176, %v2059
      %2247 = vst.msk [vmem:[%s172 + $0x230] sm:$0xff] %vm2176, %v2061
      %2248 = vst.msk [vmem:[%s172 + $0x238] sm:$0xff] %vm2176, %v2063
      %2249 = vst.msk [vmem:[%s172 + $0x240] sm:$0xff] %vm2176, %v2065
      %2250 = vst.msk [vmem:[%s172 + $0x248] sm:$0xff] %vm2176, %v2067
      %2251 = vst.msk [vmem:[%s172 + $0x250] sm:$0xff] %vm2176, %v2069
      %2252 = vst.msk [vmem:[%s172 + $0x258] sm:$0xff] %vm2176, %v2071
      %2253 = vst.msk [vmem:[%s172 + $0x260] sm:$0xff] %vm2176, %v2073
      %2254 = vst.msk [vmem:[%s172 + $0x268] sm:$0xff] %vm2176, %v2075
      %2255 = vst.msk [vmem:[%s172 + $0x270] sm:$0xff] %vm2176, %v2077
      %2256 = vst.msk [vmem:[%s172 + $0x278] sm:$0xff] %vm2176, %v2079
      %2257 = vst.msk [vmem:[%s172 + $0x280] sm:$0xff] %vm2176, %v2081
      %2258 = vst.msk [vmem:[%s172 + $0x288] sm:$0xff] %vm2176, %v2083
      %2259 = vst.msk [vmem:[%s172 + $0x290] sm:$0xff] %vm2176, %v2085
      %2260 = vst.msk [vmem:[%s172 + $0x298] sm:$0xff] %vm2176, %v2087
      %2261 = vst.msk [vmem:[%s172 + $0x2a0] sm:$0xff] %vm2176, %v2089
      %2262 = vst.msk [vmem:[%s172 + $0x2a8] sm:$0xff] %vm2176, %v2091
      %2263 = vst.msk [vmem:[%s172 + $0x2b0] sm:$0xff] %vm2176, %v2093
      %2264 = vst.msk [vmem:[%s172 + $0x2b8] sm:$0xff] %vm2176, %v2095
      %2265 = vst.msk [vmem:[%s172 + $0x2c0] sm:$0xff] %vm2176, %v2097
      %2266 = vst.msk [vmem:[%s172 + $0x2c8] sm:$0xff] %vm2176, %v2099
      %2267 = vst.msk [vmem:[%s172 + $0x2d0] sm:$0xff] %vm2176, %v2101
      %2268 = vst.msk [vmem:[%s172 + $0x2d8] sm:$0xff] %vm2176, %v2103
      %2269 = vst.msk [vmem:[%s172 + $0x2e0] sm:$0xff] %vm2176, %v2105
      %2270 = vst.msk [vmem:[%s172 + $0x2e8] sm:$0xff] %vm2176, %v2107
      %2271 = vst.msk [vmem:[%s172 + $0x2f0] sm:$0xff] %vm2176, %v2109
      %2272 = vst.msk [vmem:[%s172 + $0x2f8] sm:$0xff] %vm2176, %v2111
      %2273 = vst.msk [vmem:[%s172 + $0x300] sm:$0xff] %vm2176, %v2113
      %2274 = vst.msk [vmem:[%s172 + $0x308] sm:$0xff] %vm2176, %v2115
      %2275 = vst.msk [vmem:[%s172 + $0x310] sm:$0xff] %vm2176, %v2117
      %2276 = vst.msk [vmem:[%s172 + $0x318] sm:$0xff] %vm2176, %v2119
      %2277 = vst.msk [vmem:[%s172 + $0x320] sm:$0xff] %vm2176, %v2121
      %2278 = vst.msk [vmem:[%s172 + $0x328] sm:$0xff] %vm2176, %v2123
      %2279 = vst.msk [vmem:[%s172 + $0x330] sm:$0xff] %vm2176, %v2125
      %2280 = vst.msk [vmem:[%s172 + $0x338] sm:$0xff] %vm2176, %v2127
      %2281 = vst.msk [vmem:[%s172 + $0x340] sm:$0xff] %vm2176, %v2129
      %2282 = vst.msk [vmem:[%s172 + $0x348] sm:$0xff] %vm2176, %v2131
      %2283 = vst.msk [vmem:[%s172 + $0x350] sm:$0xff] %vm2176, %v2133
      %2284 = vst.msk [vmem:[%s172 + $0x358] sm:$0xff] %vm2176, %v2135
      %2285 = vst.msk [vmem:[%s172 + $0x360] sm:$0xff] %vm2176, %v2137
      %2286 = vst.msk [vmem:[%s172 + $0x368] sm:$0xff] %vm2176, %v2139
      %2287 = vst.msk [vmem:[%s172 + $0x370] sm:$0xff] %vm2176, %v2141
      %2288 = vst.msk [vmem:[%s172 + $0x378] sm:$0xff] %vm2176, %v2143
      %2289 = vst.msk [vmem:[%s172 + $0x380] sm:$0xff] %vm2176, %v2145
      %2290 = vst.msk [vmem:[%s172 + $0x388] sm:$0xff] %vm2176, %v2147
      %2291 = vst.msk [vmem:[%s172 + $0x390] sm:$0xff] %vm2176, %v2149
      %2292 = vst.msk [vmem:[%s172 + $0x398] sm:$0xff] %vm2176, %v2151
      %2293 = vst.msk [vmem:[%s172 + $0x3a0] sm:$0xff] %vm2176, %v2153
      %2294 = vst.msk [vmem:[%s172 + $0x3a8] sm:$0xff] %vm2176, %v2155
      %2295 = vst.msk [vmem:[%s172 + $0x3b0] sm:$0xff] %vm2176, %v2157
      %2296 = vst.msk [vmem:[%s172 + $0x3b8] sm:$0xff] %vm2176, %v2159
      %2297 = vst.msk [vmem:[%s172 + $0x3c0] sm:$0xff] %vm2176, %v2161
      %2298 = vst.msk [vmem:[%s172 + $0x3c8] sm:$0xff] %vm2176, %v2163
      %2299 = vst.msk [vmem:[%s172 + $0x3d0] sm:$0xff] %vm2176, %v2165
      %2300 = vst.msk [vmem:[%s172 + $0x3d8] sm:$0xff] %vm2176, %v2167
      %2301 = vst.msk [vmem:[%s172 + $0x3e0] sm:$0xff] %vm2176, %v2169
      %2302 = vst.msk [vmem:[%s172 + $0x3e8] sm:$0xff] %vm2176, %v2171
      %2303 = vst.msk [vmem:[%s172 + $0x3f0] sm:$0xff] %vm2176, %v2173
      %2304 = vst.msk [vmem:[%s172 + $0x3f8] sm:$0xff] %vm2176, %v2175
      %s2305 = smul.u32 128, %s14
      %p2306 = scmp.lt.s32.totalorder %s2305, 255
      %s2307 = scalar_select %p2306, %s2305, 255
      %s2308 = smul.addr %s2307, 8
      %s2309 = scalar_lea.vmem %s3, %s2308
      // Predicated region
      $region33: #{vae_forward.19} parent=31 // pred_check
        %p2310 = pneg %p100
      $region34: #{vae_forward.19} parent=31 // pred_check_branch
        %2312 = sbr.rel (%p2310) target = $region36
      $region35: #{vae_forward.19} parent=31 // pred_region
        %s2313 = smul.u32 128, %s14
      $region36: #{vae_forward.19} parent=31 // pred_fallthru
        _
    $region32: #{vae_forward.19} parent=5 // pred_fallthru
      _
    %p2314 = scmp.le.s32.totalorder 2, %s9
    // Predicated region
    $region37: #{vae_forward.19} parent=5 // pred_check
      %p2315 = pneg %p2314
    $region38: #{vae_forward.19} parent=5 // pred_check_branch
      %2317 = sbr.rel (%p2315) target = $region40
    $region39: #{vae_forward.19} parent=5 // pred_region
      %s2318 = ssub.s32 %s9, 2
      // Predicated region
      $region41: #{vae_forward.19} parent=39 // pred_check
        %p2319 = pneg %p106
      $region42: #{vae_forward.19} parent=39 // pred_check_branch
        %2321 = sbr.rel (%p2319) target = $region44
      $region43: #{vae_forward.19} parent=39 // pred_region
        %s2322 = smul.u32 128, %s15
        %p2323 = scmp.lt.s32.totalorder %s2322, 255
        %s2324 = scalar_select %p2323, %s2322, 255
        %s2325 = smul.addr %s2324, 8
        %s2326 = scalar_lea.vmem %s3, %s2325
      $region44: #{vae_forward.19} parent=39 // pred_fallthru
        _
    $region40: #{vae_forward.19} parent=5 // pred_fallthru
      _
  $region6: #{vae_forward.19} parent=0 // loop_footer
    %s13 = sadd.s32 1, %s9
  $region7: #{vae_forward.19} parent=0 // loop_footer_branch
    %8 = sbr.rel target = $region3
  $region8: #{vae_forward.19} parent=0 // loop_exit
    _

</llo_original>
